<compile_context>
chip_gen: v7x
topology: tpu7x:2x2x1
jax: 0.10.0
libtpu: 0.0.40
codegen_flags: <defaults>
</compile_context>

<pallas_src>
import numpy as np
import jax
import jax.numpy as jnp
from jax.experimental import pallas as pl
from jax.experimental.pallas import tpu as pltpu

_BN_EPS = 1e-5
# _KSEL[parity][tap] -> which of the 4 kernel positions contributes to that
# output parity for a k=4, s=2, p=1 transposed conv.
_KSEL = ((3, 1), (2, 0))
_VMEM_LIMIT = 32 * 1024 * 1024   # >= v5e scoped default, <= all physical VMEM
_MAX_ROW_TILE = 512


def _round_up(x, m):
    return (x + m - 1) // m * m


def _row_tiling(nhw):
    tm = min(_MAX_ROW_TILE, _round_up(nhw, 8))
    nhw_pad = _round_up(nhw, tm)
    return tm, nhw_pad


# ----------------------------------------------------------------------------
# Pallas kernels
# ----------------------------------------------------------------------------
def _make_up_kernel(relu):
    """Per-(row-tile, parity) accumulation over the 2x2 taps (innermost axes)."""

    def kernel(x_ref, w_ref, scale_ref, shift_ref, out_ref):
        dh = pl.program_id(3)
        dw = pl.program_id(4)

        # Taps (dh, dw) are the two innermost grid axes, so the same output
        # block is revisited consecutively: accumulate directly in out_ref.
        @pl.when(jnp.logical_and(dh == 0, dw == 0))
        def _():
            out_ref[...] = jnp.zeros_like(out_ref)

        # bf16 x bf16 -> f32 accumulate on the MXU.
        out_ref[...] += jnp.dot(x_ref[...], w_ref[...],
                                preferred_element_type=jnp.float32)

        @pl.when(jnp.logical_and(dh == 1, dw == 1))
        def _():
            y = out_ref[...] * scale_ref[...] + shift_ref[...]   # f32 epilogue
            if relu:
                y = jnp.maximum(y, 0.0)
            out_ref[...] = y.astype(out_ref.dtype)

    return kernel


def _head_kernel(x_ref, w_ref, bias_ref, out_ref):
    """Fused mask+edge heads: accumulate over the 9 shifts; output has
    4 parities x 2 heads packed into 8 lanes."""
    s = pl.program_id(1)

    @pl.when(s == 0)
    def _():
        out_ref[...] = jnp.zeros_like(out_ref)

    out_ref[...] += jnp.dot(x_ref[...], w_ref[...],
                            preferred_element_type=jnp.float32)

    @pl.when(s == pl.num_programs(1) - 1)
    def _():
        out_ref[...] = out_ref[...] + bias_ref[...]


# ----------------------------------------------------------------------------
# Glue: weight / input packing
# ----------------------------------------------------------------------------
def _rearrange_weight(w):
    """(Cin, Cout, 4, 4) -> (2, 2, 2, 2, Cin, Cout) indexed [ph, pw, dh, dw]."""
    rows = []
    for ph in range(2):
        prow = []
        for pw in range(2):
            hh = []
            for dh in range(2):
                ww = []
                for dw in range(2):
                    ww.append(w[:, :, _KSEL[ph][dh], _KSEL[pw][dw]])
                hh.append(jnp.stack(ww, 0))
            prow.append(jnp.stack(hh, 0))
        rows.append(jnp.stack(prow, 0))
    return jnp.stack(rows, 0)


def _pack_head_weights(w_mask, w_edge):
    """(Cin,1,4,4) x2 -> (9, Cin, 8) bf16; lane 2*(2*ph+pw)+{0:mask,1:edge}.
    Shifts a parity does not use get zero weights (wasted MACs are ~0.1% of
    total FLOPs, in exchange for a single fused matmul and 8-lane stores)."""
    cin = w_mask.shape[0]
    w2 = jnp.stack([w_mask[:, 0], w_edge[:, 0]], axis=-1)     # (Cin, 4, 4, 2)
    slabs = []
    for sh in range(3):
        for sw in range(3):
            chans = []
            for ph in range(2):
                for pw in range(2):
                    dh, dw = sh - ph, sw - pw
                    if dh in (0, 1) and dw in (0, 1):
                        chans.append(w2[:, _KSEL[ph][dh], _KSEL[pw][dw], :])
                    else:
                        chans.append(jnp.zeros((cin, 2), w2.dtype))
            slabs.append(jnp.concatenate(chans, axis=-1))      # (Cin, 8)
    return jnp.stack(slabs, axis=0).astype(jnp.bfloat16)       # (9, Cin, 8)


def _shift_stack(x_nhwc, nhw_pad):
    """(N,H,W,C) -> (9, nhw_pad, C) bf16 stack of the 3x3 shifted padded views."""
    N, H, W, C = x_nhwc.shape
    nhw = N * H * W
    xp = jnp.pad(x_nhwc.astype(jnp.bfloat16), ((0, 0), (1, 1), (1, 1), (0, 0)))
    slabs = [xp[:, sh:sh + H, sw:sw + W, :].reshape(nhw, C)
             for sh in range(3) for sw in range(3)]
    st = jnp.stack(slabs, axis=0)
    if nhw_pad > nhw:
        st = jnp.pad(st, ((0, 0), (0, nhw_pad - nhw), (0, 0)))
    return st


# ----------------------------------------------------------------------------
# One transposed-conv layer (+ fused affine / ReLU epilogue)
# ----------------------------------------------------------------------------
def conv_transpose4x4_s2p1(x_nhwc, w, scale, shift, relu):
    """ConvTranspose2d(Cin, Cout, k=4, s=2, p=1) + per-channel affine (+ReLU)."""
    N, H, W, Cin = x_nhwc.shape
    Cout = w.shape[1]
    nhw = N * H * W
    tm, nhw_pad = _row_tiling(nhw)
    n_tiles = nhw_pad // tm

    x9 = _shift_stack(x_nhwc, nhw_pad)                       # (9, nhw_pad, Cin) bf16
    w_r = _rearrange_weight(w).astype(jnp.bfloat16)          # (2,2,2,2,Cin,Cout)
    scale2 = jnp.asarray(scale, jnp.float32).reshape(1, Cout)
    shift2 = jnp.asarray(shift, jnp.float32).reshape(1, Cout)

    out = pl.pallas_call(
        _make_up_kernel(relu),
        out_shape=jax.ShapeDtypeStruct((nhw_pad, 4 * Cout), jnp.float32),
        grid_spec=pltpu.PrefetchScalarGridSpec(
            num_scalar_prefetch=0,
            grid=(n_tiles, 2, 2, 2, 2),   # (row tile, parity_h, parity_w, tap_h, tap_w)
            in_specs=[
                pl.BlockSpec((None, tm, Cin),
                             lambda i, ph, pw, dh, dw: (3 * (ph + dh) + (pw + dw), i, 0)),
                pl.BlockSpec((None, None, None, None, Cin, Cout),
                             lambda i, ph, pw, dh, dw: (ph, pw, dh, dw, 0, 0)),
                pl.BlockSpec((1, Cout), lambda i, ph, pw, dh, dw: (0, 0)),
                pl.BlockSpec((1, Cout), lambda i, ph, pw, dh, dw: (0, 0)),
            ],
            out_specs=pl.BlockSpec((tm, Cout),
                                   lambda i, ph, pw, dh, dw: (i, 2 * ph + pw)),
        ),
        compiler_params=pltpu.CompilerParams(
            dimension_semantics=("parallel", "parallel", "parallel",
                                 "arbitrary", "arbitrary"),
            vmem_limit_bytes=_VMEM_LIMIT),
    )(x9, w_r, scale2, shift2)

    # Un-pack the 4 parities from the lane axis into the (2H, 2W) output grid.
    out = out[:nhw].reshape(N, H, W, 2, 2, Cout)
    out = jnp.transpose(out, (0, 1, 3, 2, 4, 5)).reshape(N, 2 * H, 2 * W, Cout)
    return out


def fused_heads(x_nhwc, w_mask, b_mask, w_edge, b_edge):
    """Both 320->1 transposed-conv heads in a single pallas_call."""
    N, H, W, Cin = x_nhwc.shape
    nhw = N * H * W
    tm, nhw_pad = _row_tiling(nhw)
    n_tiles = nhw_pad // tm

    x9 = _shift_stack(x_nhwc, nhw_pad)                       # (9, nhw_pad, Cin) bf16
    w9 = _pack_head_weights(w_mask, w_edge)                  # (9, Cin, 8) bf16
    bias = jnp.tile(jnp.concatenate(
        [jnp.asarray(b_mask, jnp.float32).reshape(1),
         jnp.asarray(b_edge, jnp.float32).reshape(1)]), 4).reshape(1, 8)

    out = pl.pallas_call(
        _head_kernel,
        out_shape=jax.ShapeDtypeStruct((nhw_pad, 8), jnp.float32),
        grid_spec=pltpu.PrefetchScalarGridSpec(
            num_scalar_prefetch=0,
            grid=(n_tiles, 9),            # (row tile, shift)
            in_specs=[
                pl.BlockSpec((None, tm, Cin), lambda i, s: (s, i, 0)),
                pl.BlockSpec((None, Cin, 8), lambda i, s: (s, 0, 0)),
                pl.BlockSpec((1, 8), lambda i, s: (0, 0)),
            ],
            out_specs=pl.BlockSpec((tm, 8), lambda i, s: (i, 0)),
        ),
        compiler_params=pltpu.CompilerParams(
            dimension_semantics=("parallel", "arbitrary"),
            vmem_limit_bytes=_VMEM_LIMIT),
    )(x9, w9, bias)

    out = out[:nhw].reshape(N, H, W, 2, 2, 2)                # (..., ph, pw, head)
    out = jnp.transpose(out, (0, 1, 3, 2, 4, 5)).reshape(N, 2 * H, 2 * W, 2)
    mask = jnp.transpose(out[..., 0:1], (0, 3, 1, 2))        # NCHW
    edge = jnp.transpose(out[..., 1:2], (0, 3, 1, 2))
    return mask, edge


# ----------------------------------------------------------------------------
# EdgeModel forward (decoder): up1 -> cat -> up2 -> cat -> fused mask/edge heads
# ----------------------------------------------------------------------------
def _bn_fold(gamma, beta, mean, var):
    scale = gamma / jnp.sqrt(var + _BN_EPS)
    shift = beta - mean * scale
    return scale, shift


@jax.jit
def edge_model_forward(params, x_128, x_64, x_32):
    # Inputs are NCHW (PyTorch convention): x_128 (N,64,8s,8s), x_64 (N,256,4s,4s),
    # x_32 (N,2048,2s,2s).  Convert to NHWC for the kernels.
    f128 = jnp.transpose(x_128, (0, 2, 3, 1))
    f64 = jnp.transpose(x_64, (0, 2, 3, 1))
    f32v = jnp.transpose(x_32, (0, 2, 3, 1))

    # up1: ConvTranspose(2048->512) + BN + ReLU
    s1, b1 = _bn_fold(params["up1_gamma"], params["up1_beta"],
                      params["up1_mean"], params["up1_var"])
    x = conv_transpose4x4_s2p1(f32v, params["up1_w"], s1, b1, relu=True)

    # up2: cat([x, x_64], channel) -> ConvTranspose(768->256) + BN + ReLU
    x = jnp.concatenate([x, f64], axis=-1)
    s2, b2 = _bn_fold(params["up2_gamma"], params["up2_beta"],
                      params["up2_mean"], params["up2_var"])
    x = conv_transpose4x4_s2p1(x, params["up2_w"], s2, b2, relu=True)

    # heads: cat([x, x_128], channel) -> two ConvTranspose(320->1) with bias,
    # fused into one kernel.
    x = jnp.concatenate([x, f128], axis=-1)
    mask, edge = fused_heads(x, params["mask_w"], params["mask_b"],
                             params["edge_w"], params["edge_b"])
    return mask, edge


# ----------------------------------------------------------------------------
# Deterministic synthetic parameters (shapes from EdgeModel.__init__)
# ----------------------------------------------------------------------------
def init_params(key):
    ks = jax.random.split(key, 12)

    def winit(k, cin, cout):
        return jax.random.normal(k, (cin, cout, 4, 4), jnp.float32) / np.sqrt(cin * 16)

    p = {}
    p["up1_w"] = winit(ks[0], 2048, 512)
    p["up1_gamma"] = 1.0 + 0.1 * jax.random.normal(ks[1], (512,), jnp.float32)
    p["up1_beta"] = 0.1 * jax.random.normal(ks[2], (512,), jnp.float32)
    p["up1_mean"] = jnp.zeros((512,), jnp.float32)
    p["up1_var"] = jnp.ones((512,), jnp.float32)

    p["up2_w"] = winit(ks[3], 768, 256)
    p["up2_gamma"] = 1.0 + 0.1 * jax.random.normal(ks[4], (256,), jnp.float32)
    p["up2_beta"] = 0.1 * jax.random.normal(ks[5], (256,), jnp.float32)
    p["up2_mean"] = jnp.zeros((256,), jnp.float32)
    p["up2_var"] = jnp.ones((256,), jnp.float32)

    p["mask_w"] = winit(ks[6], 320, 1)
    p["mask_b"] = 0.1 * jax.random.normal(ks[7], (1,), jnp.float32)
    p["edge_w"] = winit(ks[8], 320, 1)
    p["edge_b"] = 0.1 * jax.random.normal(ks[9], (1,), jnp.float32)
    return p


# ----------------------------------------------------------------------------
# Pure-JAX reference (lax dilated conv == PyTorch ConvTranspose2d) for checking
# ----------------------------------------------------------------------------
def _ref_deconv_nchw(x, w, bias=None):
    w_flip = w[:, :, ::-1, ::-1]
    w_oihw = jnp.transpose(w_flip, (1, 0, 2, 3))
    out = jax.lax.conv_general_dilated(
        x, w_oihw, window_strides=(1, 1), padding=((2, 2), (2, 2)),
        lhs_dilation=(2, 2), dimension_numbers=("NCHW", "OIHW", "NCHW"))
    if bias is not None:
        out = out + bias.reshape(1, -1, 1, 1)
    return out


def _ref_forward(params, x_128, x_64, x_32):
    def bn_relu(x, g, b, m, v):
        s = g / jnp.sqrt(v + _BN_EPS)
        sh = b - m * s
        return jnp.maximum(x * s.reshape(1, -1, 1, 1) + sh.reshape(1, -1, 1, 1), 0.0)

    x = bn_relu(_ref_deconv_nchw(x_32, params["up1_w"]),
                params["up1_gamma"], params["up1_beta"],
                params["up1_mean"], params["up1_var"])
    x = jnp.concatenate([x, x_64], axis=1)
    x = bn_relu(_ref_deconv_nchw(x, params["up2_w"]),
                params["up2_gamma"], params["up2_beta"],
                params["up2_mean"], params["up2_var"])
    x = jnp.concatenate([x, x_128], axis=1)
    mask = _ref_deconv_nchw(x, params["mask_w"], params["mask_b"])
    edge = _ref_deconv_nchw(x, params["edge_w"], params["edge_b"])
    return mask, edge


if __name__ == "__main__":
    key = jax.random.PRNGKey(0)
    k0, k1, k2, k3 = jax.random.split(key, 4)

    N, s = 2, 4  # x_32 spatial = 4 -> x_64 = 8 -> x_128 = 16 -> logits = 32
    x_32 = jax.random.normal(k0, (N, 2048, s, s), jnp.float32)
    x_64 = jax.random.normal(k1, (N, 256, 2 * s, 2 * s), jnp.float32)
    x_128 = jax.random.normal(k2, (N, 64, 4 * s, 4 * s), jnp.float32)
    params = init_params(k3)

    mask, edge = edge_model_forward(params, x_128, x_64, x_32)
    jax.block_until_ready((mask, edge))

    assert mask.shape == (N, 1, 8 * s, 8 * s) and edge.shape == (N, 1, 8 * s, 8 * s)

    # Reference is full f32; kernel feeds the MXU bf16 (f32 accumulate), so a
    # 5e-2 tolerance comfortably covers the K<=2048 bf16 rounding noise.
    mask_ref, edge_ref = _ref_forward(params, x_128, x_64, x_32)
    np.testing.assert_allclose(np.asarray(mask), np.asarray(mask_ref), rtol=5e-2, atol=5e-2)
    np.testing.assert_allclose(np.asarray(edge), np.asarray(edge_ref), rtol=5e-2, atol=5e-2)

    print("KERNEL_OK")
</pallas_src>

<mosaic_0001>
module attributes {stable_mosaic.version = 11 : i64} {
  func.func @kernel(%arg0: i32, %arg1: i32, %arg2: i32, %arg3: i32, %arg4: i32, %arg5: memref<1x32x2048xbf16, #tpu.memory_space<vmem>>, %arg6: memref<1x1x1x1x2048x512xbf16, #tpu.memory_space<vmem>>, %arg7: memref<1x512xf32, #tpu.memory_space<vmem>>, %arg8: memref<1x512xf32, #tpu.memory_space<vmem>>, %arg9: memref<32x512xf32, #tpu.memory_space<vmem>>) attributes {dimension_semantics = [#tpu.dimension_semantics<parallel>, #tpu.dimension_semantics<parallel>, #tpu.dimension_semantics<parallel>, #tpu.dimension_semantics<arbitrary>, #tpu.dimension_semantics<arbitrary>], iteration_bounds = array<i64: 1, 2, 2, 2, 2>, scalar_prefetch = 0 : i64, scratch_operands = 0 : i64, tpu.core_type = #tpu.core_type<tc>, window_params = [{transform_indices = @transform_0, window_bounds = array<i64: 1, 32, 2048>}, {transform_indices = @transform_1, window_bounds = array<i64: 1, 1, 1, 1, 2048, 512>}, {pipeline_mode = #tpu.pipeline_mode<synchronous>, transform_indices = @transform_2, window_bounds = array<i64: 1, 512>}, {pipeline_mode = #tpu.pipeline_mode<synchronous>, transform_indices = @transform_3, window_bounds = array<i64: 1, 512>}, {transform_indices = @transform_4, window_bounds = array<i64: 32, 512>}]} {
    %c0_i32 = arith.constant 0 : i32
    %0 = arith.cmpi eq, %arg3, %c0_i32 : i32
    %c0_i32_0 = arith.constant 0 : i32
    %1 = arith.cmpi eq, %arg4, %c0_i32_0 : i32
    %2 = arith.andi %0, %1 : i1
    %3 = arith.extui %2 : i1 to i32
    %c0_i32_1 = arith.constant 0 : i32
    %4 = arith.cmpi ne, %3, %c0_i32_1 : i32
    scf.if %4 {
      %cst_16 = arith.constant 0.000000e+00 : f32
      %18 = vector.broadcast %cst_16 : f32 to vector<32x512xf32>
      %c0_17 = arith.constant 0 : index
      %c0_18 = arith.constant 0 : index
      %19 = vector.load %arg9[%c0_17, %c0_18] : memref<32x512xf32, #tpu.memory_space<vmem>>, vector<32x512xf32>
      tpu.vector_store %arg9[%c0_17, %c0_18], %18 {strides = array<i32>} : memref<32x512xf32, #tpu.memory_space<vmem>>, vector<32x512xf32>,
    } else {
    }
    %c0 = arith.constant 0 : index
    %c0_2 = arith.constant 0 : index
    %5 = vector.load %arg9[%c0, %c0_2] : memref<32x512xf32, #tpu.memory_space<vmem>>, vector<32x512xf32>
    %c0_3 = arith.constant 0 : index
    %c0_4 = arith.constant 0 : index
    %c0_5 = arith.constant 0 : index
    %6 = vector.load %arg5[%c0_3, %c0_4, %c0_5] : memref<1x32x2048xbf16, #tpu.memory_space<vmem>>, vector<1x32x2048xbf16>
    %7 = vector.shape_cast %6 : vector<1x32x2048xbf16> to vector<32x2048xbf16>
    %c0_6 = arith.constant 0 : index
    %c0_7 = arith.constant 0 : index
    %c0_8 = arith.constant 0 : index
    %c0_9 = arith.constant 0 : index
    %c0_10 = arith.constant 0 : index
    %c0_11 = arith.constant 0 : index
    %8 = vector.load %arg6[%c0_6, %c0_7, %c0_8, %c0_9, %c0_10, %c0_11] : memref<1x1x1x1x2048x512xbf16, #tpu.memory_space<vmem>>, vector<1x1x1x1x2048x512xbf16>
    %9 = vector.shape_cast %8 : vector<1x1x1x1x2048x512xbf16> to vector<2048x512xbf16>
    %cst = arith.constant dense<0.000000e+00> : vector<32x512xf32>
    %10 = tpu.matmul %7, %9, %cst {dimension_numbers = #tpu.dot_dimension_numbers<[1], [0], [0], [1], [0, 0, 1, 1], [], []>} : vector<32x2048xbf16>, vector<2048x512xbf16>, vector<32x512xf32> -> vector<32x512xf32>
    %11 = arith.addf %5, %10 : vector<32x512xf32>
    %c0_12 = arith.constant 0 : index
    %c0_13 = arith.constant 0 : index
    %12 = vector.load %arg9[%c0_12, %c0_13] : memref<32x512xf32, #tpu.memory_space<vmem>>, vector<32x512xf32>
    tpu.vector_store %arg9[%c0_12, %c0_13], %11 {strides = array<i32>} : memref<32x512xf32, #tpu.memory_space<vmem>>, vector<32x512xf32>,
    %c1_i32 = arith.constant 1 : i32
    %13 = arith.cmpi eq, %arg3, %c1_i32 : i32
    %c1_i32_14 = arith.constant 1 : i32
    %14 = arith.cmpi eq, %arg4, %c1_i32_14 : i32
    %15 = arith.andi %13, %14 : i1
    %16 = arith.extui %15 : i1 to i32
    %c0_i32_15 = arith.constant 0 : i32
    %17 = arith.cmpi ne, %16, %c0_i32_15 : i32
    scf.if %17 {
      %c0_16 = arith.constant 0 : index
      %c0_17 = arith.constant 0 : index
      %18 = vector.load %arg9[%c0_16, %c0_17] : memref<32x512xf32, #tpu.memory_space<vmem>>, vector<32x512xf32>
      %c0_18 = arith.constant 0 : index
      %c0_19 = arith.constant 0 : index
      %19 = vector.load %arg7[%c0_18, %c0_19] : memref<1x512xf32, #tpu.memory_space<vmem>>, vector<1x512xf32>
      %20 = vector.broadcast %19 : vector<1x512xf32> to vector<32x512xf32>
      %21 = arith.mulf %18, %20 : vector<32x512xf32>
      %c0_20 = arith.constant 0 : index
      %c0_21 = arith.constant 0 : index
      %22 = vector.load %arg8[%c0_20, %c0_21] : memref<1x512xf32, #tpu.memory_space<vmem>>, vector<1x512xf32>
      %23 = vector.broadcast %22 : vector<1x512xf32> to vector<32x512xf32>
      %24 = arith.addf %21, %23 : vector<32x512xf32>
      %cst_22 = arith.constant 0.000000e+00 : f32
      %25 = vector.broadcast %cst_22 : f32 to vector<32x512xf32>
      %26 = arith.maximumf %24, %25 : vector<32x512xf32>
      %c0_23 = arith.constant 0 : index
      %c0_24 = arith.constant 0 : index
      %27 = vector.load %arg9[%c0_23, %c0_24] : memref<32x512xf32, #tpu.memory_space<vmem>>, vector<32x512xf32>
      tpu.vector_store %arg9[%c0_23, %c0_24], %26 {strides = array<i32>} : memref<32x512xf32, #tpu.memory_space<vmem>>, vector<32x512xf32>,
    } else {
    }
    return
  }
  func.func @transform_0(%arg0: i32, %arg1: i32, %arg2: i32, %arg3: i32, %arg4: i32) -> (i32, i32, i32) {
    %0 = arith.addi %arg1, %arg3 : i32
    %c3_i32 = arith.constant 3 : i32
    %1 = arith.muli %c3_i32, %0 : i32
    %2 = arith.addi %arg2, %arg4 : i32
    %3 = arith.addi %1, %2 : i32
    %c0_i32 = arith.constant 0 : i32
    %c0_i32_0 = arith.constant 0 : i32
    return %3, %arg0, %c0_i32 : i32, i32, i32
  }
  func.func @transform_1(%arg0: i32, %arg1: i32, %arg2: i32, %arg3: i32, %arg4: i32) -> (i32, i32, i32, i32, i32, i32) {
    %c0_i32 = arith.constant 0 : i32
    %c0_i32_0 = arith.constant 0 : i32
    %c0_i32_1 = arith.constant 0 : i32
    return %arg1, %arg2, %arg3, %arg4, %c0_i32, %c0_i32_0 : i32, i32, i32, i32, i32, i32
  }
  func.func @transform_2(%arg0: i32, %arg1: i32, %arg2: i32, %arg3: i32, %arg4: i32) -> (i32, i32) {
    %c0_i32 = arith.constant 0 : i32
    %c0_i32_0 = arith.constant 0 : i32
    %c0_i32_1 = arith.constant 0 : i32
    return %c0_i32, %c0_i32_0 : i32, i32
  }
  func.func @transform_3(%arg0: i32, %arg1: i32, %arg2: i32, %arg3: i32, %arg4: i32) -> (i32, i32) {
    %c0_i32 = arith.constant 0 : i32
    %c0_i32_0 = arith.constant 0 : i32
    %c0_i32_1 = arith.constant 0 : i32
    return %c0_i32, %c0_i32_0 : i32, i32
  }
  func.func @transform_4(%arg0: i32, %arg1: i32, %arg2: i32, %arg3: i32, %arg4: i32) -> (i32, i32) {
    %c2_i32 = arith.constant 2 : i32
    %0 = arith.muli %c2_i32, %arg1 : i32
    %1 = arith.addi %0, %arg2 : i32
    %c0_i32 = arith.constant 0 : i32
    return %arg0, %1 : i32, i32
  }
}

module attributes {stable_mosaic.version = 11 : i64} {
  func.func @kernel(%arg0: i32, %arg1: i32, %arg2: i32, %arg3: i32, %arg4: i32, %arg5: memref<1x128x768xbf16, #tpu.memory_space<vmem>>, %arg6: memref<1x1x1x1x768x256xbf16, #tpu.memory_space<vmem>>, %arg7: memref<1x256xf32, #tpu.memory_space<vmem>>, %arg8: memref<1x256xf32, #tpu.memory_space<vmem>>, %arg9: memref<128x256xf32, #tpu.memory_space<vmem>>) attributes {dimension_semantics = [#tpu.dimension_semantics<parallel>, #tpu.dimension_semantics<parallel>, #tpu.dimension_semantics<parallel>, #tpu.dimension_semantics<arbitrary>, #tpu.dimension_semantics<arbitrary>], iteration_bounds = array<i64: 1, 2, 2, 2, 2>, scalar_prefetch = 0 : i64, scratch_operands = 0 : i64, tpu.core_type = #tpu.core_type<tc>, window_params = [{transform_indices = @transform_0, window_bounds = array<i64: 1, 128, 768>}, {transform_indices = @transform_1, window_bounds = array<i64: 1, 1, 1, 1, 768, 256>}, {pipeline_mode = #tpu.pipeline_mode<synchronous>, transform_indices = @transform_2, window_bounds = array<i64: 1, 256>}, {pipeline_mode = #tpu.pipeline_mode<synchronous>, transform_indices = @transform_3, window_bounds = array<i64: 1, 256>}, {transform_indices = @transform_4, window_bounds = array<i64: 128, 256>}]} {
    %c0_i32 = arith.constant 0 : i32
    %0 = arith.cmpi eq, %arg3, %c0_i32 : i32
    %c0_i32_0 = arith.constant 0 : i32
    %1 = arith.cmpi eq, %arg4, %c0_i32_0 : i32
    %2 = arith.andi %0, %1 : i1
    %3 = arith.extui %2 : i1 to i32
    %c0_i32_1 = arith.constant 0 : i32
    %4 = arith.cmpi ne, %3, %c0_i32_1 : i32
    scf.if %4 {
      %cst_16 = arith.constant 0.000000e+00 : f32
      %18 = vector.broadcast %cst_16 : f32 to vector<128x256xf32>
      %c0_17 = arith.constant 0 : index
      %c0_18 = arith.constant 0 : index
      %19 = vector.load %arg9[%c0_17, %c0_18] : memref<128x256xf32, #tpu.memory_space<vmem>>, vector<128x256xf32>
      tpu.vector_store %arg9[%c0_17, %c0_18], %18 {strides = array<i32>} : memref<128x256xf32, #tpu.memory_space<vmem>>, vector<128x256xf32>,
    } else {
    }
    %c0 = arith.constant 0 : index
    %c0_2 = arith.constant 0 : index
    %5 = vector.load %arg9[%c0, %c0_2] : memref<128x256xf32, #tpu.memory_space<vmem>>, vector<128x256xf32>
    %c0_3 = arith.constant 0 : index
    %c0_4 = arith.constant 0 : index
    %c0_5 = arith.constant 0 : index
    %6 = vector.load %arg5[%c0_3, %c0_4, %c0_5] : memref<1x128x768xbf16, #tpu.memory_space<vmem>>, vector<1x128x768xbf16>
    %7 = vector.shape_cast %6 : vector<1x128x768xbf16> to vector<128x768xbf16>
    %c0_6 = arith.constant 0 : index
    %c0_7 = arith.constant 0 : index
    %c0_8 = arith.constant 0 : index
    %c0_9 = arith.constant 0 : index
    %c0_10 = arith.constant 0 : index
    %c0_11 = arith.constant 0 : index
    %8 = vector.load %arg6[%c0_6, %c0_7, %c0_8, %c0_9, %c0_10, %c0_11] : memref<1x1x1x1x768x256xbf16, #tpu.memory_space<vmem>>, vector<1x1x1x1x768x256xbf16>
    %9 = vector.shape_cast %8 : vector<1x1x1x1x768x256xbf16> to vector<768x256xbf16>
    %cst = arith.constant dense<0.000000e+00> : vector<128x256xf32>
    %10 = tpu.matmul %7, %9, %cst {dimension_numbers = #tpu.dot_dimension_numbers<[1], [0], [0], [1], [0, 0, 1, 1], [], []>} : vector<128x768xbf16>, vector<768x256xbf16>, vector<128x256xf32> -> vector<128x256xf32>
    %11 = arith.addf %5, %10 : vector<128x256xf32>
    %c0_12 = arith.constant 0 : index
    %c0_13 = arith.constant 0 : index
    %12 = vector.load %arg9[%c0_12, %c0_13] : memref<128x256xf32, #tpu.memory_space<vmem>>, vector<128x256xf32>
    tpu.vector_store %arg9[%c0_12, %c0_13], %11 {strides = array<i32>} : memref<128x256xf32, #tpu.memory_space<vmem>>, vector<128x256xf32>,
    %c1_i32 = arith.constant 1 : i32
    %13 = arith.cmpi eq, %arg3, %c1_i32 : i32
    %c1_i32_14 = arith.constant 1 : i32
    %14 = arith.cmpi eq, %arg4, %c1_i32_14 : i32
    %15 = arith.andi %13, %14 : i1
    %16 = arith.extui %15 : i1 to i32
    %c0_i32_15 = arith.constant 0 : i32
    %17 = arith.cmpi ne, %16, %c0_i32_15 : i32
    scf.if %17 {
      %c0_16 = arith.constant 0 : index
      %c0_17 = arith.constant 0 : index
      %18 = vector.load %arg9[%c0_16, %c0_17] : memref<128x256xf32, #tpu.memory_space<vmem>>, vector<128x256xf32>
      %c0_18 = arith.constant 0 : index
      %c0_19 = arith.constant 0 : index
      %19 = vector.load %arg7[%c0_18, %c0_19] : memref<1x256xf32, #tpu.memory_space<vmem>>, vector<1x256xf32>
      %20 = vector.broadcast %19 : vector<1x256xf32> to vector<128x256xf32>
      %21 = arith.mulf %18, %20 : vector<128x256xf32>
      %c0_20 = arith.constant 0 : index
      %c0_21 = arith.constant 0 : index
      %22 = vector.load %arg8[%c0_20, %c0_21] : memref<1x256xf32, #tpu.memory_space<vmem>>, vector<1x256xf32>
      %23 = vector.broadcast %22 : vector<1x256xf32> to vector<128x256xf32>
      %24 = arith.addf %21, %23 : vector<128x256xf32>
      %cst_22 = arith.constant 0.000000e+00 : f32
      %25 = vector.broadcast %cst_22 : f32 to vector<128x256xf32>
      %26 = arith.maximumf %24, %25 : vector<128x256xf32>
      %c0_23 = arith.constant 0 : index
      %c0_24 = arith.constant 0 : index
      %27 = vector.load %arg9[%c0_23, %c0_24] : memref<128x256xf32, #tpu.memory_space<vmem>>, vector<128x256xf32>
      tpu.vector_store %arg9[%c0_23, %c0_24], %26 {strides = array<i32>} : memref<128x256xf32, #tpu.memory_space<vmem>>, vector<128x256xf32>,
    } else {
    }
    return
  }
  func.func @transform_0(%arg0: i32, %arg1: i32, %arg2: i32, %arg3: i32, %arg4: i32) -> (i32, i32, i32) {
    %0 = arith.addi %arg1, %arg3 : i32
    %c3_i32 = arith.constant 3 : i32
    %1 = arith.muli %c3_i32, %0 : i32
    %2 = arith.addi %arg2, %arg4 : i32
    %3 = arith.addi %1, %2 : i32
    %c0_i32 = arith.constant 0 : i32
    %c0_i32_0 = arith.constant 0 : i32
    return %3, %arg0, %c0_i32 : i32, i32, i32
  }
  func.func @transform_1(%arg0: i32, %arg1: i32, %arg2: i32, %arg3: i32, %arg4: i32) -> (i32, i32, i32, i32, i32, i32) {
    %c0_i32 = arith.constant 0 : i32
    %c0_i32_0 = arith.constant 0 : i32
    %c0_i32_1 = arith.constant 0 : i32
    return %arg1, %arg2, %arg3, %arg4, %c0_i32, %c0_i32_0 : i32, i32, i32, i32, i32, i32
  }
  func.func @transform_2(%arg0: i32, %arg1: i32, %arg2: i32, %arg3: i32, %arg4: i32) -> (i32, i32) {
    %c0_i32 = arith.constant 0 : i32
    %c0_i32_0 = arith.constant 0 : i32
    %c0_i32_1 = arith.constant 0 : i32
    return %c0_i32, %c0_i32_0 : i32, i32
  }
  func.func @transform_3(%arg0: i32, %arg1: i32, %arg2: i32, %arg3: i32, %arg4: i32) -> (i32, i32) {
    %c0_i32 = arith.constant 0 : i32
    %c0_i32_0 = arith.constant 0 : i32
    %c0_i32_1 = arith.constant 0 : i32
    return %c0_i32, %c0_i32_0 : i32, i32
  }
  func.func @transform_4(%arg0: i32, %arg1: i32, %arg2: i32, %arg3: i32, %arg4: i32) -> (i32, i32) {
    %c2_i32 = arith.constant 2 : i32
    %0 = arith.muli %c2_i32, %arg1 : i32
    %1 = arith.addi %0, %arg2 : i32
    %c0_i32 = arith.constant 0 : i32
    return %arg0, %1 : i32, i32
  }
}

module attributes {stable_mosaic.version = 11 : i64} {
  func.func @_head_kernel(%arg0: i32, %arg1: i32, %arg2: memref<1x512x320xbf16, #tpu.memory_space<vmem>>, %arg3: memref<1x320x8xbf16, #tpu.memory_space<vmem>>, %arg4: memref<1x8xf32, #tpu.memory_space<vmem>>, %arg5: memref<512x8xf32, #tpu.memory_space<vmem>>) attributes {dimension_semantics = [#tpu.dimension_semantics<parallel>, #tpu.dimension_semantics<arbitrary>], iteration_bounds = array<i64: 1, 9>, scalar_prefetch = 0 : i64, scratch_operands = 0 : i64, tpu.core_type = #tpu.core_type<tc>, window_params = [{transform_indices = @transform_0, window_bounds = array<i64: 1, 512, 320>}, {transform_indices = @transform_1, window_bounds = array<i64: 1, 320, 8>}, {pipeline_mode = #tpu.pipeline_mode<synchronous>, transform_indices = @transform_2, window_bounds = array<i64: 1, 8>}, {transform_indices = @transform_3, window_bounds = array<i64: 512, 8>}]} {
    %c0_i32 = arith.constant 0 : i32
    %0 = arith.cmpi eq, %arg1, %c0_i32 : i32
    %1 = arith.extui %0 : i1 to i32
    %c0_i32_0 = arith.constant 0 : i32
    %2 = arith.cmpi ne, %1, %c0_i32_0 : i32
    scf.if %2 {
      %cst_11 = arith.constant 0.000000e+00 : f32
      %14 = vector.broadcast %cst_11 : f32 to vector<512x8xf32>
      %c0_12 = arith.constant 0 : index
      %c0_13 = arith.constant 0 : index
      %15 = vector.load %arg5[%c0_12, %c0_13] : memref<512x8xf32, #tpu.memory_space<vmem>>, vector<512x8xf32>
      tpu.vector_store %arg5[%c0_12, %c0_13], %14 {strides = array<i32>} : memref<512x8xf32, #tpu.memory_space<vmem>>, vector<512x8xf32>,
    } else {
    }
    %c0 = arith.constant 0 : index
    %c0_1 = arith.constant 0 : index
    %3 = vector.load %arg5[%c0, %c0_1] : memref<512x8xf32, #tpu.memory_space<vmem>>, vector<512x8xf32>
    %c0_2 = arith.constant 0 : index
    %c0_3 = arith.constant 0 : index
    %c0_4 = arith.constant 0 : index
    %4 = vector.load %arg2[%c0_2, %c0_3, %c0_4] : memref<1x512x320xbf16, #tpu.memory_space<vmem>>, vector<1x512x320xbf16>
    %5 = vector.shape_cast %4 : vector<1x512x320xbf16> to vector<512x320xbf16>
    %c0_5 = arith.constant 0 : index
    %c0_6 = arith.constant 0 : index
    %c0_7 = arith.constant 0 : index
    %6 = vector.load %arg3[%c0_5, %c0_6, %c0_7] : memref<1x320x8xbf16, #tpu.memory_space<vmem>>, vector<1x320x8xbf16>
    %7 = vector.shape_cast %6 : vector<1x320x8xbf16> to vector<320x8xbf16>
    %cst = arith.constant dense<0.000000e+00> : vector<512x8xf32>
    %8 = tpu.matmul %5, %7, %cst {dimension_numbers = #tpu.dot_dimension_numbers<[1], [0], [0], [1], [0, 0, 1, 1], [], []>} : vector<512x320xbf16>, vector<320x8xbf16>, vector<512x8xf32> -> vector<512x8xf32>
    %9 = arith.addf %3, %8 : vector<512x8xf32>
    %c0_8 = arith.constant 0 : index
    %c0_9 = arith.constant 0 : index
    %10 = vector.load %arg5[%c0_8, %c0_9] : memref<512x8xf32, #tpu.memory_space<vmem>>, vector<512x8xf32>
    tpu.vector_store %arg5[%c0_8, %c0_9], %9 {strides = array<i32>} : memref<512x8xf32, #tpu.memory_space<vmem>>, vector<512x8xf32>,
    %c8_i32 = arith.constant 8 : i32
    %11 = arith.cmpi eq, %arg1, %c8_i32 : i32
    %12 = arith.extui %11 : i1 to i32
    %c0_i32_10 = arith.constant 0 : i32
    %13 = arith.cmpi ne, %12, %c0_i32_10 : i32
    scf.if %13 {
      %c0_11 = arith.constant 0 : index
      %c0_12 = arith.constant 0 : index
      %14 = vector.load %arg5[%c0_11, %c0_12] : memref<512x8xf32, #tpu.memory_space<vmem>>, vector<512x8xf32>
      %c0_13 = arith.constant 0 : index
      %c0_14 = arith.constant 0 : index
      %15 = vector.load %arg4[%c0_13, %c0_14] : memref<1x8xf32, #tpu.memory_space<vmem>>, vector<1x8xf32>
      %16 = vector.broadcast %15 : vector<1x8xf32> to vector<512x8xf32>
      %17 = arith.addf %14, %16 : vector<512x8xf32>
      %c0_15 = arith.constant 0 : index
      %c0_16 = arith.constant 0 : index
      %18 = vector.load %arg5[%c0_15, %c0_16] : memref<512x8xf32, #tpu.memory_space<vmem>>, vector<512x8xf32>
      tpu.vector_store %arg5[%c0_15, %c0_16], %17 {strides = array<i32>} : memref<512x8xf32, #tpu.memory_space<vmem>>, vector<512x8xf32>,
    } else {
    }
    return
  }
  func.func @transform_0(%arg0: i32, %arg1: i32) -> (i32, i32, i32) {
    %c0_i32 = arith.constant 0 : i32
    %c0_i32_0 = arith.constant 0 : i32
    return %arg1, %arg0, %c0_i32 : i32, i32, i32
  }
  func.func @transform_1(%arg0: i32, %arg1: i32) -> (i32, i32, i32) {
    %c0_i32 = arith.constant 0 : i32
    %c0_i32_0 = arith.constant 0 : i32
    %c0_i32_1 = arith.constant 0 : i32
    return %arg1, %c0_i32, %c0_i32_0 : i32, i32, i32
  }
  func.func @transform_2(%arg0: i32, %arg1: i32) -> (i32, i32) {
    %c0_i32 = arith.constant 0 : i32
    %c0_i32_0 = arith.constant 0 : i32
    %c0_i32_1 = arith.constant 0 : i32
    return %c0_i32, %c0_i32_0 : i32, i32
  }
  func.func @transform_3(%arg0: i32, %arg1: i32) -> (i32, i32) {
    %c0_i32 = arith.constant 0 : i32
    %c0_i32_0 = arith.constant 0 : i32
    return %arg0, %c0_i32 : i32, i32
  }
}

</mosaic_0001>

<llo_original>
// kernel: edge_model_forward.3
$region0: #{edge_model_forward.3}
  #allocation0 [shape = 'u32[]', space=smem, size = 0x4, offset = 0x4, fixed_abs, tag = 'smem constant byte address 0x4 - core index']
  #allocation1 [shape = 'u32[144,128]{1,0:T(1,128)}', space=vmem, size = 0x12000, scoped, tag = 'internal scratch']
  %s0 = inlined_call_operand.hbm [shape: bf16[9,32,2048], index: 0, kind: input, shape index: {}]
  %s1 = inlined_call_operand.vmem [shape: bf16[2,2,2,2,2048,512], index: 1, kind: input, shape index: {}]
  %s2 = inlined_call_operand.hbm [shape: f32[1,512], index: 2, kind: input, shape index: {}]
  %s3 = inlined_call_operand.hbm [shape: f32[1,512], index: 3, kind: input, shape index: {}]
  %s4 = inlined_call_operand.hbm [shape: f32[32,2048], index: 4, kind: output, shape index: {}]
  %s5 = sld [smem:[#allocation0]]
  $region69: #{edge_model_forward.3} parent=0
    _
  %s7 = ssub.s32 1, %s5
  %s8 = scalar_select 0, %s7, %s5
  $region1: #{edge_model_forward.3} parent=0
    #allocation2 [shape = 'u8[262144]{0}', space=vmem, size = 0x40000, scoped, tag = 'input window, operand 0']
    #allocation3 [shape = 's32[2]{0}', space=sflag, size = 0x8, scoped, tag = 'scoped memory for edge_model_forward.3']
    #allocation4 [shape = 's32[2]{0}', space=sflag, size = 0x8, scoped, tag = 'scoped memory for edge_model_forward.3']
    #allocation5 [shape = 'u8[2048]{0}', space=vmem, size = 0x800, scoped, tag = 'input window, operand 2, single buffered']
    #allocation6 [shape = 's32[1]{0}', space=sflag, size = 0x4, scoped, tag = 'scoped memory for edge_model_forward.3']
    #allocation7 [shape = 'u8[2048]{0}', space=vmem, size = 0x800, scoped, tag = 'input window, operand 3, single buffered']
    #allocation8 [shape = 'u8[131072]{0}', space=vmem, size = 0x20000, scoped, tag = 'output window, operand 0']
    %9 = vsyncpa [#allocation3], 0
    %s10 = scalar_lea.sflag [#allocation3], 1
    %11 = vsyncpa %s10, 0
    %12 = vsyncpa [#allocation6], 0
    %13 = vsyncpa [#allocation4], 0
    %s14 = scalar_lea.sflag [#allocation4], 1
    %15 = vsyncpa %s14, 0
    loop: start=0, step=1, limit=18
    $region2: #{edge_model_forward.3} parent=1 // loop_pre_header
      _
    $region3: #{edge_model_forward.3} parent=1 // loop_header
      %s17 = sphi 0, %s21
      %p18 = scmp.ge.s32.totalorder %s17, 18
      %s24 = sphi 0, %s57
      %s25 = sphi 0, %s53
      %s26 = sphi 0, %s49
      %s27 = sphi 0, %s45
      %s28 = sphi 0, %s41
      %s29 = sphi 0, %s24
      %s30 = sphi 0, %s25
      %s31 = sphi 0, %s26
      %s32 = sphi 0, %s27
      %s33 = sphi 0, %s28
      %s34 = sphi 0, %s29
      %s35 = sphi 0, %s30
      %s36 = sphi 0, %s31
      %s37 = sphi 0, %s32
      %s38 = sphi 0, %s33
      %s70 = sphi 0, %s72
      %s73 = sphi 0, %s70
      %s74 = sphi 0, %s73
      %s90 = sphi 0, %s74
      %s102 = sphi 0, %s104
      %s105 = sphi 0, %s102
      %s106 = sphi 0, %s105
      %s122 = sphi 0, %s106
      %s126 = sphi 0, %s126
      %s128 = sphi 0, %s126
      %s129 = sphi 0, %s128
      %s143 = sphi 0, %s129
      %s147 = sphi 0, %s147
      %s149 = sphi 0, %s147
      %s150 = sphi 0, %s149
      %s164 = sphi 0, %s150
      %s176 = sphi 0, %s178
      %s179 = sphi 0, %s176
      %s180 = sphi 0, %s179
      %s196 = sphi 0, %s180
    $region4: #{edge_model_forward.3} parent=1 // loop_header_branch
      %20 = sbr.rel (%p18) target = $region8
    $region5: #{edge_model_forward.3} parent=1 // loop_body
      %s22 = ssub.s32 %s17, 1
      %s23 = ssub.s32 %s17, 2
      %s39 = sadd.s32 1, %s28
      %p40 = scmp.ge.s32.totalorder %s39, 2
      %s41 = scalar_select %p40, 0, %s39
      %s42 = sadd.s32 1, %s27
      %s43 = scalar_select %p40, %s42, %s27
      %p44 = scmp.ge.s32.totalorder %s43, 2
      %s45 = scalar_select %p44, 0, %s43
      %s46 = sadd.s32 1, %s26
      %s47 = scalar_select %p44, %s46, %s26
      %p48 = scmp.ge.s32.totalorder %s47, 2
      %s49 = scalar_select %p48, 0, %s47
      %s50 = sadd.s32 1, %s25
      %s51 = scalar_select %p48, %s50, %s25
      %p52 = scmp.ge.s32.totalorder %s51, 2
      %s53 = scalar_select %p52, 0, %s51
      %s54 = sadd.s32 1, %s24
      %s55 = scalar_select %p52, %s54, %s24
      %p56 = scmp.ge.s32.totalorder %s55, 1
      %s57 = scalar_select %p56, 0, %s55
      %s58 = sadd.s32 %s25, %s27
      %s59 = smul.u32 %s58, 3
      %s60 = sadd.s32 %s26, %s28
      %s61 = sadd.s32 %s59, %s60
      %s62 = sadd.s32 %s53, %s45
      %s63 = smul.u32 %s62, 3
      %s64 = sadd.s32 %s49, %s41
      %s65 = sadd.s32 %s63, %s64
      %s66 = ssub.s32 %s61, %s65
      %s67 = ssub.s32 %s24, %s57
      %s68 = sor.u32 %s66, %s67
      %p69 = scmp.eq.s32.totalorder %s68, 0
      %s71 = sadd.s32 %s70, 1
      %s72 = scalar_select %p69, %s70, %s71
      %p75 = pneg %p69
      %p76 = scmp.eq.s32.totalorder %s17, 15
      %p77 = por %p75, %p76
      %p78 = scmp.ne.s32.totalorder %s70, %s73
      %p79 = scmp.eq.s32.totalorder %s17, 0
      %p80 = por %p78, %p79
      %p81 = scmp.ne.s32.totalorder %s70, %s73
      %p82 = scmp.eq.s32.totalorder %s22, 15
      %p83 = por %p81, %p82
      %p84 = scmp.ne.s32.totalorder %s73, %s74
      %p85 = scmp.eq.s32.totalorder %s22, 0
      %p86 = por %p84, %p85
      %p87 = scmp.ne.s32.totalorder %s73, %s74
      %p88 = scmp.eq.s32.totalorder %s23, 15
      %p89 = por %p87, %p88
      %p91 = scmp.ne.s32.totalorder %s74, %s90
      %p92 = scmp.eq.s32.totalorder %s23, 0
      %p93 = por %p91, %p92
      %s94 = ssub.s32 %s25, %s53
      %s95 = ssub.s32 %s26, %s49
      %s96 = sor.u32 %s94, %s95
      %s97 = ssub.s32 %s27, %s45
      %s98 = sor.u32 %s96, %s97
      %s99 = ssub.s32 %s28, %s41
      %s100 = sor.u32 %s98, %s99
      %p101 = scmp.eq.s32.totalorder %s100, 0
      %s103 = sadd.s32 %s102, 1
      %s104 = scalar_select %p101, %s102, %s103
      %p107 = pneg %p101
      %p108 = scmp.eq.s32.totalorder %s17, 15
      %p109 = por %p107, %p108
      %p110 = scmp.ne.s32.totalorder %s102, %s105
      %p111 = scmp.eq.s32.totalorder %s17, 0
      %p112 = por %p110, %p111
      %p113 = scmp.ne.s32.totalorder %s102, %s105
      %p114 = scmp.eq.s32.totalorder %s22, 15
      %p115 = por %p113, %p114
      %p116 = scmp.ne.s32.totalorder %s105, %s106
      %p117 = scmp.eq.s32.totalorder %s22, 0
      %p118 = por %p116, %p117
      %p119 = scmp.ne.s32.totalorder %s105, %s106
      %p120 = scmp.eq.s32.totalorder %s23, 15
      %p121 = por %p119, %p120
      %p123 = scmp.ne.s32.totalorder %s106, %s122
      %p124 = scmp.eq.s32.totalorder %s23, 0
      %p125 = por %p123, %p124
      %s127 = sadd.s32 %s126, 1
      %p130 = scmp.eq.s32.totalorder %s17, 15
      %p131 = scmp.ne.s32.totalorder %s126, %s128
      %p132 = scmp.eq.s32.totalorder %s17, 0
      %p133 = por %p131, %p132
      %p134 = scmp.ne.s32.totalorder %s126, %s128
      %p135 = scmp.eq.s32.totalorder %s22, 15
      %p136 = por %p134, %p135
      %p137 = scmp.ne.s32.totalorder %s128, %s129
      %p138 = scmp.eq.s32.totalorder %s22, 0
      %p139 = por %p137, %p138
      %p140 = scmp.ne.s32.totalorder %s128, %s129
      %p141 = scmp.eq.s32.totalorder %s23, 15
      %p142 = por %p140, %p141
      %p144 = scmp.ne.s32.totalorder %s129, %s143
      %p145 = scmp.eq.s32.totalorder %s23, 0
      %p146 = por %p144, %p145
      %s148 = sadd.s32 %s147, 1
      %p151 = scmp.eq.s32.totalorder %s17, 15
      %p152 = scmp.ne.s32.totalorder %s147, %s149
      %p153 = scmp.eq.s32.totalorder %s17, 0
      %p154 = por %p152, %p153
      %p155 = scmp.ne.s32.totalorder %s147, %s149
      %p156 = scmp.eq.s32.totalorder %s22, 15
      %p157 = por %p155, %p156
      %p158 = scmp.ne.s32.totalorder %s149, %s150
      %p159 = scmp.eq.s32.totalorder %s22, 0
      %p160 = por %p158, %p159
      %p161 = scmp.ne.s32.totalorder %s149, %s150
      %p162 = scmp.eq.s32.totalorder %s23, 15
      %p163 = por %p161, %p162
      %p165 = scmp.ne.s32.totalorder %s150, %s164
      %p166 = scmp.eq.s32.totalorder %s23, 0
      %p167 = por %p165, %p166
      %s168 = smul.u32 %s25, 2
      %s169 = sadd.s32 %s168, %s26
      %s170 = smul.u32 %s53, 2
      %s171 = sadd.s32 %s170, %s49
      %s172 = ssub.s32 %s24, %s57
      %s173 = ssub.s32 %s169, %s171
      %s174 = sor.u32 %s172, %s173
      %p175 = scmp.eq.s32.totalorder %s174, 0
      %s177 = sadd.s32 %s176, 1
      %s178 = scalar_select %p175, %s176, %s177
      %p181 = pneg %p175
      %p182 = scmp.eq.s32.totalorder %s17, 15
      %p183 = por %p181, %p182
      %p184 = scmp.ne.s32.totalorder %s176, %s179
      %p185 = scmp.eq.s32.totalorder %s17, 0
      %p186 = por %p184, %p185
      %p187 = scmp.ne.s32.totalorder %s176, %s179
      %p188 = scmp.eq.s32.totalorder %s22, 15
      %p189 = por %p187, %p188
      %p190 = scmp.ne.s32.totalorder %s179, %s180
      %p191 = scmp.eq.s32.totalorder %s22, 0
      %p192 = por %p190, %p191
      %p193 = scmp.ne.s32.totalorder %s179, %s180
      %p194 = scmp.eq.s32.totalorder %s23, 15
      %p195 = por %p193, %p194
      %p197 = scmp.ne.s32.totalorder %s180, %s196
      %p198 = scmp.eq.s32.totalorder %s23, 0
      %p199 = por %p197, %p198
      %p200 = scmp.le.s32.totalorder 1, %s17
      %p201 = scmp.lt.s32.totalorder %s17, 17
      %p202 = pnand %p200, %p201
      %p203 = pneg %p202
      // Predicated region
      $region9: #{edge_model_forward.3} parent=5 // pred_check
        _
      $region10: #{edge_model_forward.3} parent=5 // pred_check_branch
        %205 = sbr.rel (%p202) target = $region12
      $region11: #{edge_model_forward.3} parent=5 // pred_region
        %s206 = ssub.s32 %s17, 1
        // Predicated region
        $region13: #{edge_model_forward.3} parent=11 // pred_check
          %p207 = pneg %p139
        $region14: #{edge_model_forward.3} parent=11 // pred_check_branch
          %209 = sbr.rel (%p207) target = $region16
        $region15: #{edge_model_forward.3} parent=11 // pred_region
          %s211 = ssub.s32 64, 64
          %212 = vsyncadd [#allocation6], %s211
          %s214 = sshll.u32 [#allocation5], 4
          %s215 = int_to_ptr.vmem [resolvable:$true] %s214
          %217 = dma.hbm_to_vmem [thread:$0]  %s2, 64, %s215, [#allocation6]
        $region16: #{edge_model_forward.3} parent=11 // pred_fallthru
          _
        // Predicated region
        $region17: #{edge_model_forward.3} parent=11 // pred_check
          %p218 = pneg %p160
        $region18: #{edge_model_forward.3} parent=11 // pred_check_branch
          %220 = sbr.rel (%p218) target = $region20
        $region19: #{edge_model_forward.3} parent=11 // pred_region
          %s222 = ssub.s32 64, 64
          %223 = vsyncadd [#allocation6], %s222
          %s225 = sshll.u32 [#allocation7], 4
          %s226 = int_to_ptr.vmem [resolvable:$true] %s225
          %228 = dma.hbm_to_vmem [thread:$0]  %s3, 64, %s226, [#allocation6]
        $region20: #{edge_model_forward.3} parent=11 // pred_fallthru
          _
      $region12: #{edge_model_forward.3} parent=5 // pred_fallthru
        _
      %p229 = scmp.lt.s32.totalorder %s17, 16
      // Predicated region
      $region21: #{edge_model_forward.3} parent=5 // pred_check
        %p230 = pneg %p229
      $region22: #{edge_model_forward.3} parent=5 // pred_check_branch
        %232 = sbr.rel (%p230) target = $region24
      $region23: #{edge_model_forward.3} parent=5 // pred_region
        // Predicated region
        $region25: #{edge_model_forward.3} parent=23 // pred_check
          %p233 = pneg %p80
        $region26: #{edge_model_forward.3} parent=23 // pred_check_branch
          %235 = sbr.rel (%p233) target = $region28
        $region27: #{edge_model_forward.3} parent=23 // pred_region
          %s236 = sand.u32 %s70, 1
          %s237 = scalar_lea.sflag [#allocation3], %s236
          %s238 = sand.u32 %s70, 1
          %s239 = smul.addr %s238, 256
          %s240 = scalar_lea.vmem [#allocation2], %s239
          %s241 = sadd.s32 %s25, %s27
          %s242 = smul.u32 %s241, 3
          %s243 = sadd.s32 %s26, %s28
          %s244 = sadd.s32 %s242, %s243
          %s245 = smul.u32 4, %s24
          %s247 = ssub.s32 4096, 4096
          %248 = vsyncadd %s237, %s247
          %s249 = smul.addr %s245, 16
          %s250 = smul.addr %s244, 64
          %s251 = sadd.s32 %s249, %s250
          %s252 = smul.addr %s251, 64
          %s253 = scalar_lea.hbm %s0, %s252
          %s254 = sshll.u32 %s240, 4
          %s255 = int_to_ptr.vmem [resolvable:$true] %s254
          %260 = dma.hbm_to_vmem [thread:$0]  %s253, 4096, %s255, %s237, 1024, 1024, 64
        $region28: #{edge_model_forward.3} parent=23 // pred_fallthru
          _
        // Predicated region
        $region29: #{edge_model_forward.3} parent=23 // pred_check
          %p261 = pneg %p112
        $region30: #{edge_model_forward.3} parent=23 // pred_check_branch
          %263 = sbr.rel (%p261) target = $region32
        $region31: #{edge_model_forward.3} parent=23 // pred_region
          %p264 = scmp.lt.s32.totalorder %s25, 1
          %s265 = scalar_select %p264, %s25, 1
          %p266 = scmp.lt.s32.totalorder %s26, 1
          %s267 = scalar_select %p266, %s26, 1
          %p268 = scmp.lt.s32.totalorder %s27, 1
          %s269 = scalar_select %p268, %s27, 1
          %p270 = scmp.lt.s32.totalorder %s28, 1
          %s271 = scalar_select %p270, %s28, 1
          %s272 = smul.addr %s271, 1024
          %s273 = smul.addr %s269, 2048
          %s274 = sadd.s32 %s272, %s273
          %s275 = smul.addr %s267, 4096
          %s276 = sadd.s32 %s274, %s275
          %s277 = smul.addr %s265, 8192
          %s278 = sadd.s32 %s276, %s277
          %s279 = smul.addr %s278, 4
          %s280 = scalar_lea.vmem %s1, %s279
        $region32: #{edge_model_forward.3} parent=23 // pred_fallthru
          _
      $region24: #{edge_model_forward.3} parent=5 // pred_fallthru
        _
      %p281 = scmp.le.s32.totalorder 1, %s17
      %p282 = scmp.lt.s32.totalorder %s17, 17
      %p283 = pnand %p281, %p282
      %p284 = pneg %p283
      // Predicated region
      $region33: #{edge_model_forward.3} parent=5 // pred_check
        _
      $region34: #{edge_model_forward.3} parent=5 // pred_check_branch
        %286 = sbr.rel (%p283) target = $region36
      $region35: #{edge_model_forward.3} parent=5 // pred_region
        %s287 = ssub.s32 %s17, 1
        %s288 = sand.u32 %s73, 1
        %s289 = scalar_lea.sflag [#allocation3], %s288
        %s290 = sand.u32 %s73, 1
        %s291 = smul.addr %s290, 256
        %s292 = scalar_lea.vmem [#allocation2], %s291
        // Predicated region
        $region37: #{edge_model_forward.3} parent=35 // pred_check
          %p293 = pneg %p86
        $region38: #{edge_model_forward.3} parent=35 // pred_check_branch
          %295 = sbr.rel (%p293) target = $region40
        $region39: #{edge_model_forward.3} parent=35 // pred_region
          %296 = dma.done %s289, 4096
        $region40: #{edge_model_forward.3} parent=35 // pred_fallthru
          _
        // Predicated region
        $region41: #{edge_model_forward.3} parent=35 // pred_check
          %p297 = pneg %p139
        $region42: #{edge_model_forward.3} parent=35 // pred_check_branch
          %299 = sbr.rel (%p297) target = $region44
        $region43: #{edge_model_forward.3} parent=35 // pred_region
          %300 = dma.done [#allocation6], 64
        $region44: #{edge_model_forward.3} parent=35 // pred_fallthru
          _
        // Predicated region
        $region45: #{edge_model_forward.3} parent=35 // pred_check
          %p301 = pneg %p160
        $region46: #{edge_model_forward.3} parent=35 // pred_check_branch
          %303 = sbr.rel (%p301) target = $region48
        $region47: #{edge_model_forward.3} parent=35 // pred_region
          %304 = dma.done [#allocation6], 64
        $region48: #{edge_model_forward.3} parent=35 // pred_fallthru
          _
        %s305 = sand.u32 %s73, 1
        %s306 = scalar_lea.sflag [#allocation3], %s305
        %s307 = sand.u32 %s73, 1
        %s308 = smul.addr %s307, 256
        %s309 = scalar_lea.vmem [#allocation2], %s308
        %p310 = pneg %p86
        %p311 = pneg %p83
        %p312 = scmp.lt.s32.totalorder %s30, 1
        %s313 = scalar_select %p312, %s30, 1
        %p314 = scmp.lt.s32.totalorder %s31, 1
        %s315 = scalar_select %p314, %s31, 1
        %p316 = scmp.lt.s32.totalorder %s32, 1
        %s317 = scalar_select %p316, %s32, 1
        %p318 = scmp.lt.s32.totalorder %s33, 1
        %s319 = scalar_select %p318, %s33, 1
        %s320 = smul.addr %s319, 1024
        %s321 = smul.addr %s317, 2048
        %s322 = sadd.s32 %s320, %s321
        %s323 = smul.addr %s315, 4096
        %s324 = sadd.s32 %s322, %s323
        %s325 = smul.addr %s313, 8192
        %s326 = sadd.s32 %s324, %s325
        %s327 = smul.addr %s326, 4
        %s328 = scalar_lea.vmem %s1, %s327
        %p329 = pneg %p118
        %p330 = pneg %p115
        %p331 = pneg %p139
        %p332 = pneg %p136
        %p333 = pneg %p160
        %p334 = pneg %p157
        %p335 = pneg %p192
        %p336 = pneg %p189
        %s337 = sand.u32 %s179, 1
        %s338 = scalar_lea.sflag [#allocation4], %s337
        %s339 = sand.u32 %s179, 1
        %s340 = smul.addr %s339, 128
        %s341 = scalar_lea.vmem [#allocation8], %s340
        %s342 = sadd.s32 %s30, %s32
        %s343 = smul.u32 %s342, 3
        %s344 = sadd.s32 %s31, %s33
        %s345 = sadd.s32 %s343, %s344
        %s346 = smul.u32 4, %s29
        %p347 = scmp.lt.s32.totalorder %s30, 1
        %s348 = scalar_select %p347, %s30, 1
        %p349 = scmp.lt.s32.totalorder %s31, 1
        %s350 = scalar_select %p349, %s31, 1
        %p351 = scmp.lt.s32.totalorder %s32, 1
        %s352 = scalar_select %p351, %s32, 1
        %p353 = scmp.lt.s32.totalorder %s33, 1
        %s354 = scalar_select %p353, %s33, 1
        %s355 = smul.addr %s354, 1024
        %s356 = smul.addr %s352, 2048
        %s357 = sadd.s32 %s355, %s356
        %s358 = smul.addr %s350, 4096
        %s359 = sadd.s32 %s357, %s358
        %s360 = smul.addr %s348, 8192
        %s361 = sadd.s32 %s359, %s360
        %s362 = smul.addr %s361, 4
        %s363 = scalar_lea.vmem %s1, %s362
        %s364 = smul.u32 %s30, 2
        %s365 = sadd.s32 %s364, %s31
        %s366 = smul.u32 4, %s29
        %s367 = smul.u32 4, %s365
        %p368 = scmp.eq.s32.totalorder %s32, 0
        %p369 = scmp.eq.s32.totalorder %s33, 0
        %p370 = pnand %p368, %p369
        %p371 = pneg %p370
        // Predicated region
        $region49: #{edge_model_forward.3} parent=35 // pred_check
          _
        $region50: #{edge_model_forward.3} parent=35 // pred_check_branch
          %373 = sbr.rel (%p370) target = $region52
        $region51: #{edge_model_forward.3} parent=35 // pred_region
          %374 = vst [vmem:[%s341] sm:$0xff] 0.0
          %375 = vst [vmem:[%s341 + $0x8] sm:$0xff] 0.0
          %376 = vst [vmem:[%s341 + $0x10] sm:$0xff] 0.0
          %377 = vst [vmem:[%s341 + $0x18] sm:$0xff] 0.0
          %378 = vst [vmem:[%s341 + $0x20] sm:$0xff] 0.0
          %379 = vst [vmem:[%s341 + $0x28] sm:$0xff] 0.0
          %380 = vst [vmem:[%s341 + $0x30] sm:$0xff] 0.0
          %381 = vst [vmem:[%s341 + $0x38] sm:$0xff] 0.0
          %382 = vst [vmem:[%s341 + $0x40] sm:$0xff] 0.0
          %383 = vst [vmem:[%s341 + $0x48] sm:$0xff] 0.0
          %384 = vst [vmem:[%s341 + $0x50] sm:$0xff] 0.0
          %385 = vst [vmem:[%s341 + $0x58] sm:$0xff] 0.0
          %386 = vst [vmem:[%s341 + $0x60] sm:$0xff] 0.0
          %387 = vst [vmem:[%s341 + $0x68] sm:$0xff] 0.0
          %388 = vst [vmem:[%s341 + $0x70] sm:$0xff] 0.0
          %389 = vst [vmem:[%s341 + $0x78] sm:$0xff] 0.0
        $region52: #{edge_model_forward.3} parent=35 // pred_fallthru
          _
        %v390 = vld [vmem:[%s341] sm:$0xff]
        %v391 = vld [vmem:[%s341 + $0x8] sm:$0xff]
        %v392 = vld [vmem:[%s341 + $0x10] sm:$0xff]
        %v393 = vld [vmem:[%s341 + $0x18] sm:$0xff]
        %v394 = vld [vmem:[%s341 + $0x20] sm:$0xff]
        %v395 = vld [vmem:[%s341 + $0x28] sm:$0xff]
        %v396 = vld [vmem:[%s341 + $0x30] sm:$0xff]
        %v397 = vld [vmem:[%s341 + $0x38] sm:$0xff]
        %v398 = vld [vmem:[%s341 + $0x40] sm:$0xff]
        %v399 = vld [vmem:[%s341 + $0x48] sm:$0xff]
        %v400 = vld [vmem:[%s341 + $0x50] sm:$0xff]
        %v401 = vld [vmem:[%s341 + $0x58] sm:$0xff]
        %v402 = vld [vmem:[%s341 + $0x60] sm:$0xff]
        %v403 = vld [vmem:[%s341 + $0x68] sm:$0xff]
        %v404 = vld [vmem:[%s341 + $0x70] sm:$0xff]
        %v405 = vld [vmem:[%s341 + $0x78] sm:$0xff]
        %v406 = vld [vmem:[%s292] sm:$0xff]
        %v407 = vld [vmem:[%s292 + $0x8] sm:$0xff]
        %v408 = vld [vmem:[%s292 + $0x10] sm:$0xff]
        %v409 = vld [vmem:[%s292 + $0x18] sm:$0xff]
        %v410 = vld [vmem:[%s292 + $0x20] sm:$0xff]
        %v411 = vld [vmem:[%s292 + $0x28] sm:$0xff]
        %v412 = vld [vmem:[%s292 + $0x30] sm:$0xff]
        %v413 = vld [vmem:[%s292 + $0x38] sm:$0xff]
        %v414 = vld [vmem:[%s292 + $0x40] sm:$0xff]
        %v415 = vld [vmem:[%s292 + $0x48] sm:$0xff]
        %v416 = vld [vmem:[%s292 + $0x50] sm:$0xff]
        %v417 = vld [vmem:[%s292 + $0x58] sm:$0xff]
        %v418 = vld [vmem:[%s292 + $0x60] sm:$0xff]
        %v419 = vld [vmem:[%s292 + $0x68] sm:$0xff]
        %v420 = vld [vmem:[%s292 + $0x70] sm:$0xff]
        %v421 = vld [vmem:[%s292 + $0x78] sm:$0xff]
        %v422 = vld [vmem:[%s292 + $0x80] sm:$0xff]
        %v423 = vld [vmem:[%s292 + $0x88] sm:$0xff]
        %v424 = vld [vmem:[%s292 + $0x90] sm:$0xff]
        %v425 = vld [vmem:[%s292 + $0x98] sm:$0xff]
        %v426 = vld [vmem:[%s292 + $0xa0] sm:$0xff]
        %v427 = vld [vmem:[%s292 + $0xa8] sm:$0xff]
        %v428 = vld [vmem:[%s292 + $0xb0] sm:$0xff]
        %v429 = vld [vmem:[%s292 + $0xb8] sm:$0xff]
        %v430 = vld [vmem:[%s292 + $0xc0] sm:$0xff]
        %v431 = vld [vmem:[%s292 + $0xc8] sm:$0xff]
        %v432 = vld [vmem:[%s292 + $0xd0] sm:$0xff]
        %v433 = vld [vmem:[%s292 + $0xd8] sm:$0xff]
        %v434 = vld [vmem:[%s292 + $0xe0] sm:$0xff]
        %v435 = vld [vmem:[%s292 + $0xe8] sm:$0xff]
        %v436 = vld [vmem:[%s292 + $0xf0] sm:$0xff]
        %v437 = vld [vmem:[%s292 + $0xf8] sm:$0xff]
        %v438 = vld [vmem:[%s363] sm:$0xff]
        %v439 = vld [vmem:[%s363 + $0x8] sm:$0xff]
        %v440 = vld [vmem:[%s363 + $0x10] sm:$0xff]
        %v441 = vld [vmem:[%s363 + $0x18] sm:$0xff]
        %v442 = vld [vmem:[%s363 + $0x20] sm:$0xff]
        %v443 = vld [vmem:[%s363 + $0x28] sm:$0xff]
        %v444 = vld [vmem:[%s363 + $0x30] sm:$0xff]
        %v445 = vld [vmem:[%s363 + $0x38] sm:$0xff]
        %v446 = vld [vmem:[%s363 + $0x40] sm:$0xff]
        %v447 = vld [vmem:[%s363 + $0x48] sm:$0xff]
        %v448 = vld [vmem:[%s363 + $0x50] sm:$0xff]
        %v449 = vld [vmem:[%s363 + $0x58] sm:$0xff]
        %v450 = vld [vmem:[%s363 + $0x60] sm:$0xff]
        %v451 = vld [vmem:[%s363 + $0x68] sm:$0xff]
        %v452 = vld [vmem:[%s363 + $0x70] sm:$0xff]
        %v453 = vld [vmem:[%s363 + $0x78] sm:$0xff]
        %v454 = vld [vmem:[%s363 + $0x80] sm:$0xff]
        %v455 = vld [vmem:[%s363 + $0x88] sm:$0xff]
        %v456 = vld [vmem:[%s363 + $0x90] sm:$0xff]
        %v457 = vld [vmem:[%s363 + $0x98] sm:$0xff]
        %v458 = vld [vmem:[%s363 + $0xa0] sm:$0xff]
        %v459 = vld [vmem:[%s363 + $0xa8] sm:$0xff]
        %v460 = vld [vmem:[%s363 + $0xb0] sm:$0xff]
        %v461 = vld [vmem:[%s363 + $0xb8] sm:$0xff]
        %v462 = vld [vmem:[%s363 + $0xc0] sm:$0xff]
        %v463 = vld [vmem:[%s363 + $0xc8] sm:$0xff]
        %v464 = vld [vmem:[%s363 + $0xd0] sm:$0xff]
        %v465 = vld [vmem:[%s363 + $0xd8] sm:$0xff]
        %v466 = vld [vmem:[%s363 + $0xe0] sm:$0xff]
        %v467 = vld [vmem:[%s363 + $0xe8] sm:$0xff]
        %v468 = vld [vmem:[%s363 + $0xf0] sm:$0xff]
        %v469 = vld [vmem:[%s363 + $0xf8] sm:$0xff]
        %v470 = vld [vmem:[%s363 + $0x100] sm:$0xff]
        %v471 = vld [vmem:[%s363 + $0x108] sm:$0xff]
        %v472 = vld [vmem:[%s363 + $0x110] sm:$0xff]
        %v473 = vld [vmem:[%s363 + $0x118] sm:$0xff]
        %v474 = vld [vmem:[%s363 + $0x120] sm:$0xff]
        %v475 = vld [vmem:[%s363 + $0x128] sm:$0xff]
        %v476 = vld [vmem:[%s363 + $0x130] sm:$0xff]
        %v477 = vld [vmem:[%s363 + $0x138] sm:$0xff]
        %v478 = vld [vmem:[%s363 + $0x140] sm:$0xff]
        %v479 = vld [vmem:[%s363 + $0x148] sm:$0xff]
        %v480 = vld [vmem:[%s363 + $0x150] sm:$0xff]
        %v481 = vld [vmem:[%s363 + $0x158] sm:$0xff]
        %v482 = vld [vmem:[%s363 + $0x160] sm:$0xff]
        %v483 = vld [vmem:[%s363 + $0x168] sm:$0xff]
        %v484 = vld [vmem:[%s363 + $0x170] sm:$0xff]
        %v485 = vld [vmem:[%s363 + $0x178] sm:$0xff]
        %v486 = vld [vmem:[%s363 + $0x180] sm:$0xff]
        %v487 = vld [vmem:[%s363 + $0x188] sm:$0xff]
        %v488 = vld [vmem:[%s363 + $0x190] sm:$0xff]
        %v489 = vld [vmem:[%s363 + $0x198] sm:$0xff]
        %v490 = vld [vmem:[%s363 + $0x1a0] sm:$0xff]
        %v491 = vld [vmem:[%s363 + $0x1a8] sm:$0xff]
        %v492 = vld [vmem:[%s363 + $0x1b0] sm:$0xff]
        %v493 = vld [vmem:[%s363 + $0x1b8] sm:$0xff]
        %v494 = vld [vmem:[%s363 + $0x1c0] sm:$0xff]
        %v495 = vld [vmem:[%s363 + $0x1c8] sm:$0xff]
        %v496 = vld [vmem:[%s363 + $0x1d0] sm:$0xff]
        %v497 = vld [vmem:[%s363 + $0x1d8] sm:$0xff]
        %v498 = vld [vmem:[%s363 + $0x1e0] sm:$0xff]
        %v499 = vld [vmem:[%s363 + $0x1e8] sm:$0xff]
        %v500 = vld [vmem:[%s363 + $0x1f0] sm:$0xff]
        %v501 = vld [vmem:[%s363 + $0x1f8] sm:$0xff]
        %v502 = vld [vmem:[%s363 + $0x200] sm:$0xff]
        %v503 = vld [vmem:[%s363 + $0x208] sm:$0xff]
        %v504 = vld [vmem:[%s363 + $0x210] sm:$0xff]
        %v505 = vld [vmem:[%s363 + $0x218] sm:$0xff]
        %v506 = vld [vmem:[%s363 + $0x220] sm:$0xff]
        %v507 = vld [vmem:[%s363 + $0x228] sm:$0xff]
        %v508 = vld [vmem:[%s363 + $0x230] sm:$0xff]
        %v509 = vld [vmem:[%s363 + $0x238] sm:$0xff]
        %v510 = vld [vmem:[%s363 + $0x240] sm:$0xff]
        %v511 = vld [vmem:[%s363 + $0x248] sm:$0xff]
        %v512 = vld [vmem:[%s363 + $0x250] sm:$0xff]
        %v513 = vld [vmem:[%s363 + $0x258] sm:$0xff]
        %v514 = vld [vmem:[%s363 + $0x260] sm:$0xff]
        %v515 = vld [vmem:[%s363 + $0x268] sm:$0xff]
        %v516 = vld [vmem:[%s363 + $0x270] sm:$0xff]
        %v517 = vld [vmem:[%s363 + $0x278] sm:$0xff]
        %v518 = vld [vmem:[%s363 + $0x280] sm:$0xff]
        %v519 = vld [vmem:[%s363 + $0x288] sm:$0xff]
        %v520 = vld [vmem:[%s363 + $0x290] sm:$0xff]
        %v521 = vld [vmem:[%s363 + $0x298] sm:$0xff]
        %v522 = vld [vmem:[%s363 + $0x2a0] sm:$0xff]
        %v523 = vld [vmem:[%s363 + $0x2a8] sm:$0xff]
        %v524 = vld [vmem:[%s363 + $0x2b0] sm:$0xff]
        %v525 = vld [vmem:[%s363 + $0x2b8] sm:$0xff]
        %v526 = vld [vmem:[%s363 + $0x2c0] sm:$0xff]
        %v527 = vld [vmem:[%s363 + $0x2c8] sm:$0xff]
        %v528 = vld [vmem:[%s363 + $0x2d0] sm:$0xff]
        %v529 = vld [vmem:[%s363 + $0x2d8] sm:$0xff]
        %v530 = vld [vmem:[%s363 + $0x2e0] sm:$0xff]
        %v531 = vld [vmem:[%s363 + $0x2e8] sm:$0xff]
        %v532 = vld [vmem:[%s363 + $0x2f0] sm:$0xff]
        %v533 = vld [vmem:[%s363 + $0x2f8] sm:$0xff]
        %v534 = vld [vmem:[%s363 + $0x300] sm:$0xff]
        %v535 = vld [vmem:[%s363 + $0x308] sm:$0xff]
        %v536 = vld [vmem:[%s363 + $0x310] sm:$0xff]
        %v537 = vld [vmem:[%s363 + $0x318] sm:$0xff]
        %v538 = vld [vmem:[%s363 + $0x320] sm:$0xff]
        %v539 = vld [vmem:[%s363 + $0x328] sm:$0xff]
        %v540 = vld [vmem:[%s363 + $0x330] sm:$0xff]
        %v541 = vld [vmem:[%s363 + $0x338] sm:$0xff]
        %v542 = vld [vmem:[%s363 + $0x340] sm:$0xff]
        %v543 = vld [vmem:[%s363 + $0x348] sm:$0xff]
        %v544 = vld [vmem:[%s363 + $0x350] sm:$0xff]
        %v545 = vld [vmem:[%s363 + $0x358] sm:$0xff]
        %v546 = vld [vmem:[%s363 + $0x360] sm:$0xff]
        %v547 = vld [vmem:[%s363 + $0x368] sm:$0xff]
        %v548 = vld [vmem:[%s363 + $0x370] sm:$0xff]
        %v549 = vld [vmem:[%s363 + $0x378] sm:$0xff]
        %v550 = vld [vmem:[%s363 + $0x380] sm:$0xff]
        %v551 = vld [vmem:[%s363 + $0x388] sm:$0xff]
        %v552 = vld [vmem:[%s363 + $0x390] sm:$0xff]
        %v553 = vld [vmem:[%s363 + $0x398] sm:$0xff]
        %v554 = vld [vmem:[%s363 + $0x3a0] sm:$0xff]
        %v555 = vld [vmem:[%s363 + $0x3a8] sm:$0xff]
        %v556 = vld [vmem:[%s363 + $0x3b0] sm:$0xff]
        %v557 = vld [vmem:[%s363 + $0x3b8] sm:$0xff]
        %v558 = vld [vmem:[%s363 + $0x3c0] sm:$0xff]
        %v559 = vld [vmem:[%s363 + $0x3c8] sm:$0xff]
        %v560 = vld [vmem:[%s363 + $0x3d0] sm:$0xff]
        %v561 = vld [vmem:[%s363 + $0x3d8] sm:$0xff]
        %v562 = vld [vmem:[%s363 + $0x3e0] sm:$0xff]
        %v563 = vld [vmem:[%s363 + $0x3e8] sm:$0xff]
        %v564 = vld [vmem:[%s363 + $0x3f0] sm:$0xff]
        %v565 = vld [vmem:[%s363 + $0x3f8] sm:$0xff]
        %v566 = vld [vmem:[%s363 + $0x400] sm:$0xff]
        %v567 = vld [vmem:[%s363 + $0x408] sm:$0xff]
        %v568 = vld [vmem:[%s363 + $0x410] sm:$0xff]
        %v569 = vld [vmem:[%s363 + $0x418] sm:$0xff]
        %v570 = vld [vmem:[%s363 + $0x420] sm:$0xff]
        %v571 = vld [vmem:[%s363 + $0x428] sm:$0xff]
        %v572 = vld [vmem:[%s363 + $0x430] sm:$0xff]
        %v573 = vld [vmem:[%s363 + $0x438] sm:$0xff]
        %v574 = vld [vmem:[%s363 + $0x440] sm:$0xff]
        %v575 = vld [vmem:[%s363 + $0x448] sm:$0xff]
        %v576 = vld [vmem:[%s363 + $0x450] sm:$0xff]
        %v577 = vld [vmem:[%s363 + $0x458] sm:$0xff]
        %v578 = vld [vmem:[%s363 + $0x460] sm:$0xff]
        %v579 = vld [vmem:[%s363 + $0x468] sm:$0xff]
        %v580 = vld [vmem:[%s363 + $0x470] sm:$0xff]
        %v581 = vld [vmem:[%s363 + $0x478] sm:$0xff]
        %v582 = vld [vmem:[%s363 + $0x480] sm:$0xff]
        %v583 = vld [vmem:[%s363 + $0x488] sm:$0xff]
        %v584 = vld [vmem:[%s363 + $0x490] sm:$0xff]
        %v585 = vld [vmem:[%s363 + $0x498] sm:$0xff]
        %v586 = vld [vmem:[%s363 + $0x4a0] sm:$0xff]
        %v587 = vld [vmem:[%s363 + $0x4a8] sm:$0xff]
        %v588 = vld [vmem:[%s363 + $0x4b0] sm:$0xff]
        %v589 = vld [vmem:[%s363 + $0x4b8] sm:$0xff]
        %v590 = vld [vmem:[%s363 + $0x4c0] sm:$0xff]
        %v591 = vld [vmem:[%s363 + $0x4c8] sm:$0xff]
        %v592 = vld [vmem:[%s363 + $0x4d0] sm:$0xff]
        %v593 = vld [vmem:[%s363 + $0x4d8] sm:$0xff]
        %v594 = vld [vmem:[%s363 + $0x4e0] sm:$0xff]
        %v595 = vld [vmem:[%s363 + $0x4e8] sm:$0xff]
        %v596 = vld [vmem:[%s363 + $0x4f0] sm:$0xff]
        %v597 = vld [vmem:[%s363 + $0x4f8] sm:$0xff]
        %v598 = vld [vmem:[%s363 + $0x500] sm:$0xff]
        %v599 = vld [vmem:[%s363 + $0x508] sm:$0xff]
        %v600 = vld [vmem:[%s363 + $0x510] sm:$0xff]
        %v601 = vld [vmem:[%s363 + $0x518] sm:$0xff]
        %v602 = vld [vmem:[%s363 + $0x520] sm:$0xff]
        %v603 = vld [vmem:[%s363 + $0x528] sm:$0xff]
        %v604 = vld [vmem:[%s363 + $0x530] sm:$0xff]
        %v605 = vld [vmem:[%s363 + $0x538] sm:$0xff]
        %v606 = vld [vmem:[%s363 + $0x540] sm:$0xff]
        %v607 = vld [vmem:[%s363 + $0x548] sm:$0xff]
        %v608 = vld [vmem:[%s363 + $0x550] sm:$0xff]
        %v609 = vld [vmem:[%s363 + $0x558] sm:$0xff]
        %v610 = vld [vmem:[%s363 + $0x560] sm:$0xff]
        %v611 = vld [vmem:[%s363 + $0x568] sm:$0xff]
        %v612 = vld [vmem:[%s363 + $0x570] sm:$0xff]
        %v613 = vld [vmem:[%s363 + $0x578] sm:$0xff]
        %v614 = vld [vmem:[%s363 + $0x580] sm:$0xff]
        %v615 = vld [vmem:[%s363 + $0x588] sm:$0xff]
        %v616 = vld [vmem:[%s363 + $0x590] sm:$0xff]
        %v617 = vld [vmem:[%s363 + $0x598] sm:$0xff]
        %v618 = vld [vmem:[%s363 + $0x5a0] sm:$0xff]
        %v619 = vld [vmem:[%s363 + $0x5a8] sm:$0xff]
        %v620 = vld [vmem:[%s363 + $0x5b0] sm:$0xff]
        %v621 = vld [vmem:[%s363 + $0x5b8] sm:$0xff]
        %v622 = vld [vmem:[%s363 + $0x5c0] sm:$0xff]
        %v623 = vld [vmem:[%s363 + $0x5c8] sm:$0xff]
        %v624 = vld [vmem:[%s363 + $0x5d0] sm:$0xff]
        %v625 = vld [vmem:[%s363 + $0x5d8] sm:$0xff]
        %v626 = vld [vmem:[%s363 + $0x5e0] sm:$0xff]
        %v627 = vld [vmem:[%s363 + $0x5e8] sm:$0xff]
        %v628 = vld [vmem:[%s363 + $0x5f0] sm:$0xff]
        %v629 = vld [vmem:[%s363 + $0x5f8] sm:$0xff]
        %v630 = vld [vmem:[%s363 + $0x600] sm:$0xff]
        %v631 = vld [vmem:[%s363 + $0x608] sm:$0xff]
        %v632 = vld [vmem:[%s363 + $0x610] sm:$0xff]
        %v633 = vld [vmem:[%s363 + $0x618] sm:$0xff]
        %v634 = vld [vmem:[%s363 + $0x620] sm:$0xff]
        %v635 = vld [vmem:[%s363 + $0x628] sm:$0xff]
        %v636 = vld [vmem:[%s363 + $0x630] sm:$0xff]
        %v637 = vld [vmem:[%s363 + $0x638] sm:$0xff]
        %v638 = vld [vmem:[%s363 + $0x640] sm:$0xff]
        %v639 = vld [vmem:[%s363 + $0x648] sm:$0xff]
        %v640 = vld [vmem:[%s363 + $0x650] sm:$0xff]
        %v641 = vld [vmem:[%s363 + $0x658] sm:$0xff]
        %v642 = vld [vmem:[%s363 + $0x660] sm:$0xff]
        %v643 = vld [vmem:[%s363 + $0x668] sm:$0xff]
        %v644 = vld [vmem:[%s363 + $0x670] sm:$0xff]
        %v645 = vld [vmem:[%s363 + $0x678] sm:$0xff]
        %v646 = vld [vmem:[%s363 + $0x680] sm:$0xff]
        %v647 = vld [vmem:[%s363 + $0x688] sm:$0xff]
        %v648 = vld [vmem:[%s363 + $0x690] sm:$0xff]
        %v649 = vld [vmem:[%s363 + $0x698] sm:$0xff]
        %v650 = vld [vmem:[%s363 + $0x6a0] sm:$0xff]
        %v651 = vld [vmem:[%s363 + $0x6a8] sm:$0xff]
        %v652 = vld [vmem:[%s363 + $0x6b0] sm:$0xff]
        %v653 = vld [vmem:[%s363 + $0x6b8] sm:$0xff]
        %v654 = vld [vmem:[%s363 + $0x6c0] sm:$0xff]
        %v655 = vld [vmem:[%s363 + $0x6c8] sm:$0xff]
        %v656 = vld [vmem:[%s363 + $0x6d0] sm:$0xff]
        %v657 = vld [vmem:[%s363 + $0x6d8] sm:$0xff]
        %v658 = vld [vmem:[%s363 + $0x6e0] sm:$0xff]
        %v659 = vld [vmem:[%s363 + $0x6e8] sm:$0xff]
        %v660 = vld [vmem:[%s363 + $0x6f0] sm:$0xff]
        %v661 = vld [vmem:[%s363 + $0x6f8] sm:$0xff]
        %v662 = vld [vmem:[%s363 + $0x700] sm:$0xff]
        %v663 = vld [vmem:[%s363 + $0x708] sm:$0xff]
        %v664 = vld [vmem:[%s363 + $0x710] sm:$0xff]
        %v665 = vld [vmem:[%s363 + $0x718] sm:$0xff]
        %v666 = vld [vmem:[%s363 + $0x720] sm:$0xff]
        %v667 = vld [vmem:[%s363 + $0x728] sm:$0xff]
        %v668 = vld [vmem:[%s363 + $0x730] sm:$0xff]
        %v669 = vld [vmem:[%s363 + $0x738] sm:$0xff]
        %v670 = vld [vmem:[%s363 + $0x740] sm:$0xff]
        %v671 = vld [vmem:[%s363 + $0x748] sm:$0xff]
        %v672 = vld [vmem:[%s363 + $0x750] sm:$0xff]
        %v673 = vld [vmem:[%s363 + $0x758] sm:$0xff]
        %v674 = vld [vmem:[%s363 + $0x760] sm:$0xff]
        %v675 = vld [vmem:[%s363 + $0x768] sm:$0xff]
        %v676 = vld [vmem:[%s363 + $0x770] sm:$0xff]
        %v677 = vld [vmem:[%s363 + $0x778] sm:$0xff]
        %v678 = vld [vmem:[%s363 + $0x780] sm:$0xff]
        %v679 = vld [vmem:[%s363 + $0x788] sm:$0xff]
        %v680 = vld [vmem:[%s363 + $0x790] sm:$0xff]
        %v681 = vld [vmem:[%s363 + $0x798] sm:$0xff]
        %v682 = vld [vmem:[%s363 + $0x7a0] sm:$0xff]
        %v683 = vld [vmem:[%s363 + $0x7a8] sm:$0xff]
        %v684 = vld [vmem:[%s363 + $0x7b0] sm:$0xff]
        %v685 = vld [vmem:[%s363 + $0x7b8] sm:$0xff]
        %v686 = vld [vmem:[%s363 + $0x7c0] sm:$0xff]
        %v687 = vld [vmem:[%s363 + $0x7c8] sm:$0xff]
        %v688 = vld [vmem:[%s363 + $0x7d0] sm:$0xff]
        %v689 = vld [vmem:[%s363 + $0x7d8] sm:$0xff]
        %v690 = vld [vmem:[%s363 + $0x7e0] sm:$0xff]
        %v691 = vld [vmem:[%s363 + $0x7e8] sm:$0xff]
        %v692 = vld [vmem:[%s363 + $0x7f0] sm:$0xff]
        %v693 = vld [vmem:[%s363 + $0x7f8] sm:$0xff]
        %v694 = vld [vmem:[%s363 + $0x800] sm:$0xff]
        %v695 = vld [vmem:[%s363 + $0x808] sm:$0xff]
        %v696 = vld [vmem:[%s363 + $0x810] sm:$0xff]
        %v697 = vld [vmem:[%s363 + $0x818] sm:$0xff]
        %v698 = vld [vmem:[%s363 + $0x820] sm:$0xff]
        %v699 = vld [vmem:[%s363 + $0x828] sm:$0xff]
        %v700 = vld [vmem:[%s363 + $0x830] sm:$0xff]
        %v701 = vld [vmem:[%s363 + $0x838] sm:$0xff]
        %v702 = vld [vmem:[%s363 + $0x840] sm:$0xff]
        %v703 = vld [vmem:[%s363 + $0x848] sm:$0xff]
        %v704 = vld [vmem:[%s363 + $0x850] sm:$0xff]
        %v705 = vld [vmem:[%s363 + $0x858] sm:$0xff]
        %v706 = vld [vmem:[%s363 + $0x860] sm:$0xff]
        %v707 = vld [vmem:[%s363 + $0x868] sm:$0xff]
        %v708 = vld [vmem:[%s363 + $0x870] sm:$0xff]
        %v709 = vld [vmem:[%s363 + $0x878] sm:$0xff]
        %v710 = vld [vmem:[%s363 + $0x880] sm:$0xff]
        %v711 = vld [vmem:[%s363 + $0x888] sm:$0xff]
        %v712 = vld [vmem:[%s363 + $0x890] sm:$0xff]
        %v713 = vld [vmem:[%s363 + $0x898] sm:$0xff]
        %v714 = vld [vmem:[%s363 + $0x8a0] sm:$0xff]
        %v715 = vld [vmem:[%s363 + $0x8a8] sm:$0xff]
        %v716 = vld [vmem:[%s363 + $0x8b0] sm:$0xff]
        %v717 = vld [vmem:[%s363 + $0x8b8] sm:$0xff]
        %v718 = vld [vmem:[%s363 + $0x8c0] sm:$0xff]
        %v719 = vld [vmem:[%s363 + $0x8c8] sm:$0xff]
        %v720 = vld [vmem:[%s363 + $0x8d0] sm:$0xff]
        %v721 = vld [vmem:[%s363 + $0x8d8] sm:$0xff]
        %v722 = vld [vmem:[%s363 + $0x8e0] sm:$0xff]
        %v723 = vld [vmem:[%s363 + $0x8e8] sm:$0xff]
        %v724 = vld [vmem:[%s363 + $0x8f0] sm:$0xff]
        %v725 = vld [vmem:[%s363 + $0x8f8] sm:$0xff]
        %v726 = vld [vmem:[%s363 + $0x900] sm:$0xff]
        %v727 = vld [vmem:[%s363 + $0x908] sm:$0xff]
        %v728 = vld [vmem:[%s363 + $0x910] sm:$0xff]
        %v729 = vld [vmem:[%s363 + $0x918] sm:$0xff]
        %v730 = vld [vmem:[%s363 + $0x920] sm:$0xff]
        %v731 = vld [vmem:[%s363 + $0x928] sm:$0xff]
        %v732 = vld [vmem:[%s363 + $0x930] sm:$0xff]
        %v733 = vld [vmem:[%s363 + $0x938] sm:$0xff]
        %v734 = vld [vmem:[%s363 + $0x940] sm:$0xff]
        %v735 = vld [vmem:[%s363 + $0x948] sm:$0xff]
        %v736 = vld [vmem:[%s363 + $0x950] sm:$0xff]
        %v737 = vld [vmem:[%s363 + $0x958] sm:$0xff]
        %v738 = vld [vmem:[%s363 + $0x960] sm:$0xff]
        %v739 = vld [vmem:[%s363 + $0x968] sm:$0xff]
        %v740 = vld [vmem:[%s363 + $0x970] sm:$0xff]
        %v741 = vld [vmem:[%s363 + $0x978] sm:$0xff]
        %v742 = vld [vmem:[%s363 + $0x980] sm:$0xff]
        %v743 = vld [vmem:[%s363 + $0x988] sm:$0xff]
        %v744 = vld [vmem:[%s363 + $0x990] sm:$0xff]
        %v745 = vld [vmem:[%s363 + $0x998] sm:$0xff]
        %v746 = vld [vmem:[%s363 + $0x9a0] sm:$0xff]
        %v747 = vld [vmem:[%s363 + $0x9a8] sm:$0xff]
        %v748 = vld [vmem:[%s363 + $0x9b0] sm:$0xff]
        %v749 = vld [vmem:[%s363 + $0x9b8] sm:$0xff]
        %v750 = vld [vmem:[%s363 + $0x9c0] sm:$0xff]
        %v751 = vld [vmem:[%s363 + $0x9c8] sm:$0xff]
        %v752 = vld [vmem:[%s363 + $0x9d0] sm:$0xff]
        %v753 = vld [vmem:[%s363 + $0x9d8] sm:$0xff]
        %v754 = vld [vmem:[%s363 + $0x9e0] sm:$0xff]
        %v755 = vld [vmem:[%s363 + $0x9e8] sm:$0xff]
        %v756 = vld [vmem:[%s363 + $0x9f0] sm:$0xff]
        %v757 = vld [vmem:[%s363 + $0x9f8] sm:$0xff]
        %v758 = vld [vmem:[%s363 + $0xa00] sm:$0xff]
        %v759 = vld [vmem:[%s363 + $0xa08] sm:$0xff]
        %v760 = vld [vmem:[%s363 + $0xa10] sm:$0xff]
        %v761 = vld [vmem:[%s363 + $0xa18] sm:$0xff]
        %v762 = vld [vmem:[%s363 + $0xa20] sm:$0xff]
        %v763 = vld [vmem:[%s363 + $0xa28] sm:$0xff]
        %v764 = vld [vmem:[%s363 + $0xa30] sm:$0xff]
        %v765 = vld [vmem:[%s363 + $0xa38] sm:$0xff]
        %v766 = vld [vmem:[%s363 + $0xa40] sm:$0xff]
        %v767 = vld [vmem:[%s363 + $0xa48] sm:$0xff]
        %v768 = vld [vmem:[%s363 + $0xa50] sm:$0xff]
        %v769 = vld [vmem:[%s363 + $0xa58] sm:$0xff]
        %v770 = vld [vmem:[%s363 + $0xa60] sm:$0xff]
        %v771 = vld [vmem:[%s363 + $0xa68] sm:$0xff]
        %v772 = vld [vmem:[%s363 + $0xa70] sm:$0xff]
        %v773 = vld [vmem:[%s363 + $0xa78] sm:$0xff]
        %v774 = vld [vmem:[%s363 + $0xa80] sm:$0xff]
        %v775 = vld [vmem:[%s363 + $0xa88] sm:$0xff]
        %v776 = vld [vmem:[%s363 + $0xa90] sm:$0xff]
        %v777 = vld [vmem:[%s363 + $0xa98] sm:$0xff]
        %v778 = vld [vmem:[%s363 + $0xaa0] sm:$0xff]
        %v779 = vld [vmem:[%s363 + $0xaa8] sm:$0xff]
        %v780 = vld [vmem:[%s363 + $0xab0] sm:$0xff]
        %v781 = vld [vmem:[%s363 + $0xab8] sm:$0xff]
        %v782 = vld [vmem:[%s363 + $0xac0] sm:$0xff]
        %v783 = vld [vmem:[%s363 + $0xac8] sm:$0xff]
        %v784 = vld [vmem:[%s363 + $0xad0] sm:$0xff]
        %v785 = vld [vmem:[%s363 + $0xad8] sm:$0xff]
        %v786 = vld [vmem:[%s363 + $0xae0] sm:$0xff]
        %v787 = vld [vmem:[%s363 + $0xae8] sm:$0xff]
        %v788 = vld [vmem:[%s363 + $0xaf0] sm:$0xff]
        %v789 = vld [vmem:[%s363 + $0xaf8] sm:$0xff]
        %v790 = vld [vmem:[%s363 + $0xb00] sm:$0xff]
        %v791 = vld [vmem:[%s363 + $0xb08] sm:$0xff]
        %v792 = vld [vmem:[%s363 + $0xb10] sm:$0xff]
        %v793 = vld [vmem:[%s363 + $0xb18] sm:$0xff]
        %v794 = vld [vmem:[%s363 + $0xb20] sm:$0xff]
        %v795 = vld [vmem:[%s363 + $0xb28] sm:$0xff]
        %v796 = vld [vmem:[%s363 + $0xb30] sm:$0xff]
        %v797 = vld [vmem:[%s363 + $0xb38] sm:$0xff]
        %v798 = vld [vmem:[%s363 + $0xb40] sm:$0xff]
        %v799 = vld [vmem:[%s363 + $0xb48] sm:$0xff]
        %v800 = vld [vmem:[%s363 + $0xb50] sm:$0xff]
        %v801 = vld [vmem:[%s363 + $0xb58] sm:$0xff]
        %v802 = vld [vmem:[%s363 + $0xb60] sm:$0xff]
        %v803 = vld [vmem:[%s363 + $0xb68] sm:$0xff]
        %v804 = vld [vmem:[%s363 + $0xb70] sm:$0xff]
        %v805 = vld [vmem:[%s363 + $0xb78] sm:$0xff]
        %v806 = vld [vmem:[%s363 + $0xb80] sm:$0xff]
        %v807 = vld [vmem:[%s363 + $0xb88] sm:$0xff]
        %v808 = vld [vmem:[%s363 + $0xb90] sm:$0xff]
        %v809 = vld [vmem:[%s363 + $0xb98] sm:$0xff]
        %v810 = vld [vmem:[%s363 + $0xba0] sm:$0xff]
        %v811 = vld [vmem:[%s363 + $0xba8] sm:$0xff]
        %v812 = vld [vmem:[%s363 + $0xbb0] sm:$0xff]
        %v813 = vld [vmem:[%s363 + $0xbb8] sm:$0xff]
        %v814 = vld [vmem:[%s363 + $0xbc0] sm:$0xff]
        %v815 = vld [vmem:[%s363 + $0xbc8] sm:$0xff]
        %v816 = vld [vmem:[%s363 + $0xbd0] sm:$0xff]
        %v817 = vld [vmem:[%s363 + $0xbd8] sm:$0xff]
        %v818 = vld [vmem:[%s363 + $0xbe0] sm:$0xff]
        %v819 = vld [vmem:[%s363 + $0xbe8] sm:$0xff]
        %v820 = vld [vmem:[%s363 + $0xbf0] sm:$0xff]
        %v821 = vld [vmem:[%s363 + $0xbf8] sm:$0xff]
        %v822 = vld [vmem:[%s363 + $0xc00] sm:$0xff]
        %v823 = vld [vmem:[%s363 + $0xc08] sm:$0xff]
        %v824 = vld [vmem:[%s363 + $0xc10] sm:$0xff]
        %v825 = vld [vmem:[%s363 + $0xc18] sm:$0xff]
        %v826 = vld [vmem:[%s363 + $0xc20] sm:$0xff]
        %v827 = vld [vmem:[%s363 + $0xc28] sm:$0xff]
        %v828 = vld [vmem:[%s363 + $0xc30] sm:$0xff]
        %v829 = vld [vmem:[%s363 + $0xc38] sm:$0xff]
        %v830 = vld [vmem:[%s363 + $0xc40] sm:$0xff]
        %v831 = vld [vmem:[%s363 + $0xc48] sm:$0xff]
        %v832 = vld [vmem:[%s363 + $0xc50] sm:$0xff]
        %v833 = vld [vmem:[%s363 + $0xc58] sm:$0xff]
        %v834 = vld [vmem:[%s363 + $0xc60] sm:$0xff]
        %v835 = vld [vmem:[%s363 + $0xc68] sm:$0xff]
        %v836 = vld [vmem:[%s363 + $0xc70] sm:$0xff]
        %v837 = vld [vmem:[%s363 + $0xc78] sm:$0xff]
        %v838 = vld [vmem:[%s363 + $0xc80] sm:$0xff]
        %v839 = vld [vmem:[%s363 + $0xc88] sm:$0xff]
        %v840 = vld [vmem:[%s363 + $0xc90] sm:$0xff]
        %v841 = vld [vmem:[%s363 + $0xc98] sm:$0xff]
        %v842 = vld [vmem:[%s363 + $0xca0] sm:$0xff]
        %v843 = vld [vmem:[%s363 + $0xca8] sm:$0xff]
        %v844 = vld [vmem:[%s363 + $0xcb0] sm:$0xff]
        %v845 = vld [vmem:[%s363 + $0xcb8] sm:$0xff]
        %v846 = vld [vmem:[%s363 + $0xcc0] sm:$0xff]
        %v847 = vld [vmem:[%s363 + $0xcc8] sm:$0xff]
        %v848 = vld [vmem:[%s363 + $0xcd0] sm:$0xff]
        %v849 = vld [vmem:[%s363 + $0xcd8] sm:$0xff]
        %v850 = vld [vmem:[%s363 + $0xce0] sm:$0xff]
        %v851 = vld [vmem:[%s363 + $0xce8] sm:$0xff]
        %v852 = vld [vmem:[%s363 + $0xcf0] sm:$0xff]
        %v853 = vld [vmem:[%s363 + $0xcf8] sm:$0xff]
        %v854 = vld [vmem:[%s363 + $0xd00] sm:$0xff]
        %v855 = vld [vmem:[%s363 + $0xd08] sm:$0xff]
        %v856 = vld [vmem:[%s363 + $0xd10] sm:$0xff]
        %v857 = vld [vmem:[%s363 + $0xd18] sm:$0xff]
        %v858 = vld [vmem:[%s363 + $0xd20] sm:$0xff]
        %v859 = vld [vmem:[%s363 + $0xd28] sm:$0xff]
        %v860 = vld [vmem:[%s363 + $0xd30] sm:$0xff]
        %v861 = vld [vmem:[%s363 + $0xd38] sm:$0xff]
        %v862 = vld [vmem:[%s363 + $0xd40] sm:$0xff]
        %v863 = vld [vmem:[%s363 + $0xd48] sm:$0xff]
        %v864 = vld [vmem:[%s363 + $0xd50] sm:$0xff]
        %v865 = vld [vmem:[%s363 + $0xd58] sm:$0xff]
        %v866 = vld [vmem:[%s363 + $0xd60] sm:$0xff]
        %v867 = vld [vmem:[%s363 + $0xd68] sm:$0xff]
        %v868 = vld [vmem:[%s363 + $0xd70] sm:$0xff]
        %v869 = vld [vmem:[%s363 + $0xd78] sm:$0xff]
        %v870 = vld [vmem:[%s363 + $0xd80] sm:$0xff]
        %v871 = vld [vmem:[%s363 + $0xd88] sm:$0xff]
        %v872 = vld [vmem:[%s363 + $0xd90] sm:$0xff]
        %v873 = vld [vmem:[%s363 + $0xd98] sm:$0xff]
        %v874 = vld [vmem:[%s363 + $0xda0] sm:$0xff]
        %v875 = vld [vmem:[%s363 + $0xda8] sm:$0xff]
        %v876 = vld [vmem:[%s363 + $0xdb0] sm:$0xff]
        %v877 = vld [vmem:[%s363 + $0xdb8] sm:$0xff]
        %v878 = vld [vmem:[%s363 + $0xdc0] sm:$0xff]
        %v879 = vld [vmem:[%s363 + $0xdc8] sm:$0xff]
        %v880 = vld [vmem:[%s363 + $0xdd0] sm:$0xff]
        %v881 = vld [vmem:[%s363 + $0xdd8] sm:$0xff]
        %v882 = vld [vmem:[%s363 + $0xde0] sm:$0xff]
        %v883 = vld [vmem:[%s363 + $0xde8] sm:$0xff]
        %v884 = vld [vmem:[%s363 + $0xdf0] sm:$0xff]
        %v885 = vld [vmem:[%s363 + $0xdf8] sm:$0xff]
        %v886 = vld [vmem:[%s363 + $0xe00] sm:$0xff]
        %v887 = vld [vmem:[%s363 + $0xe08] sm:$0xff]
        %v888 = vld [vmem:[%s363 + $0xe10] sm:$0xff]
        %v889 = vld [vmem:[%s363 + $0xe18] sm:$0xff]
        %v890 = vld [vmem:[%s363 + $0xe20] sm:$0xff]
        %v891 = vld [vmem:[%s363 + $0xe28] sm:$0xff]
        %v892 = vld [vmem:[%s363 + $0xe30] sm:$0xff]
        %v893 = vld [vmem:[%s363 + $0xe38] sm:$0xff]
        %v894 = vld [vmem:[%s363 + $0xe40] sm:$0xff]
        %v895 = vld [vmem:[%s363 + $0xe48] sm:$0xff]
        %v896 = vld [vmem:[%s363 + $0xe50] sm:$0xff]
        %v897 = vld [vmem:[%s363 + $0xe58] sm:$0xff]
        %v898 = vld [vmem:[%s363 + $0xe60] sm:$0xff]
        %v899 = vld [vmem:[%s363 + $0xe68] sm:$0xff]
        %v900 = vld [vmem:[%s363 + $0xe70] sm:$0xff]
        %v901 = vld [vmem:[%s363 + $0xe78] sm:$0xff]
        %v902 = vld [vmem:[%s363 + $0xe80] sm:$0xff]
        %v903 = vld [vmem:[%s363 + $0xe88] sm:$0xff]
        %v904 = vld [vmem:[%s363 + $0xe90] sm:$0xff]
        %v905 = vld [vmem:[%s363 + $0xe98] sm:$0xff]
        %v906 = vld [vmem:[%s363 + $0xea0] sm:$0xff]
        %v907 = vld [vmem:[%s363 + $0xea8] sm:$0xff]
        %v908 = vld [vmem:[%s363 + $0xeb0] sm:$0xff]
        %v909 = vld [vmem:[%s363 + $0xeb8] sm:$0xff]
        %v910 = vld [vmem:[%s363 + $0xec0] sm:$0xff]
        %v911 = vld [vmem:[%s363 + $0xec8] sm:$0xff]
        %v912 = vld [vmem:[%s363 + $0xed0] sm:$0xff]
        %v913 = vld [vmem:[%s363 + $0xed8] sm:$0xff]
        %v914 = vld [vmem:[%s363 + $0xee0] sm:$0xff]
        %v915 = vld [vmem:[%s363 + $0xee8] sm:$0xff]
        %v916 = vld [vmem:[%s363 + $0xef0] sm:$0xff]
        %v917 = vld [vmem:[%s363 + $0xef8] sm:$0xff]
        %v918 = vld [vmem:[%s363 + $0xf00] sm:$0xff]
        %v919 = vld [vmem:[%s363 + $0xf08] sm:$0xff]
        %v920 = vld [vmem:[%s363 + $0xf10] sm:$0xff]
        %v921 = vld [vmem:[%s363 + $0xf18] sm:$0xff]
        %v922 = vld [vmem:[%s363 + $0xf20] sm:$0xff]
        %v923 = vld [vmem:[%s363 + $0xf28] sm:$0xff]
        %v924 = vld [vmem:[%s363 + $0xf30] sm:$0xff]
        %v925 = vld [vmem:[%s363 + $0xf38] sm:$0xff]
        %v926 = vld [vmem:[%s363 + $0xf40] sm:$0xff]
        %v927 = vld [vmem:[%s363 + $0xf48] sm:$0xff]
        %v928 = vld [vmem:[%s363 + $0xf50] sm:$0xff]
        %v929 = vld [vmem:[%s363 + $0xf58] sm:$0xff]
        %v930 = vld [vmem:[%s363 + $0xf60] sm:$0xff]
        %v931 = vld [vmem:[%s363 + $0xf68] sm:$0xff]
        %v932 = vld [vmem:[%s363 + $0xf70] sm:$0xff]
        %v933 = vld [vmem:[%s363 + $0xf78] sm:$0xff]
        %v934 = vld [vmem:[%s363 + $0xf80] sm:$0xff]
        %v935 = vld [vmem:[%s363 + $0xf88] sm:$0xff]
        %v936 = vld [vmem:[%s363 + $0xf90] sm:$0xff]
        %v937 = vld [vmem:[%s363 + $0xf98] sm:$0xff]
        %v938 = vld [vmem:[%s363 + $0xfa0] sm:$0xff]
        %v939 = vld [vmem:[%s363 + $0xfa8] sm:$0xff]
        %v940 = vld [vmem:[%s363 + $0xfb0] sm:$0xff]
        %v941 = vld [vmem:[%s363 + $0xfb8] sm:$0xff]
        %v942 = vld [vmem:[%s363 + $0xfc0] sm:$0xff]
        %v943 = vld [vmem:[%s363 + $0xfc8] sm:$0xff]
        %v944 = vld [vmem:[%s363 + $0xfd0] sm:$0xff]
        %v945 = vld [vmem:[%s363 + $0xfd8] sm:$0xff]
        %v946 = vld [vmem:[%s363 + $0xfe0] sm:$0xff]
        %v947 = vld [vmem:[%s363 + $0xfe8] sm:$0xff]
        %v948 = vld [vmem:[%s363 + $0xff0] sm:$0xff]
        %v949 = vld [vmem:[%s363 + $0xff8] sm:$0xff]
        %v982 = vunpack.c.l.b16 %v406
        %v983 = vunpack.c.h.b16 %v406
        %v984 = vunpack.c.l.b16 %v407
        %v985 = vunpack.c.h.b16 %v407
        %v986 = vunpack.c.l.b16 %v408
        %v987 = vunpack.c.h.b16 %v408
        %v988 = vunpack.c.l.b16 %v409
        %v989 = vunpack.c.h.b16 %v409
        %v990 = vunpack.c.l.b16 %v410
        %v991 = vunpack.c.h.b16 %v410
        %v992 = vunpack.c.l.b16 %v411
        %v993 = vunpack.c.h.b16 %v411
        %v994 = vunpack.c.l.b16 %v412
        %v995 = vunpack.c.h.b16 %v412
        %v996 = vunpack.c.l.b16 %v413
        %v997 = vunpack.c.h.b16 %v413
        %v998 = vunpack.c.l.b16 %v414
        %v999 = vunpack.c.h.b16 %v414
        %v1000 = vunpack.c.l.b16 %v415
        %v1001 = vunpack.c.h.b16 %v415
        %v1002 = vunpack.c.l.b16 %v416
        %v1003 = vunpack.c.h.b16 %v416
        %v1004 = vunpack.c.l.b16 %v417
        %v1005 = vunpack.c.h.b16 %v417
        %v1006 = vunpack.c.l.b16 %v418
        %v1007 = vunpack.c.h.b16 %v418
        %v1008 = vunpack.c.l.b16 %v419
        %v1009 = vunpack.c.h.b16 %v419
        %v1010 = vunpack.c.l.b16 %v420
        %v1011 = vunpack.c.h.b16 %v420
        %v1012 = vunpack.c.l.b16 %v421
        %v1013 = vunpack.c.h.b16 %v421
        %v1014 = vunpack.c.l.b16 %v422
        %v1015 = vunpack.c.h.b16 %v422
        %v1016 = vunpack.c.l.b16 %v423
        %v1017 = vunpack.c.h.b16 %v423
        %v1018 = vunpack.c.l.b16 %v424
        %v1019 = vunpack.c.h.b16 %v424
        %v1020 = vunpack.c.l.b16 %v425
        %v1021 = vunpack.c.h.b16 %v425
        %v1022 = vunpack.c.l.b16 %v426
        %v1023 = vunpack.c.h.b16 %v426
        %v1024 = vunpack.c.l.b16 %v427
        %v1025 = vunpack.c.h.b16 %v427
        %v1026 = vunpack.c.l.b16 %v428
        %v1027 = vunpack.c.h.b16 %v428
        %v1028 = vunpack.c.l.b16 %v429
        %v1029 = vunpack.c.h.b16 %v429
        %v1030 = vunpack.c.l.b16 %v430
        %v1031 = vunpack.c.h.b16 %v430
        %v1032 = vunpack.c.l.b16 %v431
        %v1033 = vunpack.c.h.b16 %v431
        %v1034 = vunpack.c.l.b16 %v432
        %v1035 = vunpack.c.h.b16 %v432
        %v1036 = vunpack.c.l.b16 %v433
        %v1037 = vunpack.c.h.b16 %v433
        %v1038 = vunpack.c.l.b16 %v434
        %v1039 = vunpack.c.h.b16 %v434
        %v1040 = vunpack.c.l.b16 %v435
        %v1041 = vunpack.c.h.b16 %v435
        %v1042 = vunpack.c.l.b16 %v436
        %v1043 = vunpack.c.h.b16 %v436
        %v1044 = vunpack.c.l.b16 %v437
        %v1045 = vunpack.c.h.b16 %v437
        %v1046 = vpack.c.b16 %v998, %v982
        %v1047 = vpack.c.b16 %v999, %v983
        %v1048 = vpack.c.b16 %v1000, %v984
        %v1049 = vpack.c.b16 %v1001, %v985
        %v1050 = vpack.c.b16 %v1002, %v986
        %v1051 = vpack.c.b16 %v1003, %v987
        %v1052 = vpack.c.b16 %v1004, %v988
        %v1053 = vpack.c.b16 %v1005, %v989
        %v1054 = vpack.c.b16 %v1006, %v990
        %v1055 = vpack.c.b16 %v1007, %v991
        %v1056 = vpack.c.b16 %v1008, %v992
        %v1057 = vpack.c.b16 %v1009, %v993
        %v1058 = vpack.c.b16 %v1010, %v994
        %v1059 = vpack.c.b16 %v1011, %v995
        %v1060 = vpack.c.b16 %v1012, %v996
        %v1061 = vpack.c.b16 %v1013, %v997
        %v1062 = vpack.c.b16 %v1030, %v1014
        %v1063 = vpack.c.b16 %v1031, %v1015
        %v1064 = vpack.c.b16 %v1032, %v1016
        %v1065 = vpack.c.b16 %v1033, %v1017
        %v1066 = vpack.c.b16 %v1034, %v1018
        %v1067 = vpack.c.b16 %v1035, %v1019
        %v1068 = vpack.c.b16 %v1036, %v1020
        %v1069 = vpack.c.b16 %v1037, %v1021
        %v1070 = vpack.c.b16 %v1038, %v1022
        %v1071 = vpack.c.b16 %v1039, %v1023
        %v1072 = vpack.c.b16 %v1040, %v1024
        %v1073 = vpack.c.b16 %v1041, %v1025
        %v1074 = vpack.c.b16 %v1042, %v1026
        %v1075 = vpack.c.b16 %v1043, %v1027
        %v1076 = vpack.c.b16 %v1044, %v1028
        %v1077 = vpack.c.b16 %v1045, %v1029
        %v1622 = vunpack.c.l.b16 %v438
        %v1623 = vunpack.c.h.b16 %v438
        %v1624 = vunpack.c.l.b16 %v439
        %v1625 = vunpack.c.h.b16 %v439
        %v1626 = vunpack.c.l.b16 %v440
        %v1627 = vunpack.c.h.b16 %v440
        %v1628 = vunpack.c.l.b16 %v441
        %v1629 = vunpack.c.h.b16 %v441
        %v1630 = vunpack.c.l.b16 %v442
        %v1631 = vunpack.c.h.b16 %v442
        %v1632 = vunpack.c.l.b16 %v443
        %v1633 = vunpack.c.h.b16 %v443
        %v1634 = vunpack.c.l.b16 %v444
        %v1635 = vunpack.c.h.b16 %v444
        %v1636 = vunpack.c.l.b16 %v445
        %v1637 = vunpack.c.h.b16 %v445
        %v1638 = vunpack.c.l.b16 %v446
        %v1639 = vunpack.c.h.b16 %v446
        %v1640 = vunpack.c.l.b16 %v447
        %v1641 = vunpack.c.h.b16 %v447
        %v1642 = vunpack.c.l.b16 %v448
        %v1643 = vunpack.c.h.b16 %v448
        %v1644 = vunpack.c.l.b16 %v449
        %v1645 = vunpack.c.h.b16 %v449
        %v1646 = vunpack.c.l.b16 %v450
        %v1647 = vunpack.c.h.b16 %v450
        %v1648 = vunpack.c.l.b16 %v451
        %v1649 = vunpack.c.h.b16 %v451
        %v1650 = vunpack.c.l.b16 %v452
        %v1651 = vunpack.c.h.b16 %v452
        %v1652 = vunpack.c.l.b16 %v453
        %v1653 = vunpack.c.h.b16 %v453
        %v1654 = vunpack.c.l.b16 %v454
        %v1655 = vunpack.c.h.b16 %v454
        %v1656 = vunpack.c.l.b16 %v455
        %v1657 = vunpack.c.h.b16 %v455
        %v1658 = vunpack.c.l.b16 %v456
        %v1659 = vunpack.c.h.b16 %v456
        %v1660 = vunpack.c.l.b16 %v457
        %v1661 = vunpack.c.h.b16 %v457
        %v1662 = vunpack.c.l.b16 %v458
        %v1663 = vunpack.c.h.b16 %v458
        %v1664 = vunpack.c.l.b16 %v459
        %v1665 = vunpack.c.h.b16 %v459
        %v1666 = vunpack.c.l.b16 %v460
        %v1667 = vunpack.c.h.b16 %v460
        %v1668 = vunpack.c.l.b16 %v461
        %v1669 = vunpack.c.h.b16 %v461
        %v1670 = vunpack.c.l.b16 %v462
        %v1671 = vunpack.c.h.b16 %v462
        %v1672 = vunpack.c.l.b16 %v463
        %v1673 = vunpack.c.h.b16 %v463
        %v1674 = vunpack.c.l.b16 %v464
        %v1675 = vunpack.c.h.b16 %v464
        %v1676 = vunpack.c.l.b16 %v465
        %v1677 = vunpack.c.h.b16 %v465
        %v1678 = vunpack.c.l.b16 %v466
        %v1679 = vunpack.c.h.b16 %v466
        %v1680 = vunpack.c.l.b16 %v467
        %v1681 = vunpack.c.h.b16 %v467
        %v1682 = vunpack.c.l.b16 %v468
        %v1683 = vunpack.c.h.b16 %v468
        %v1684 = vunpack.c.l.b16 %v469
        %v1685 = vunpack.c.h.b16 %v469
        %v1686 = vunpack.c.l.b16 %v470
        %v1687 = vunpack.c.h.b16 %v470
        %v1688 = vunpack.c.l.b16 %v471
        %v1689 = vunpack.c.h.b16 %v471
        %v1690 = vunpack.c.l.b16 %v472
        %v1691 = vunpack.c.h.b16 %v472
        %v1692 = vunpack.c.l.b16 %v473
        %v1693 = vunpack.c.h.b16 %v473
        %v1694 = vunpack.c.l.b16 %v474
        %v1695 = vunpack.c.h.b16 %v474
        %v1696 = vunpack.c.l.b16 %v475
        %v1697 = vunpack.c.h.b16 %v475
        %v1698 = vunpack.c.l.b16 %v476
        %v1699 = vunpack.c.h.b16 %v476
        %v1700 = vunpack.c.l.b16 %v477
        %v1701 = vunpack.c.h.b16 %v477
        %v1702 = vunpack.c.l.b16 %v478
        %v1703 = vunpack.c.h.b16 %v478
        %v1704 = vunpack.c.l.b16 %v479
        %v1705 = vunpack.c.h.b16 %v479
        %v1706 = vunpack.c.l.b16 %v480
        %v1707 = vunpack.c.h.b16 %v480
        %v1708 = vunpack.c.l.b16 %v481
        %v1709 = vunpack.c.h.b16 %v481
        %v1710 = vunpack.c.l.b16 %v482
        %v1711 = vunpack.c.h.b16 %v482
        %v1712 = vunpack.c.l.b16 %v483
        %v1713 = vunpack.c.h.b16 %v483
        %v1714 = vunpack.c.l.b16 %v484
        %v1715 = vunpack.c.h.b16 %v484
        %v1716 = vunpack.c.l.b16 %v485
        %v1717 = vunpack.c.h.b16 %v485
        %v1718 = vunpack.c.l.b16 %v486
        %v1719 = vunpack.c.h.b16 %v486
        %v1720 = vunpack.c.l.b16 %v487
        %v1721 = vunpack.c.h.b16 %v487
        %v1722 = vunpack.c.l.b16 %v488
        %v1723 = vunpack.c.h.b16 %v488
        %v1724 = vunpack.c.l.b16 %v489
        %v1725 = vunpack.c.h.b16 %v489
        %v1726 = vunpack.c.l.b16 %v490
        %v1727 = vunpack.c.h.b16 %v490
        %v1728 = vunpack.c.l.b16 %v491
        %v1729 = vunpack.c.h.b16 %v491
        %v1730 = vunpack.c.l.b16 %v492
        %v1731 = vunpack.c.h.b16 %v492
        %v1732 = vunpack.c.l.b16 %v493
        %v1733 = vunpack.c.h.b16 %v493
        %v1734 = vunpack.c.l.b16 %v494
        %v1735 = vunpack.c.h.b16 %v494
        %v1736 = vunpack.c.l.b16 %v495
        %v1737 = vunpack.c.h.b16 %v495
        %v1738 = vunpack.c.l.b16 %v496
        %v1739 = vunpack.c.h.b16 %v496
        %v1740 = vunpack.c.l.b16 %v497
        %v1741 = vunpack.c.h.b16 %v497
        %v1742 = vunpack.c.l.b16 %v498
        %v1743 = vunpack.c.h.b16 %v498
        %v1744 = vunpack.c.l.b16 %v499
        %v1745 = vunpack.c.h.b16 %v499
        %v1746 = vunpack.c.l.b16 %v500
        %v1747 = vunpack.c.h.b16 %v500
        %v1748 = vunpack.c.l.b16 %v501
        %v1749 = vunpack.c.h.b16 %v501
        %v1750 = vunpack.c.l.b16 %v502
        %v1751 = vunpack.c.h.b16 %v502
        %v1752 = vunpack.c.l.b16 %v503
        %v1753 = vunpack.c.h.b16 %v503
        %v1754 = vunpack.c.l.b16 %v504
        %v1755 = vunpack.c.h.b16 %v504
        %v1756 = vunpack.c.l.b16 %v505
        %v1757 = vunpack.c.h.b16 %v505
        %v1758 = vunpack.c.l.b16 %v506
        %v1759 = vunpack.c.h.b16 %v506
        %v1760 = vunpack.c.l.b16 %v507
        %v1761 = vunpack.c.h.b16 %v507
        %v1762 = vunpack.c.l.b16 %v508
        %v1763 = vunpack.c.h.b16 %v508
        %v1764 = vunpack.c.l.b16 %v509
        %v1765 = vunpack.c.h.b16 %v509
        %v1766 = vunpack.c.l.b16 %v510
        %v1767 = vunpack.c.h.b16 %v510
        %v1768 = vunpack.c.l.b16 %v511
        %v1769 = vunpack.c.h.b16 %v511
        %v1770 = vunpack.c.l.b16 %v512
        %v1771 = vunpack.c.h.b16 %v512
        %v1772 = vunpack.c.l.b16 %v513
        %v1773 = vunpack.c.h.b16 %v513
        %v1774 = vunpack.c.l.b16 %v514
        %v1775 = vunpack.c.h.b16 %v514
        %v1776 = vunpack.c.l.b16 %v515
        %v1777 = vunpack.c.h.b16 %v515
        %v1778 = vunpack.c.l.b16 %v516
        %v1779 = vunpack.c.h.b16 %v516
        %v1780 = vunpack.c.l.b16 %v517
        %v1781 = vunpack.c.h.b16 %v517
        %v1782 = vunpack.c.l.b16 %v518
        %v1783 = vunpack.c.h.b16 %v518
        %v1784 = vunpack.c.l.b16 %v519
        %v1785 = vunpack.c.h.b16 %v519
        %v1786 = vunpack.c.l.b16 %v520
        %v1787 = vunpack.c.h.b16 %v520
        %v1788 = vunpack.c.l.b16 %v521
        %v1789 = vunpack.c.h.b16 %v521
        %v1790 = vunpack.c.l.b16 %v522
        %v1791 = vunpack.c.h.b16 %v522
        %v1792 = vunpack.c.l.b16 %v523
        %v1793 = vunpack.c.h.b16 %v523
        %v1794 = vunpack.c.l.b16 %v524
        %v1795 = vunpack.c.h.b16 %v524
        %v1796 = vunpack.c.l.b16 %v525
        %v1797 = vunpack.c.h.b16 %v525
        %v1798 = vunpack.c.l.b16 %v526
        %v1799 = vunpack.c.h.b16 %v526
        %v1800 = vunpack.c.l.b16 %v527
        %v1801 = vunpack.c.h.b16 %v527
        %v1802 = vunpack.c.l.b16 %v528
        %v1803 = vunpack.c.h.b16 %v528
        %v1804 = vunpack.c.l.b16 %v529
        %v1805 = vunpack.c.h.b16 %v529
        %v1806 = vunpack.c.l.b16 %v530
        %v1807 = vunpack.c.h.b16 %v530
        %v1808 = vunpack.c.l.b16 %v531
        %v1809 = vunpack.c.h.b16 %v531
        %v1810 = vunpack.c.l.b16 %v532
        %v1811 = vunpack.c.h.b16 %v532
        %v1812 = vunpack.c.l.b16 %v533
        %v1813 = vunpack.c.h.b16 %v533
        %v1814 = vunpack.c.l.b16 %v534
        %v1815 = vunpack.c.h.b16 %v534
        %v1816 = vunpack.c.l.b16 %v535
        %v1817 = vunpack.c.h.b16 %v535
        %v1818 = vunpack.c.l.b16 %v536
        %v1819 = vunpack.c.h.b16 %v536
        %v1820 = vunpack.c.l.b16 %v537
        %v1821 = vunpack.c.h.b16 %v537
        %v1822 = vunpack.c.l.b16 %v538
        %v1823 = vunpack.c.h.b16 %v538
        %v1824 = vunpack.c.l.b16 %v539
        %v1825 = vunpack.c.h.b16 %v539
        %v1826 = vunpack.c.l.b16 %v540
        %v1827 = vunpack.c.h.b16 %v540
        %v1828 = vunpack.c.l.b16 %v541
        %v1829 = vunpack.c.h.b16 %v541
        %v1830 = vunpack.c.l.b16 %v542
        %v1831 = vunpack.c.h.b16 %v542
        %v1832 = vunpack.c.l.b16 %v543
        %v1833 = vunpack.c.h.b16 %v543
        %v1834 = vunpack.c.l.b16 %v544
        %v1835 = vunpack.c.h.b16 %v544
        %v1836 = vunpack.c.l.b16 %v545
        %v1837 = vunpack.c.h.b16 %v545
        %v1838 = vunpack.c.l.b16 %v546
        %v1839 = vunpack.c.h.b16 %v546
        %v1840 = vunpack.c.l.b16 %v547
        %v1841 = vunpack.c.h.b16 %v547
        %v1842 = vunpack.c.l.b16 %v548
        %v1843 = vunpack.c.h.b16 %v548
        %v1844 = vunpack.c.l.b16 %v549
        %v1845 = vunpack.c.h.b16 %v549
        %v1846 = vunpack.c.l.b16 %v550
        %v1847 = vunpack.c.h.b16 %v550
        %v1848 = vunpack.c.l.b16 %v551
        %v1849 = vunpack.c.h.b16 %v551
        %v1850 = vunpack.c.l.b16 %v552
        %v1851 = vunpack.c.h.b16 %v552
        %v1852 = vunpack.c.l.b16 %v553
        %v1853 = vunpack.c.h.b16 %v553
        %v1854 = vunpack.c.l.b16 %v554
        %v1855 = vunpack.c.h.b16 %v554
        %v1856 = vunpack.c.l.b16 %v555
        %v1857 = vunpack.c.h.b16 %v555
        %v1858 = vunpack.c.l.b16 %v556
        %v1859 = vunpack.c.h.b16 %v556
        %v1860 = vunpack.c.l.b16 %v557
        %v1861 = vunpack.c.h.b16 %v557
        %v1862 = vunpack.c.l.b16 %v558
        %v1863 = vunpack.c.h.b16 %v558
        %v1864 = vunpack.c.l.b16 %v559
        %v1865 = vunpack.c.h.b16 %v559
        %v1866 = vunpack.c.l.b16 %v560
        %v1867 = vunpack.c.h.b16 %v560
        %v1868 = vunpack.c.l.b16 %v561
        %v1869 = vunpack.c.h.b16 %v561
        %v1870 = vunpack.c.l.b16 %v562
        %v1871 = vunpack.c.h.b16 %v562
        %v1872 = vunpack.c.l.b16 %v563
        %v1873 = vunpack.c.h.b16 %v563
        %v1874 = vunpack.c.l.b16 %v564
        %v1875 = vunpack.c.h.b16 %v564
        %v1876 = vunpack.c.l.b16 %v565
        %v1877 = vunpack.c.h.b16 %v565
        %v1878 = vunpack.c.l.b16 %v566
        %v1879 = vunpack.c.h.b16 %v566
        %v1880 = vunpack.c.l.b16 %v567
        %v1881 = vunpack.c.h.b16 %v567
        %v1882 = vunpack.c.l.b16 %v568
        %v1883 = vunpack.c.h.b16 %v568
        %v1884 = vunpack.c.l.b16 %v569
        %v1885 = vunpack.c.h.b16 %v569
        %v1886 = vunpack.c.l.b16 %v570
        %v1887 = vunpack.c.h.b16 %v570
        %v1888 = vunpack.c.l.b16 %v571
        %v1889 = vunpack.c.h.b16 %v571
        %v1890 = vunpack.c.l.b16 %v572
        %v1891 = vunpack.c.h.b16 %v572
        %v1892 = vunpack.c.l.b16 %v573
        %v1893 = vunpack.c.h.b16 %v573
        %v1894 = vunpack.c.l.b16 %v574
        %v1895 = vunpack.c.h.b16 %v574
        %v1896 = vunpack.c.l.b16 %v575
        %v1897 = vunpack.c.h.b16 %v575
        %v1898 = vunpack.c.l.b16 %v576
        %v1899 = vunpack.c.h.b16 %v576
        %v1900 = vunpack.c.l.b16 %v577
        %v1901 = vunpack.c.h.b16 %v577
        %v1902 = vunpack.c.l.b16 %v578
        %v1903 = vunpack.c.h.b16 %v578
        %v1904 = vunpack.c.l.b16 %v579
        %v1905 = vunpack.c.h.b16 %v579
        %v1906 = vunpack.c.l.b16 %v580
        %v1907 = vunpack.c.h.b16 %v580
        %v1908 = vunpack.c.l.b16 %v581
        %v1909 = vunpack.c.h.b16 %v581
        %v1910 = vunpack.c.l.b16 %v582
        %v1911 = vunpack.c.h.b16 %v582
        %v1912 = vunpack.c.l.b16 %v583
        %v1913 = vunpack.c.h.b16 %v583
        %v1914 = vunpack.c.l.b16 %v584
        %v1915 = vunpack.c.h.b16 %v584
        %v1916 = vunpack.c.l.b16 %v585
        %v1917 = vunpack.c.h.b16 %v585
        %v1918 = vunpack.c.l.b16 %v586
        %v1919 = vunpack.c.h.b16 %v586
        %v1920 = vunpack.c.l.b16 %v587
        %v1921 = vunpack.c.h.b16 %v587
        %v1922 = vunpack.c.l.b16 %v588
        %v1923 = vunpack.c.h.b16 %v588
        %v1924 = vunpack.c.l.b16 %v589
        %v1925 = vunpack.c.h.b16 %v589
        %v1926 = vunpack.c.l.b16 %v590
        %v1927 = vunpack.c.h.b16 %v590
        %v1928 = vunpack.c.l.b16 %v591
        %v1929 = vunpack.c.h.b16 %v591
        %v1930 = vunpack.c.l.b16 %v592
        %v1931 = vunpack.c.h.b16 %v592
        %v1932 = vunpack.c.l.b16 %v593
        %v1933 = vunpack.c.h.b16 %v593
        %v1934 = vunpack.c.l.b16 %v594
        %v1935 = vunpack.c.h.b16 %v594
        %v1936 = vunpack.c.l.b16 %v595
        %v1937 = vunpack.c.h.b16 %v595
        %v1938 = vunpack.c.l.b16 %v596
        %v1939 = vunpack.c.h.b16 %v596
        %v1940 = vunpack.c.l.b16 %v597
        %v1941 = vunpack.c.h.b16 %v597
        %v1942 = vunpack.c.l.b16 %v598
        %v1943 = vunpack.c.h.b16 %v598
        %v1944 = vunpack.c.l.b16 %v599
        %v1945 = vunpack.c.h.b16 %v599
        %v1946 = vunpack.c.l.b16 %v600
        %v1947 = vunpack.c.h.b16 %v600
        %v1948 = vunpack.c.l.b16 %v601
        %v1949 = vunpack.c.h.b16 %v601
        %v1950 = vunpack.c.l.b16 %v602
        %v1951 = vunpack.c.h.b16 %v602
        %v1952 = vunpack.c.l.b16 %v603
        %v1953 = vunpack.c.h.b16 %v603
        %v1954 = vunpack.c.l.b16 %v604
        %v1955 = vunpack.c.h.b16 %v604
        %v1956 = vunpack.c.l.b16 %v605
        %v1957 = vunpack.c.h.b16 %v605
        %v1958 = vunpack.c.l.b16 %v606
        %v1959 = vunpack.c.h.b16 %v606
        %v1960 = vunpack.c.l.b16 %v607
        %v1961 = vunpack.c.h.b16 %v607
        %v1962 = vunpack.c.l.b16 %v608
        %v1963 = vunpack.c.h.b16 %v608
        %v1964 = vunpack.c.l.b16 %v609
        %v1965 = vunpack.c.h.b16 %v609
        %v1966 = vunpack.c.l.b16 %v610
        %v1967 = vunpack.c.h.b16 %v610
        %v1968 = vunpack.c.l.b16 %v611
        %v1969 = vunpack.c.h.b16 %v611
        %v1970 = vunpack.c.l.b16 %v612
        %v1971 = vunpack.c.h.b16 %v612
        %v1972 = vunpack.c.l.b16 %v613
        %v1973 = vunpack.c.h.b16 %v613
        %v1974 = vunpack.c.l.b16 %v614
        %v1975 = vunpack.c.h.b16 %v614
        %v1976 = vunpack.c.l.b16 %v615
        %v1977 = vunpack.c.h.b16 %v615
        %v1978 = vunpack.c.l.b16 %v616
        %v1979 = vunpack.c.h.b16 %v616
        %v1980 = vunpack.c.l.b16 %v617
        %v1981 = vunpack.c.h.b16 %v617
        %v1982 = vunpack.c.l.b16 %v618
        %v1983 = vunpack.c.h.b16 %v618
        %v1984 = vunpack.c.l.b16 %v619
        %v1985 = vunpack.c.h.b16 %v619
        %v1986 = vunpack.c.l.b16 %v620
        %v1987 = vunpack.c.h.b16 %v620
        %v1988 = vunpack.c.l.b16 %v621
        %v1989 = vunpack.c.h.b16 %v621
        %v1990 = vunpack.c.l.b16 %v622
        %v1991 = vunpack.c.h.b16 %v622
        %v1992 = vunpack.c.l.b16 %v623
        %v1993 = vunpack.c.h.b16 %v623
        %v1994 = vunpack.c.l.b16 %v624
        %v1995 = vunpack.c.h.b16 %v624
        %v1996 = vunpack.c.l.b16 %v625
        %v1997 = vunpack.c.h.b16 %v625
        %v1998 = vunpack.c.l.b16 %v626
        %v1999 = vunpack.c.h.b16 %v626
        %v2000 = vunpack.c.l.b16 %v627
        %v2001 = vunpack.c.h.b16 %v627
        %v2002 = vunpack.c.l.b16 %v628
        %v2003 = vunpack.c.h.b16 %v628
        %v2004 = vunpack.c.l.b16 %v629
        %v2005 = vunpack.c.h.b16 %v629
        %v2006 = vunpack.c.l.b16 %v630
        %v2007 = vunpack.c.h.b16 %v630
        %v2008 = vunpack.c.l.b16 %v631
        %v2009 = vunpack.c.h.b16 %v631
        %v2010 = vunpack.c.l.b16 %v632
        %v2011 = vunpack.c.h.b16 %v632
        %v2012 = vunpack.c.l.b16 %v633
        %v2013 = vunpack.c.h.b16 %v633
        %v2014 = vunpack.c.l.b16 %v634
        %v2015 = vunpack.c.h.b16 %v634
        %v2016 = vunpack.c.l.b16 %v635
        %v2017 = vunpack.c.h.b16 %v635
        %v2018 = vunpack.c.l.b16 %v636
        %v2019 = vunpack.c.h.b16 %v636
        %v2020 = vunpack.c.l.b16 %v637
        %v2021 = vunpack.c.h.b16 %v637
        %v2022 = vunpack.c.l.b16 %v638
        %v2023 = vunpack.c.h.b16 %v638
        %v2024 = vunpack.c.l.b16 %v639
        %v2025 = vunpack.c.h.b16 %v639
        %v2026 = vunpack.c.l.b16 %v640
        %v2027 = vunpack.c.h.b16 %v640
        %v2028 = vunpack.c.l.b16 %v641
        %v2029 = vunpack.c.h.b16 %v641
        %v2030 = vunpack.c.l.b16 %v642
        %v2031 = vunpack.c.h.b16 %v642
        %v2032 = vunpack.c.l.b16 %v643
        %v2033 = vunpack.c.h.b16 %v643
        %v2034 = vunpack.c.l.b16 %v644
        %v2035 = vunpack.c.h.b16 %v644
        %v2036 = vunpack.c.l.b16 %v645
        %v2037 = vunpack.c.h.b16 %v645
        %v2038 = vunpack.c.l.b16 %v646
        %v2039 = vunpack.c.h.b16 %v646
        %v2040 = vunpack.c.l.b16 %v647
        %v2041 = vunpack.c.h.b16 %v647
        %v2042 = vunpack.c.l.b16 %v648
        %v2043 = vunpack.c.h.b16 %v648
        %v2044 = vunpack.c.l.b16 %v649
        %v2045 = vunpack.c.h.b16 %v649
        %v2046 = vunpack.c.l.b16 %v650
        %v2047 = vunpack.c.h.b16 %v650
        %v2048 = vunpack.c.l.b16 %v651
        %v2049 = vunpack.c.h.b16 %v651
        %v2050 = vunpack.c.l.b16 %v652
        %v2051 = vunpack.c.h.b16 %v652
        %v2052 = vunpack.c.l.b16 %v653
        %v2053 = vunpack.c.h.b16 %v653
        %v2054 = vunpack.c.l.b16 %v654
        %v2055 = vunpack.c.h.b16 %v654
        %v2056 = vunpack.c.l.b16 %v655
        %v2057 = vunpack.c.h.b16 %v655
        %v2058 = vunpack.c.l.b16 %v656
        %v2059 = vunpack.c.h.b16 %v656
        %v2060 = vunpack.c.l.b16 %v657
        %v2061 = vunpack.c.h.b16 %v657
        %v2062 = vunpack.c.l.b16 %v658
        %v2063 = vunpack.c.h.b16 %v658
        %v2064 = vunpack.c.l.b16 %v659
        %v2065 = vunpack.c.h.b16 %v659
        %v2066 = vunpack.c.l.b16 %v660
        %v2067 = vunpack.c.h.b16 %v660
        %v2068 = vunpack.c.l.b16 %v661
        %v2069 = vunpack.c.h.b16 %v661
        %v2070 = vunpack.c.l.b16 %v662
        %v2071 = vunpack.c.h.b16 %v662
        %v2072 = vunpack.c.l.b16 %v663
        %v2073 = vunpack.c.h.b16 %v663
        %v2074 = vunpack.c.l.b16 %v664
        %v2075 = vunpack.c.h.b16 %v664
        %v2076 = vunpack.c.l.b16 %v665
        %v2077 = vunpack.c.h.b16 %v665
        %v2078 = vunpack.c.l.b16 %v666
        %v2079 = vunpack.c.h.b16 %v666
        %v2080 = vunpack.c.l.b16 %v667
        %v2081 = vunpack.c.h.b16 %v667
        %v2082 = vunpack.c.l.b16 %v668
        %v2083 = vunpack.c.h.b16 %v668
        %v2084 = vunpack.c.l.b16 %v669
        %v2085 = vunpack.c.h.b16 %v669
        %v2086 = vunpack.c.l.b16 %v670
        %v2087 = vunpack.c.h.b16 %v670
        %v2088 = vunpack.c.l.b16 %v671
        %v2089 = vunpack.c.h.b16 %v671
        %v2090 = vunpack.c.l.b16 %v672
        %v2091 = vunpack.c.h.b16 %v672
        %v2092 = vunpack.c.l.b16 %v673
        %v2093 = vunpack.c.h.b16 %v673
        %v2094 = vunpack.c.l.b16 %v674
        %v2095 = vunpack.c.h.b16 %v674
        %v2096 = vunpack.c.l.b16 %v675
        %v2097 = vunpack.c.h.b16 %v675
        %v2098 = vunpack.c.l.b16 %v676
        %v2099 = vunpack.c.h.b16 %v676
        %v2100 = vunpack.c.l.b16 %v677
        %v2101 = vunpack.c.h.b16 %v677
        %v2102 = vunpack.c.l.b16 %v678
        %v2103 = vunpack.c.h.b16 %v678
        %v2104 = vunpack.c.l.b16 %v679
        %v2105 = vunpack.c.h.b16 %v679
        %v2106 = vunpack.c.l.b16 %v680
        %v2107 = vunpack.c.h.b16 %v680
        %v2108 = vunpack.c.l.b16 %v681
        %v2109 = vunpack.c.h.b16 %v681
        %v2110 = vunpack.c.l.b16 %v682
        %v2111 = vunpack.c.h.b16 %v682
        %v2112 = vunpack.c.l.b16 %v683
        %v2113 = vunpack.c.h.b16 %v683
        %v2114 = vunpack.c.l.b16 %v684
        %v2115 = vunpack.c.h.b16 %v684
        %v2116 = vunpack.c.l.b16 %v685
        %v2117 = vunpack.c.h.b16 %v685
        %v2118 = vunpack.c.l.b16 %v686
        %v2119 = vunpack.c.h.b16 %v686
        %v2120 = vunpack.c.l.b16 %v687
        %v2121 = vunpack.c.h.b16 %v687
        %v2122 = vunpack.c.l.b16 %v688
        %v2123 = vunpack.c.h.b16 %v688
        %v2124 = vunpack.c.l.b16 %v689
        %v2125 = vunpack.c.h.b16 %v689
        %v2126 = vunpack.c.l.b16 %v690
        %v2127 = vunpack.c.h.b16 %v690
        %v2128 = vunpack.c.l.b16 %v691
        %v2129 = vunpack.c.h.b16 %v691
        %v2130 = vunpack.c.l.b16 %v692
        %v2131 = vunpack.c.h.b16 %v692
        %v2132 = vunpack.c.l.b16 %v693
        %v2133 = vunpack.c.h.b16 %v693
        %v2134 = vunpack.c.l.b16 %v694
        %v2135 = vunpack.c.h.b16 %v694
        %v2136 = vunpack.c.l.b16 %v695
        %v2137 = vunpack.c.h.b16 %v695
        %v2138 = vunpack.c.l.b16 %v696
        %v2139 = vunpack.c.h.b16 %v696
        %v2140 = vunpack.c.l.b16 %v697
        %v2141 = vunpack.c.h.b16 %v697
        %v2142 = vunpack.c.l.b16 %v698
        %v2143 = vunpack.c.h.b16 %v698
        %v2144 = vunpack.c.l.b16 %v699
        %v2145 = vunpack.c.h.b16 %v699
        %v2146 = vunpack.c.l.b16 %v700
        %v2147 = vunpack.c.h.b16 %v700
        %v2148 = vunpack.c.l.b16 %v701
        %v2149 = vunpack.c.h.b16 %v701
        %v2150 = vunpack.c.l.b16 %v702
        %v2151 = vunpack.c.h.b16 %v702
        %v2152 = vunpack.c.l.b16 %v703
        %v2153 = vunpack.c.h.b16 %v703
        %v2154 = vunpack.c.l.b16 %v704
        %v2155 = vunpack.c.h.b16 %v704
        %v2156 = vunpack.c.l.b16 %v705
        %v2157 = vunpack.c.h.b16 %v705
        %v2158 = vunpack.c.l.b16 %v706
        %v2159 = vunpack.c.h.b16 %v706
        %v2160 = vunpack.c.l.b16 %v707
        %v2161 = vunpack.c.h.b16 %v707
        %v2162 = vunpack.c.l.b16 %v708
        %v2163 = vunpack.c.h.b16 %v708
        %v2164 = vunpack.c.l.b16 %v709
        %v2165 = vunpack.c.h.b16 %v709
        %v2166 = vunpack.c.l.b16 %v710
        %v2167 = vunpack.c.h.b16 %v710
        %v2168 = vunpack.c.l.b16 %v711
        %v2169 = vunpack.c.h.b16 %v711
        %v2170 = vunpack.c.l.b16 %v712
        %v2171 = vunpack.c.h.b16 %v712
        %v2172 = vunpack.c.l.b16 %v713
        %v2173 = vunpack.c.h.b16 %v713
        %v2174 = vunpack.c.l.b16 %v714
        %v2175 = vunpack.c.h.b16 %v714
        %v2176 = vunpack.c.l.b16 %v715
        %v2177 = vunpack.c.h.b16 %v715
        %v2178 = vunpack.c.l.b16 %v716
        %v2179 = vunpack.c.h.b16 %v716
        %v2180 = vunpack.c.l.b16 %v717
        %v2181 = vunpack.c.h.b16 %v717
        %v2182 = vunpack.c.l.b16 %v718
        %v2183 = vunpack.c.h.b16 %v718
        %v2184 = vunpack.c.l.b16 %v719
        %v2185 = vunpack.c.h.b16 %v719
        %v2186 = vunpack.c.l.b16 %v720
        %v2187 = vunpack.c.h.b16 %v720
        %v2188 = vunpack.c.l.b16 %v721
        %v2189 = vunpack.c.h.b16 %v721
        %v2190 = vunpack.c.l.b16 %v722
        %v2191 = vunpack.c.h.b16 %v722
        %v2192 = vunpack.c.l.b16 %v723
        %v2193 = vunpack.c.h.b16 %v723
        %v2194 = vunpack.c.l.b16 %v724
        %v2195 = vunpack.c.h.b16 %v724
        %v2196 = vunpack.c.l.b16 %v725
        %v2197 = vunpack.c.h.b16 %v725
        %v2198 = vunpack.c.l.b16 %v726
        %v2199 = vunpack.c.h.b16 %v726
        %v2200 = vunpack.c.l.b16 %v727
        %v2201 = vunpack.c.h.b16 %v727
        %v2202 = vunpack.c.l.b16 %v728
        %v2203 = vunpack.c.h.b16 %v728
        %v2204 = vunpack.c.l.b16 %v729
        %v2205 = vunpack.c.h.b16 %v729
        %v2206 = vunpack.c.l.b16 %v730
        %v2207 = vunpack.c.h.b16 %v730
        %v2208 = vunpack.c.l.b16 %v731
        %v2209 = vunpack.c.h.b16 %v731
        %v2210 = vunpack.c.l.b16 %v732
        %v2211 = vunpack.c.h.b16 %v732
        %v2212 = vunpack.c.l.b16 %v733
        %v2213 = vunpack.c.h.b16 %v733
        %v2214 = vunpack.c.l.b16 %v734
        %v2215 = vunpack.c.h.b16 %v734
        %v2216 = vunpack.c.l.b16 %v735
        %v2217 = vunpack.c.h.b16 %v735
        %v2218 = vunpack.c.l.b16 %v736
        %v2219 = vunpack.c.h.b16 %v736
        %v2220 = vunpack.c.l.b16 %v737
        %v2221 = vunpack.c.h.b16 %v737
        %v2222 = vunpack.c.l.b16 %v738
        %v2223 = vunpack.c.h.b16 %v738
        %v2224 = vunpack.c.l.b16 %v739
        %v2225 = vunpack.c.h.b16 %v739
        %v2226 = vunpack.c.l.b16 %v740
        %v2227 = vunpack.c.h.b16 %v740
        %v2228 = vunpack.c.l.b16 %v741
        %v2229 = vunpack.c.h.b16 %v741
        %v2230 = vunpack.c.l.b16 %v742
        %v2231 = vunpack.c.h.b16 %v742
        %v2232 = vunpack.c.l.b16 %v743
        %v2233 = vunpack.c.h.b16 %v743
        %v2234 = vunpack.c.l.b16 %v744
        %v2235 = vunpack.c.h.b16 %v744
        %v2236 = vunpack.c.l.b16 %v745
        %v2237 = vunpack.c.h.b16 %v745
        %v2238 = vunpack.c.l.b16 %v746
        %v2239 = vunpack.c.h.b16 %v746
        %v2240 = vunpack.c.l.b16 %v747
        %v2241 = vunpack.c.h.b16 %v747
        %v2242 = vunpack.c.l.b16 %v748
        %v2243 = vunpack.c.h.b16 %v748
        %v2244 = vunpack.c.l.b16 %v749
        %v2245 = vunpack.c.h.b16 %v749
        %v2246 = vunpack.c.l.b16 %v750
        %v2247 = vunpack.c.h.b16 %v750
        %v2248 = vunpack.c.l.b16 %v751
        %v2249 = vunpack.c.h.b16 %v751
        %v2250 = vunpack.c.l.b16 %v752
        %v2251 = vunpack.c.h.b16 %v752
        %v2252 = vunpack.c.l.b16 %v753
        %v2253 = vunpack.c.h.b16 %v753
        %v2254 = vunpack.c.l.b16 %v754
        %v2255 = vunpack.c.h.b16 %v754
        %v2256 = vunpack.c.l.b16 %v755
        %v2257 = vunpack.c.h.b16 %v755
        %v2258 = vunpack.c.l.b16 %v756
        %v2259 = vunpack.c.h.b16 %v756
        %v2260 = vunpack.c.l.b16 %v757
        %v2261 = vunpack.c.h.b16 %v757
        %v2262 = vunpack.c.l.b16 %v758
        %v2263 = vunpack.c.h.b16 %v758
        %v2264 = vunpack.c.l.b16 %v759
        %v2265 = vunpack.c.h.b16 %v759
        %v2266 = vunpack.c.l.b16 %v760
        %v2267 = vunpack.c.h.b16 %v760
        %v2268 = vunpack.c.l.b16 %v761
        %v2269 = vunpack.c.h.b16 %v761
        %v2270 = vunpack.c.l.b16 %v762
        %v2271 = vunpack.c.h.b16 %v762
        %v2272 = vunpack.c.l.b16 %v763
        %v2273 = vunpack.c.h.b16 %v763
        %v2274 = vunpack.c.l.b16 %v764
        %v2275 = vunpack.c.h.b16 %v764
        %v2276 = vunpack.c.l.b16 %v765
        %v2277 = vunpack.c.h.b16 %v765
        %v2278 = vunpack.c.l.b16 %v766
        %v2279 = vunpack.c.h.b16 %v766
        %v2280 = vunpack.c.l.b16 %v767
        %v2281 = vunpack.c.h.b16 %v767
        %v2282 = vunpack.c.l.b16 %v768
        %v2283 = vunpack.c.h.b16 %v768
        %v2284 = vunpack.c.l.b16 %v769
        %v2285 = vunpack.c.h.b16 %v769
        %v2286 = vunpack.c.l.b16 %v770
        %v2287 = vunpack.c.h.b16 %v770
        %v2288 = vunpack.c.l.b16 %v771
        %v2289 = vunpack.c.h.b16 %v771
        %v2290 = vunpack.c.l.b16 %v772
        %v2291 = vunpack.c.h.b16 %v772
        %v2292 = vunpack.c.l.b16 %v773
        %v2293 = vunpack.c.h.b16 %v773
        %v2294 = vunpack.c.l.b16 %v774
        %v2295 = vunpack.c.h.b16 %v774
        %v2296 = vunpack.c.l.b16 %v775
        %v2297 = vunpack.c.h.b16 %v775
        %v2298 = vunpack.c.l.b16 %v776
        %v2299 = vunpack.c.h.b16 %v776
        %v2300 = vunpack.c.l.b16 %v777
        %v2301 = vunpack.c.h.b16 %v777
        %v2302 = vunpack.c.l.b16 %v778
        %v2303 = vunpack.c.h.b16 %v778
        %v2304 = vunpack.c.l.b16 %v779
        %v2305 = vunpack.c.h.b16 %v779
        %v2306 = vunpack.c.l.b16 %v780
        %v2307 = vunpack.c.h.b16 %v780
        %v2308 = vunpack.c.l.b16 %v781
        %v2309 = vunpack.c.h.b16 %v781
        %v2310 = vunpack.c.l.b16 %v782
        %v2311 = vunpack.c.h.b16 %v782
        %v2312 = vunpack.c.l.b16 %v783
        %v2313 = vunpack.c.h.b16 %v783
        %v2314 = vunpack.c.l.b16 %v784
        %v2315 = vunpack.c.h.b16 %v784
        %v2316 = vunpack.c.l.b16 %v785
        %v2317 = vunpack.c.h.b16 %v785
        %v2318 = vunpack.c.l.b16 %v786
        %v2319 = vunpack.c.h.b16 %v786
        %v2320 = vunpack.c.l.b16 %v787
        %v2321 = vunpack.c.h.b16 %v787
        %v2322 = vunpack.c.l.b16 %v788
        %v2323 = vunpack.c.h.b16 %v788
        %v2324 = vunpack.c.l.b16 %v789
        %v2325 = vunpack.c.h.b16 %v789
        %v2326 = vunpack.c.l.b16 %v790
        %v2327 = vunpack.c.h.b16 %v790
        %v2328 = vunpack.c.l.b16 %v791
        %v2329 = vunpack.c.h.b16 %v791
        %v2330 = vunpack.c.l.b16 %v792
        %v2331 = vunpack.c.h.b16 %v792
        %v2332 = vunpack.c.l.b16 %v793
        %v2333 = vunpack.c.h.b16 %v793
        %v2334 = vunpack.c.l.b16 %v794
        %v2335 = vunpack.c.h.b16 %v794
        %v2336 = vunpack.c.l.b16 %v795
        %v2337 = vunpack.c.h.b16 %v795
        %v2338 = vunpack.c.l.b16 %v796
        %v2339 = vunpack.c.h.b16 %v796
        %v2340 = vunpack.c.l.b16 %v797
        %v2341 = vunpack.c.h.b16 %v797
        %v2342 = vunpack.c.l.b16 %v798
        %v2343 = vunpack.c.h.b16 %v798
        %v2344 = vunpack.c.l.b16 %v799
        %v2345 = vunpack.c.h.b16 %v799
        %v2346 = vunpack.c.l.b16 %v800
        %v2347 = vunpack.c.h.b16 %v800
        %v2348 = vunpack.c.l.b16 %v801
        %v2349 = vunpack.c.h.b16 %v801
        %v2350 = vunpack.c.l.b16 %v802
        %v2351 = vunpack.c.h.b16 %v802
        %v2352 = vunpack.c.l.b16 %v803
        %v2353 = vunpack.c.h.b16 %v803
        %v2354 = vunpack.c.l.b16 %v804
        %v2355 = vunpack.c.h.b16 %v804
        %v2356 = vunpack.c.l.b16 %v805
        %v2357 = vunpack.c.h.b16 %v805
        %v2358 = vunpack.c.l.b16 %v806
        %v2359 = vunpack.c.h.b16 %v806
        %v2360 = vunpack.c.l.b16 %v807
        %v2361 = vunpack.c.h.b16 %v807
        %v2362 = vunpack.c.l.b16 %v808
        %v2363 = vunpack.c.h.b16 %v808
        %v2364 = vunpack.c.l.b16 %v809
        %v2365 = vunpack.c.h.b16 %v809
        %v2366 = vunpack.c.l.b16 %v810
        %v2367 = vunpack.c.h.b16 %v810
        %v2368 = vunpack.c.l.b16 %v811
        %v2369 = vunpack.c.h.b16 %v811
        %v2370 = vunpack.c.l.b16 %v812
        %v2371 = vunpack.c.h.b16 %v812
        %v2372 = vunpack.c.l.b16 %v813
        %v2373 = vunpack.c.h.b16 %v813
        %v2374 = vunpack.c.l.b16 %v814
        %v2375 = vunpack.c.h.b16 %v814
        %v2376 = vunpack.c.l.b16 %v815
        %v2377 = vunpack.c.h.b16 %v815
        %v2378 = vunpack.c.l.b16 %v816
        %v2379 = vunpack.c.h.b16 %v816
        %v2380 = vunpack.c.l.b16 %v817
        %v2381 = vunpack.c.h.b16 %v817
        %v2382 = vunpack.c.l.b16 %v818
        %v2383 = vunpack.c.h.b16 %v818
        %v2384 = vunpack.c.l.b16 %v819
        %v2385 = vunpack.c.h.b16 %v819
        %v2386 = vunpack.c.l.b16 %v820
        %v2387 = vunpack.c.h.b16 %v820
        %v2388 = vunpack.c.l.b16 %v821
        %v2389 = vunpack.c.h.b16 %v821
        %v2390 = vunpack.c.l.b16 %v822
        %v2391 = vunpack.c.h.b16 %v822
        %v2392 = vunpack.c.l.b16 %v823
        %v2393 = vunpack.c.h.b16 %v823
        %v2394 = vunpack.c.l.b16 %v824
        %v2395 = vunpack.c.h.b16 %v824
        %v2396 = vunpack.c.l.b16 %v825
        %v2397 = vunpack.c.h.b16 %v825
        %v2398 = vunpack.c.l.b16 %v826
        %v2399 = vunpack.c.h.b16 %v826
        %v2400 = vunpack.c.l.b16 %v827
        %v2401 = vunpack.c.h.b16 %v827
        %v2402 = vunpack.c.l.b16 %v828
        %v2403 = vunpack.c.h.b16 %v828
        %v2404 = vunpack.c.l.b16 %v829
        %v2405 = vunpack.c.h.b16 %v829
        %v2406 = vunpack.c.l.b16 %v830
        %v2407 = vunpack.c.h.b16 %v830
        %v2408 = vunpack.c.l.b16 %v831
        %v2409 = vunpack.c.h.b16 %v831
        %v2410 = vunpack.c.l.b16 %v832
        %v2411 = vunpack.c.h.b16 %v832
        %v2412 = vunpack.c.l.b16 %v833
        %v2413 = vunpack.c.h.b16 %v833
        %v2414 = vunpack.c.l.b16 %v834
        %v2415 = vunpack.c.h.b16 %v834
        %v2416 = vunpack.c.l.b16 %v835
        %v2417 = vunpack.c.h.b16 %v835
        %v2418 = vunpack.c.l.b16 %v836
        %v2419 = vunpack.c.h.b16 %v836
        %v2420 = vunpack.c.l.b16 %v837
        %v2421 = vunpack.c.h.b16 %v837
        %v2422 = vunpack.c.l.b16 %v838
        %v2423 = vunpack.c.h.b16 %v838
        %v2424 = vunpack.c.l.b16 %v839
        %v2425 = vunpack.c.h.b16 %v839
        %v2426 = vunpack.c.l.b16 %v840
        %v2427 = vunpack.c.h.b16 %v840
        %v2428 = vunpack.c.l.b16 %v841
        %v2429 = vunpack.c.h.b16 %v841
        %v2430 = vunpack.c.l.b16 %v842
        %v2431 = vunpack.c.h.b16 %v842
        %v2432 = vunpack.c.l.b16 %v843
        %v2433 = vunpack.c.h.b16 %v843
        %v2434 = vunpack.c.l.b16 %v844
        %v2435 = vunpack.c.h.b16 %v844
        %v2436 = vunpack.c.l.b16 %v845
        %v2437 = vunpack.c.h.b16 %v845
        %v2438 = vunpack.c.l.b16 %v846
        %v2439 = vunpack.c.h.b16 %v846
        %v2440 = vunpack.c.l.b16 %v847
        %v2441 = vunpack.c.h.b16 %v847
        %v2442 = vunpack.c.l.b16 %v848
        %v2443 = vunpack.c.h.b16 %v848
        %v2444 = vunpack.c.l.b16 %v849
        %v2445 = vunpack.c.h.b16 %v849
        %v2446 = vunpack.c.l.b16 %v850
        %v2447 = vunpack.c.h.b16 %v850
        %v2448 = vunpack.c.l.b16 %v851
        %v2449 = vunpack.c.h.b16 %v851
        %v2450 = vunpack.c.l.b16 %v852
        %v2451 = vunpack.c.h.b16 %v852
        %v2452 = vunpack.c.l.b16 %v853
        %v2453 = vunpack.c.h.b16 %v853
        %v2454 = vunpack.c.l.b16 %v854
        %v2455 = vunpack.c.h.b16 %v854
        %v2456 = vunpack.c.l.b16 %v855
        %v2457 = vunpack.c.h.b16 %v855
        %v2458 = vunpack.c.l.b16 %v856
        %v2459 = vunpack.c.h.b16 %v856
        %v2460 = vunpack.c.l.b16 %v857
        %v2461 = vunpack.c.h.b16 %v857
        %v2462 = vunpack.c.l.b16 %v858
        %v2463 = vunpack.c.h.b16 %v858
        %v2464 = vunpack.c.l.b16 %v859
        %v2465 = vunpack.c.h.b16 %v859
        %v2466 = vunpack.c.l.b16 %v860
        %v2467 = vunpack.c.h.b16 %v860
        %v2468 = vunpack.c.l.b16 %v861
        %v2469 = vunpack.c.h.b16 %v861
        %v2470 = vunpack.c.l.b16 %v862
        %v2471 = vunpack.c.h.b16 %v862
        %v2472 = vunpack.c.l.b16 %v863
        %v2473 = vunpack.c.h.b16 %v863
        %v2474 = vunpack.c.l.b16 %v864
        %v2475 = vunpack.c.h.b16 %v864
        %v2476 = vunpack.c.l.b16 %v865
        %v2477 = vunpack.c.h.b16 %v865
        %v2478 = vunpack.c.l.b16 %v866
        %v2479 = vunpack.c.h.b16 %v866
        %v2480 = vunpack.c.l.b16 %v867
        %v2481 = vunpack.c.h.b16 %v867
        %v2482 = vunpack.c.l.b16 %v868
        %v2483 = vunpack.c.h.b16 %v868
        %v2484 = vunpack.c.l.b16 %v869
        %v2485 = vunpack.c.h.b16 %v869
        %v2486 = vunpack.c.l.b16 %v870
        %v2487 = vunpack.c.h.b16 %v870
        %v2488 = vunpack.c.l.b16 %v871
        %v2489 = vunpack.c.h.b16 %v871
        %v2490 = vunpack.c.l.b16 %v872
        %v2491 = vunpack.c.h.b16 %v872
        %v2492 = vunpack.c.l.b16 %v873
        %v2493 = vunpack.c.h.b16 %v873
        %v2494 = vunpack.c.l.b16 %v874
        %v2495 = vunpack.c.h.b16 %v874
        %v2496 = vunpack.c.l.b16 %v875
        %v2497 = vunpack.c.h.b16 %v875
        %v2498 = vunpack.c.l.b16 %v876
        %v2499 = vunpack.c.h.b16 %v876
        %v2500 = vunpack.c.l.b16 %v877
        %v2501 = vunpack.c.h.b16 %v877
        %v2502 = vunpack.c.l.b16 %v878
        %v2503 = vunpack.c.h.b16 %v878
        %v2504 = vunpack.c.l.b16 %v879
        %v2505 = vunpack.c.h.b16 %v879
        %v2506 = vunpack.c.l.b16 %v880
        %v2507 = vunpack.c.h.b16 %v880
        %v2508 = vunpack.c.l.b16 %v881
        %v2509 = vunpack.c.h.b16 %v881
        %v2510 = vunpack.c.l.b16 %v882
        %v2511 = vunpack.c.h.b16 %v882
        %v2512 = vunpack.c.l.b16 %v883
        %v2513 = vunpack.c.h.b16 %v883
        %v2514 = vunpack.c.l.b16 %v884
        %v2515 = vunpack.c.h.b16 %v884
        %v2516 = vunpack.c.l.b16 %v885
        %v2517 = vunpack.c.h.b16 %v885
        %v2518 = vunpack.c.l.b16 %v886
        %v2519 = vunpack.c.h.b16 %v886
        %v2520 = vunpack.c.l.b16 %v887
        %v2521 = vunpack.c.h.b16 %v887
        %v2522 = vunpack.c.l.b16 %v888
        %v2523 = vunpack.c.h.b16 %v888
        %v2524 = vunpack.c.l.b16 %v889
        %v2525 = vunpack.c.h.b16 %v889
        %v2526 = vunpack.c.l.b16 %v890
        %v2527 = vunpack.c.h.b16 %v890
        %v2528 = vunpack.c.l.b16 %v891
        %v2529 = vunpack.c.h.b16 %v891
        %v2530 = vunpack.c.l.b16 %v892
        %v2531 = vunpack.c.h.b16 %v892
        %v2532 = vunpack.c.l.b16 %v893
        %v2533 = vunpack.c.h.b16 %v893
        %v2534 = vunpack.c.l.b16 %v894
        %v2535 = vunpack.c.h.b16 %v894
        %v2536 = vunpack.c.l.b16 %v895
        %v2537 = vunpack.c.h.b16 %v895
        %v2538 = vunpack.c.l.b16 %v896
        %v2539 = vunpack.c.h.b16 %v896
        %v2540 = vunpack.c.l.b16 %v897
        %v2541 = vunpack.c.h.b16 %v897
        %v2542 = vunpack.c.l.b16 %v898
        %v2543 = vunpack.c.h.b16 %v898
        %v2544 = vunpack.c.l.b16 %v899
        %v2545 = vunpack.c.h.b16 %v899
        %v2546 = vunpack.c.l.b16 %v900
        %v2547 = vunpack.c.h.b16 %v900
        %v2548 = vunpack.c.l.b16 %v901
        %v2549 = vunpack.c.h.b16 %v901
        %v2550 = vunpack.c.l.b16 %v902
        %v2551 = vunpack.c.h.b16 %v902
        %v2552 = vunpack.c.l.b16 %v903
        %v2553 = vunpack.c.h.b16 %v903
        %v2554 = vunpack.c.l.b16 %v904
        %v2555 = vunpack.c.h.b16 %v904
        %v2556 = vunpack.c.l.b16 %v905
        %v2557 = vunpack.c.h.b16 %v905
        %v2558 = vunpack.c.l.b16 %v906
        %v2559 = vunpack.c.h.b16 %v906
        %v2560 = vunpack.c.l.b16 %v907
        %v2561 = vunpack.c.h.b16 %v907
        %v2562 = vunpack.c.l.b16 %v908
        %v2563 = vunpack.c.h.b16 %v908
        %v2564 = vunpack.c.l.b16 %v909
        %v2565 = vunpack.c.h.b16 %v909
        %v2566 = vunpack.c.l.b16 %v910
        %v2567 = vunpack.c.h.b16 %v910
        %v2568 = vunpack.c.l.b16 %v911
        %v2569 = vunpack.c.h.b16 %v911
        %v2570 = vunpack.c.l.b16 %v912
        %v2571 = vunpack.c.h.b16 %v912
        %v2572 = vunpack.c.l.b16 %v913
        %v2573 = vunpack.c.h.b16 %v913
        %v2574 = vunpack.c.l.b16 %v914
        %v2575 = vunpack.c.h.b16 %v914
        %v2576 = vunpack.c.l.b16 %v915
        %v2577 = vunpack.c.h.b16 %v915
        %v2578 = vunpack.c.l.b16 %v916
        %v2579 = vunpack.c.h.b16 %v916
        %v2580 = vunpack.c.l.b16 %v917
        %v2581 = vunpack.c.h.b16 %v917
        %v2582 = vunpack.c.l.b16 %v918
        %v2583 = vunpack.c.h.b16 %v918
        %v2584 = vunpack.c.l.b16 %v919
        %v2585 = vunpack.c.h.b16 %v919
        %v2586 = vunpack.c.l.b16 %v920
        %v2587 = vunpack.c.h.b16 %v920
        %v2588 = vunpack.c.l.b16 %v921
        %v2589 = vunpack.c.h.b16 %v921
        %v2590 = vunpack.c.l.b16 %v922
        %v2591 = vunpack.c.h.b16 %v922
        %v2592 = vunpack.c.l.b16 %v923
        %v2593 = vunpack.c.h.b16 %v923
        %v2594 = vunpack.c.l.b16 %v924
        %v2595 = vunpack.c.h.b16 %v924
        %v2596 = vunpack.c.l.b16 %v925
        %v2597 = vunpack.c.h.b16 %v925
        %v2598 = vunpack.c.l.b16 %v926
        %v2599 = vunpack.c.h.b16 %v926
        %v2600 = vunpack.c.l.b16 %v927
        %v2601 = vunpack.c.h.b16 %v927
        %v2602 = vunpack.c.l.b16 %v928
        %v2603 = vunpack.c.h.b16 %v928
        %v2604 = vunpack.c.l.b16 %v929
        %v2605 = vunpack.c.h.b16 %v929
        %v2606 = vunpack.c.l.b16 %v930
        %v2607 = vunpack.c.h.b16 %v930
        %v2608 = vunpack.c.l.b16 %v931
        %v2609 = vunpack.c.h.b16 %v931
        %v2610 = vunpack.c.l.b16 %v932
        %v2611 = vunpack.c.h.b16 %v932
        %v2612 = vunpack.c.l.b16 %v933
        %v2613 = vunpack.c.h.b16 %v933
        %v2614 = vunpack.c.l.b16 %v934
        %v2615 = vunpack.c.h.b16 %v934
        %v2616 = vunpack.c.l.b16 %v935
        %v2617 = vunpack.c.h.b16 %v935
        %v2618 = vunpack.c.l.b16 %v936
        %v2619 = vunpack.c.h.b16 %v936
        %v2620 = vunpack.c.l.b16 %v937
        %v2621 = vunpack.c.h.b16 %v937
        %v2622 = vunpack.c.l.b16 %v938
        %v2623 = vunpack.c.h.b16 %v938
        %v2624 = vunpack.c.l.b16 %v939
        %v2625 = vunpack.c.h.b16 %v939
        %v2626 = vunpack.c.l.b16 %v940
        %v2627 = vunpack.c.h.b16 %v940
        %v2628 = vunpack.c.l.b16 %v941
        %v2629 = vunpack.c.h.b16 %v941
        %v2630 = vunpack.c.l.b16 %v942
        %v2631 = vunpack.c.h.b16 %v942
        %v2632 = vunpack.c.l.b16 %v943
        %v2633 = vunpack.c.h.b16 %v943
        %v2634 = vunpack.c.l.b16 %v944
        %v2635 = vunpack.c.h.b16 %v944
        %v2636 = vunpack.c.l.b16 %v945
        %v2637 = vunpack.c.h.b16 %v945
        %v2638 = vunpack.c.l.b16 %v946
        %v2639 = vunpack.c.h.b16 %v946
        %v2640 = vunpack.c.l.b16 %v947
        %v2641 = vunpack.c.h.b16 %v947
        %v2642 = vunpack.c.l.b16 %v948
        %v2643 = vunpack.c.h.b16 %v948
        %v2644 = vunpack.c.l.b16 %v949
        %v2645 = vunpack.c.h.b16 %v949
        %v2646 = vpack.c.b16 %v1626, %v1622
        %v2647 = vpack.c.b16 %v1627, %v1623
        %v2648 = vpack.c.b16 %v1628, %v1624
        %v2649 = vpack.c.b16 %v1629, %v1625
        %v2650 = vpack.c.b16 %v1634, %v1630
        %v2651 = vpack.c.b16 %v1635, %v1631
        %v2652 = vpack.c.b16 %v1636, %v1632
        %v2653 = vpack.c.b16 %v1637, %v1633
        %v2654 = vpack.c.b16 %v1642, %v1638
        %v2655 = vpack.c.b16 %v1643, %v1639
        %v2656 = vpack.c.b16 %v1644, %v1640
        %v2657 = vpack.c.b16 %v1645, %v1641
        %v2658 = vpack.c.b16 %v1650, %v1646
        %v2659 = vpack.c.b16 %v1651, %v1647
        %v2660 = vpack.c.b16 %v1652, %v1648
        %v2661 = vpack.c.b16 %v1653, %v1649
        %v2662 = vpack.c.b16 %v1658, %v1654
        %v2663 = vpack.c.b16 %v1659, %v1655
        %v2664 = vpack.c.b16 %v1660, %v1656
        %v2665 = vpack.c.b16 %v1661, %v1657
        %v2666 = vpack.c.b16 %v1666, %v1662
        %v2667 = vpack.c.b16 %v1667, %v1663
        %v2668 = vpack.c.b16 %v1668, %v1664
        %v2669 = vpack.c.b16 %v1669, %v1665
        %v2670 = vpack.c.b16 %v1674, %v1670
        %v2671 = vpack.c.b16 %v1675, %v1671
        %v2672 = vpack.c.b16 %v1676, %v1672
        %v2673 = vpack.c.b16 %v1677, %v1673
        %v2674 = vpack.c.b16 %v1682, %v1678
        %v2675 = vpack.c.b16 %v1683, %v1679
        %v2676 = vpack.c.b16 %v1684, %v1680
        %v2677 = vpack.c.b16 %v1685, %v1681
        %v2678 = vpack.c.b16 %v1690, %v1686
        %v2679 = vpack.c.b16 %v1691, %v1687
        %v2680 = vpack.c.b16 %v1692, %v1688
        %v2681 = vpack.c.b16 %v1693, %v1689
        %v2682 = vpack.c.b16 %v1698, %v1694
        %v2683 = vpack.c.b16 %v1699, %v1695
        %v2684 = vpack.c.b16 %v1700, %v1696
        %v2685 = vpack.c.b16 %v1701, %v1697
        %v2686 = vpack.c.b16 %v1706, %v1702
        %v2687 = vpack.c.b16 %v1707, %v1703
        %v2688 = vpack.c.b16 %v1708, %v1704
        %v2689 = vpack.c.b16 %v1709, %v1705
        %v2690 = vpack.c.b16 %v1714, %v1710
        %v2691 = vpack.c.b16 %v1715, %v1711
        %v2692 = vpack.c.b16 %v1716, %v1712
        %v2693 = vpack.c.b16 %v1717, %v1713
        %v2694 = vpack.c.b16 %v1722, %v1718
        %v2695 = vpack.c.b16 %v1723, %v1719
        %v2696 = vpack.c.b16 %v1724, %v1720
        %v2697 = vpack.c.b16 %v1725, %v1721
        %v2698 = vpack.c.b16 %v1730, %v1726
        %v2699 = vpack.c.b16 %v1731, %v1727
        %v2700 = vpack.c.b16 %v1732, %v1728
        %v2701 = vpack.c.b16 %v1733, %v1729
        %v2702 = vpack.c.b16 %v1738, %v1734
        %v2703 = vpack.c.b16 %v1739, %v1735
        %v2704 = vpack.c.b16 %v1740, %v1736
        %v2705 = vpack.c.b16 %v1741, %v1737
        %v2706 = vpack.c.b16 %v1746, %v1742
        %v2707 = vpack.c.b16 %v1747, %v1743
        %v2708 = vpack.c.b16 %v1748, %v1744
        %v2709 = vpack.c.b16 %v1749, %v1745
        %v2710 = vpack.c.b16 %v1754, %v1750
        %v2711 = vpack.c.b16 %v1755, %v1751
        %v2712 = vpack.c.b16 %v1756, %v1752
        %v2713 = vpack.c.b16 %v1757, %v1753
        %v2714 = vpack.c.b16 %v1762, %v1758
        %v2715 = vpack.c.b16 %v1763, %v1759
        %v2716 = vpack.c.b16 %v1764, %v1760
        %v2717 = vpack.c.b16 %v1765, %v1761
        %v2718 = vpack.c.b16 %v1770, %v1766
        %v2719 = vpack.c.b16 %v1771, %v1767
        %v2720 = vpack.c.b16 %v1772, %v1768
        %v2721 = vpack.c.b16 %v1773, %v1769
        %v2722 = vpack.c.b16 %v1778, %v1774
        %v2723 = vpack.c.b16 %v1779, %v1775
        %v2724 = vpack.c.b16 %v1780, %v1776
        %v2725 = vpack.c.b16 %v1781, %v1777
        %v2726 = vpack.c.b16 %v1786, %v1782
        %v2727 = vpack.c.b16 %v1787, %v1783
        %v2728 = vpack.c.b16 %v1788, %v1784
        %v2729 = vpack.c.b16 %v1789, %v1785
        %v2730 = vpack.c.b16 %v1794, %v1790
        %v2731 = vpack.c.b16 %v1795, %v1791
        %v2732 = vpack.c.b16 %v1796, %v1792
        %v2733 = vpack.c.b16 %v1797, %v1793
        %v2734 = vpack.c.b16 %v1802, %v1798
        %v2735 = vpack.c.b16 %v1803, %v1799
        %v2736 = vpack.c.b16 %v1804, %v1800
        %v2737 = vpack.c.b16 %v1805, %v1801
        %v2738 = vpack.c.b16 %v1810, %v1806
        %v2739 = vpack.c.b16 %v1811, %v1807
        %v2740 = vpack.c.b16 %v1812, %v1808
        %v2741 = vpack.c.b16 %v1813, %v1809
        %v2742 = vpack.c.b16 %v1818, %v1814
        %v2743 = vpack.c.b16 %v1819, %v1815
        %v2744 = vpack.c.b16 %v1820, %v1816
        %v2745 = vpack.c.b16 %v1821, %v1817
        %v2746 = vpack.c.b16 %v1826, %v1822
        %v2747 = vpack.c.b16 %v1827, %v1823
        %v2748 = vpack.c.b16 %v1828, %v1824
        %v2749 = vpack.c.b16 %v1829, %v1825
        %v2750 = vpack.c.b16 %v1834, %v1830
        %v2751 = vpack.c.b16 %v1835, %v1831
        %v2752 = vpack.c.b16 %v1836, %v1832
        %v2753 = vpack.c.b16 %v1837, %v1833
        %v2754 = vpack.c.b16 %v1842, %v1838
        %v2755 = vpack.c.b16 %v1843, %v1839
        %v2756 = vpack.c.b16 %v1844, %v1840
        %v2757 = vpack.c.b16 %v1845, %v1841
        %v2758 = vpack.c.b16 %v1850, %v1846
        %v2759 = vpack.c.b16 %v1851, %v1847
        %v2760 = vpack.c.b16 %v1852, %v1848
        %v2761 = vpack.c.b16 %v1853, %v1849
        %v2762 = vpack.c.b16 %v1858, %v1854
        %v2763 = vpack.c.b16 %v1859, %v1855
        %v2764 = vpack.c.b16 %v1860, %v1856
        %v2765 = vpack.c.b16 %v1861, %v1857
        %v2766 = vpack.c.b16 %v1866, %v1862
        %v2767 = vpack.c.b16 %v1867, %v1863
        %v2768 = vpack.c.b16 %v1868, %v1864
        %v2769 = vpack.c.b16 %v1869, %v1865
        %v2770 = vpack.c.b16 %v1874, %v1870
        %v2771 = vpack.c.b16 %v1875, %v1871
        %v2772 = vpack.c.b16 %v1876, %v1872
        %v2773 = vpack.c.b16 %v1877, %v1873
        %v2774 = vpack.c.b16 %v1882, %v1878
        %v2775 = vpack.c.b16 %v1883, %v1879
        %v2776 = vpack.c.b16 %v1884, %v1880
        %v2777 = vpack.c.b16 %v1885, %v1881
        %v2778 = vpack.c.b16 %v1890, %v1886
        %v2779 = vpack.c.b16 %v1891, %v1887
        %v2780 = vpack.c.b16 %v1892, %v1888
        %v2781 = vpack.c.b16 %v1893, %v1889
        %v2782 = vpack.c.b16 %v1898, %v1894
        %v2783 = vpack.c.b16 %v1899, %v1895
        %v2784 = vpack.c.b16 %v1900, %v1896
        %v2785 = vpack.c.b16 %v1901, %v1897
        %v2786 = vpack.c.b16 %v1906, %v1902
        %v2787 = vpack.c.b16 %v1907, %v1903
        %v2788 = vpack.c.b16 %v1908, %v1904
        %v2789 = vpack.c.b16 %v1909, %v1905
        %v2790 = vpack.c.b16 %v1914, %v1910
        %v2791 = vpack.c.b16 %v1915, %v1911
        %v2792 = vpack.c.b16 %v1916, %v1912
        %v2793 = vpack.c.b16 %v1917, %v1913
        %v2794 = vpack.c.b16 %v1922, %v1918
        %v2795 = vpack.c.b16 %v1923, %v1919
        %v2796 = vpack.c.b16 %v1924, %v1920
        %v2797 = vpack.c.b16 %v1925, %v1921
        %v2798 = vpack.c.b16 %v1930, %v1926
        %v2799 = vpack.c.b16 %v1931, %v1927
        %v2800 = vpack.c.b16 %v1932, %v1928
        %v2801 = vpack.c.b16 %v1933, %v1929
        %v2802 = vpack.c.b16 %v1938, %v1934
        %v2803 = vpack.c.b16 %v1939, %v1935
        %v2804 = vpack.c.b16 %v1940, %v1936
        %v2805 = vpack.c.b16 %v1941, %v1937
        %v2806 = vpack.c.b16 %v1946, %v1942
        %v2807 = vpack.c.b16 %v1947, %v1943
        %v2808 = vpack.c.b16 %v1948, %v1944
        %v2809 = vpack.c.b16 %v1949, %v1945
        %v2810 = vpack.c.b16 %v1954, %v1950
        %v2811 = vpack.c.b16 %v1955, %v1951
        %v2812 = vpack.c.b16 %v1956, %v1952
        %v2813 = vpack.c.b16 %v1957, %v1953
        %v2814 = vpack.c.b16 %v1962, %v1958
        %v2815 = vpack.c.b16 %v1963, %v1959
        %v2816 = vpack.c.b16 %v1964, %v1960
        %v2817 = vpack.c.b16 %v1965, %v1961
        %v2818 = vpack.c.b16 %v1970, %v1966
        %v2819 = vpack.c.b16 %v1971, %v1967
        %v2820 = vpack.c.b16 %v1972, %v1968
        %v2821 = vpack.c.b16 %v1973, %v1969
        %v2822 = vpack.c.b16 %v1978, %v1974
        %v2823 = vpack.c.b16 %v1979, %v1975
        %v2824 = vpack.c.b16 %v1980, %v1976
        %v2825 = vpack.c.b16 %v1981, %v1977
        %v2826 = vpack.c.b16 %v1986, %v1982
        %v2827 = vpack.c.b16 %v1987, %v1983
        %v2828 = vpack.c.b16 %v1988, %v1984
        %v2829 = vpack.c.b16 %v1989, %v1985
        %v2830 = vpack.c.b16 %v1994, %v1990
        %v2831 = vpack.c.b16 %v1995, %v1991
        %v2832 = vpack.c.b16 %v1996, %v1992
        %v2833 = vpack.c.b16 %v1997, %v1993
        %v2834 = vpack.c.b16 %v2002, %v1998
        %v2835 = vpack.c.b16 %v2003, %v1999
        %v2836 = vpack.c.b16 %v2004, %v2000
        %v2837 = vpack.c.b16 %v2005, %v2001
        %v2838 = vpack.c.b16 %v2010, %v2006
        %v2839 = vpack.c.b16 %v2011, %v2007
        %v2840 = vpack.c.b16 %v2012, %v2008
        %v2841 = vpack.c.b16 %v2013, %v2009
        %v2842 = vpack.c.b16 %v2018, %v2014
        %v2843 = vpack.c.b16 %v2019, %v2015
        %v2844 = vpack.c.b16 %v2020, %v2016
        %v2845 = vpack.c.b16 %v2021, %v2017
        %v2846 = vpack.c.b16 %v2026, %v2022
        %v2847 = vpack.c.b16 %v2027, %v2023
        %v2848 = vpack.c.b16 %v2028, %v2024
        %v2849 = vpack.c.b16 %v2029, %v2025
        %v2850 = vpack.c.b16 %v2034, %v2030
        %v2851 = vpack.c.b16 %v2035, %v2031
        %v2852 = vpack.c.b16 %v2036, %v2032
        %v2853 = vpack.c.b16 %v2037, %v2033
        %v2854 = vpack.c.b16 %v2042, %v2038
        %v2855 = vpack.c.b16 %v2043, %v2039
        %v2856 = vpack.c.b16 %v2044, %v2040
        %v2857 = vpack.c.b16 %v2045, %v2041
        %v2858 = vpack.c.b16 %v2050, %v2046
        %v2859 = vpack.c.b16 %v2051, %v2047
        %v2860 = vpack.c.b16 %v2052, %v2048
        %v2861 = vpack.c.b16 %v2053, %v2049
        %v2862 = vpack.c.b16 %v2058, %v2054
        %v2863 = vpack.c.b16 %v2059, %v2055
        %v2864 = vpack.c.b16 %v2060, %v2056
        %v2865 = vpack.c.b16 %v2061, %v2057
        %v2866 = vpack.c.b16 %v2066, %v2062
        %v2867 = vpack.c.b16 %v2067, %v2063
        %v2868 = vpack.c.b16 %v2068, %v2064
        %v2869 = vpack.c.b16 %v2069, %v2065
        %v2870 = vpack.c.b16 %v2074, %v2070
        %v2871 = vpack.c.b16 %v2075, %v2071
        %v2872 = vpack.c.b16 %v2076, %v2072
        %v2873 = vpack.c.b16 %v2077, %v2073
        %v2874 = vpack.c.b16 %v2082, %v2078
        %v2875 = vpack.c.b16 %v2083, %v2079
        %v2876 = vpack.c.b16 %v2084, %v2080
        %v2877 = vpack.c.b16 %v2085, %v2081
        %v2878 = vpack.c.b16 %v2090, %v2086
        %v2879 = vpack.c.b16 %v2091, %v2087
        %v2880 = vpack.c.b16 %v2092, %v2088
        %v2881 = vpack.c.b16 %v2093, %v2089
        %v2882 = vpack.c.b16 %v2098, %v2094
        %v2883 = vpack.c.b16 %v2099, %v2095
        %v2884 = vpack.c.b16 %v2100, %v2096
        %v2885 = vpack.c.b16 %v2101, %v2097
        %v2886 = vpack.c.b16 %v2106, %v2102
        %v2887 = vpack.c.b16 %v2107, %v2103
        %v2888 = vpack.c.b16 %v2108, %v2104
        %v2889 = vpack.c.b16 %v2109, %v2105
        %v2890 = vpack.c.b16 %v2114, %v2110
        %v2891 = vpack.c.b16 %v2115, %v2111
        %v2892 = vpack.c.b16 %v2116, %v2112
        %v2893 = vpack.c.b16 %v2117, %v2113
        %v2894 = vpack.c.b16 %v2122, %v2118
        %v2895 = vpack.c.b16 %v2123, %v2119
        %v2896 = vpack.c.b16 %v2124, %v2120
        %v2897 = vpack.c.b16 %v2125, %v2121
        %v2898 = vpack.c.b16 %v2130, %v2126
        %v2899 = vpack.c.b16 %v2131, %v2127
        %v2900 = vpack.c.b16 %v2132, %v2128
        %v2901 = vpack.c.b16 %v2133, %v2129
        %v2902 = vpack.c.b16 %v2138, %v2134
        %v2903 = vpack.c.b16 %v2139, %v2135
        %v2904 = vpack.c.b16 %v2140, %v2136
        %v2905 = vpack.c.b16 %v2141, %v2137
        %v2906 = vpack.c.b16 %v2146, %v2142
        %v2907 = vpack.c.b16 %v2147, %v2143
        %v2908 = vpack.c.b16 %v2148, %v2144
        %v2909 = vpack.c.b16 %v2149, %v2145
        %v2910 = vpack.c.b16 %v2154, %v2150
        %v2911 = vpack.c.b16 %v2155, %v2151
        %v2912 = vpack.c.b16 %v2156, %v2152
        %v2913 = vpack.c.b16 %v2157, %v2153
        %v2914 = vpack.c.b16 %v2162, %v2158
        %v2915 = vpack.c.b16 %v2163, %v2159
        %v2916 = vpack.c.b16 %v2164, %v2160
        %v2917 = vpack.c.b16 %v2165, %v2161
        %v2918 = vpack.c.b16 %v2170, %v2166
        %v2919 = vpack.c.b16 %v2171, %v2167
        %v2920 = vpack.c.b16 %v2172, %v2168
        %v2921 = vpack.c.b16 %v2173, %v2169
        %v2922 = vpack.c.b16 %v2178, %v2174
        %v2923 = vpack.c.b16 %v2179, %v2175
        %v2924 = vpack.c.b16 %v2180, %v2176
        %v2925 = vpack.c.b16 %v2181, %v2177
        %v2926 = vpack.c.b16 %v2186, %v2182
        %v2927 = vpack.c.b16 %v2187, %v2183
        %v2928 = vpack.c.b16 %v2188, %v2184
        %v2929 = vpack.c.b16 %v2189, %v2185
        %v2930 = vpack.c.b16 %v2194, %v2190
        %v2931 = vpack.c.b16 %v2195, %v2191
        %v2932 = vpack.c.b16 %v2196, %v2192
        %v2933 = vpack.c.b16 %v2197, %v2193
        %v2934 = vpack.c.b16 %v2202, %v2198
        %v2935 = vpack.c.b16 %v2203, %v2199
        %v2936 = vpack.c.b16 %v2204, %v2200
        %v2937 = vpack.c.b16 %v2205, %v2201
        %v2938 = vpack.c.b16 %v2210, %v2206
        %v2939 = vpack.c.b16 %v2211, %v2207
        %v2940 = vpack.c.b16 %v2212, %v2208
        %v2941 = vpack.c.b16 %v2213, %v2209
        %v2942 = vpack.c.b16 %v2218, %v2214
        %v2943 = vpack.c.b16 %v2219, %v2215
        %v2944 = vpack.c.b16 %v2220, %v2216
        %v2945 = vpack.c.b16 %v2221, %v2217
        %v2946 = vpack.c.b16 %v2226, %v2222
        %v2947 = vpack.c.b16 %v2227, %v2223
        %v2948 = vpack.c.b16 %v2228, %v2224
        %v2949 = vpack.c.b16 %v2229, %v2225
        %v2950 = vpack.c.b16 %v2234, %v2230
        %v2951 = vpack.c.b16 %v2235, %v2231
        %v2952 = vpack.c.b16 %v2236, %v2232
        %v2953 = vpack.c.b16 %v2237, %v2233
        %v2954 = vpack.c.b16 %v2242, %v2238
        %v2955 = vpack.c.b16 %v2243, %v2239
        %v2956 = vpack.c.b16 %v2244, %v2240
        %v2957 = vpack.c.b16 %v2245, %v2241
        %v2958 = vpack.c.b16 %v2250, %v2246
        %v2959 = vpack.c.b16 %v2251, %v2247
        %v2960 = vpack.c.b16 %v2252, %v2248
        %v2961 = vpack.c.b16 %v2253, %v2249
        %v2962 = vpack.c.b16 %v2258, %v2254
        %v2963 = vpack.c.b16 %v2259, %v2255
        %v2964 = vpack.c.b16 %v2260, %v2256
        %v2965 = vpack.c.b16 %v2261, %v2257
        %v2966 = vpack.c.b16 %v2266, %v2262
        %v2967 = vpack.c.b16 %v2267, %v2263
        %v2968 = vpack.c.b16 %v2268, %v2264
        %v2969 = vpack.c.b16 %v2269, %v2265
        %v2970 = vpack.c.b16 %v2274, %v2270
        %v2971 = vpack.c.b16 %v2275, %v2271
        %v2972 = vpack.c.b16 %v2276, %v2272
        %v2973 = vpack.c.b16 %v2277, %v2273
        %v2974 = vpack.c.b16 %v2282, %v2278
        %v2975 = vpack.c.b16 %v2283, %v2279
        %v2976 = vpack.c.b16 %v2284, %v2280
        %v2977 = vpack.c.b16 %v2285, %v2281
        %v2978 = vpack.c.b16 %v2290, %v2286
        %v2979 = vpack.c.b16 %v2291, %v2287
        %v2980 = vpack.c.b16 %v2292, %v2288
        %v2981 = vpack.c.b16 %v2293, %v2289
        %v2982 = vpack.c.b16 %v2298, %v2294
        %v2983 = vpack.c.b16 %v2299, %v2295
        %v2984 = vpack.c.b16 %v2300, %v2296
        %v2985 = vpack.c.b16 %v2301, %v2297
        %v2986 = vpack.c.b16 %v2306, %v2302
        %v2987 = vpack.c.b16 %v2307, %v2303
        %v2988 = vpack.c.b16 %v2308, %v2304
        %v2989 = vpack.c.b16 %v2309, %v2305
        %v2990 = vpack.c.b16 %v2314, %v2310
        %v2991 = vpack.c.b16 %v2315, %v2311
        %v2992 = vpack.c.b16 %v2316, %v2312
        %v2993 = vpack.c.b16 %v2317, %v2313
        %v2994 = vpack.c.b16 %v2322, %v2318
        %v2995 = vpack.c.b16 %v2323, %v2319
        %v2996 = vpack.c.b16 %v2324, %v2320
        %v2997 = vpack.c.b16 %v2325, %v2321
        %v2998 = vpack.c.b16 %v2330, %v2326
        %v2999 = vpack.c.b16 %v2331, %v2327
        %v3000 = vpack.c.b16 %v2332, %v2328
        %v3001 = vpack.c.b16 %v2333, %v2329
        %v3002 = vpack.c.b16 %v2338, %v2334
        %v3003 = vpack.c.b16 %v2339, %v2335
        %v3004 = vpack.c.b16 %v2340, %v2336
        %v3005 = vpack.c.b16 %v2341, %v2337
        %v3006 = vpack.c.b16 %v2346, %v2342
        %v3007 = vpack.c.b16 %v2347, %v2343
        %v3008 = vpack.c.b16 %v2348, %v2344
        %v3009 = vpack.c.b16 %v2349, %v2345
        %v3010 = vpack.c.b16 %v2354, %v2350
        %v3011 = vpack.c.b16 %v2355, %v2351
        %v3012 = vpack.c.b16 %v2356, %v2352
        %v3013 = vpack.c.b16 %v2357, %v2353
        %v3014 = vpack.c.b16 %v2362, %v2358
        %v3015 = vpack.c.b16 %v2363, %v2359
        %v3016 = vpack.c.b16 %v2364, %v2360
        %v3017 = vpack.c.b16 %v2365, %v2361
        %v3018 = vpack.c.b16 %v2370, %v2366
        %v3019 = vpack.c.b16 %v2371, %v2367
        %v3020 = vpack.c.b16 %v2372, %v2368
        %v3021 = vpack.c.b16 %v2373, %v2369
        %v3022 = vpack.c.b16 %v2378, %v2374
        %v3023 = vpack.c.b16 %v2379, %v2375
        %v3024 = vpack.c.b16 %v2380, %v2376
        %v3025 = vpack.c.b16 %v2381, %v2377
        %v3026 = vpack.c.b16 %v2386, %v2382
        %v3027 = vpack.c.b16 %v2387, %v2383
        %v3028 = vpack.c.b16 %v2388, %v2384
        %v3029 = vpack.c.b16 %v2389, %v2385
        %v3030 = vpack.c.b16 %v2394, %v2390
        %v3031 = vpack.c.b16 %v2395, %v2391
        %v3032 = vpack.c.b16 %v2396, %v2392
        %v3033 = vpack.c.b16 %v2397, %v2393
        %v3034 = vpack.c.b16 %v2402, %v2398
        %v3035 = vpack.c.b16 %v2403, %v2399
        %v3036 = vpack.c.b16 %v2404, %v2400
        %v3037 = vpack.c.b16 %v2405, %v2401
        %v3038 = vpack.c.b16 %v2410, %v2406
        %v3039 = vpack.c.b16 %v2411, %v2407
        %v3040 = vpack.c.b16 %v2412, %v2408
        %v3041 = vpack.c.b16 %v2413, %v2409
        %v3042 = vpack.c.b16 %v2418, %v2414
        %v3043 = vpack.c.b16 %v2419, %v2415
        %v3044 = vpack.c.b16 %v2420, %v2416
        %v3045 = vpack.c.b16 %v2421, %v2417
        %v3046 = vpack.c.b16 %v2426, %v2422
        %v3047 = vpack.c.b16 %v2427, %v2423
        %v3048 = vpack.c.b16 %v2428, %v2424
        %v3049 = vpack.c.b16 %v2429, %v2425
        %v3050 = vpack.c.b16 %v2434, %v2430
        %v3051 = vpack.c.b16 %v2435, %v2431
        %v3052 = vpack.c.b16 %v2436, %v2432
        %v3053 = vpack.c.b16 %v2437, %v2433
        %v3054 = vpack.c.b16 %v2442, %v2438
        %v3055 = vpack.c.b16 %v2443, %v2439
        %v3056 = vpack.c.b16 %v2444, %v2440
        %v3057 = vpack.c.b16 %v2445, %v2441
        %v3058 = vpack.c.b16 %v2450, %v2446
        %v3059 = vpack.c.b16 %v2451, %v2447
        %v3060 = vpack.c.b16 %v2452, %v2448
        %v3061 = vpack.c.b16 %v2453, %v2449
        %v3062 = vpack.c.b16 %v2458, %v2454
        %v3063 = vpack.c.b16 %v2459, %v2455
        %v3064 = vpack.c.b16 %v2460, %v2456
        %v3065 = vpack.c.b16 %v2461, %v2457
        %v3066 = vpack.c.b16 %v2466, %v2462
        %v3067 = vpack.c.b16 %v2467, %v2463
        %v3068 = vpack.c.b16 %v2468, %v2464
        %v3069 = vpack.c.b16 %v2469, %v2465
        %v3070 = vpack.c.b16 %v2474, %v2470
        %v3071 = vpack.c.b16 %v2475, %v2471
        %v3072 = vpack.c.b16 %v2476, %v2472
        %v3073 = vpack.c.b16 %v2477, %v2473
        %v3074 = vpack.c.b16 %v2482, %v2478
        %v3075 = vpack.c.b16 %v2483, %v2479
        %v3076 = vpack.c.b16 %v2484, %v2480
        %v3077 = vpack.c.b16 %v2485, %v2481
        %v3078 = vpack.c.b16 %v2490, %v2486
        %v3079 = vpack.c.b16 %v2491, %v2487
        %v3080 = vpack.c.b16 %v2492, %v2488
        %v3081 = vpack.c.b16 %v2493, %v2489
        %v3082 = vpack.c.b16 %v2498, %v2494
        %v3083 = vpack.c.b16 %v2499, %v2495
        %v3084 = vpack.c.b16 %v2500, %v2496
        %v3085 = vpack.c.b16 %v2501, %v2497
        %v3086 = vpack.c.b16 %v2506, %v2502
        %v3087 = vpack.c.b16 %v2507, %v2503
        %v3088 = vpack.c.b16 %v2508, %v2504
        %v3089 = vpack.c.b16 %v2509, %v2505
        %v3090 = vpack.c.b16 %v2514, %v2510
        %v3091 = vpack.c.b16 %v2515, %v2511
        %v3092 = vpack.c.b16 %v2516, %v2512
        %v3093 = vpack.c.b16 %v2517, %v2513
        %v3094 = vpack.c.b16 %v2522, %v2518
        %v3095 = vpack.c.b16 %v2523, %v2519
        %v3096 = vpack.c.b16 %v2524, %v2520
        %v3097 = vpack.c.b16 %v2525, %v2521
        %v3098 = vpack.c.b16 %v2530, %v2526
        %v3099 = vpack.c.b16 %v2531, %v2527
        %v3100 = vpack.c.b16 %v2532, %v2528
        %v3101 = vpack.c.b16 %v2533, %v2529
        %v3102 = vpack.c.b16 %v2538, %v2534
        %v3103 = vpack.c.b16 %v2539, %v2535
        %v3104 = vpack.c.b16 %v2540, %v2536
        %v3105 = vpack.c.b16 %v2541, %v2537
        %v3106 = vpack.c.b16 %v2546, %v2542
        %v3107 = vpack.c.b16 %v2547, %v2543
        %v3108 = vpack.c.b16 %v2548, %v2544
        %v3109 = vpack.c.b16 %v2549, %v2545
        %v3110 = vpack.c.b16 %v2554, %v2550
        %v3111 = vpack.c.b16 %v2555, %v2551
        %v3112 = vpack.c.b16 %v2556, %v2552
        %v3113 = vpack.c.b16 %v2557, %v2553
        %v3114 = vpack.c.b16 %v2562, %v2558
        %v3115 = vpack.c.b16 %v2563, %v2559
        %v3116 = vpack.c.b16 %v2564, %v2560
        %v3117 = vpack.c.b16 %v2565, %v2561
        %v3118 = vpack.c.b16 %v2570, %v2566
        %v3119 = vpack.c.b16 %v2571, %v2567
        %v3120 = vpack.c.b16 %v2572, %v2568
        %v3121 = vpack.c.b16 %v2573, %v2569
        %v3122 = vpack.c.b16 %v2578, %v2574
        %v3123 = vpack.c.b16 %v2579, %v2575
        %v3124 = vpack.c.b16 %v2580, %v2576
        %v3125 = vpack.c.b16 %v2581, %v2577
        %v3126 = vpack.c.b16 %v2586, %v2582
        %v3127 = vpack.c.b16 %v2587, %v2583
        %v3128 = vpack.c.b16 %v2588, %v2584
        %v3129 = vpack.c.b16 %v2589, %v2585
        %v3130 = vpack.c.b16 %v2594, %v2590
        %v3131 = vpack.c.b16 %v2595, %v2591
        %v3132 = vpack.c.b16 %v2596, %v2592
        %v3133 = vpack.c.b16 %v2597, %v2593
        %v3134 = vpack.c.b16 %v2602, %v2598
        %v3135 = vpack.c.b16 %v2603, %v2599
        %v3136 = vpack.c.b16 %v2604, %v2600
        %v3137 = vpack.c.b16 %v2605, %v2601
        %v3138 = vpack.c.b16 %v2610, %v2606
        %v3139 = vpack.c.b16 %v2611, %v2607
        %v3140 = vpack.c.b16 %v2612, %v2608
        %v3141 = vpack.c.b16 %v2613, %v2609
        %v3142 = vpack.c.b16 %v2618, %v2614
        %v3143 = vpack.c.b16 %v2619, %v2615
        %v3144 = vpack.c.b16 %v2620, %v2616
        %v3145 = vpack.c.b16 %v2621, %v2617
        %v3146 = vpack.c.b16 %v2626, %v2622
        %v3147 = vpack.c.b16 %v2627, %v2623
        %v3148 = vpack.c.b16 %v2628, %v2624
        %v3149 = vpack.c.b16 %v2629, %v2625
        %v3150 = vpack.c.b16 %v2634, %v2630
        %v3151 = vpack.c.b16 %v2635, %v2631
        %v3152 = vpack.c.b16 %v2636, %v2632
        %v3153 = vpack.c.b16 %v2637, %v2633
        %v3154 = vpack.c.b16 %v2642, %v2638
        %v3155 = vpack.c.b16 %v2643, %v2639
        %v3156 = vpack.c.b16 %v2644, %v2640
        %v3157 = vpack.c.b16 %v2645, %v2641
        %3670 = vmatprep.subr.bf16.mxu0 %v2647
        %3671 = vmatpush1.bf16.msra.mxu0 %v2646
        %3672 = vmatprep.subr.bf16.mxu0 %v2651
        %3673 = vmatpush1.bf16.msra.mxu0 %v2650
        %3674 = vmatprep.subr.bf16.mxu0 %v2655
        %3675 = vmatpush1.bf16.msra.mxu0 %v2654
        %3676 = vmatprep.subr.bf16.mxu0 %v2659
        %3677 = vmatpush1.bf16.msra.mxu0 %v2658
        %3678 = vmatprep.subr.bf16.mxu0 %v2663
        %3679 = vmatpush1.bf16.msra.mxu0 %v2662
        %3680 = vmatprep.subr.bf16.mxu0 %v2667
        %3681 = vmatpush1.bf16.msra.mxu0 %v2666
        %3682 = vmatprep.subr.bf16.mxu0 %v2671
        %3683 = vmatpush1.bf16.msra.mxu0 %v2670
        %3684 = vmatprep.subr.bf16.mxu0 %v2675
        %3685 = vmatpush1.bf16.msra.mxu0 %v2674
        %3686 = vmatprep.subr.bf16.mxu0 %v2679
        %3687 = vmatpush1.bf16.msra.mxu0 %v2678
        %3688 = vmatprep.subr.bf16.mxu0 %v2683
        %3689 = vmatpush1.bf16.msra.mxu0 %v2682
        %3690 = vmatprep.subr.bf16.mxu0 %v2687
        %3691 = vmatpush1.bf16.msra.mxu0 %v2686
        %3692 = vmatprep.subr.bf16.mxu0 %v2691
        %3693 = vmatpush1.bf16.msra.mxu0 %v2690
        %3694 = vmatprep.subr.bf16.mxu0 %v2695
        %3695 = vmatpush1.bf16.msra.mxu0 %v2694
        %3696 = vmatprep.subr.bf16.mxu0 %v2699
        %3697 = vmatpush1.bf16.msra.mxu0 %v2698
        %3698 = vmatprep.subr.bf16.mxu0 %v2703
        %3699 = vmatpush1.bf16.msra.mxu0 %v2702
        %3700 = vmatprep.subr.bf16.mxu0 %v2707
        %3701 = vmatpush1.bf16.msra.mxu0 %v2706
        %3702 = vmatprep.mubr.bf16.mxu0 %v1047
        %3703 = vmatmul.mubr.bf16.gmra.mrb[0].mxu0 %v1046
        %v3704 = vpop.f32.mrb[0].mxu0
        %v3705 = vadd.f32 0.0, %v3704
        %v3706 = vpop.f32.mrb[0].mxu0
        %v3707 = vadd.f32 0.0, %v3706
        %v3708 = vpop.f32.mrb[0].mxu0
        %v3709 = vadd.f32 0.0, %v3708
        %v3710 = vpop.f32.mrb[0].mxu0
        %v3711 = vadd.f32 0.0, %v3710
        %3712 = vmatprep.mubr.bf16.mxu0 %v1063
        %3713 = vmatmul.mubr.bf16.gmra.mrb[0].mxu0 %v1062
        %v3714 = vpop.f32.mrb[0].mxu0
        %v3715 = vadd.f32 0.0, %v3714
        %v3716 = vpop.f32.mrb[0].mxu0
        %v3717 = vadd.f32 0.0, %v3716
        %v3718 = vpop.f32.mrb[0].mxu0
        %v3719 = vadd.f32 0.0, %v3718
        %v3720 = vpop.f32.mrb[0].mxu0
        %v3721 = vadd.f32 0.0, %v3720
        %3722 = vdwg.mxu0
        %3723 = vmatprep.subr.bf16.mxu0 %v2711
        %3724 = vmatpush1.bf16.msra.mxu0 %v2710
        %3725 = vmatprep.subr.bf16.mxu0 %v2715
        %3726 = vmatpush1.bf16.msra.mxu0 %v2714
        %3727 = vmatprep.subr.bf16.mxu0 %v2719
        %3728 = vmatpush1.bf16.msra.mxu0 %v2718
        %3729 = vmatprep.subr.bf16.mxu0 %v2723
        %3730 = vmatpush1.bf16.msra.mxu0 %v2722
        %3731 = vmatprep.subr.bf16.mxu0 %v2727
        %3732 = vmatpush1.bf16.msra.mxu0 %v2726
        %3733 = vmatprep.subr.bf16.mxu0 %v2731
        %3734 = vmatpush1.bf16.msra.mxu0 %v2730
        %3735 = vmatprep.subr.bf16.mxu0 %v2735
        %3736 = vmatpush1.bf16.msra.mxu0 %v2734
        %3737 = vmatprep.subr.bf16.mxu0 %v2739
        %3738 = vmatpush1.bf16.msra.mxu0 %v2738
        %3739 = vmatprep.subr.bf16.mxu0 %v2743
        %3740 = vmatpush1.bf16.msra.mxu0 %v2742
        %3741 = vmatprep.subr.bf16.mxu0 %v2747
        %3742 = vmatpush1.bf16.msra.mxu0 %v2746
        %3743 = vmatprep.subr.bf16.mxu0 %v2751
        %3744 = vmatpush1.bf16.msra.mxu0 %v2750
        %3745 = vmatprep.subr.bf16.mxu0 %v2755
        %3746 = vmatpush1.bf16.msra.mxu0 %v2754
        %3747 = vmatprep.subr.bf16.mxu0 %v2759
        %3748 = vmatpush1.bf16.msra.mxu0 %v2758
        %3749 = vmatprep.subr.bf16.mxu0 %v2763
        %3750 = vmatpush1.bf16.msra.mxu0 %v2762
        %3751 = vmatprep.subr.bf16.mxu0 %v2767
        %3752 = vmatpush1.bf16.msra.mxu0 %v2766
        %3753 = vmatprep.subr.bf16.mxu0 %v2771
        %3754 = vmatpush1.bf16.msra.mxu0 %v2770
        %3755 = vmatprep.mubr.bf16.mxu0 %v1049
        %3756 = vmatmul.mubr.bf16.gmra.mrb[0].mxu0 %v1048
        %v3757 = vpop.f32.mrb[0].mxu0
        %v3758 = vadd.f32 %v3705, %v3757
        %v3759 = vpop.f32.mrb[0].mxu0
        %v3760 = vadd.f32 %v3707, %v3759
        %v3761 = vpop.f32.mrb[0].mxu0
        %v3762 = vadd.f32 %v3709, %v3761
        %v3763 = vpop.f32.mrb[0].mxu0
        %v3764 = vadd.f32 %v3711, %v3763
        %3765 = vmatprep.mubr.bf16.mxu0 %v1065
        %3766 = vmatmul.mubr.bf16.gmra.mrb[0].mxu0 %v1064
        %v3767 = vpop.f32.mrb[0].mxu0
        %v3768 = vadd.f32 %v3715, %v3767
        %v3769 = vpop.f32.mrb[0].mxu0
        %v3770 = vadd.f32 %v3717, %v3769
        %v3771 = vpop.f32.mrb[0].mxu0
        %v3772 = vadd.f32 %v3719, %v3771
        %v3773 = vpop.f32.mrb[0].mxu0
        %v3774 = vadd.f32 %v3721, %v3773
        %3775 = vdwg.mxu0
        %3776 = vmatprep.subr.bf16.mxu0 %v2775
        %3777 = vmatpush1.bf16.msra.mxu0 %v2774
        %3778 = vmatprep.subr.bf16.mxu0 %v2779
        %3779 = vmatpush1.bf16.msra.mxu0 %v2778
        %3780 = vmatprep.subr.bf16.mxu0 %v2783
        %3781 = vmatpush1.bf16.msra.mxu0 %v2782
        %3782 = vmatprep.subr.bf16.mxu0 %v2787
        %3783 = vmatpush1.bf16.msra.mxu0 %v2786
        %3784 = vmatprep.subr.bf16.mxu0 %v2791
        %3785 = vmatpush1.bf16.msra.mxu0 %v2790
        %3786 = vmatprep.subr.bf16.mxu0 %v2795
        %3787 = vmatpush1.bf16.msra.mxu0 %v2794
        %3788 = vmatprep.subr.bf16.mxu0 %v2799
        %3789 = vmatpush1.bf16.msra.mxu0 %v2798
        %3790 = vmatprep.subr.bf16.mxu0 %v2803
        %3791 = vmatpush1.bf16.msra.mxu0 %v2802
        %3792 = vmatprep.subr.bf16.mxu0 %v2807
        %3793 = vmatpush1.bf16.msra.mxu0 %v2806
        %3794 = vmatprep.subr.bf16.mxu0 %v2811
        %3795 = vmatpush1.bf16.msra.mxu0 %v2810
        %3796 = vmatprep.subr.bf16.mxu0 %v2815
        %3797 = vmatpush1.bf16.msra.mxu0 %v2814
        %3798 = vmatprep.subr.bf16.mxu0 %v2819
        %3799 = vmatpush1.bf16.msra.mxu0 %v2818
        %3800 = vmatprep.subr.bf16.mxu0 %v2823
        %3801 = vmatpush1.bf16.msra.mxu0 %v2822
        %3802 = vmatprep.subr.bf16.mxu0 %v2827
        %3803 = vmatpush1.bf16.msra.mxu0 %v2826
        %3804 = vmatprep.subr.bf16.mxu0 %v2831
        %3805 = vmatpush1.bf16.msra.mxu0 %v2830
        %3806 = vmatprep.subr.bf16.mxu0 %v2835
        %3807 = vmatpush1.bf16.msra.mxu0 %v2834
        %3808 = vmatprep.mubr.bf16.mxu0 %v1051
        %3809 = vmatmul.mubr.bf16.gmra.mrb[0].mxu0 %v1050
        %v3810 = vpop.f32.mrb[0].mxu0
        %v3811 = vadd.f32 %v3758, %v3810
        %v3812 = vpop.f32.mrb[0].mxu0
        %v3813 = vadd.f32 %v3760, %v3812
        %v3814 = vpop.f32.mrb[0].mxu0
        %v3815 = vadd.f32 %v3762, %v3814
        %v3816 = vpop.f32.mrb[0].mxu0
        %v3817 = vadd.f32 %v3764, %v3816
        %3818 = vmatprep.mubr.bf16.mxu0 %v1067
        %3819 = vmatmul.mubr.bf16.gmra.mrb[0].mxu0 %v1066
        %v3820 = vpop.f32.mrb[0].mxu0
        %v3821 = vadd.f32 %v3768, %v3820
        %v3822 = vpop.f32.mrb[0].mxu0
        %v3823 = vadd.f32 %v3770, %v3822
        %v3824 = vpop.f32.mrb[0].mxu0
        %v3825 = vadd.f32 %v3772, %v3824
        %v3826 = vpop.f32.mrb[0].mxu0
        %v3827 = vadd.f32 %v3774, %v3826
        %3828 = vdwg.mxu0
        %3829 = vmatprep.subr.bf16.mxu0 %v2839
        %3830 = vmatpush1.bf16.msra.mxu0 %v2838
        %3831 = vmatprep.subr.bf16.mxu0 %v2843
        %3832 = vmatpush1.bf16.msra.mxu0 %v2842
        %3833 = vmatprep.subr.bf16.mxu0 %v2847
        %3834 = vmatpush1.bf16.msra.mxu0 %v2846
        %3835 = vmatprep.subr.bf16.mxu0 %v2851
        %3836 = vmatpush1.bf16.msra.mxu0 %v2850
        %3837 = vmatprep.subr.bf16.mxu0 %v2855
        %3838 = vmatpush1.bf16.msra.mxu0 %v2854
        %3839 = vmatprep.subr.bf16.mxu0 %v2859
        %3840 = vmatpush1.bf16.msra.mxu0 %v2858
        %3841 = vmatprep.subr.bf16.mxu0 %v2863
        %3842 = vmatpush1.bf16.msra.mxu0 %v2862
        %3843 = vmatprep.subr.bf16.mxu0 %v2867
        %3844 = vmatpush1.bf16.msra.mxu0 %v2866
        %3845 = vmatprep.subr.bf16.mxu0 %v2871
        %3846 = vmatpush1.bf16.msra.mxu0 %v2870
        %3847 = vmatprep.subr.bf16.mxu0 %v2875
        %3848 = vmatpush1.bf16.msra.mxu0 %v2874
        %3849 = vmatprep.subr.bf16.mxu0 %v2879
        %3850 = vmatpush1.bf16.msra.mxu0 %v2878
        %3851 = vmatprep.subr.bf16.mxu0 %v2883
        %3852 = vmatpush1.bf16.msra.mxu0 %v2882
        %3853 = vmatprep.subr.bf16.mxu0 %v2887
        %3854 = vmatpush1.bf16.msra.mxu0 %v2886
        %3855 = vmatprep.subr.bf16.mxu0 %v2891
        %3856 = vmatpush1.bf16.msra.mxu0 %v2890
        %3857 = vmatprep.subr.bf16.mxu0 %v2895
        %3858 = vmatpush1.bf16.msra.mxu0 %v2894
        %3859 = vmatprep.subr.bf16.mxu0 %v2899
        %3860 = vmatpush1.bf16.msra.mxu0 %v2898
        %3861 = vmatprep.mubr.bf16.mxu0 %v1053
        %3862 = vmatmul.mubr.bf16.gmra.mrb[0].mxu0 %v1052
        %v3863 = vpop.f32.mrb[0].mxu0
        %v3864 = vadd.f32 %v3811, %v3863
        %v3865 = vpop.f32.mrb[0].mxu0
        %v3866 = vadd.f32 %v3813, %v3865
        %v3867 = vpop.f32.mrb[0].mxu0
        %v3868 = vadd.f32 %v3815, %v3867
        %v3869 = vpop.f32.mrb[0].mxu0
        %v3870 = vadd.f32 %v3817, %v3869
        %3871 = vmatprep.mubr.bf16.mxu0 %v1069
        %3872 = vmatmul.mubr.bf16.gmra.mrb[0].mxu0 %v1068
        %v3873 = vpop.f32.mrb[0].mxu0
        %v3874 = vadd.f32 %v3821, %v3873
        %v3875 = vpop.f32.mrb[0].mxu0
        %v3876 = vadd.f32 %v3823, %v3875
        %v3877 = vpop.f32.mrb[0].mxu0
        %v3878 = vadd.f32 %v3825, %v3877
        %v3879 = vpop.f32.mrb[0].mxu0
        %v3880 = vadd.f32 %v3827, %v3879
        %3881 = vdwg.mxu0
        %3882 = vmatprep.subr.bf16.mxu0 %v2903
        %3883 = vmatpush1.bf16.msra.mxu0 %v2902
        %3884 = vmatprep.subr.bf16.mxu0 %v2907
        %3885 = vmatpush1.bf16.msra.mxu0 %v2906
        %3886 = vmatprep.subr.bf16.mxu0 %v2911
        %3887 = vmatpush1.bf16.msra.mxu0 %v2910
        %3888 = vmatprep.subr.bf16.mxu0 %v2915
        %3889 = vmatpush1.bf16.msra.mxu0 %v2914
        %3890 = vmatprep.subr.bf16.mxu0 %v2919
        %3891 = vmatpush1.bf16.msra.mxu0 %v2918
        %3892 = vmatprep.subr.bf16.mxu0 %v2923
        %3893 = vmatpush1.bf16.msra.mxu0 %v2922
        %3894 = vmatprep.subr.bf16.mxu0 %v2927
        %3895 = vmatpush1.bf16.msra.mxu0 %v2926
        %3896 = vmatprep.subr.bf16.mxu0 %v2931
        %3897 = vmatpush1.bf16.msra.mxu0 %v2930
        %3898 = vmatprep.subr.bf16.mxu0 %v2935
        %3899 = vmatpush1.bf16.msra.mxu0 %v2934
        %3900 = vmatprep.subr.bf16.mxu0 %v2939
        %3901 = vmatpush1.bf16.msra.mxu0 %v2938
        %3902 = vmatprep.subr.bf16.mxu0 %v2943
        %3903 = vmatpush1.bf16.msra.mxu0 %v2942
        %3904 = vmatprep.subr.bf16.mxu0 %v2947
        %3905 = vmatpush1.bf16.msra.mxu0 %v2946
        %3906 = vmatprep.subr.bf16.mxu0 %v2951
        %3907 = vmatpush1.bf16.msra.mxu0 %v2950
        %3908 = vmatprep.subr.bf16.mxu0 %v2955
        %3909 = vmatpush1.bf16.msra.mxu0 %v2954
        %3910 = vmatprep.subr.bf16.mxu0 %v2959
        %3911 = vmatpush1.bf16.msra.mxu0 %v2958
        %3912 = vmatprep.subr.bf16.mxu0 %v2963
        %3913 = vmatpush1.bf16.msra.mxu0 %v2962
        %3914 = vmatprep.mubr.bf16.mxu0 %v1055
        %3915 = vmatmul.mubr.bf16.gmra.mrb[0].mxu0 %v1054
        %v3916 = vpop.f32.mrb[0].mxu0
        %v3917 = vadd.f32 %v3864, %v3916
        %v3918 = vpop.f32.mrb[0].mxu0
        %v3919 = vadd.f32 %v3866, %v3918
        %v3920 = vpop.f32.mrb[0].mxu0
        %v3921 = vadd.f32 %v3868, %v3920
        %v3922 = vpop.f32.mrb[0].mxu0
        %v3923 = vadd.f32 %v3870, %v3922
        %3924 = vmatprep.mubr.bf16.mxu0 %v1071
        %3925 = vmatmul.mubr.bf16.gmra.mrb[0].mxu0 %v1070
        %v3926 = vpop.f32.mrb[0].mxu0
        %v3927 = vadd.f32 %v3874, %v3926
        %v3928 = vpop.f32.mrb[0].mxu0
        %v3929 = vadd.f32 %v3876, %v3928
        %v3930 = vpop.f32.mrb[0].mxu0
        %v3931 = vadd.f32 %v3878, %v3930
        %v3932 = vpop.f32.mrb[0].mxu0
        %v3933 = vadd.f32 %v3880, %v3932
        %3934 = vdwg.mxu0
        %3935 = vmatprep.subr.bf16.mxu0 %v2967
        %3936 = vmatpush1.bf16.msra.mxu0 %v2966
        %3937 = vmatprep.subr.bf16.mxu0 %v2971
        %3938 = vmatpush1.bf16.msra.mxu0 %v2970
        %3939 = vmatprep.subr.bf16.mxu0 %v2975
        %3940 = vmatpush1.bf16.msra.mxu0 %v2974
        %3941 = vmatprep.subr.bf16.mxu0 %v2979
        %3942 = vmatpush1.bf16.msra.mxu0 %v2978
        %3943 = vmatprep.subr.bf16.mxu0 %v2983
        %3944 = vmatpush1.bf16.msra.mxu0 %v2982
        %3945 = vmatprep.subr.bf16.mxu0 %v2987
        %3946 = vmatpush1.bf16.msra.mxu0 %v2986
        %3947 = vmatprep.subr.bf16.mxu0 %v2991
        %3948 = vmatpush1.bf16.msra.mxu0 %v2990
        %3949 = vmatprep.subr.bf16.mxu0 %v2995
        %3950 = vmatpush1.bf16.msra.mxu0 %v2994
        %3951 = vmatprep.subr.bf16.mxu0 %v2999
        %3952 = vmatpush1.bf16.msra.mxu0 %v2998
        %3953 = vmatprep.subr.bf16.mxu0 %v3003
        %3954 = vmatpush1.bf16.msra.mxu0 %v3002
        %3955 = vmatprep.subr.bf16.mxu0 %v3007
        %3956 = vmatpush1.bf16.msra.mxu0 %v3006
        %3957 = vmatprep.subr.bf16.mxu0 %v3011
        %3958 = vmatpush1.bf16.msra.mxu0 %v3010
        %3959 = vmatprep.subr.bf16.mxu0 %v3015
        %3960 = vmatpush1.bf16.msra.mxu0 %v3014
        %3961 = vmatprep.subr.bf16.mxu0 %v3019
        %3962 = vmatpush1.bf16.msra.mxu0 %v3018
        %3963 = vmatprep.subr.bf16.mxu0 %v3023
        %3964 = vmatpush1.bf16.msra.mxu0 %v3022
        %3965 = vmatprep.subr.bf16.mxu0 %v3027
        %3966 = vmatpush1.bf16.msra.mxu0 %v3026
        %3967 = vmatprep.mubr.bf16.mxu0 %v1057
        %3968 = vmatmul.mubr.bf16.gmra.mrb[0].mxu0 %v1056
        %v3969 = vpop.f32.mrb[0].mxu0
        %v3970 = vadd.f32 %v3917, %v3969
        %v3971 = vpop.f32.mrb[0].mxu0
        %v3972 = vadd.f32 %v3919, %v3971
        %v3973 = vpop.f32.mrb[0].mxu0
        %v3974 = vadd.f32 %v3921, %v3973
        %v3975 = vpop.f32.mrb[0].mxu0
        %v3976 = vadd.f32 %v3923, %v3975
        %3977 = vmatprep.mubr.bf16.mxu0 %v1073
        %3978 = vmatmul.mubr.bf16.gmra.mrb[0].mxu0 %v1072
        %v3979 = vpop.f32.mrb[0].mxu0
        %v3980 = vadd.f32 %v3927, %v3979
        %v3981 = vpop.f32.mrb[0].mxu0
        %v3982 = vadd.f32 %v3929, %v3981
        %v3983 = vpop.f32.mrb[0].mxu0
        %v3984 = vadd.f32 %v3931, %v3983
        %v3985 = vpop.f32.mrb[0].mxu0
        %v3986 = vadd.f32 %v3933, %v3985
        %3987 = vdwg.mxu0
        %3988 = vmatprep.subr.bf16.mxu0 %v3031
        %3989 = vmatpush1.bf16.msra.mxu0 %v3030
        %3990 = vmatprep.subr.bf16.mxu0 %v3035
        %3991 = vmatpush1.bf16.msra.mxu0 %v3034
        %3992 = vmatprep.subr.bf16.mxu0 %v3039
        %3993 = vmatpush1.bf16.msra.mxu0 %v3038
        %3994 = vmatprep.subr.bf16.mxu0 %v3043
        %3995 = vmatpush1.bf16.msra.mxu0 %v3042
        %3996 = vmatprep.subr.bf16.mxu0 %v3047
        %3997 = vmatpush1.bf16.msra.mxu0 %v3046
        %3998 = vmatprep.subr.bf16.mxu0 %v3051
        %3999 = vmatpush1.bf16.msra.mxu0 %v3050
        %4000 = vmatprep.subr.bf16.mxu0 %v3055
        %4001 = vmatpush1.bf16.msra.mxu0 %v3054
        %4002 = vmatprep.subr.bf16.mxu0 %v3059
        %4003 = vmatpush1.bf16.msra.mxu0 %v3058
        %4004 = vmatprep.subr.bf16.mxu0 %v3063
        %4005 = vmatpush1.bf16.msra.mxu0 %v3062
        %4006 = vmatprep.subr.bf16.mxu0 %v3067
        %4007 = vmatpush1.bf16.msra.mxu0 %v3066
        %4008 = vmatprep.subr.bf16.mxu0 %v3071
        %4009 = vmatpush1.bf16.msra.mxu0 %v3070
        %4010 = vmatprep.subr.bf16.mxu0 %v3075
        %4011 = vmatpush1.bf16.msra.mxu0 %v3074
        %4012 = vmatprep.subr.bf16.mxu0 %v3079
        %4013 = vmatpush1.bf16.msra.mxu0 %v3078
        %4014 = vmatprep.subr.bf16.mxu0 %v3083
        %4015 = vmatpush1.bf16.msra.mxu0 %v3082
        %4016 = vmatprep.subr.bf16.mxu0 %v3087
        %4017 = vmatpush1.bf16.msra.mxu0 %v3086
        %4018 = vmatprep.subr.bf16.mxu0 %v3091
        %4019 = vmatpush1.bf16.msra.mxu0 %v3090
        %4020 = vmatprep.mubr.bf16.mxu0 %v1059
        %4021 = vmatmul.mubr.bf16.gmra.mrb[0].mxu0 %v1058
        %v4022 = vpop.f32.mrb[0].mxu0
        %v4023 = vadd.f32 %v3970, %v4022
        %v4024 = vpop.f32.mrb[0].mxu0
        %v4025 = vadd.f32 %v3972, %v4024
        %v4026 = vpop.f32.mrb[0].mxu0
        %v4027 = vadd.f32 %v3974, %v4026
        %v4028 = vpop.f32.mrb[0].mxu0
        %v4029 = vadd.f32 %v3976, %v4028
        %4030 = vmatprep.mubr.bf16.mxu0 %v1075
        %4031 = vmatmul.mubr.bf16.gmra.mrb[0].mxu0 %v1074
        %v4032 = vpop.f32.mrb[0].mxu0
        %v4033 = vadd.f32 %v3980, %v4032
        %v4034 = vpop.f32.mrb[0].mxu0
        %v4035 = vadd.f32 %v3982, %v4034
        %v4036 = vpop.f32.mrb[0].mxu0
        %v4037 = vadd.f32 %v3984, %v4036
        %v4038 = vpop.f32.mrb[0].mxu0
        %v4039 = vadd.f32 %v3986, %v4038
        %4040 = vdwg.mxu0
        %4041 = vmatprep.subr.bf16.mxu0 %v3095
        %4042 = vmatpush1.bf16.msra.mxu0 %v3094
        %4043 = vmatprep.subr.bf16.mxu0 %v3099
        %4044 = vmatpush1.bf16.msra.mxu0 %v3098
        %4045 = vmatprep.subr.bf16.mxu0 %v3103
        %4046 = vmatpush1.bf16.msra.mxu0 %v3102
        %4047 = vmatprep.subr.bf16.mxu0 %v3107
        %4048 = vmatpush1.bf16.msra.mxu0 %v3106
        %4049 = vmatprep.subr.bf16.mxu0 %v3111
        %4050 = vmatpush1.bf16.msra.mxu0 %v3110
        %4051 = vmatprep.subr.bf16.mxu0 %v3115
        %4052 = vmatpush1.bf16.msra.mxu0 %v3114
        %4053 = vmatprep.subr.bf16.mxu0 %v3119
        %4054 = vmatpush1.bf16.msra.mxu0 %v3118
        %4055 = vmatprep.subr.bf16.mxu0 %v3123
        %4056 = vmatpush1.bf16.msra.mxu0 %v3122
        %4057 = vmatprep.subr.bf16.mxu0 %v3127
        %4058 = vmatpush1.bf16.msra.mxu0 %v3126
        %4059 = vmatprep.subr.bf16.mxu0 %v3131
        %4060 = vmatpush1.bf16.msra.mxu0 %v3130
        %4061 = vmatprep.subr.bf16.mxu0 %v3135
        %4062 = vmatpush1.bf16.msra.mxu0 %v3134
        %4063 = vmatprep.subr.bf16.mxu0 %v3139
        %4064 = vmatpush1.bf16.msra.mxu0 %v3138
        %4065 = vmatprep.subr.bf16.mxu0 %v3143
        %4066 = vmatpush1.bf16.msra.mxu0 %v3142
        %4067 = vmatprep.subr.bf16.mxu0 %v3147
        %4068 = vmatpush1.bf16.msra.mxu0 %v3146
        %4069 = vmatprep.subr.bf16.mxu0 %v3151
        %4070 = vmatpush1.bf16.msra.mxu0 %v3150
        %4071 = vmatprep.subr.bf16.mxu0 %v3155
        %4072 = vmatpush1.bf16.msra.mxu0 %v3154
        %4073 = vmatprep.mubr.bf16.mxu0 %v1061
        %4074 = vmatmul.mubr.bf16.gmra.mrb[0].mxu0 %v1060
        %v4075 = vpop.f32.mrb[0].mxu0
        %v4076 = vadd.f32 %v4023, %v4075
        %v4077 = vpop.f32.mrb[0].mxu0
        %v4078 = vadd.f32 %v4025, %v4077
        %v4079 = vpop.f32.mrb[0].mxu0
        %v4080 = vadd.f32 %v4027, %v4079
        %v4081 = vpop.f32.mrb[0].mxu0
        %v4082 = vadd.f32 %v4029, %v4081
        %4083 = vmatprep.mubr.bf16.mxu0 %v1077
        %4084 = vmatmul.mubr.bf16.gmra.mrb[0].mxu0 %v1076
        %v4085 = vpop.f32.mrb[0].mxu0
        %v4086 = vadd.f32 %v4033, %v4085
        %v4087 = vpop.f32.mrb[0].mxu0
        %v4088 = vadd.f32 %v4035, %v4087
        %v4089 = vpop.f32.mrb[0].mxu0
        %v4090 = vadd.f32 %v4037, %v4089
        %v4091 = vpop.f32.mrb[0].mxu0
        %v4092 = vadd.f32 %v4039, %v4091
        %4093 = vdwg.mxu0
        %4094 = vmatprep.subr.bf16.mxu0 %v2649
        %4095 = vmatpush1.bf16.msra.mxu0 %v2648
        %4096 = vmatprep.subr.bf16.mxu0 %v2653
        %4097 = vmatpush1.bf16.msra.mxu0 %v2652
        %4098 = vmatprep.subr.bf16.mxu0 %v2657
        %4099 = vmatpush1.bf16.msra.mxu0 %v2656
        %4100 = vmatprep.subr.bf16.mxu0 %v2661
        %4101 = vmatpush1.bf16.msra.mxu0 %v2660
        %4102 = vmatprep.subr.bf16.mxu0 %v2665
        %4103 = vmatpush1.bf16.msra.mxu0 %v2664
        %4104 = vmatprep.subr.bf16.mxu0 %v2669
        %4105 = vmatpush1.bf16.msra.mxu0 %v2668
        %4106 = vmatprep.subr.bf16.mxu0 %v2673
        %4107 = vmatpush1.bf16.msra.mxu0 %v2672
        %4108 = vmatprep.subr.bf16.mxu0 %v2677
        %4109 = vmatpush1.bf16.msra.mxu0 %v2676
        %4110 = vmatprep.subr.bf16.mxu0 %v2681
        %4111 = vmatpush1.bf16.msra.mxu0 %v2680
        %4112 = vmatprep.subr.bf16.mxu0 %v2685
        %4113 = vmatpush1.bf16.msra.mxu0 %v2684
        %4114 = vmatprep.subr.bf16.mxu0 %v2689
        %4115 = vmatpush1.bf16.msra.mxu0 %v2688
        %4116 = vmatprep.subr.bf16.mxu0 %v2693
        %4117 = vmatpush1.bf16.msra.mxu0 %v2692
        %4118 = vmatprep.subr.bf16.mxu0 %v2697
        %4119 = vmatpush1.bf16.msra.mxu0 %v2696
        %4120 = vmatprep.subr.bf16.mxu0 %v2701
        %4121 = vmatpush1.bf16.msra.mxu0 %v2700
        %4122 = vmatprep.subr.bf16.mxu0 %v2705
        %4123 = vmatpush1.bf16.msra.mxu0 %v2704
        %4124 = vmatprep.subr.bf16.mxu0 %v2709
        %4125 = vmatpush1.bf16.msra.mxu0 %v2708
        %4126 = vmatprep.mubr.bf16.mxu0 %v1047
        %4127 = vmatmul.mubr.bf16.gmra.mrb[0].mxu0 %v1046
        %v4128 = vpop.f32.mrb[0].mxu0
        %v4129 = vadd.f32 0.0, %v4128
        %v4130 = vpop.f32.mrb[0].mxu0
        %v4131 = vadd.f32 0.0, %v4130
        %v4132 = vpop.f32.mrb[0].mxu0
        %v4133 = vadd.f32 0.0, %v4132
        %v4134 = vpop.f32.mrb[0].mxu0
        %v4135 = vadd.f32 0.0, %v4134
        %4136 = vmatprep.mubr.bf16.mxu0 %v1063
        %4137 = vmatmul.mubr.bf16.gmra.mrb[0].mxu0 %v1062
        %v4138 = vpop.f32.mrb[0].mxu0
        %v4139 = vadd.f32 0.0, %v4138
        %v4140 = vpop.f32.mrb[0].mxu0
        %v4141 = vadd.f32 0.0, %v4140
        %v4142 = vpop.f32.mrb[0].mxu0
        %v4143 = vadd.f32 0.0, %v4142
        %v4144 = vpop.f32.mrb[0].mxu0
        %v4145 = vadd.f32 0.0, %v4144
        %4146 = vdwg.mxu0
        %4147 = vmatprep.subr.bf16.mxu0 %v2713
        %4148 = vmatpush1.bf16.msra.mxu0 %v2712
        %4149 = vmatprep.subr.bf16.mxu0 %v2717
        %4150 = vmatpush1.bf16.msra.mxu0 %v2716
        %4151 = vmatprep.subr.bf16.mxu0 %v2721
        %4152 = vmatpush1.bf16.msra.mxu0 %v2720
        %4153 = vmatprep.subr.bf16.mxu0 %v2725
        %4154 = vmatpush1.bf16.msra.mxu0 %v2724
        %4155 = vmatprep.subr.bf16.mxu0 %v2729
        %4156 = vmatpush1.bf16.msra.mxu0 %v2728
        %4157 = vmatprep.subr.bf16.mxu0 %v2733
        %4158 = vmatpush1.bf16.msra.mxu0 %v2732
        %4159 = vmatprep.subr.bf16.mxu0 %v2737
        %4160 = vmatpush1.bf16.msra.mxu0 %v2736
        %4161 = vmatprep.subr.bf16.mxu0 %v2741
        %4162 = vmatpush1.bf16.msra.mxu0 %v2740
        %4163 = vmatprep.subr.bf16.mxu0 %v2745
        %4164 = vmatpush1.bf16.msra.mxu0 %v2744
        %4165 = vmatprep.subr.bf16.mxu0 %v2749
        %4166 = vmatpush1.bf16.msra.mxu0 %v2748
        %4167 = vmatprep.subr.bf16.mxu0 %v2753
        %4168 = vmatpush1.bf16.msra.mxu0 %v2752
        %4169 = vmatprep.subr.bf16.mxu0 %v2757
        %4170 = vmatpush1.bf16.msra.mxu0 %v2756
        %4171 = vmatprep.subr.bf16.mxu0 %v2761
        %4172 = vmatpush1.bf16.msra.mxu0 %v2760
        %4173 = vmatprep.subr.bf16.mxu0 %v2765
        %4174 = vmatpush1.bf16.msra.mxu0 %v2764
        %4175 = vmatprep.subr.bf16.mxu0 %v2769
        %4176 = vmatpush1.bf16.msra.mxu0 %v2768
        %4177 = vmatprep.subr.bf16.mxu0 %v2773
        %4178 = vmatpush1.bf16.msra.mxu0 %v2772
        %4179 = vmatprep.mubr.bf16.mxu0 %v1049
        %4180 = vmatmul.mubr.bf16.gmra.mrb[0].mxu0 %v1048
        %v4181 = vpop.f32.mrb[0].mxu0
        %v4182 = vadd.f32 %v4129, %v4181
        %v4183 = vpop.f32.mrb[0].mxu0
        %v4184 = vadd.f32 %v4131, %v4183
        %v4185 = vpop.f32.mrb[0].mxu0
        %v4186 = vadd.f32 %v4133, %v4185
        %v4187 = vpop.f32.mrb[0].mxu0
        %v4188 = vadd.f32 %v4135, %v4187
        %4189 = vmatprep.mubr.bf16.mxu0 %v1065
        %4190 = vmatmul.mubr.bf16.gmra.mrb[0].mxu0 %v1064
        %v4191 = vpop.f32.mrb[0].mxu0
        %v4192 = vadd.f32 %v4139, %v4191
        %v4193 = vpop.f32.mrb[0].mxu0
        %v4194 = vadd.f32 %v4141, %v4193
        %v4195 = vpop.f32.mrb[0].mxu0
        %v4196 = vadd.f32 %v4143, %v4195
        %v4197 = vpop.f32.mrb[0].mxu0
        %v4198 = vadd.f32 %v4145, %v4197
        %4199 = vdwg.mxu0
        %4200 = vmatprep.subr.bf16.mxu0 %v2777
        %4201 = vmatpush1.bf16.msra.mxu0 %v2776
        %4202 = vmatprep.subr.bf16.mxu0 %v2781
        %4203 = vmatpush1.bf16.msra.mxu0 %v2780
        %4204 = vmatprep.subr.bf16.mxu0 %v2785
        %4205 = vmatpush1.bf16.msra.mxu0 %v2784
        %4206 = vmatprep.subr.bf16.mxu0 %v2789
        %4207 = vmatpush1.bf16.msra.mxu0 %v2788
        %4208 = vmatprep.subr.bf16.mxu0 %v2793
        %4209 = vmatpush1.bf16.msra.mxu0 %v2792
        %4210 = vmatprep.subr.bf16.mxu0 %v2797
        %4211 = vmatpush1.bf16.msra.mxu0 %v2796
        %4212 = vmatprep.subr.bf16.mxu0 %v2801
        %4213 = vmatpush1.bf16.msra.mxu0 %v2800
        %4214 = vmatprep.subr.bf16.mxu0 %v2805
        %4215 = vmatpush1.bf16.msra.mxu0 %v2804
        %4216 = vmatprep.subr.bf16.mxu0 %v2809
        %4217 = vmatpush1.bf16.msra.mxu0 %v2808
        %4218 = vmatprep.subr.bf16.mxu0 %v2813
        %4219 = vmatpush1.bf16.msra.mxu0 %v2812
        %4220 = vmatprep.subr.bf16.mxu0 %v2817
        %4221 = vmatpush1.bf16.msra.mxu0 %v2816
        %4222 = vmatprep.subr.bf16.mxu0 %v2821
        %4223 = vmatpush1.bf16.msra.mxu0 %v2820
        %4224 = vmatprep.subr.bf16.mxu0 %v2825
        %4225 = vmatpush1.bf16.msra.mxu0 %v2824
        %4226 = vmatprep.subr.bf16.mxu0 %v2829
        %4227 = vmatpush1.bf16.msra.mxu0 %v2828
        %4228 = vmatprep.subr.bf16.mxu0 %v2833
        %4229 = vmatpush1.bf16.msra.mxu0 %v2832
        %4230 = vmatprep.subr.bf16.mxu0 %v2837
        %4231 = vmatpush1.bf16.msra.mxu0 %v2836
        %4232 = vmatprep.mubr.bf16.mxu0 %v1051
        %4233 = vmatmul.mubr.bf16.gmra.mrb[0].mxu0 %v1050
        %v4234 = vpop.f32.mrb[0].mxu0
        %v4235 = vadd.f32 %v4182, %v4234
        %v4236 = vpop.f32.mrb[0].mxu0
        %v4237 = vadd.f32 %v4184, %v4236
        %v4238 = vpop.f32.mrb[0].mxu0
        %v4239 = vadd.f32 %v4186, %v4238
        %v4240 = vpop.f32.mrb[0].mxu0
        %v4241 = vadd.f32 %v4188, %v4240
        %4242 = vmatprep.mubr.bf16.mxu0 %v1067
        %4243 = vmatmul.mubr.bf16.gmra.mrb[0].mxu0 %v1066
        %v4244 = vpop.f32.mrb[0].mxu0
        %v4245 = vadd.f32 %v4192, %v4244
        %v4246 = vpop.f32.mrb[0].mxu0
        %v4247 = vadd.f32 %v4194, %v4246
        %v4248 = vpop.f32.mrb[0].mxu0
        %v4249 = vadd.f32 %v4196, %v4248
        %v4250 = vpop.f32.mrb[0].mxu0
        %v4251 = vadd.f32 %v4198, %v4250
        %4252 = vdwg.mxu0
        %4253 = vmatprep.subr.bf16.mxu0 %v2841
        %4254 = vmatpush1.bf16.msra.mxu0 %v2840
        %4255 = vmatprep.subr.bf16.mxu0 %v2845
        %4256 = vmatpush1.bf16.msra.mxu0 %v2844
        %4257 = vmatprep.subr.bf16.mxu0 %v2849
        %4258 = vmatpush1.bf16.msra.mxu0 %v2848
        %4259 = vmatprep.subr.bf16.mxu0 %v2853
        %4260 = vmatpush1.bf16.msra.mxu0 %v2852
        %4261 = vmatprep.subr.bf16.mxu0 %v2857
        %4262 = vmatpush1.bf16.msra.mxu0 %v2856
        %4263 = vmatprep.subr.bf16.mxu0 %v2861
        %4264 = vmatpush1.bf16.msra.mxu0 %v2860
        %4265 = vmatprep.subr.bf16.mxu0 %v2865
        %4266 = vmatpush1.bf16.msra.mxu0 %v2864
        %4267 = vmatprep.subr.bf16.mxu0 %v2869
        %4268 = vmatpush1.bf16.msra.mxu0 %v2868
        %4269 = vmatprep.subr.bf16.mxu0 %v2873
        %4270 = vmatpush1.bf16.msra.mxu0 %v2872
        %4271 = vmatprep.subr.bf16.mxu0 %v2877
        %4272 = vmatpush1.bf16.msra.mxu0 %v2876
        %4273 = vmatprep.subr.bf16.mxu0 %v2881
        %4274 = vmatpush1.bf16.msra.mxu0 %v2880
        %4275 = vmatprep.subr.bf16.mxu0 %v2885
        %4276 = vmatpush1.bf16.msra.mxu0 %v2884
        %4277 = vmatprep.subr.bf16.mxu0 %v2889
        %4278 = vmatpush1.bf16.msra.mxu0 %v2888
        %4279 = vmatprep.subr.bf16.mxu0 %v2893
        %4280 = vmatpush1.bf16.msra.mxu0 %v2892
        %4281 = vmatprep.subr.bf16.mxu0 %v2897
        %4282 = vmatpush1.bf16.msra.mxu0 %v2896
        %4283 = vmatprep.subr.bf16.mxu0 %v2901
        %4284 = vmatpush1.bf16.msra.mxu0 %v2900
        %4285 = vmatprep.mubr.bf16.mxu0 %v1053
        %4286 = vmatmul.mubr.bf16.gmra.mrb[0].mxu0 %v1052
        %v4287 = vpop.f32.mrb[0].mxu0
        %v4288 = vadd.f32 %v4235, %v4287
        %v4289 = vpop.f32.mrb[0].mxu0
        %v4290 = vadd.f32 %v4237, %v4289
        %v4291 = vpop.f32.mrb[0].mxu0
        %v4292 = vadd.f32 %v4239, %v4291
        %v4293 = vpop.f32.mrb[0].mxu0
        %v4294 = vadd.f32 %v4241, %v4293
        %4295 = vmatprep.mubr.bf16.mxu0 %v1069
        %4296 = vmatmul.mubr.bf16.gmra.mrb[0].mxu0 %v1068
        %v4297 = vpop.f32.mrb[0].mxu0
        %v4298 = vadd.f32 %v4245, %v4297
        %v4299 = vpop.f32.mrb[0].mxu0
        %v4300 = vadd.f32 %v4247, %v4299
        %v4301 = vpop.f32.mrb[0].mxu0
        %v4302 = vadd.f32 %v4249, %v4301
        %v4303 = vpop.f32.mrb[0].mxu0
        %v4304 = vadd.f32 %v4251, %v4303
        %4305 = vdwg.mxu0
        %4306 = vmatprep.subr.bf16.mxu0 %v2905
        %4307 = vmatpush1.bf16.msra.mxu0 %v2904
        %4308 = vmatprep.subr.bf16.mxu0 %v2909
        %4309 = vmatpush1.bf16.msra.mxu0 %v2908
        %4310 = vmatprep.subr.bf16.mxu0 %v2913
        %4311 = vmatpush1.bf16.msra.mxu0 %v2912
        %4312 = vmatprep.subr.bf16.mxu0 %v2917
        %4313 = vmatpush1.bf16.msra.mxu0 %v2916
        %4314 = vmatprep.subr.bf16.mxu0 %v2921
        %4315 = vmatpush1.bf16.msra.mxu0 %v2920
        %4316 = vmatprep.subr.bf16.mxu0 %v2925
        %4317 = vmatpush1.bf16.msra.mxu0 %v2924
        %4318 = vmatprep.subr.bf16.mxu0 %v2929
        %4319 = vmatpush1.bf16.msra.mxu0 %v2928
        %4320 = vmatprep.subr.bf16.mxu0 %v2933
        %4321 = vmatpush1.bf16.msra.mxu0 %v2932
        %4322 = vmatprep.subr.bf16.mxu0 %v2937
        %4323 = vmatpush1.bf16.msra.mxu0 %v2936
        %4324 = vmatprep.subr.bf16.mxu0 %v2941
        %4325 = vmatpush1.bf16.msra.mxu0 %v2940
        %4326 = vmatprep.subr.bf16.mxu0 %v2945
        %4327 = vmatpush1.bf16.msra.mxu0 %v2944
        %4328 = vmatprep.subr.bf16.mxu0 %v2949
        %4329 = vmatpush1.bf16.msra.mxu0 %v2948
        %4330 = vmatprep.subr.bf16.mxu0 %v2953
        %4331 = vmatpush1.bf16.msra.mxu0 %v2952
        %4332 = vmatprep.subr.bf16.mxu0 %v2957
        %4333 = vmatpush1.bf16.msra.mxu0 %v2956
        %4334 = vmatprep.subr.bf16.mxu0 %v2961
        %4335 = vmatpush1.bf16.msra.mxu0 %v2960
        %4336 = vmatprep.subr.bf16.mxu0 %v2965
        %4337 = vmatpush1.bf16.msra.mxu0 %v2964
        %4338 = vmatprep.mubr.bf16.mxu0 %v1055
        %4339 = vmatmul.mubr.bf16.gmra.mrb[0].mxu0 %v1054
        %v4340 = vpop.f32.mrb[0].mxu0
        %v4341 = vadd.f32 %v4288, %v4340
        %v4342 = vpop.f32.mrb[0].mxu0
        %v4343 = vadd.f32 %v4290, %v4342
        %v4344 = vpop.f32.mrb[0].mxu0
        %v4345 = vadd.f32 %v4292, %v4344
        %v4346 = vpop.f32.mrb[0].mxu0
        %v4347 = vadd.f32 %v4294, %v4346
        %4348 = vmatprep.mubr.bf16.mxu0 %v1071
        %4349 = vmatmul.mubr.bf16.gmra.mrb[0].mxu0 %v1070
        %v4350 = vpop.f32.mrb[0].mxu0
        %v4351 = vadd.f32 %v4298, %v4350
        %v4352 = vpop.f32.mrb[0].mxu0
        %v4353 = vadd.f32 %v4300, %v4352
        %v4354 = vpop.f32.mrb[0].mxu0
        %v4355 = vadd.f32 %v4302, %v4354
        %v4356 = vpop.f32.mrb[0].mxu0
        %v4357 = vadd.f32 %v4304, %v4356
        %4358 = vdwg.mxu0
        %4359 = vmatprep.subr.bf16.mxu0 %v2969
        %4360 = vmatpush1.bf16.msra.mxu0 %v2968
        %4361 = vmatprep.subr.bf16.mxu0 %v2973
        %4362 = vmatpush1.bf16.msra.mxu0 %v2972
        %4363 = vmatprep.subr.bf16.mxu0 %v2977
        %4364 = vmatpush1.bf16.msra.mxu0 %v2976
        %4365 = vmatprep.subr.bf16.mxu0 %v2981
        %4366 = vmatpush1.bf16.msra.mxu0 %v2980
        %4367 = vmatprep.subr.bf16.mxu0 %v2985
        %4368 = vmatpush1.bf16.msra.mxu0 %v2984
        %4369 = vmatprep.subr.bf16.mxu0 %v2989
        %4370 = vmatpush1.bf16.msra.mxu0 %v2988
        %4371 = vmatprep.subr.bf16.mxu0 %v2993
        %4372 = vmatpush1.bf16.msra.mxu0 %v2992
        %4373 = vmatprep.subr.bf16.mxu0 %v2997
        %4374 = vmatpush1.bf16.msra.mxu0 %v2996
        %4375 = vmatprep.subr.bf16.mxu0 %v3001
        %4376 = vmatpush1.bf16.msra.mxu0 %v3000
        %4377 = vmatprep.subr.bf16.mxu0 %v3005
        %4378 = vmatpush1.bf16.msra.mxu0 %v3004
        %4379 = vmatprep.subr.bf16.mxu0 %v3009
        %4380 = vmatpush1.bf16.msra.mxu0 %v3008
        %4381 = vmatprep.subr.bf16.mxu0 %v3013
        %4382 = vmatpush1.bf16.msra.mxu0 %v3012
        %4383 = vmatprep.subr.bf16.mxu0 %v3017
        %4384 = vmatpush1.bf16.msra.mxu0 %v3016
        %4385 = vmatprep.subr.bf16.mxu0 %v3021
        %4386 = vmatpush1.bf16.msra.mxu0 %v3020
        %4387 = vmatprep.subr.bf16.mxu0 %v3025
        %4388 = vmatpush1.bf16.msra.mxu0 %v3024
        %4389 = vmatprep.subr.bf16.mxu0 %v3029
        %4390 = vmatpush1.bf16.msra.mxu0 %v3028
        %4391 = vmatprep.mubr.bf16.mxu0 %v1057
        %4392 = vmatmul.mubr.bf16.gmra.mrb[0].mxu0 %v1056
        %v4393 = vpop.f32.mrb[0].mxu0
        %v4394 = vadd.f32 %v4341, %v4393
        %v4395 = vpop.f32.mrb[0].mxu0
        %v4396 = vadd.f32 %v4343, %v4395
        %v4397 = vpop.f32.mrb[0].mxu0
        %v4398 = vadd.f32 %v4345, %v4397
        %v4399 = vpop.f32.mrb[0].mxu0
        %v4400 = vadd.f32 %v4347, %v4399
        %4401 = vmatprep.mubr.bf16.mxu0 %v1073
        %4402 = vmatmul.mubr.bf16.gmra.mrb[0].mxu0 %v1072
        %v4403 = vpop.f32.mrb[0].mxu0
        %v4404 = vadd.f32 %v4351, %v4403
        %v4405 = vpop.f32.mrb[0].mxu0
        %v4406 = vadd.f32 %v4353, %v4405
        %v4407 = vpop.f32.mrb[0].mxu0
        %v4408 = vadd.f32 %v4355, %v4407
        %v4409 = vpop.f32.mrb[0].mxu0
        %v4410 = vadd.f32 %v4357, %v4409
        %4411 = vdwg.mxu0
        %4412 = vmatprep.subr.bf16.mxu0 %v3033
        %4413 = vmatpush1.bf16.msra.mxu0 %v3032
        %4414 = vmatprep.subr.bf16.mxu0 %v3037
        %4415 = vmatpush1.bf16.msra.mxu0 %v3036
        %4416 = vmatprep.subr.bf16.mxu0 %v3041
        %4417 = vmatpush1.bf16.msra.mxu0 %v3040
        %4418 = vmatprep.subr.bf16.mxu0 %v3045
        %4419 = vmatpush1.bf16.msra.mxu0 %v3044
        %4420 = vmatprep.subr.bf16.mxu0 %v3049
        %4421 = vmatpush1.bf16.msra.mxu0 %v3048
        %4422 = vmatprep.subr.bf16.mxu0 %v3053
        %4423 = vmatpush1.bf16.msra.mxu0 %v3052
        %4424 = vmatprep.subr.bf16.mxu0 %v3057
        %4425 = vmatpush1.bf16.msra.mxu0 %v3056
        %4426 = vmatprep.subr.bf16.mxu0 %v3061
        %4427 = vmatpush1.bf16.msra.mxu0 %v3060
        %4428 = vmatprep.subr.bf16.mxu0 %v3065
        %4429 = vmatpush1.bf16.msra.mxu0 %v3064
        %4430 = vmatprep.subr.bf16.mxu0 %v3069
        %4431 = vmatpush1.bf16.msra.mxu0 %v3068
        %4432 = vmatprep.subr.bf16.mxu0 %v3073
        %4433 = vmatpush1.bf16.msra.mxu0 %v3072
        %4434 = vmatprep.subr.bf16.mxu0 %v3077
        %4435 = vmatpush1.bf16.msra.mxu0 %v3076
        %4436 = vmatprep.subr.bf16.mxu0 %v3081
        %4437 = vmatpush1.bf16.msra.mxu0 %v3080
        %4438 = vmatprep.subr.bf16.mxu0 %v3085
        %4439 = vmatpush1.bf16.msra.mxu0 %v3084
        %4440 = vmatprep.subr.bf16.mxu0 %v3089
        %4441 = vmatpush1.bf16.msra.mxu0 %v3088
        %4442 = vmatprep.subr.bf16.mxu0 %v3093
        %4443 = vmatpush1.bf16.msra.mxu0 %v3092
        %4444 = vmatprep.mubr.bf16.mxu0 %v1059
        %4445 = vmatmul.mubr.bf16.gmra.mrb[0].mxu0 %v1058
        %v4446 = vpop.f32.mrb[0].mxu0
        %v4447 = vadd.f32 %v4394, %v4446
        %v4448 = vpop.f32.mrb[0].mxu0
        %v4449 = vadd.f32 %v4396, %v4448
        %v4450 = vpop.f32.mrb[0].mxu0
        %v4451 = vadd.f32 %v4398, %v4450
        %v4452 = vpop.f32.mrb[0].mxu0
        %v4453 = vadd.f32 %v4400, %v4452
        %4454 = vmatprep.mubr.bf16.mxu0 %v1075
        %4455 = vmatmul.mubr.bf16.gmra.mrb[0].mxu0 %v1074
        %v4456 = vpop.f32.mrb[0].mxu0
        %v4457 = vadd.f32 %v4404, %v4456
        %v4458 = vpop.f32.mrb[0].mxu0
        %v4459 = vadd.f32 %v4406, %v4458
        %v4460 = vpop.f32.mrb[0].mxu0
        %v4461 = vadd.f32 %v4408, %v4460
        %v4462 = vpop.f32.mrb[0].mxu0
        %v4463 = vadd.f32 %v4410, %v4462
        %4464 = vdwg.mxu0
        %4465 = vmatprep.subr.bf16.mxu0 %v3097
        %4466 = vmatpush1.bf16.msra.mxu0 %v3096
        %4467 = vmatprep.subr.bf16.mxu0 %v3101
        %4468 = vmatpush1.bf16.msra.mxu0 %v3100
        %4469 = vmatprep.subr.bf16.mxu0 %v3105
        %4470 = vmatpush1.bf16.msra.mxu0 %v3104
        %4471 = vmatprep.subr.bf16.mxu0 %v3109
        %4472 = vmatpush1.bf16.msra.mxu0 %v3108
        %4473 = vmatprep.subr.bf16.mxu0 %v3113
        %4474 = vmatpush1.bf16.msra.mxu0 %v3112
        %4475 = vmatprep.subr.bf16.mxu0 %v3117
        %4476 = vmatpush1.bf16.msra.mxu0 %v3116
        %4477 = vmatprep.subr.bf16.mxu0 %v3121
        %4478 = vmatpush1.bf16.msra.mxu0 %v3120
        %4479 = vmatprep.subr.bf16.mxu0 %v3125
        %4480 = vmatpush1.bf16.msra.mxu0 %v3124
        %4481 = vmatprep.subr.bf16.mxu0 %v3129
        %4482 = vmatpush1.bf16.msra.mxu0 %v3128
        %4483 = vmatprep.subr.bf16.mxu0 %v3133
        %4484 = vmatpush1.bf16.msra.mxu0 %v3132
        %4485 = vmatprep.subr.bf16.mxu0 %v3137
        %4486 = vmatpush1.bf16.msra.mxu0 %v3136
        %4487 = vmatprep.subr.bf16.mxu0 %v3141
        %4488 = vmatpush1.bf16.msra.mxu0 %v3140
        %4489 = vmatprep.subr.bf16.mxu0 %v3145
        %4490 = vmatpush1.bf16.msra.mxu0 %v3144
        %4491 = vmatprep.subr.bf16.mxu0 %v3149
        %4492 = vmatpush1.bf16.msra.mxu0 %v3148
        %4493 = vmatprep.subr.bf16.mxu0 %v3153
        %4494 = vmatpush1.bf16.msra.mxu0 %v3152
        %4495 = vmatprep.subr.bf16.mxu0 %v3157
        %4496 = vmatpush1.bf16.msra.mxu0 %v3156
        %4497 = vmatprep.mubr.bf16.mxu0 %v1061
        %4498 = vmatmul.mubr.bf16.gmra.mrb[0].mxu0 %v1060
        %v4499 = vpop.f32.mrb[0].mxu0
        %v4500 = vadd.f32 %v4447, %v4499
        %v4501 = vpop.f32.mrb[0].mxu0
        %v4502 = vadd.f32 %v4449, %v4501
        %v4503 = vpop.f32.mrb[0].mxu0
        %v4504 = vadd.f32 %v4451, %v4503
        %v4505 = vpop.f32.mrb[0].mxu0
        %v4506 = vadd.f32 %v4453, %v4505
        %4507 = vmatprep.mubr.bf16.mxu0 %v1077
        %4508 = vmatmul.mubr.bf16.gmra.mrb[0].mxu0 %v1076
        %v4509 = vpop.f32.mrb[0].mxu0
        %v4510 = vadd.f32 %v4457, %v4509
        %v4511 = vpop.f32.mrb[0].mxu0
        %v4512 = vadd.f32 %v4459, %v4511
        %v4513 = vpop.f32.mrb[0].mxu0
        %v4514 = vadd.f32 %v4461, %v4513
        %v4515 = vpop.f32.mrb[0].mxu0
        %v4516 = vadd.f32 %v4463, %v4515
        %4517 = vdwg.mxu0
        %v4518 = vadd.f32 %v390, %v4076
        %v4519 = vadd.f32 %v391, %v4078
        %v4520 = vadd.f32 %v392, %v4500
        %v4521 = vadd.f32 %v393, %v4502
        %v4522 = vadd.f32 %v394, %v4080
        %v4523 = vadd.f32 %v395, %v4082
        %v4524 = vadd.f32 %v396, %v4504
        %v4525 = vadd.f32 %v397, %v4506
        %v4526 = vadd.f32 %v398, %v4086
        %v4527 = vadd.f32 %v399, %v4088
        %v4528 = vadd.f32 %v400, %v4510
        %v4529 = vadd.f32 %v401, %v4512
        %v4530 = vadd.f32 %v402, %v4090
        %v4531 = vadd.f32 %v403, %v4092
        %v4532 = vadd.f32 %v404, %v4514
        %v4533 = vadd.f32 %v405, %v4516
        %4534 = vst [vmem:[%s341] sm:$0xff] %v4518
        %4535 = vst [vmem:[%s341 + $0x8] sm:$0xff] %v4519
        %4536 = vst [vmem:[%s341 + $0x10] sm:$0xff] %v4520
        %4537 = vst [vmem:[%s341 + $0x18] sm:$0xff] %v4521
        %4538 = vst [vmem:[%s341 + $0x20] sm:$0xff] %v4522
        %4539 = vst [vmem:[%s341 + $0x28] sm:$0xff] %v4523
        %4540 = vst [vmem:[%s341 + $0x30] sm:$0xff] %v4524
        %4541 = vst [vmem:[%s341 + $0x38] sm:$0xff] %v4525
        %4542 = vst [vmem:[%s341 + $0x40] sm:$0xff] %v4526
        %4543 = vst [vmem:[%s341 + $0x48] sm:$0xff] %v4527
        %4544 = vst [vmem:[%s341 + $0x50] sm:$0xff] %v4528
        %4545 = vst [vmem:[%s341 + $0x58] sm:$0xff] %v4529
        %4546 = vst [vmem:[%s341 + $0x60] sm:$0xff] %v4530
        %4547 = vst [vmem:[%s341 + $0x68] sm:$0xff] %v4531
        %4548 = vst [vmem:[%s341 + $0x70] sm:$0xff] %v4532
        %4549 = vst [vmem:[%s341 + $0x78] sm:$0xff] %v4533
        %p4550 = scmp.eq.s32.totalorder %s32, 1
        %p4551 = scmp.eq.s32.totalorder %s33, 1
        %p4552 = pnand %p4550, %p4551
        %p4553 = pneg %p4552
        // Predicated region
        $region53: #{edge_model_forward.3} parent=35 // pred_check
          _
        $region54: #{edge_model_forward.3} parent=35 // pred_check_branch
          %4555 = sbr.rel (%p4552) target = $region56
        $region55: #{edge_model_forward.3} parent=35 // pred_region
          %v4556 = vld [vmem:[%s341] sm:$0xff]
          %v4557 = vld [vmem:[%s341 + $0x8] sm:$0xff]
          %v4558 = vld [vmem:[%s341 + $0x10] sm:$0xff]
          %v4559 = vld [vmem:[%s341 + $0x18] sm:$0xff]
          %v4560 = vld [vmem:[%s341 + $0x20] sm:$0xff]
          %v4561 = vld [vmem:[%s341 + $0x28] sm:$0xff]
          %v4562 = vld [vmem:[%s341 + $0x30] sm:$0xff]
          %v4563 = vld [vmem:[%s341 + $0x38] sm:$0xff]
          %v4564 = vld [vmem:[%s341 + $0x40] sm:$0xff]
          %v4565 = vld [vmem:[%s341 + $0x48] sm:$0xff]
          %v4566 = vld [vmem:[%s341 + $0x50] sm:$0xff]
          %v4567 = vld [vmem:[%s341 + $0x58] sm:$0xff]
          %v4568 = vld [vmem:[%s341 + $0x60] sm:$0xff]
          %v4569 = vld [vmem:[%s341 + $0x68] sm:$0xff]
          %v4570 = vld [vmem:[%s341 + $0x70] sm:$0xff]
          %v4571 = vld [vmem:[%s341 + $0x78] sm:$0xff]
          %v4572 = vld [vmem:[#allocation5] sm:$0xf]
          %v4574 = vlaneseq
          %v4575 = vshrl.u32 %v4574, 7
          %v4576 = vsub.s32 0, %v4575
          %v4577 = vrot.slane %v4572, %v4576
          %v4578 = vlaneseq
          %v4579 = vshrl.u32 %v4578, 7
          %v4580 = vsub.s32 1, %v4579
          %v4581 = vrot.slane %v4572, %v4580
          %v4582 = vlaneseq
          %v4583 = vshrl.u32 %v4582, 7
          %v4584 = vsub.s32 2, %v4583
          %v4585 = vrot.slane %v4572, %v4584
          %v4586 = vlaneseq
          %v4587 = vshrl.u32 %v4586, 7
          %v4588 = vsub.s32 3, %v4587
          %v4589 = vrot.slane %v4572, %v4588
          %v4594 = vmul.f32 %v4556, %v4577
          %v4595 = vmul.f32 %v4557, %v4581
          %v4596 = vmul.f32 %v4558, %v4585
          %v4597 = vmul.f32 %v4559, %v4589
          %v4598 = vmul.f32 %v4560, %v4577
          %v4599 = vmul.f32 %v4561, %v4581
          %v4600 = vmul.f32 %v4562, %v4585
          %v4601 = vmul.f32 %v4563, %v4589
          %v4602 = vmul.f32 %v4564, %v4577
          %v4603 = vmul.f32 %v4565, %v4581
          %v4604 = vmul.f32 %v4566, %v4585
          %v4605 = vmul.f32 %v4567, %v4589
          %v4606 = vmul.f32 %v4568, %v4577
          %v4607 = vmul.f32 %v4569, %v4581
          %v4608 = vmul.f32 %v4570, %v4585
          %v4609 = vmul.f32 %v4571, %v4589
          %v4610 = vld [vmem:[#allocation7] sm:$0xf]
          %v4612 = vlaneseq
          %v4613 = vshrl.u32 %v4612, 7
          %v4614 = vsub.s32 0, %v4613
          %v4615 = vrot.slane %v4610, %v4614
          %v4616 = vlaneseq
          %v4617 = vshrl.u32 %v4616, 7
          %v4618 = vsub.s32 1, %v4617
          %v4619 = vrot.slane %v4610, %v4618
          %v4620 = vlaneseq
          %v4621 = vshrl.u32 %v4620, 7
          %v4622 = vsub.s32 2, %v4621
          %v4623 = vrot.slane %v4610, %v4622
          %v4624 = vlaneseq
          %v4625 = vshrl.u32 %v4624, 7
          %v4626 = vsub.s32 3, %v4625
          %v4627 = vrot.slane %v4610, %v4626
          %v4632 = vadd.f32 %v4594, %v4615
          %v4633 = vadd.f32 %v4595, %v4619
          %v4634 = vadd.f32 %v4596, %v4623
          %v4635 = vadd.f32 %v4597, %v4627
          %v4636 = vadd.f32 %v4598, %v4615
          %v4637 = vadd.f32 %v4599, %v4619
          %v4638 = vadd.f32 %v4600, %v4623
          %v4639 = vadd.f32 %v4601, %v4627
          %v4640 = vadd.f32 %v4602, %v4615
          %v4641 = vadd.f32 %v4603, %v4619
          %v4642 = vadd.f32 %v4604, %v4623
          %v4643 = vadd.f32 %v4605, %v4627
          %v4644 = vadd.f32 %v4606, %v4615
          %v4645 = vadd.f32 %v4607, %v4619
          %v4646 = vadd.f32 %v4608, %v4623
          %v4647 = vadd.f32 %v4609, %v4627
          %v4648 = vmax.f32 %v4632, 0.0
          %v4649 = vmax.f32 %v4633, 0.0
          %v4650 = vmax.f32 %v4634, 0.0
          %v4651 = vmax.f32 %v4635, 0.0
          %v4652 = vmax.f32 %v4636, 0.0
          %v4653 = vmax.f32 %v4637, 0.0
          %v4654 = vmax.f32 %v4638, 0.0
          %v4655 = vmax.f32 %v4639, 0.0
          %v4656 = vmax.f32 %v4640, 0.0
          %v4657 = vmax.f32 %v4641, 0.0
          %v4658 = vmax.f32 %v4642, 0.0
          %v4659 = vmax.f32 %v4643, 0.0
          %v4660 = vmax.f32 %v4644, 0.0
          %v4661 = vmax.f32 %v4645, 0.0
          %v4662 = vmax.f32 %v4646, 0.0
          %v4663 = vmax.f32 %v4647, 0.0
          %4664 = vst [vmem:[%s341] sm:$0xff] %v4648
          %4665 = vst [vmem:[%s341 + $0x8] sm:$0xff] %v4649
          %4666 = vst [vmem:[%s341 + $0x10] sm:$0xff] %v4650
          %4667 = vst [vmem:[%s341 + $0x18] sm:$0xff] %v4651
          %4668 = vst [vmem:[%s341 + $0x20] sm:$0xff] %v4652
          %4669 = vst [vmem:[%s341 + $0x28] sm:$0xff] %v4653
          %4670 = vst [vmem:[%s341 + $0x30] sm:$0xff] %v4654
          %4671 = vst [vmem:[%s341 + $0x38] sm:$0xff] %v4655
          %4672 = vst [vmem:[%s341 + $0x40] sm:$0xff] %v4656
          %4673 = vst [vmem:[%s341 + $0x48] sm:$0xff] %v4657
          %4674 = vst [vmem:[%s341 + $0x50] sm:$0xff] %v4658
          %4675 = vst [vmem:[%s341 + $0x58] sm:$0xff] %v4659
          %4676 = vst [vmem:[%s341 + $0x60] sm:$0xff] %v4660
          %4677 = vst [vmem:[%s341 + $0x68] sm:$0xff] %v4661
          %4678 = vst [vmem:[%s341 + $0x70] sm:$0xff] %v4662
          %4679 = vst [vmem:[%s341 + $0x78] sm:$0xff] %v4663
        $region56: #{edge_model_forward.3} parent=35 // pred_fallthru
          _
        %s4680 = sand.u32 %s179, 1
        %s4681 = scalar_lea.sflag [#allocation4], %s4680
        %s4682 = sand.u32 %s179, 1
        %s4683 = smul.addr %s4682, 128
        %s4684 = scalar_lea.vmem [#allocation8], %s4683
        // Predicated region
        $region57: #{edge_model_forward.3} parent=35 // pred_check
          %p4685 = pneg %p189
        $region58: #{edge_model_forward.3} parent=35 // pred_check_branch
          %4687 = sbr.rel (%p4685) target = $region60
        $region59: #{edge_model_forward.3} parent=35 // pred_region
          %s4688 = smul.u32 %s30, 2
          %s4689 = sadd.s32 %s4688, %s31
          %s4690 = smul.u32 4, %s29
          %s4691 = smul.u32 4, %s4689
          %s4693 = ssub.s32 2048, 2048
          %4694 = vsyncadd %s4681, %s4693
          %s4695 = smul.addr %s4690, 16
          %s4696 = sadd.s32 %s4691, %s4695
          %s4697 = smul.addr %s4696, 128
          %s4698 = scalar_lea.hbm %s4, %s4697
          %s4699 = sshll.u32 %s4684, 4
          %s4700 = int_to_ptr.vmem [resolvable:$true] %s4699
          %4705 = dma.vmem_to_hbm [thread:$0]  %s4700, 2048, %s4698, %s4681, 512, 2048, 32
        $region60: #{edge_model_forward.3} parent=35 // pred_fallthru
          _
      $region36: #{edge_model_forward.3} parent=5 // pred_fallthru
        _
      %p4706 = scmp.le.s32.totalorder 2, %s17
      // Predicated region
      $region61: #{edge_model_forward.3} parent=5 // pred_check
        %p4707 = pneg %p4706
      $region62: #{edge_model_forward.3} parent=5 // pred_check_branch
        %4709 = sbr.rel (%p4707) target = $region64
      $region63: #{edge_model_forward.3} parent=5 // pred_region
        %s4710 = ssub.s32 %s17, 2
        // Predicated region
        $region65: #{edge_model_forward.3} parent=63 // pred_check
          %p4711 = pneg %p195
        $region66: #{edge_model_forward.3} parent=63 // pred_check_branch
          %4713 = sbr.rel (%p4711) target = $region68
        $region67: #{edge_model_forward.3} parent=63 // pred_region
          %s4714 = sand.u32 %s180, 1
          %s4715 = scalar_lea.sflag [#allocation4], %s4714
          %s4716 = sand.u32 %s180, 1
          %s4717 = smul.addr %s4716, 128
          %s4718 = scalar_lea.vmem [#allocation8], %s4717
          %4719 = dma.done %s4715, 2048
        $region68: #{edge_model_forward.3} parent=63 // pred_fallthru
          _
      $region64: #{edge_model_forward.3} parent=5 // pred_fallthru
        _
    $region6: #{edge_model_forward.3} parent=1 // loop_footer
      %s21 = sadd.s32 1, %s17
    $region7: #{edge_model_forward.3} parent=1 // loop_footer_branch
      %16 = sbr.rel target = $region3
    $region8: #{edge_model_forward.3} parent=1 // loop_exit
      _
    %4720 = vsyncpa [#allocation3], 1
    %s4721 = scalar_lea.sflag [#allocation3], 1
    %4722 = vsyncpa %s4721, 1
    %4723 = vsyncpa [#allocation6], 1
    %4724 = vsyncpa [#allocation4], 1
    %s4725 = scalar_lea.sflag [#allocation4], 1
    %4726 = vsyncpa %s4725, 1

// kernel: edge_model_forward.4
$region0: #{edge_model_forward.4}
  #allocation0 [shape = 'u32[]', space=smem, size = 0x4, offset = 0x4, fixed_abs, tag = 'smem constant byte address 0x4 - core index']
  #allocation1 [shape = 'u32[144,128]{1,0:T(1,128)}', space=vmem, size = 0x12000, scoped, tag = 'internal scratch']
  %s0 = inlined_call_operand.vmem [shape: bf16[9,128,768], index: 0, kind: input, shape index: {}]
  %s1 = inlined_call_operand.vmem [shape: bf16[2,2,2,2,768,256], index: 1, kind: input, shape index: {}]
  %s2 = inlined_call_operand.vmem [shape: f32[1,256], index: 2, kind: input, shape index: {}]
  %s3 = inlined_call_operand.vmem [shape: f32[1,256], index: 3, kind: input, shape index: {}]
  %s4 = inlined_call_operand.vmem [shape: f32[128,1024], index: 4, kind: output, shape index: {}]
  %s5 = sld [smem:[#allocation0]]
  $region76: #{edge_model_forward.4} parent=0
    _
  %s7 = ssub.s32 1, %s5
  %s8 = scalar_select 0, %s7, %s5
  $region1: #{edge_model_forward.4} parent=0
    #allocation2 [shape = 'u8[262144]{0}', space=vmem, size = 0x40000, scoped, tag = 'output window, operand 0']
    loop: start=0, step=1, limit=18
    $region2: #{edge_model_forward.4} parent=1 // loop_pre_header
      _
    $region3: #{edge_model_forward.4} parent=1 // loop_header
      %s10 = sphi 0, %s14
      %p11 = scmp.ge.s32.totalorder %s10, 18
      %s17 = sphi 0, %s50
      %s18 = sphi 0, %s46
      %s19 = sphi 0, %s42
      %s20 = sphi 0, %s38
      %s21 = sphi 0, %s34
      %s22 = sphi 0, %s17
      %s23 = sphi 0, %s18
      %s24 = sphi 0, %s19
      %s25 = sphi 0, %s20
      %s26 = sphi 0, %s21
      %s27 = sphi 0, %s22
      %s28 = sphi 0, %s23
      %s29 = sphi 0, %s24
      %s30 = sphi 0, %s25
      %s31 = sphi 0, %s26
      %s63 = sphi 0, %s65
      %s66 = sphi 0, %s63
      %s67 = sphi 0, %s66
      %s83 = sphi 0, %s67
      %s95 = sphi 0, %s97
      %s98 = sphi 0, %s95
      %s99 = sphi 0, %s98
      %s115 = sphi 0, %s99
      %s119 = sphi 0, %s119
      %s121 = sphi 0, %s119
      %s122 = sphi 0, %s121
      %s136 = sphi 0, %s122
      %s140 = sphi 0, %s140
      %s142 = sphi 0, %s140
      %s143 = sphi 0, %s142
      %s157 = sphi 0, %s143
      %s169 = sphi 0, %s171
      %s172 = sphi 0, %s169
      %s173 = sphi 0, %s172
      %s189 = sphi 0, %s173
    $region4: #{edge_model_forward.4} parent=1 // loop_header_branch
      %13 = sbr.rel (%p11) target = $region8
    $region5: #{edge_model_forward.4} parent=1 // loop_body
      %s15 = ssub.s32 %s10, 1
      %s16 = ssub.s32 %s10, 2
      %s32 = sadd.s32 1, %s21
      %p33 = scmp.ge.s32.totalorder %s32, 2
      %s34 = scalar_select %p33, 0, %s32
      %s35 = sadd.s32 1, %s20
      %s36 = scalar_select %p33, %s35, %s20
      %p37 = scmp.ge.s32.totalorder %s36, 2
      %s38 = scalar_select %p37, 0, %s36
      %s39 = sadd.s32 1, %s19
      %s40 = scalar_select %p37, %s39, %s19
      %p41 = scmp.ge.s32.totalorder %s40, 2
      %s42 = scalar_select %p41, 0, %s40
      %s43 = sadd.s32 1, %s18
      %s44 = scalar_select %p41, %s43, %s18
      %p45 = scmp.ge.s32.totalorder %s44, 2
      %s46 = scalar_select %p45, 0, %s44
      %s47 = sadd.s32 1, %s17
      %s48 = scalar_select %p45, %s47, %s17
      %p49 = scmp.ge.s32.totalorder %s48, 1
      %s50 = scalar_select %p49, 0, %s48
      %s51 = sadd.s32 %s18, %s20
      %s52 = smul.u32 %s51, 3
      %s53 = sadd.s32 %s19, %s21
      %s54 = sadd.s32 %s52, %s53
      %s55 = sadd.s32 %s46, %s38
      %s56 = smul.u32 %s55, 3
      %s57 = sadd.s32 %s42, %s34
      %s58 = sadd.s32 %s56, %s57
      %s59 = ssub.s32 %s54, %s58
      %s60 = ssub.s32 %s17, %s50
      %s61 = sor.u32 %s59, %s60
      %p62 = scmp.eq.s32.totalorder %s61, 0
      %s64 = sadd.s32 %s63, 1
      %s65 = scalar_select %p62, %s63, %s64
      %p68 = pneg %p62
      %p69 = scmp.eq.s32.totalorder %s10, 15
      %p70 = por %p68, %p69
      %p71 = scmp.ne.s32.totalorder %s63, %s66
      %p72 = scmp.eq.s32.totalorder %s10, 0
      %p73 = por %p71, %p72
      %p74 = scmp.ne.s32.totalorder %s63, %s66
      %p75 = scmp.eq.s32.totalorder %s15, 15
      %p76 = por %p74, %p75
      %p77 = scmp.ne.s32.totalorder %s66, %s67
      %p78 = scmp.eq.s32.totalorder %s15, 0
      %p79 = por %p77, %p78
      %p80 = scmp.ne.s32.totalorder %s66, %s67
      %p81 = scmp.eq.s32.totalorder %s16, 15
      %p82 = por %p80, %p81
      %p84 = scmp.ne.s32.totalorder %s67, %s83
      %p85 = scmp.eq.s32.totalorder %s16, 0
      %p86 = por %p84, %p85
      %s87 = ssub.s32 %s18, %s46
      %s88 = ssub.s32 %s19, %s42
      %s89 = sor.u32 %s87, %s88
      %s90 = ssub.s32 %s20, %s38
      %s91 = sor.u32 %s89, %s90
      %s92 = ssub.s32 %s21, %s34
      %s93 = sor.u32 %s91, %s92
      %p94 = scmp.eq.s32.totalorder %s93, 0
      %s96 = sadd.s32 %s95, 1
      %s97 = scalar_select %p94, %s95, %s96
      %p100 = pneg %p94
      %p101 = scmp.eq.s32.totalorder %s10, 15
      %p102 = por %p100, %p101
      %p103 = scmp.ne.s32.totalorder %s95, %s98
      %p104 = scmp.eq.s32.totalorder %s10, 0
      %p105 = por %p103, %p104
      %p106 = scmp.ne.s32.totalorder %s95, %s98
      %p107 = scmp.eq.s32.totalorder %s15, 15
      %p108 = por %p106, %p107
      %p109 = scmp.ne.s32.totalorder %s98, %s99
      %p110 = scmp.eq.s32.totalorder %s15, 0
      %p111 = por %p109, %p110
      %p112 = scmp.ne.s32.totalorder %s98, %s99
      %p113 = scmp.eq.s32.totalorder %s16, 15
      %p114 = por %p112, %p113
      %p116 = scmp.ne.s32.totalorder %s99, %s115
      %p117 = scmp.eq.s32.totalorder %s16, 0
      %p118 = por %p116, %p117
      %s120 = sadd.s32 %s119, 1
      %p123 = scmp.eq.s32.totalorder %s10, 15
      %p124 = scmp.ne.s32.totalorder %s119, %s121
      %p125 = scmp.eq.s32.totalorder %s10, 0
      %p126 = por %p124, %p125
      %p127 = scmp.ne.s32.totalorder %s119, %s121
      %p128 = scmp.eq.s32.totalorder %s15, 15
      %p129 = por %p127, %p128
      %p130 = scmp.ne.s32.totalorder %s121, %s122
      %p131 = scmp.eq.s32.totalorder %s15, 0
      %p132 = por %p130, %p131
      %p133 = scmp.ne.s32.totalorder %s121, %s122
      %p134 = scmp.eq.s32.totalorder %s16, 15
      %p135 = por %p133, %p134
      %p137 = scmp.ne.s32.totalorder %s122, %s136
      %p138 = scmp.eq.s32.totalorder %s16, 0
      %p139 = por %p137, %p138
      %s141 = sadd.s32 %s140, 1
      %p144 = scmp.eq.s32.totalorder %s10, 15
      %p145 = scmp.ne.s32.totalorder %s140, %s142
      %p146 = scmp.eq.s32.totalorder %s10, 0
      %p147 = por %p145, %p146
      %p148 = scmp.ne.s32.totalorder %s140, %s142
      %p149 = scmp.eq.s32.totalorder %s15, 15
      %p150 = por %p148, %p149
      %p151 = scmp.ne.s32.totalorder %s142, %s143
      %p152 = scmp.eq.s32.totalorder %s15, 0
      %p153 = por %p151, %p152
      %p154 = scmp.ne.s32.totalorder %s142, %s143
      %p155 = scmp.eq.s32.totalorder %s16, 15
      %p156 = por %p154, %p155
      %p158 = scmp.ne.s32.totalorder %s143, %s157
      %p159 = scmp.eq.s32.totalorder %s16, 0
      %p160 = por %p158, %p159
      %s161 = smul.u32 %s18, 2
      %s162 = sadd.s32 %s161, %s19
      %s163 = smul.u32 %s46, 2
      %s164 = sadd.s32 %s163, %s42
      %s165 = ssub.s32 %s17, %s50
      %s166 = ssub.s32 %s162, %s164
      %s167 = sor.u32 %s165, %s166
      %p168 = scmp.eq.s32.totalorder %s167, 0
      %s170 = sadd.s32 %s169, 1
      %s171 = scalar_select %p168, %s169, %s170
      %p174 = pneg %p168
      %p175 = scmp.eq.s32.totalorder %s10, 15
      %p176 = por %p174, %p175
      %p177 = scmp.ne.s32.totalorder %s169, %s172
      %p178 = scmp.eq.s32.totalorder %s10, 0
      %p179 = por %p177, %p178
      %p180 = scmp.ne.s32.totalorder %s169, %s172
      %p181 = scmp.eq.s32.totalorder %s15, 15
      %p182 = por %p180, %p181
      %p183 = scmp.ne.s32.totalorder %s172, %s173
      %p184 = scmp.eq.s32.totalorder %s15, 0
      %p185 = por %p183, %p184
      %p186 = scmp.ne.s32.totalorder %s172, %s173
      %p187 = scmp.eq.s32.totalorder %s16, 15
      %p188 = por %p186, %p187
      %p190 = scmp.ne.s32.totalorder %s173, %s189
      %p191 = scmp.eq.s32.totalorder %s16, 0
      %p192 = por %p190, %p191
      %p193 = scmp.le.s32.totalorder 1, %s10
      %p194 = scmp.lt.s32.totalorder %s10, 17
      %p195 = pnand %p193, %p194
      %p196 = pneg %p195
      // Predicated region
      $region9: #{edge_model_forward.4} parent=5 // pred_check
        _
      $region10: #{edge_model_forward.4} parent=5 // pred_check_branch
        %198 = sbr.rel (%p195) target = $region12
      $region11: #{edge_model_forward.4} parent=5 // pred_region
        %s199 = ssub.s32 %s10, 1
        // Predicated region
        $region13: #{edge_model_forward.4} parent=11 // pred_check
          %p200 = pneg %p132
        $region14: #{edge_model_forward.4} parent=11 // pred_check_branch
          %202 = sbr.rel (%p200) target = $region16
        $region15: #{edge_model_forward.4} parent=11 // pred_region
          _
        $region16: #{edge_model_forward.4} parent=11 // pred_fallthru
          _
        // Predicated region
        $region17: #{edge_model_forward.4} parent=11 // pred_check
          %p203 = pneg %p153
        $region18: #{edge_model_forward.4} parent=11 // pred_check_branch
          %205 = sbr.rel (%p203) target = $region20
        $region19: #{edge_model_forward.4} parent=11 // pred_region
          _
        $region20: #{edge_model_forward.4} parent=11 // pred_fallthru
          _
      $region12: #{edge_model_forward.4} parent=5 // pred_fallthru
        _
      %p206 = scmp.lt.s32.totalorder %s10, 16
      // Predicated region
      $region21: #{edge_model_forward.4} parent=5 // pred_check
        %p207 = pneg %p206
      $region22: #{edge_model_forward.4} parent=5 // pred_check_branch
        %209 = sbr.rel (%p207) target = $region24
      $region23: #{edge_model_forward.4} parent=5 // pred_region
        // Predicated region
        $region25: #{edge_model_forward.4} parent=23 // pred_check
          %p210 = pneg %p73
        $region26: #{edge_model_forward.4} parent=23 // pred_check_branch
          %212 = sbr.rel (%p210) target = $region28
        $region27: #{edge_model_forward.4} parent=23 // pred_region
          %s213 = sadd.s32 %s18, %s20
          %s214 = smul.u32 %s213, 3
          %s215 = sadd.s32 %s19, %s21
          %s216 = sadd.s32 %s214, %s215
          %s217 = smul.u32 16, %s17
          %p218 = scmp.lt.s32.totalorder %s216, 8
          %s219 = scalar_select %p218, %s216, 8
          %p220 = scmp.lt.s32.totalorder %s217, 15
          %s221 = scalar_select %p220, %s217, 15
          %s222 = smul.addr %s221, 6
          %s223 = smul.addr %s219, 96
          %s224 = sadd.s32 %s222, %s223
          %s225 = smul.addr %s224, 4
          %s226 = scalar_lea.vmem %s0, %s225
          %s227 = sadd.s32 %s18, %s20
          %s228 = smul.u32 %s227, 3
          %s229 = sadd.s32 %s19, %s21
          %s230 = sadd.s32 %s228, %s229
          %s231 = smul.u32 16, %s17
        $region28: #{edge_model_forward.4} parent=23 // pred_fallthru
          _
        // Predicated region
        $region29: #{edge_model_forward.4} parent=23 // pred_check
          %p232 = pneg %p105
        $region30: #{edge_model_forward.4} parent=23 // pred_check_branch
          %234 = sbr.rel (%p232) target = $region32
        $region31: #{edge_model_forward.4} parent=23 // pred_region
          %p235 = scmp.lt.s32.totalorder %s18, 1
          %s236 = scalar_select %p235, %s18, 1
          %p237 = scmp.lt.s32.totalorder %s19, 1
          %s238 = scalar_select %p237, %s19, 1
          %p239 = scmp.lt.s32.totalorder %s20, 1
          %s240 = scalar_select %p239, %s20, 1
          %p241 = scmp.lt.s32.totalorder %s21, 1
          %s242 = scalar_select %p241, %s21, 1
          %s243 = smul.addr %s242, 192
          %s244 = smul.addr %s240, 384
          %s245 = sadd.s32 %s243, %s244
          %s246 = smul.addr %s238, 768
          %s247 = sadd.s32 %s245, %s246
          %s248 = smul.addr %s236, 1536
          %s249 = sadd.s32 %s247, %s248
          %s250 = smul.addr %s249, 4
          %s251 = scalar_lea.vmem %s1, %s250
        $region32: #{edge_model_forward.4} parent=23 // pred_fallthru
          _
      $region24: #{edge_model_forward.4} parent=5 // pred_fallthru
        _
      %p252 = scmp.le.s32.totalorder 1, %s10
      %p253 = scmp.lt.s32.totalorder %s10, 17
      %p254 = pnand %p252, %p253
      %p255 = pneg %p254
      // Predicated region
      $region33: #{edge_model_forward.4} parent=5 // pred_check
        _
      $region34: #{edge_model_forward.4} parent=5 // pred_check_branch
        %257 = sbr.rel (%p254) target = $region36
      $region35: #{edge_model_forward.4} parent=5 // pred_region
        %s258 = ssub.s32 %s10, 1
        %s259 = sadd.s32 %s23, %s25
        %s260 = smul.u32 %s259, 3
        %s261 = sadd.s32 %s24, %s26
        %s262 = sadd.s32 %s260, %s261
        %s263 = smul.u32 16, %s22
        %p264 = scmp.lt.s32.totalorder %s262, 8
        %s265 = scalar_select %p264, %s262, 8
        %p266 = scmp.lt.s32.totalorder %s263, 15
        %s267 = scalar_select %p266, %s263, 15
        %s268 = smul.addr %s267, 6
        %s269 = smul.addr %s265, 96
        %s270 = sadd.s32 %s268, %s269
        %s271 = smul.addr %s270, 4
        %s272 = scalar_lea.vmem %s0, %s271
        %p273 = pneg %p79
        %p274 = pneg %p76
        %p275 = scmp.lt.s32.totalorder %s23, 1
        %s276 = scalar_select %p275, %s23, 1
        %p277 = scmp.lt.s32.totalorder %s24, 1
        %s278 = scalar_select %p277, %s24, 1
        %p279 = scmp.lt.s32.totalorder %s25, 1
        %s280 = scalar_select %p279, %s25, 1
        %p281 = scmp.lt.s32.totalorder %s26, 1
        %s282 = scalar_select %p281, %s26, 1
        %s283 = smul.addr %s282, 192
        %s284 = smul.addr %s280, 384
        %s285 = sadd.s32 %s283, %s284
        %s286 = smul.addr %s278, 768
        %s287 = sadd.s32 %s285, %s286
        %s288 = smul.addr %s276, 1536
        %s289 = sadd.s32 %s287, %s288
        %s290 = smul.addr %s289, 4
        %s291 = scalar_lea.vmem %s1, %s290
        %p292 = pneg %p111
        %p293 = pneg %p108
        %p294 = pneg %p132
        %p295 = pneg %p129
        %p296 = pneg %p153
        %p297 = pneg %p150
        %p298 = pneg %p185
        %p299 = pneg %p182
        %s300 = sand.u32 %s172, 1
        %s301 = sand.u32 %s172, 1
        %s302 = smul.addr %s301, 256
        %s303 = scalar_lea.vmem [#allocation2], %s302
        %s304 = sadd.s32 %s23, %s25
        %s305 = smul.u32 %s304, 3
        %s306 = sadd.s32 %s24, %s26
        %s307 = sadd.s32 %s305, %s306
        %s308 = smul.u32 16, %s22
        %p309 = scmp.lt.s32.totalorder %s307, 8
        %s310 = scalar_select %p309, %s307, 8
        %p311 = scmp.lt.s32.totalorder %s308, 15
        %s312 = scalar_select %p311, %s308, 15
        %s313 = smul.addr %s312, 6
        %s314 = smul.addr %s310, 96
        %s315 = sadd.s32 %s313, %s314
        %s316 = smul.addr %s315, 4
        %s317 = scalar_lea.vmem %s0, %s316
        %s318 = sadd.s32 %s23, %s25
        %s319 = smul.u32 %s318, 3
        %s320 = sadd.s32 %s24, %s26
        %s321 = sadd.s32 %s319, %s320
        %s322 = smul.u32 16, %s22
        %p323 = scmp.lt.s32.totalorder %s23, 1
        %s324 = scalar_select %p323, %s23, 1
        %p325 = scmp.lt.s32.totalorder %s24, 1
        %s326 = scalar_select %p325, %s24, 1
        %p327 = scmp.lt.s32.totalorder %s25, 1
        %s328 = scalar_select %p327, %s25, 1
        %p329 = scmp.lt.s32.totalorder %s26, 1
        %s330 = scalar_select %p329, %s26, 1
        %s331 = smul.addr %s330, 192
        %s332 = smul.addr %s328, 384
        %s333 = sadd.s32 %s331, %s332
        %s334 = smul.addr %s326, 768
        %s335 = sadd.s32 %s333, %s334
        %s336 = smul.addr %s324, 1536
        %s337 = sadd.s32 %s335, %s336
        %s338 = smul.addr %s337, 4
        %s339 = scalar_lea.vmem %s1, %s338
        %s340 = smul.u32 %s23, 2
        %s341 = sadd.s32 %s340, %s24
        %s342 = smul.u32 16, %s22
        %s343 = smul.u32 2, %s341
        %p344 = scmp.eq.s32.totalorder %s25, 0
        %p345 = scmp.eq.s32.totalorder %s26, 0
        %p346 = pnand %p344, %p345
        %p347 = pneg %p346
        // Predicated region
        $region37: #{edge_model_forward.4} parent=35 // pred_check
          _
        $region38: #{edge_model_forward.4} parent=35 // pred_check_branch
          %349 = sbr.rel (%p346) target = $region40
        $region39: #{edge_model_forward.4} parent=35 // pred_region
          %350 = vst [vmem:[%s303] sm:$0xff] 0.0
          %351 = vst [vmem:[%s303 + $0x8] sm:$0xff] 0.0
          %352 = vst [vmem:[%s303 + $0x10] sm:$0xff] 0.0
          %353 = vst [vmem:[%s303 + $0x18] sm:$0xff] 0.0
          %354 = vst [vmem:[%s303 + $0x20] sm:$0xff] 0.0
          %355 = vst [vmem:[%s303 + $0x28] sm:$0xff] 0.0
          %356 = vst [vmem:[%s303 + $0x30] sm:$0xff] 0.0
          %357 = vst [vmem:[%s303 + $0x38] sm:$0xff] 0.0
          %358 = vst [vmem:[%s303 + $0x40] sm:$0xff] 0.0
          %359 = vst [vmem:[%s303 + $0x48] sm:$0xff] 0.0
          %360 = vst [vmem:[%s303 + $0x50] sm:$0xff] 0.0
          %361 = vst [vmem:[%s303 + $0x58] sm:$0xff] 0.0
          %362 = vst [vmem:[%s303 + $0x60] sm:$0xff] 0.0
          %363 = vst [vmem:[%s303 + $0x68] sm:$0xff] 0.0
          %364 = vst [vmem:[%s303 + $0x70] sm:$0xff] 0.0
          %365 = vst [vmem:[%s303 + $0x78] sm:$0xff] 0.0
          %366 = vst [vmem:[%s303 + $0x80] sm:$0xff] 0.0
          %367 = vst [vmem:[%s303 + $0x88] sm:$0xff] 0.0
          %368 = vst [vmem:[%s303 + $0x90] sm:$0xff] 0.0
          %369 = vst [vmem:[%s303 + $0x98] sm:$0xff] 0.0
          %370 = vst [vmem:[%s303 + $0xa0] sm:$0xff] 0.0
          %371 = vst [vmem:[%s303 + $0xa8] sm:$0xff] 0.0
          %372 = vst [vmem:[%s303 + $0xb0] sm:$0xff] 0.0
          %373 = vst [vmem:[%s303 + $0xb8] sm:$0xff] 0.0
          %374 = vst [vmem:[%s303 + $0xc0] sm:$0xff] 0.0
          %375 = vst [vmem:[%s303 + $0xc8] sm:$0xff] 0.0
          %376 = vst [vmem:[%s303 + $0xd0] sm:$0xff] 0.0
          %377 = vst [vmem:[%s303 + $0xd8] sm:$0xff] 0.0
          %378 = vst [vmem:[%s303 + $0xe0] sm:$0xff] 0.0
          %379 = vst [vmem:[%s303 + $0xe8] sm:$0xff] 0.0
          %380 = vst [vmem:[%s303 + $0xf0] sm:$0xff] 0.0
          %381 = vst [vmem:[%s303 + $0xf8] sm:$0xff] 0.0
        $region40: #{edge_model_forward.4} parent=35 // pred_fallthru
          _
        %v382 = vld [vmem:[%s303] sm:$0xff]
        %v383 = vld [vmem:[%s303 + $0x8] sm:$0xff]
        %v384 = vld [vmem:[%s303 + $0x10] sm:$0xff]
        %v385 = vld [vmem:[%s303 + $0x18] sm:$0xff]
        %v386 = vld [vmem:[%s303 + $0x20] sm:$0xff]
        %v387 = vld [vmem:[%s303 + $0x28] sm:$0xff]
        %v388 = vld [vmem:[%s303 + $0x30] sm:$0xff]
        %v389 = vld [vmem:[%s303 + $0x38] sm:$0xff]
        %v390 = vld [vmem:[%s303 + $0x40] sm:$0xff]
        %v391 = vld [vmem:[%s303 + $0x48] sm:$0xff]
        %v392 = vld [vmem:[%s303 + $0x50] sm:$0xff]
        %v393 = vld [vmem:[%s303 + $0x58] sm:$0xff]
        %v394 = vld [vmem:[%s303 + $0x60] sm:$0xff]
        %v395 = vld [vmem:[%s303 + $0x68] sm:$0xff]
        %v396 = vld [vmem:[%s303 + $0x70] sm:$0xff]
        %v397 = vld [vmem:[%s303 + $0x78] sm:$0xff]
        %v398 = vld [vmem:[%s303 + $0x80] sm:$0xff]
        %v399 = vld [vmem:[%s303 + $0x88] sm:$0xff]
        %v400 = vld [vmem:[%s303 + $0x90] sm:$0xff]
        %v401 = vld [vmem:[%s303 + $0x98] sm:$0xff]
        %v402 = vld [vmem:[%s303 + $0xa0] sm:$0xff]
        %v403 = vld [vmem:[%s303 + $0xa8] sm:$0xff]
        %v404 = vld [vmem:[%s303 + $0xb0] sm:$0xff]
        %v405 = vld [vmem:[%s303 + $0xb8] sm:$0xff]
        %v406 = vld [vmem:[%s303 + $0xc0] sm:$0xff]
        %v407 = vld [vmem:[%s303 + $0xc8] sm:$0xff]
        %v408 = vld [vmem:[%s303 + $0xd0] sm:$0xff]
        %v409 = vld [vmem:[%s303 + $0xd8] sm:$0xff]
        %v410 = vld [vmem:[%s303 + $0xe0] sm:$0xff]
        %v411 = vld [vmem:[%s303 + $0xe8] sm:$0xff]
        %v412 = vld [vmem:[%s303 + $0xf0] sm:$0xff]
        %v413 = vld [vmem:[%s303 + $0xf8] sm:$0xff]
        %v414 = vld [vmem:[%s317] sm:$0xff]
        %v415 = vld [vmem:[%s317 + $0x8] sm:$0xff]
        %v416 = vld [vmem:[%s317 + $0x10] sm:$0xff]
        %v417 = vld [vmem:[%s317 + $0x18] sm:$0xff]
        %v418 = vld [vmem:[%s317 + $0x20] sm:$0xff]
        %v419 = vld [vmem:[%s317 + $0x28] sm:$0xff]
        %v420 = vld [vmem:[%s317 + $0x30] sm:$0xff]
        %v421 = vld [vmem:[%s317 + $0x38] sm:$0xff]
        %v422 = vld [vmem:[%s317 + $0x40] sm:$0xff]
        %v423 = vld [vmem:[%s317 + $0x48] sm:$0xff]
        %v424 = vld [vmem:[%s317 + $0x50] sm:$0xff]
        %v425 = vld [vmem:[%s317 + $0x58] sm:$0xff]
        %v426 = vld [vmem:[%s317 + $0x60] sm:$0xff]
        %v427 = vld [vmem:[%s317 + $0x68] sm:$0xff]
        %v428 = vld [vmem:[%s317 + $0x70] sm:$0xff]
        %v429 = vld [vmem:[%s317 + $0x78] sm:$0xff]
        %v430 = vld [vmem:[%s317 + $0x80] sm:$0xff]
        %v431 = vld [vmem:[%s317 + $0x88] sm:$0xff]
        %v432 = vld [vmem:[%s317 + $0x90] sm:$0xff]
        %v433 = vld [vmem:[%s317 + $0x98] sm:$0xff]
        %v434 = vld [vmem:[%s317 + $0xa0] sm:$0xff]
        %v435 = vld [vmem:[%s317 + $0xa8] sm:$0xff]
        %v436 = vld [vmem:[%s317 + $0xb0] sm:$0xff]
        %v437 = vld [vmem:[%s317 + $0xb8] sm:$0xff]
        %v438 = vld [vmem:[%s317 + $0xc0] sm:$0xff]
        %v439 = vld [vmem:[%s317 + $0xc8] sm:$0xff]
        %v440 = vld [vmem:[%s317 + $0xd0] sm:$0xff]
        %v441 = vld [vmem:[%s317 + $0xd8] sm:$0xff]
        %v442 = vld [vmem:[%s317 + $0xe0] sm:$0xff]
        %v443 = vld [vmem:[%s317 + $0xe8] sm:$0xff]
        %v444 = vld [vmem:[%s317 + $0xf0] sm:$0xff]
        %v445 = vld [vmem:[%s317 + $0xf8] sm:$0xff]
        %v446 = vld [vmem:[%s317 + $0x100] sm:$0xff]
        %v447 = vld [vmem:[%s317 + $0x108] sm:$0xff]
        %v448 = vld [vmem:[%s317 + $0x110] sm:$0xff]
        %v449 = vld [vmem:[%s317 + $0x118] sm:$0xff]
        %v450 = vld [vmem:[%s317 + $0x120] sm:$0xff]
        %v451 = vld [vmem:[%s317 + $0x128] sm:$0xff]
        %v452 = vld [vmem:[%s317 + $0x130] sm:$0xff]
        %v453 = vld [vmem:[%s317 + $0x138] sm:$0xff]
        %v454 = vld [vmem:[%s317 + $0x140] sm:$0xff]
        %v455 = vld [vmem:[%s317 + $0x148] sm:$0xff]
        %v456 = vld [vmem:[%s317 + $0x150] sm:$0xff]
        %v457 = vld [vmem:[%s317 + $0x158] sm:$0xff]
        %v458 = vld [vmem:[%s317 + $0x160] sm:$0xff]
        %v459 = vld [vmem:[%s317 + $0x168] sm:$0xff]
        %v460 = vld [vmem:[%s317 + $0x170] sm:$0xff]
        %v461 = vld [vmem:[%s317 + $0x178] sm:$0xff]
        %v462 = vld [vmem:[%s339] sm:$0xff]
        %v463 = vld [vmem:[%s339 + $0x8] sm:$0xff]
        %v464 = vld [vmem:[%s339 + $0x10] sm:$0xff]
        %v465 = vld [vmem:[%s339 + $0x18] sm:$0xff]
        %v466 = vld [vmem:[%s339 + $0x20] sm:$0xff]
        %v467 = vld [vmem:[%s339 + $0x28] sm:$0xff]
        %v468 = vld [vmem:[%s339 + $0x30] sm:$0xff]
        %v469 = vld [vmem:[%s339 + $0x38] sm:$0xff]
        %v470 = vld [vmem:[%s339 + $0x40] sm:$0xff]
        %v471 = vld [vmem:[%s339 + $0x48] sm:$0xff]
        %v472 = vld [vmem:[%s339 + $0x50] sm:$0xff]
        %v473 = vld [vmem:[%s339 + $0x58] sm:$0xff]
        %v474 = vld [vmem:[%s339 + $0x60] sm:$0xff]
        %v475 = vld [vmem:[%s339 + $0x68] sm:$0xff]
        %v476 = vld [vmem:[%s339 + $0x70] sm:$0xff]
        %v477 = vld [vmem:[%s339 + $0x78] sm:$0xff]
        %v478 = vld [vmem:[%s339 + $0x80] sm:$0xff]
        %v479 = vld [vmem:[%s339 + $0x88] sm:$0xff]
        %v480 = vld [vmem:[%s339 + $0x90] sm:$0xff]
        %v481 = vld [vmem:[%s339 + $0x98] sm:$0xff]
        %v482 = vld [vmem:[%s339 + $0xa0] sm:$0xff]
        %v483 = vld [vmem:[%s339 + $0xa8] sm:$0xff]
        %v484 = vld [vmem:[%s339 + $0xb0] sm:$0xff]
        %v485 = vld [vmem:[%s339 + $0xb8] sm:$0xff]
        %v486 = vld [vmem:[%s339 + $0xc0] sm:$0xff]
        %v487 = vld [vmem:[%s339 + $0xc8] sm:$0xff]
        %v488 = vld [vmem:[%s339 + $0xd0] sm:$0xff]
        %v489 = vld [vmem:[%s339 + $0xd8] sm:$0xff]
        %v490 = vld [vmem:[%s339 + $0xe0] sm:$0xff]
        %v491 = vld [vmem:[%s339 + $0xe8] sm:$0xff]
        %v492 = vld [vmem:[%s339 + $0xf0] sm:$0xff]
        %v493 = vld [vmem:[%s339 + $0xf8] sm:$0xff]
        %v494 = vld [vmem:[%s339 + $0x100] sm:$0xff]
        %v495 = vld [vmem:[%s339 + $0x108] sm:$0xff]
        %v496 = vld [vmem:[%s339 + $0x110] sm:$0xff]
        %v497 = vld [vmem:[%s339 + $0x118] sm:$0xff]
        %v498 = vld [vmem:[%s339 + $0x120] sm:$0xff]
        %v499 = vld [vmem:[%s339 + $0x128] sm:$0xff]
        %v500 = vld [vmem:[%s339 + $0x130] sm:$0xff]
        %v501 = vld [vmem:[%s339 + $0x138] sm:$0xff]
        %v502 = vld [vmem:[%s339 + $0x140] sm:$0xff]
        %v503 = vld [vmem:[%s339 + $0x148] sm:$0xff]
        %v504 = vld [vmem:[%s339 + $0x150] sm:$0xff]
        %v505 = vld [vmem:[%s339 + $0x158] sm:$0xff]
        %v506 = vld [vmem:[%s339 + $0x160] sm:$0xff]
        %v507 = vld [vmem:[%s339 + $0x168] sm:$0xff]
        %v508 = vld [vmem:[%s339 + $0x170] sm:$0xff]
        %v509 = vld [vmem:[%s339 + $0x178] sm:$0xff]
        %v510 = vld [vmem:[%s339 + $0x180] sm:$0xff]
        %v511 = vld [vmem:[%s339 + $0x188] sm:$0xff]
        %v512 = vld [vmem:[%s339 + $0x190] sm:$0xff]
        %v513 = vld [vmem:[%s339 + $0x198] sm:$0xff]
        %v514 = vld [vmem:[%s339 + $0x1a0] sm:$0xff]
        %v515 = vld [vmem:[%s339 + $0x1a8] sm:$0xff]
        %v516 = vld [vmem:[%s339 + $0x1b0] sm:$0xff]
        %v517 = vld [vmem:[%s339 + $0x1b8] sm:$0xff]
        %v518 = vld [vmem:[%s339 + $0x1c0] sm:$0xff]
        %v519 = vld [vmem:[%s339 + $0x1c8] sm:$0xff]
        %v520 = vld [vmem:[%s339 + $0x1d0] sm:$0xff]
        %v521 = vld [vmem:[%s339 + $0x1d8] sm:$0xff]
        %v522 = vld [vmem:[%s339 + $0x1e0] sm:$0xff]
        %v523 = vld [vmem:[%s339 + $0x1e8] sm:$0xff]
        %v524 = vld [vmem:[%s339 + $0x1f0] sm:$0xff]
        %v525 = vld [vmem:[%s339 + $0x1f8] sm:$0xff]
        %v526 = vld [vmem:[%s339 + $0x200] sm:$0xff]
        %v527 = vld [vmem:[%s339 + $0x208] sm:$0xff]
        %v528 = vld [vmem:[%s339 + $0x210] sm:$0xff]
        %v529 = vld [vmem:[%s339 + $0x218] sm:$0xff]
        %v530 = vld [vmem:[%s339 + $0x220] sm:$0xff]
        %v531 = vld [vmem:[%s339 + $0x228] sm:$0xff]
        %v532 = vld [vmem:[%s339 + $0x230] sm:$0xff]
        %v533 = vld [vmem:[%s339 + $0x238] sm:$0xff]
        %v534 = vld [vmem:[%s339 + $0x240] sm:$0xff]
        %v535 = vld [vmem:[%s339 + $0x248] sm:$0xff]
        %v536 = vld [vmem:[%s339 + $0x250] sm:$0xff]
        %v537 = vld [vmem:[%s339 + $0x258] sm:$0xff]
        %v538 = vld [vmem:[%s339 + $0x260] sm:$0xff]
        %v539 = vld [vmem:[%s339 + $0x268] sm:$0xff]
        %v540 = vld [vmem:[%s339 + $0x270] sm:$0xff]
        %v541 = vld [vmem:[%s339 + $0x278] sm:$0xff]
        %v542 = vld [vmem:[%s339 + $0x280] sm:$0xff]
        %v543 = vld [vmem:[%s339 + $0x288] sm:$0xff]
        %v544 = vld [vmem:[%s339 + $0x290] sm:$0xff]
        %v545 = vld [vmem:[%s339 + $0x298] sm:$0xff]
        %v546 = vld [vmem:[%s339 + $0x2a0] sm:$0xff]
        %v547 = vld [vmem:[%s339 + $0x2a8] sm:$0xff]
        %v548 = vld [vmem:[%s339 + $0x2b0] sm:$0xff]
        %v549 = vld [vmem:[%s339 + $0x2b8] sm:$0xff]
        %v550 = vld [vmem:[%s339 + $0x2c0] sm:$0xff]
        %v551 = vld [vmem:[%s339 + $0x2c8] sm:$0xff]
        %v552 = vld [vmem:[%s339 + $0x2d0] sm:$0xff]
        %v553 = vld [vmem:[%s339 + $0x2d8] sm:$0xff]
        %v554 = vld [vmem:[%s339 + $0x2e0] sm:$0xff]
        %v555 = vld [vmem:[%s339 + $0x2e8] sm:$0xff]
        %v556 = vld [vmem:[%s339 + $0x2f0] sm:$0xff]
        %v557 = vld [vmem:[%s339 + $0x2f8] sm:$0xff]
        %v606 = vunpack.c.l.b16 %v414
        %v607 = vunpack.c.h.b16 %v414
        %v608 = vunpack.c.l.b16 %v415
        %v609 = vunpack.c.h.b16 %v415
        %v610 = vunpack.c.l.b16 %v416
        %v611 = vunpack.c.h.b16 %v416
        %v612 = vunpack.c.l.b16 %v417
        %v613 = vunpack.c.h.b16 %v417
        %v614 = vunpack.c.l.b16 %v418
        %v615 = vunpack.c.h.b16 %v418
        %v616 = vunpack.c.l.b16 %v419
        %v617 = vunpack.c.h.b16 %v419
        %v618 = vunpack.c.l.b16 %v420
        %v619 = vunpack.c.h.b16 %v420
        %v620 = vunpack.c.l.b16 %v421
        %v621 = vunpack.c.h.b16 %v421
        %v622 = vunpack.c.l.b16 %v422
        %v623 = vunpack.c.h.b16 %v422
        %v624 = vunpack.c.l.b16 %v423
        %v625 = vunpack.c.h.b16 %v423
        %v626 = vunpack.c.l.b16 %v424
        %v627 = vunpack.c.h.b16 %v424
        %v628 = vunpack.c.l.b16 %v425
        %v629 = vunpack.c.h.b16 %v425
        %v630 = vunpack.c.l.b16 %v426
        %v631 = vunpack.c.h.b16 %v426
        %v632 = vunpack.c.l.b16 %v427
        %v633 = vunpack.c.h.b16 %v427
        %v634 = vunpack.c.l.b16 %v428
        %v635 = vunpack.c.h.b16 %v428
        %v636 = vunpack.c.l.b16 %v429
        %v637 = vunpack.c.h.b16 %v429
        %v638 = vunpack.c.l.b16 %v430
        %v639 = vunpack.c.h.b16 %v430
        %v640 = vunpack.c.l.b16 %v431
        %v641 = vunpack.c.h.b16 %v431
        %v642 = vunpack.c.l.b16 %v432
        %v643 = vunpack.c.h.b16 %v432
        %v644 = vunpack.c.l.b16 %v433
        %v645 = vunpack.c.h.b16 %v433
        %v646 = vunpack.c.l.b16 %v434
        %v647 = vunpack.c.h.b16 %v434
        %v648 = vunpack.c.l.b16 %v435
        %v649 = vunpack.c.h.b16 %v435
        %v650 = vunpack.c.l.b16 %v436
        %v651 = vunpack.c.h.b16 %v436
        %v652 = vunpack.c.l.b16 %v437
        %v653 = vunpack.c.h.b16 %v437
        %v654 = vunpack.c.l.b16 %v438
        %v655 = vunpack.c.h.b16 %v438
        %v656 = vunpack.c.l.b16 %v439
        %v657 = vunpack.c.h.b16 %v439
        %v658 = vunpack.c.l.b16 %v440
        %v659 = vunpack.c.h.b16 %v440
        %v660 = vunpack.c.l.b16 %v441
        %v661 = vunpack.c.h.b16 %v441
        %v662 = vunpack.c.l.b16 %v442
        %v663 = vunpack.c.h.b16 %v442
        %v664 = vunpack.c.l.b16 %v443
        %v665 = vunpack.c.h.b16 %v443
        %v666 = vunpack.c.l.b16 %v444
        %v667 = vunpack.c.h.b16 %v444
        %v668 = vunpack.c.l.b16 %v445
        %v669 = vunpack.c.h.b16 %v445
        %v670 = vunpack.c.l.b16 %v446
        %v671 = vunpack.c.h.b16 %v446
        %v672 = vunpack.c.l.b16 %v447
        %v673 = vunpack.c.h.b16 %v447
        %v674 = vunpack.c.l.b16 %v448
        %v675 = vunpack.c.h.b16 %v448
        %v676 = vunpack.c.l.b16 %v449
        %v677 = vunpack.c.h.b16 %v449
        %v678 = vunpack.c.l.b16 %v450
        %v679 = vunpack.c.h.b16 %v450
        %v680 = vunpack.c.l.b16 %v451
        %v681 = vunpack.c.h.b16 %v451
        %v682 = vunpack.c.l.b16 %v452
        %v683 = vunpack.c.h.b16 %v452
        %v684 = vunpack.c.l.b16 %v453
        %v685 = vunpack.c.h.b16 %v453
        %v686 = vunpack.c.l.b16 %v454
        %v687 = vunpack.c.h.b16 %v454
        %v688 = vunpack.c.l.b16 %v455
        %v689 = vunpack.c.h.b16 %v455
        %v690 = vunpack.c.l.b16 %v456
        %v691 = vunpack.c.h.b16 %v456
        %v692 = vunpack.c.l.b16 %v457
        %v693 = vunpack.c.h.b16 %v457
        %v694 = vunpack.c.l.b16 %v458
        %v695 = vunpack.c.h.b16 %v458
        %v696 = vunpack.c.l.b16 %v459
        %v697 = vunpack.c.h.b16 %v459
        %v698 = vunpack.c.l.b16 %v460
        %v699 = vunpack.c.h.b16 %v460
        %v700 = vunpack.c.l.b16 %v461
        %v701 = vunpack.c.h.b16 %v461
        %v702 = vpack.c.b16 %v612, %v606
        %v703 = vpack.c.b16 %v613, %v607
        %v704 = vpack.c.b16 %v614, %v608
        %v705 = vpack.c.b16 %v615, %v609
        %v706 = vpack.c.b16 %v616, %v610
        %v707 = vpack.c.b16 %v617, %v611
        %v708 = vpack.c.b16 %v624, %v618
        %v709 = vpack.c.b16 %v625, %v619
        %v710 = vpack.c.b16 %v626, %v620
        %v711 = vpack.c.b16 %v627, %v621
        %v712 = vpack.c.b16 %v628, %v622
        %v713 = vpack.c.b16 %v629, %v623
        %v714 = vpack.c.b16 %v636, %v630
        %v715 = vpack.c.b16 %v637, %v631
        %v716 = vpack.c.b16 %v638, %v632
        %v717 = vpack.c.b16 %v639, %v633
        %v718 = vpack.c.b16 %v640, %v634
        %v719 = vpack.c.b16 %v641, %v635
        %v720 = vpack.c.b16 %v648, %v642
        %v721 = vpack.c.b16 %v649, %v643
        %v722 = vpack.c.b16 %v650, %v644
        %v723 = vpack.c.b16 %v651, %v645
        %v724 = vpack.c.b16 %v652, %v646
        %v725 = vpack.c.b16 %v653, %v647
        %v726 = vpack.c.b16 %v660, %v654
        %v727 = vpack.c.b16 %v661, %v655
        %v728 = vpack.c.b16 %v662, %v656
        %v729 = vpack.c.b16 %v663, %v657
        %v730 = vpack.c.b16 %v664, %v658
        %v731 = vpack.c.b16 %v665, %v659
        %v732 = vpack.c.b16 %v672, %v666
        %v733 = vpack.c.b16 %v673, %v667
        %v734 = vpack.c.b16 %v674, %v668
        %v735 = vpack.c.b16 %v675, %v669
        %v736 = vpack.c.b16 %v676, %v670
        %v737 = vpack.c.b16 %v677, %v671
        %v738 = vpack.c.b16 %v684, %v678
        %v739 = vpack.c.b16 %v685, %v679
        %v740 = vpack.c.b16 %v686, %v680
        %v741 = vpack.c.b16 %v687, %v681
        %v742 = vpack.c.b16 %v688, %v682
        %v743 = vpack.c.b16 %v689, %v683
        %v744 = vpack.c.b16 %v696, %v690
        %v745 = vpack.c.b16 %v697, %v691
        %v746 = vpack.c.b16 %v698, %v692
        %v747 = vpack.c.b16 %v699, %v693
        %v748 = vpack.c.b16 %v700, %v694
        %v749 = vpack.c.b16 %v701, %v695
        %v894 = vunpack.c.l.b16 %v462
        %v895 = vunpack.c.h.b16 %v462
        %v896 = vunpack.c.l.b16 %v463
        %v897 = vunpack.c.h.b16 %v463
        %v898 = vunpack.c.l.b16 %v464
        %v899 = vunpack.c.h.b16 %v464
        %v900 = vunpack.c.l.b16 %v465
        %v901 = vunpack.c.h.b16 %v465
        %v902 = vunpack.c.l.b16 %v466
        %v903 = vunpack.c.h.b16 %v466
        %v904 = vunpack.c.l.b16 %v467
        %v905 = vunpack.c.h.b16 %v467
        %v906 = vunpack.c.l.b16 %v468
        %v907 = vunpack.c.h.b16 %v468
        %v908 = vunpack.c.l.b16 %v469
        %v909 = vunpack.c.h.b16 %v469
        %v910 = vunpack.c.l.b16 %v470
        %v911 = vunpack.c.h.b16 %v470
        %v912 = vunpack.c.l.b16 %v471
        %v913 = vunpack.c.h.b16 %v471
        %v914 = vunpack.c.l.b16 %v472
        %v915 = vunpack.c.h.b16 %v472
        %v916 = vunpack.c.l.b16 %v473
        %v917 = vunpack.c.h.b16 %v473
        %v918 = vunpack.c.l.b16 %v474
        %v919 = vunpack.c.h.b16 %v474
        %v920 = vunpack.c.l.b16 %v475
        %v921 = vunpack.c.h.b16 %v475
        %v922 = vunpack.c.l.b16 %v476
        %v923 = vunpack.c.h.b16 %v476
        %v924 = vunpack.c.l.b16 %v477
        %v925 = vunpack.c.h.b16 %v477
        %v926 = vunpack.c.l.b16 %v478
        %v927 = vunpack.c.h.b16 %v478
        %v928 = vunpack.c.l.b16 %v479
        %v929 = vunpack.c.h.b16 %v479
        %v930 = vunpack.c.l.b16 %v480
        %v931 = vunpack.c.h.b16 %v480
        %v932 = vunpack.c.l.b16 %v481
        %v933 = vunpack.c.h.b16 %v481
        %v934 = vunpack.c.l.b16 %v482
        %v935 = vunpack.c.h.b16 %v482
        %v936 = vunpack.c.l.b16 %v483
        %v937 = vunpack.c.h.b16 %v483
        %v938 = vunpack.c.l.b16 %v484
        %v939 = vunpack.c.h.b16 %v484
        %v940 = vunpack.c.l.b16 %v485
        %v941 = vunpack.c.h.b16 %v485
        %v942 = vunpack.c.l.b16 %v486
        %v943 = vunpack.c.h.b16 %v486
        %v944 = vunpack.c.l.b16 %v487
        %v945 = vunpack.c.h.b16 %v487
        %v946 = vunpack.c.l.b16 %v488
        %v947 = vunpack.c.h.b16 %v488
        %v948 = vunpack.c.l.b16 %v489
        %v949 = vunpack.c.h.b16 %v489
        %v950 = vunpack.c.l.b16 %v490
        %v951 = vunpack.c.h.b16 %v490
        %v952 = vunpack.c.l.b16 %v491
        %v953 = vunpack.c.h.b16 %v491
        %v954 = vunpack.c.l.b16 %v492
        %v955 = vunpack.c.h.b16 %v492
        %v956 = vunpack.c.l.b16 %v493
        %v957 = vunpack.c.h.b16 %v493
        %v958 = vunpack.c.l.b16 %v494
        %v959 = vunpack.c.h.b16 %v494
        %v960 = vunpack.c.l.b16 %v495
        %v961 = vunpack.c.h.b16 %v495
        %v962 = vunpack.c.l.b16 %v496
        %v963 = vunpack.c.h.b16 %v496
        %v964 = vunpack.c.l.b16 %v497
        %v965 = vunpack.c.h.b16 %v497
        %v966 = vunpack.c.l.b16 %v498
        %v967 = vunpack.c.h.b16 %v498
        %v968 = vunpack.c.l.b16 %v499
        %v969 = vunpack.c.h.b16 %v499
        %v970 = vunpack.c.l.b16 %v500
        %v971 = vunpack.c.h.b16 %v500
        %v972 = vunpack.c.l.b16 %v501
        %v973 = vunpack.c.h.b16 %v501
        %v974 = vunpack.c.l.b16 %v502
        %v975 = vunpack.c.h.b16 %v502
        %v976 = vunpack.c.l.b16 %v503
        %v977 = vunpack.c.h.b16 %v503
        %v978 = vunpack.c.l.b16 %v504
        %v979 = vunpack.c.h.b16 %v504
        %v980 = vunpack.c.l.b16 %v505
        %v981 = vunpack.c.h.b16 %v505
        %v982 = vunpack.c.l.b16 %v506
        %v983 = vunpack.c.h.b16 %v506
        %v984 = vunpack.c.l.b16 %v507
        %v985 = vunpack.c.h.b16 %v507
        %v986 = vunpack.c.l.b16 %v508
        %v987 = vunpack.c.h.b16 %v508
        %v988 = vunpack.c.l.b16 %v509
        %v989 = vunpack.c.h.b16 %v509
        %v990 = vunpack.c.l.b16 %v510
        %v991 = vunpack.c.h.b16 %v510
        %v992 = vunpack.c.l.b16 %v511
        %v993 = vunpack.c.h.b16 %v511
        %v994 = vunpack.c.l.b16 %v512
        %v995 = vunpack.c.h.b16 %v512
        %v996 = vunpack.c.l.b16 %v513
        %v997 = vunpack.c.h.b16 %v513
        %v998 = vunpack.c.l.b16 %v514
        %v999 = vunpack.c.h.b16 %v514
        %v1000 = vunpack.c.l.b16 %v515
        %v1001 = vunpack.c.h.b16 %v515
        %v1002 = vunpack.c.l.b16 %v516
        %v1003 = vunpack.c.h.b16 %v516
        %v1004 = vunpack.c.l.b16 %v517
        %v1005 = vunpack.c.h.b16 %v517
        %v1006 = vunpack.c.l.b16 %v518
        %v1007 = vunpack.c.h.b16 %v518
        %v1008 = vunpack.c.l.b16 %v519
        %v1009 = vunpack.c.h.b16 %v519
        %v1010 = vunpack.c.l.b16 %v520
        %v1011 = vunpack.c.h.b16 %v520
        %v1012 = vunpack.c.l.b16 %v521
        %v1013 = vunpack.c.h.b16 %v521
        %v1014 = vunpack.c.l.b16 %v522
        %v1015 = vunpack.c.h.b16 %v522
        %v1016 = vunpack.c.l.b16 %v523
        %v1017 = vunpack.c.h.b16 %v523
        %v1018 = vunpack.c.l.b16 %v524
        %v1019 = vunpack.c.h.b16 %v524
        %v1020 = vunpack.c.l.b16 %v525
        %v1021 = vunpack.c.h.b16 %v525
        %v1022 = vunpack.c.l.b16 %v526
        %v1023 = vunpack.c.h.b16 %v526
        %v1024 = vunpack.c.l.b16 %v527
        %v1025 = vunpack.c.h.b16 %v527
        %v1026 = vunpack.c.l.b16 %v528
        %v1027 = vunpack.c.h.b16 %v528
        %v1028 = vunpack.c.l.b16 %v529
        %v1029 = vunpack.c.h.b16 %v529
        %v1030 = vunpack.c.l.b16 %v530
        %v1031 = vunpack.c.h.b16 %v530
        %v1032 = vunpack.c.l.b16 %v531
        %v1033 = vunpack.c.h.b16 %v531
        %v1034 = vunpack.c.l.b16 %v532
        %v1035 = vunpack.c.h.b16 %v532
        %v1036 = vunpack.c.l.b16 %v533
        %v1037 = vunpack.c.h.b16 %v533
        %v1038 = vunpack.c.l.b16 %v534
        %v1039 = vunpack.c.h.b16 %v534
        %v1040 = vunpack.c.l.b16 %v535
        %v1041 = vunpack.c.h.b16 %v535
        %v1042 = vunpack.c.l.b16 %v536
        %v1043 = vunpack.c.h.b16 %v536
        %v1044 = vunpack.c.l.b16 %v537
        %v1045 = vunpack.c.h.b16 %v537
        %v1046 = vunpack.c.l.b16 %v538
        %v1047 = vunpack.c.h.b16 %v538
        %v1048 = vunpack.c.l.b16 %v539
        %v1049 = vunpack.c.h.b16 %v539
        %v1050 = vunpack.c.l.b16 %v540
        %v1051 = vunpack.c.h.b16 %v540
        %v1052 = vunpack.c.l.b16 %v541
        %v1053 = vunpack.c.h.b16 %v541
        %v1054 = vunpack.c.l.b16 %v542
        %v1055 = vunpack.c.h.b16 %v542
        %v1056 = vunpack.c.l.b16 %v543
        %v1057 = vunpack.c.h.b16 %v543
        %v1058 = vunpack.c.l.b16 %v544
        %v1059 = vunpack.c.h.b16 %v544
        %v1060 = vunpack.c.l.b16 %v545
        %v1061 = vunpack.c.h.b16 %v545
        %v1062 = vunpack.c.l.b16 %v546
        %v1063 = vunpack.c.h.b16 %v546
        %v1064 = vunpack.c.l.b16 %v547
        %v1065 = vunpack.c.h.b16 %v547
        %v1066 = vunpack.c.l.b16 %v548
        %v1067 = vunpack.c.h.b16 %v548
        %v1068 = vunpack.c.l.b16 %v549
        %v1069 = vunpack.c.h.b16 %v549
        %v1070 = vunpack.c.l.b16 %v550
        %v1071 = vunpack.c.h.b16 %v550
        %v1072 = vunpack.c.l.b16 %v551
        %v1073 = vunpack.c.h.b16 %v551
        %v1074 = vunpack.c.l.b16 %v552
        %v1075 = vunpack.c.h.b16 %v552
        %v1076 = vunpack.c.l.b16 %v553
        %v1077 = vunpack.c.h.b16 %v553
        %v1078 = vunpack.c.l.b16 %v554
        %v1079 = vunpack.c.h.b16 %v554
        %v1080 = vunpack.c.l.b16 %v555
        %v1081 = vunpack.c.h.b16 %v555
        %v1082 = vunpack.c.l.b16 %v556
        %v1083 = vunpack.c.h.b16 %v556
        %v1084 = vunpack.c.l.b16 %v557
        %v1085 = vunpack.c.h.b16 %v557
        %v1086 = vpack.c.b16 %v896, %v894
        %v1087 = vpack.c.b16 %v897, %v895
        %v1088 = vpack.c.b16 %v900, %v898
        %v1089 = vpack.c.b16 %v901, %v899
        %v1090 = vpack.c.b16 %v904, %v902
        %v1091 = vpack.c.b16 %v905, %v903
        %v1092 = vpack.c.b16 %v908, %v906
        %v1093 = vpack.c.b16 %v909, %v907
        %v1094 = vpack.c.b16 %v912, %v910
        %v1095 = vpack.c.b16 %v913, %v911
        %v1096 = vpack.c.b16 %v916, %v914
        %v1097 = vpack.c.b16 %v917, %v915
        %v1098 = vpack.c.b16 %v920, %v918
        %v1099 = vpack.c.b16 %v921, %v919
        %v1100 = vpack.c.b16 %v924, %v922
        %v1101 = vpack.c.b16 %v925, %v923
        %v1102 = vpack.c.b16 %v928, %v926
        %v1103 = vpack.c.b16 %v929, %v927
        %v1104 = vpack.c.b16 %v932, %v930
        %v1105 = vpack.c.b16 %v933, %v931
        %v1106 = vpack.c.b16 %v936, %v934
        %v1107 = vpack.c.b16 %v937, %v935
        %v1108 = vpack.c.b16 %v940, %v938
        %v1109 = vpack.c.b16 %v941, %v939
        %v1110 = vpack.c.b16 %v944, %v942
        %v1111 = vpack.c.b16 %v945, %v943
        %v1112 = vpack.c.b16 %v948, %v946
        %v1113 = vpack.c.b16 %v949, %v947
        %v1114 = vpack.c.b16 %v952, %v950
        %v1115 = vpack.c.b16 %v953, %v951
        %v1116 = vpack.c.b16 %v956, %v954
        %v1117 = vpack.c.b16 %v957, %v955
        %v1118 = vpack.c.b16 %v960, %v958
        %v1119 = vpack.c.b16 %v961, %v959
        %v1120 = vpack.c.b16 %v964, %v962
        %v1121 = vpack.c.b16 %v965, %v963
        %v1122 = vpack.c.b16 %v968, %v966
        %v1123 = vpack.c.b16 %v969, %v967
        %v1124 = vpack.c.b16 %v972, %v970
        %v1125 = vpack.c.b16 %v973, %v971
        %v1126 = vpack.c.b16 %v976, %v974
        %v1127 = vpack.c.b16 %v977, %v975
        %v1128 = vpack.c.b16 %v980, %v978
        %v1129 = vpack.c.b16 %v981, %v979
        %v1130 = vpack.c.b16 %v984, %v982
        %v1131 = vpack.c.b16 %v985, %v983
        %v1132 = vpack.c.b16 %v988, %v986
        %v1133 = vpack.c.b16 %v989, %v987
        %v1134 = vpack.c.b16 %v992, %v990
        %v1135 = vpack.c.b16 %v993, %v991
        %v1136 = vpack.c.b16 %v996, %v994
        %v1137 = vpack.c.b16 %v997, %v995
        %v1138 = vpack.c.b16 %v1000, %v998
        %v1139 = vpack.c.b16 %v1001, %v999
        %v1140 = vpack.c.b16 %v1004, %v1002
        %v1141 = vpack.c.b16 %v1005, %v1003
        %v1142 = vpack.c.b16 %v1008, %v1006
        %v1143 = vpack.c.b16 %v1009, %v1007
        %v1144 = vpack.c.b16 %v1012, %v1010
        %v1145 = vpack.c.b16 %v1013, %v1011
        %v1146 = vpack.c.b16 %v1016, %v1014
        %v1147 = vpack.c.b16 %v1017, %v1015
        %v1148 = vpack.c.b16 %v1020, %v1018
        %v1149 = vpack.c.b16 %v1021, %v1019
        %v1150 = vpack.c.b16 %v1024, %v1022
        %v1151 = vpack.c.b16 %v1025, %v1023
        %v1152 = vpack.c.b16 %v1028, %v1026
        %v1153 = vpack.c.b16 %v1029, %v1027
        %v1154 = vpack.c.b16 %v1032, %v1030
        %v1155 = vpack.c.b16 %v1033, %v1031
        %v1156 = vpack.c.b16 %v1036, %v1034
        %v1157 = vpack.c.b16 %v1037, %v1035
        %v1158 = vpack.c.b16 %v1040, %v1038
        %v1159 = vpack.c.b16 %v1041, %v1039
        %v1160 = vpack.c.b16 %v1044, %v1042
        %v1161 = vpack.c.b16 %v1045, %v1043
        %v1162 = vpack.c.b16 %v1048, %v1046
        %v1163 = vpack.c.b16 %v1049, %v1047
        %v1164 = vpack.c.b16 %v1052, %v1050
        %v1165 = vpack.c.b16 %v1053, %v1051
        %v1166 = vpack.c.b16 %v1056, %v1054
        %v1167 = vpack.c.b16 %v1057, %v1055
        %v1168 = vpack.c.b16 %v1060, %v1058
        %v1169 = vpack.c.b16 %v1061, %v1059
        %v1170 = vpack.c.b16 %v1064, %v1062
        %v1171 = vpack.c.b16 %v1065, %v1063
        %v1172 = vpack.c.b16 %v1068, %v1066
        %v1173 = vpack.c.b16 %v1069, %v1067
        %v1174 = vpack.c.b16 %v1072, %v1070
        %v1175 = vpack.c.b16 %v1073, %v1071
        %v1176 = vpack.c.b16 %v1076, %v1074
        %v1177 = vpack.c.b16 %v1077, %v1075
        %v1178 = vpack.c.b16 %v1080, %v1078
        %v1179 = vpack.c.b16 %v1081, %v1079
        %v1180 = vpack.c.b16 %v1084, %v1082
        %v1181 = vpack.c.b16 %v1085, %v1083
        %1278 = vmatprep.subr.bf16.mxu0 %v1087
        %1279 = vmatpush1.bf16.msra.mxu0 %v1086
        %1280 = vmatprep.subr.bf16.mxu0 %v1089
        %1281 = vmatpush1.bf16.msra.mxu0 %v1088
        %1282 = vmatprep.subr.bf16.mxu0 %v1091
        %1283 = vmatpush1.bf16.msra.mxu0 %v1090
        %1284 = vmatprep.subr.bf16.mxu0 %v1093
        %1285 = vmatpush1.bf16.msra.mxu0 %v1092
        %1286 = vmatprep.subr.bf16.mxu0 %v1095
        %1287 = vmatpush1.bf16.msra.mxu0 %v1094
        %1288 = vmatprep.subr.bf16.mxu0 %v1097
        %1289 = vmatpush1.bf16.msra.mxu0 %v1096
        %1290 = vmatprep.subr.bf16.mxu0 %v1099
        %1291 = vmatpush1.bf16.msra.mxu0 %v1098
        %1292 = vmatprep.subr.bf16.mxu0 %v1101
        %1293 = vmatpush1.bf16.msra.mxu0 %v1100
        %1294 = vmatprep.subr.bf16.mxu0 %v1103
        %1295 = vmatpush1.bf16.msra.mxu0 %v1102
        %1296 = vmatprep.subr.bf16.mxu0 %v1105
        %1297 = vmatpush1.bf16.msra.mxu0 %v1104
        %1298 = vmatprep.subr.bf16.mxu0 %v1107
        %1299 = vmatpush1.bf16.msra.mxu0 %v1106
        %1300 = vmatprep.subr.bf16.mxu0 %v1109
        %1301 = vmatpush1.bf16.msra.mxu0 %v1108
        %1302 = vmatprep.subr.bf16.mxu0 %v1111
        %1303 = vmatpush1.bf16.msra.mxu0 %v1110
        %1304 = vmatprep.subr.bf16.mxu0 %v1113
        %1305 = vmatpush1.bf16.msra.mxu0 %v1112
        %1306 = vmatprep.subr.bf16.mxu0 %v1115
        %1307 = vmatpush1.bf16.msra.mxu0 %v1114
        %1308 = vmatprep.subr.bf16.mxu0 %v1117
        %1309 = vmatpush1.bf16.msra.mxu0 %v1116
        %1310 = vmatprep.mubr.bf16.mxu0 %v703
        %1311 = vmatmul.mubr.bf16.gmra.mrb[0].mxu0 %v702
        %v1312 = vpop.f32.mrb[0].mxu0
        %v1313 = vadd.f32 0.0, %v1312
        %v1314 = vpop.f32.mrb[0].mxu0
        %v1315 = vadd.f32 0.0, %v1314
        %v1316 = vpop.f32.mrb[0].mxu0
        %v1317 = vadd.f32 0.0, %v1316
        %v1318 = vpop.f32.mrb[0].mxu0
        %v1319 = vadd.f32 0.0, %v1318
        %1320 = vmatprep.mubr.bf16.mxu0 %v709
        %1321 = vmatmul.mubr.bf16.gmra.mrb[0].mxu0 %v708
        %v1322 = vpop.f32.mrb[0].mxu0
        %v1323 = vadd.f32 0.0, %v1322
        %v1324 = vpop.f32.mrb[0].mxu0
        %v1325 = vadd.f32 0.0, %v1324
        %v1326 = vpop.f32.mrb[0].mxu0
        %v1327 = vadd.f32 0.0, %v1326
        %v1328 = vpop.f32.mrb[0].mxu0
        %v1329 = vadd.f32 0.0, %v1328
        %1330 = vmatprep.mubr.bf16.mxu0 %v715
        %1331 = vmatmul.mubr.bf16.gmra.mrb[0].mxu0 %v714
        %v1332 = vpop.f32.mrb[0].mxu0
        %v1333 = vadd.f32 0.0, %v1332
        %v1334 = vpop.f32.mrb[0].mxu0
        %v1335 = vadd.f32 0.0, %v1334
        %v1336 = vpop.f32.mrb[0].mxu0
        %v1337 = vadd.f32 0.0, %v1336
        %v1338 = vpop.f32.mrb[0].mxu0
        %v1339 = vadd.f32 0.0, %v1338
        %1340 = vmatprep.mubr.bf16.mxu0 %v721
        %1341 = vmatmul.mubr.bf16.gmra.mrb[0].mxu0 %v720
        %v1342 = vpop.f32.mrb[0].mxu0
        %v1343 = vadd.f32 0.0, %v1342
        %v1344 = vpop.f32.mrb[0].mxu0
        %v1345 = vadd.f32 0.0, %v1344
        %v1346 = vpop.f32.mrb[0].mxu0
        %v1347 = vadd.f32 0.0, %v1346
        %v1348 = vpop.f32.mrb[0].mxu0
        %v1349 = vadd.f32 0.0, %v1348
        %1350 = vmatprep.mubr.bf16.mxu0 %v727
        %1351 = vmatmul.mubr.bf16.gmra.mrb[0].mxu0 %v726
        %v1352 = vpop.f32.mrb[0].mxu0
        %v1353 = vadd.f32 0.0, %v1352
        %v1354 = vpop.f32.mrb[0].mxu0
        %v1355 = vadd.f32 0.0, %v1354
        %v1356 = vpop.f32.mrb[0].mxu0
        %v1357 = vadd.f32 0.0, %v1356
        %v1358 = vpop.f32.mrb[0].mxu0
        %v1359 = vadd.f32 0.0, %v1358
        %1360 = vmatprep.mubr.bf16.mxu0 %v733
        %1361 = vmatmul.mubr.bf16.gmra.mrb[0].mxu0 %v732
        %v1362 = vpop.f32.mrb[0].mxu0
        %v1363 = vadd.f32 0.0, %v1362
        %v1364 = vpop.f32.mrb[0].mxu0
        %v1365 = vadd.f32 0.0, %v1364
        %v1366 = vpop.f32.mrb[0].mxu0
        %v1367 = vadd.f32 0.0, %v1366
        %v1368 = vpop.f32.mrb[0].mxu0
        %v1369 = vadd.f32 0.0, %v1368
        %1370 = vmatprep.mubr.bf16.mxu0 %v739
        %1371 = vmatmul.mubr.bf16.gmra.mrb[0].mxu0 %v738
        %v1372 = vpop.f32.mrb[0].mxu0
        %v1373 = vadd.f32 0.0, %v1372
        %v1374 = vpop.f32.mrb[0].mxu0
        %v1375 = vadd.f32 0.0, %v1374
        %v1376 = vpop.f32.mrb[0].mxu0
        %v1377 = vadd.f32 0.0, %v1376
        %v1378 = vpop.f32.mrb[0].mxu0
        %v1379 = vadd.f32 0.0, %v1378
        %1380 = vmatprep.mubr.bf16.mxu0 %v745
        %1381 = vmatmul.mubr.bf16.gmra.mrb[0].mxu0 %v744
        %v1382 = vpop.f32.mrb[0].mxu0
        %v1383 = vadd.f32 0.0, %v1382
        %v1384 = vpop.f32.mrb[0].mxu0
        %v1385 = vadd.f32 0.0, %v1384
        %v1386 = vpop.f32.mrb[0].mxu0
        %v1387 = vadd.f32 0.0, %v1386
        %v1388 = vpop.f32.mrb[0].mxu0
        %v1389 = vadd.f32 0.0, %v1388
        %1390 = vdwg.mxu0
        %1391 = vmatprep.subr.bf16.mxu0 %v1119
        %1392 = vmatpush1.bf16.msra.mxu0 %v1118
        %1393 = vmatprep.subr.bf16.mxu0 %v1121
        %1394 = vmatpush1.bf16.msra.mxu0 %v1120
        %1395 = vmatprep.subr.bf16.mxu0 %v1123
        %1396 = vmatpush1.bf16.msra.mxu0 %v1122
        %1397 = vmatprep.subr.bf16.mxu0 %v1125
        %1398 = vmatpush1.bf16.msra.mxu0 %v1124
        %1399 = vmatprep.subr.bf16.mxu0 %v1127
        %1400 = vmatpush1.bf16.msra.mxu0 %v1126
        %1401 = vmatprep.subr.bf16.mxu0 %v1129
        %1402 = vmatpush1.bf16.msra.mxu0 %v1128
        %1403 = vmatprep.subr.bf16.mxu0 %v1131
        %1404 = vmatpush1.bf16.msra.mxu0 %v1130
        %1405 = vmatprep.subr.bf16.mxu0 %v1133
        %1406 = vmatpush1.bf16.msra.mxu0 %v1132
        %1407 = vmatprep.subr.bf16.mxu0 %v1135
        %1408 = vmatpush1.bf16.msra.mxu0 %v1134
        %1409 = vmatprep.subr.bf16.mxu0 %v1137
        %1410 = vmatpush1.bf16.msra.mxu0 %v1136
        %1411 = vmatprep.subr.bf16.mxu0 %v1139
        %1412 = vmatpush1.bf16.msra.mxu0 %v1138
        %1413 = vmatprep.subr.bf16.mxu0 %v1141
        %1414 = vmatpush1.bf16.msra.mxu0 %v1140
        %1415 = vmatprep.subr.bf16.mxu0 %v1143
        %1416 = vmatpush1.bf16.msra.mxu0 %v1142
        %1417 = vmatprep.subr.bf16.mxu0 %v1145
        %1418 = vmatpush1.bf16.msra.mxu0 %v1144
        %1419 = vmatprep.subr.bf16.mxu0 %v1147
        %1420 = vmatpush1.bf16.msra.mxu0 %v1146
        %1421 = vmatprep.subr.bf16.mxu0 %v1149
        %1422 = vmatpush1.bf16.msra.mxu0 %v1148
        %1423 = vmatprep.mubr.bf16.mxu0 %v705
        %1424 = vmatmul.mubr.bf16.gmra.mrb[0].mxu0 %v704
        %v1425 = vpop.f32.mrb[0].mxu0
        %v1426 = vadd.f32 %v1313, %v1425
        %v1427 = vpop.f32.mrb[0].mxu0
        %v1428 = vadd.f32 %v1315, %v1427
        %v1429 = vpop.f32.mrb[0].mxu0
        %v1430 = vadd.f32 %v1317, %v1429
        %v1431 = vpop.f32.mrb[0].mxu0
        %v1432 = vadd.f32 %v1319, %v1431
        %1433 = vmatprep.mubr.bf16.mxu0 %v711
        %1434 = vmatmul.mubr.bf16.gmra.mrb[0].mxu0 %v710
        %v1435 = vpop.f32.mrb[0].mxu0
        %v1436 = vadd.f32 %v1323, %v1435
        %v1437 = vpop.f32.mrb[0].mxu0
        %v1438 = vadd.f32 %v1325, %v1437
        %v1439 = vpop.f32.mrb[0].mxu0
        %v1440 = vadd.f32 %v1327, %v1439
        %v1441 = vpop.f32.mrb[0].mxu0
        %v1442 = vadd.f32 %v1329, %v1441
        %1443 = vmatprep.mubr.bf16.mxu0 %v717
        %1444 = vmatmul.mubr.bf16.gmra.mrb[0].mxu0 %v716
        %v1445 = vpop.f32.mrb[0].mxu0
        %v1446 = vadd.f32 %v1333, %v1445
        %v1447 = vpop.f32.mrb[0].mxu0
        %v1448 = vadd.f32 %v1335, %v1447
        %v1449 = vpop.f32.mrb[0].mxu0
        %v1450 = vadd.f32 %v1337, %v1449
        %v1451 = vpop.f32.mrb[0].mxu0
        %v1452 = vadd.f32 %v1339, %v1451
        %1453 = vmatprep.mubr.bf16.mxu0 %v723
        %1454 = vmatmul.mubr.bf16.gmra.mrb[0].mxu0 %v722
        %v1455 = vpop.f32.mrb[0].mxu0
        %v1456 = vadd.f32 %v1343, %v1455
        %v1457 = vpop.f32.mrb[0].mxu0
        %v1458 = vadd.f32 %v1345, %v1457
        %v1459 = vpop.f32.mrb[0].mxu0
        %v1460 = vadd.f32 %v1347, %v1459
        %v1461 = vpop.f32.mrb[0].mxu0
        %v1462 = vadd.f32 %v1349, %v1461
        %1463 = vmatprep.mubr.bf16.mxu0 %v729
        %1464 = vmatmul.mubr.bf16.gmra.mrb[0].mxu0 %v728
        %v1465 = vpop.f32.mrb[0].mxu0
        %v1466 = vadd.f32 %v1353, %v1465
        %v1467 = vpop.f32.mrb[0].mxu0
        %v1468 = vadd.f32 %v1355, %v1467
        %v1469 = vpop.f32.mrb[0].mxu0
        %v1470 = vadd.f32 %v1357, %v1469
        %v1471 = vpop.f32.mrb[0].mxu0
        %v1472 = vadd.f32 %v1359, %v1471
        %1473 = vmatprep.mubr.bf16.mxu0 %v735
        %1474 = vmatmul.mubr.bf16.gmra.mrb[0].mxu0 %v734
        %v1475 = vpop.f32.mrb[0].mxu0
        %v1476 = vadd.f32 %v1363, %v1475
        %v1477 = vpop.f32.mrb[0].mxu0
        %v1478 = vadd.f32 %v1365, %v1477
        %v1479 = vpop.f32.mrb[0].mxu0
        %v1480 = vadd.f32 %v1367, %v1479
        %v1481 = vpop.f32.mrb[0].mxu0
        %v1482 = vadd.f32 %v1369, %v1481
        %1483 = vmatprep.mubr.bf16.mxu0 %v741
        %1484 = vmatmul.mubr.bf16.gmra.mrb[0].mxu0 %v740
        %v1485 = vpop.f32.mrb[0].mxu0
        %v1486 = vadd.f32 %v1373, %v1485
        %v1487 = vpop.f32.mrb[0].mxu0
        %v1488 = vadd.f32 %v1375, %v1487
        %v1489 = vpop.f32.mrb[0].mxu0
        %v1490 = vadd.f32 %v1377, %v1489
        %v1491 = vpop.f32.mrb[0].mxu0
        %v1492 = vadd.f32 %v1379, %v1491
        %1493 = vmatprep.mubr.bf16.mxu0 %v747
        %1494 = vmatmul.mubr.bf16.gmra.mrb[0].mxu0 %v746
        %v1495 = vpop.f32.mrb[0].mxu0
        %v1496 = vadd.f32 %v1383, %v1495
        %v1497 = vpop.f32.mrb[0].mxu0
        %v1498 = vadd.f32 %v1385, %v1497
        %v1499 = vpop.f32.mrb[0].mxu0
        %v1500 = vadd.f32 %v1387, %v1499
        %v1501 = vpop.f32.mrb[0].mxu0
        %v1502 = vadd.f32 %v1389, %v1501
        %1503 = vdwg.mxu0
        %1504 = vmatprep.subr.bf16.mxu0 %v1151
        %1505 = vmatpush1.bf16.msra.mxu0 %v1150
        %1506 = vmatprep.subr.bf16.mxu0 %v1153
        %1507 = vmatpush1.bf16.msra.mxu0 %v1152
        %1508 = vmatprep.subr.bf16.mxu0 %v1155
        %1509 = vmatpush1.bf16.msra.mxu0 %v1154
        %1510 = vmatprep.subr.bf16.mxu0 %v1157
        %1511 = vmatpush1.bf16.msra.mxu0 %v1156
        %1512 = vmatprep.subr.bf16.mxu0 %v1159
        %1513 = vmatpush1.bf16.msra.mxu0 %v1158
        %1514 = vmatprep.subr.bf16.mxu0 %v1161
        %1515 = vmatpush1.bf16.msra.mxu0 %v1160
        %1516 = vmatprep.subr.bf16.mxu0 %v1163
        %1517 = vmatpush1.bf16.msra.mxu0 %v1162
        %1518 = vmatprep.subr.bf16.mxu0 %v1165
        %1519 = vmatpush1.bf16.msra.mxu0 %v1164
        %1520 = vmatprep.subr.bf16.mxu0 %v1167
        %1521 = vmatpush1.bf16.msra.mxu0 %v1166
        %1522 = vmatprep.subr.bf16.mxu0 %v1169
        %1523 = vmatpush1.bf16.msra.mxu0 %v1168
        %1524 = vmatprep.subr.bf16.mxu0 %v1171
        %1525 = vmatpush1.bf16.msra.mxu0 %v1170
        %1526 = vmatprep.subr.bf16.mxu0 %v1173
        %1527 = vmatpush1.bf16.msra.mxu0 %v1172
        %1528 = vmatprep.subr.bf16.mxu0 %v1175
        %1529 = vmatpush1.bf16.msra.mxu0 %v1174
        %1530 = vmatprep.subr.bf16.mxu0 %v1177
        %1531 = vmatpush1.bf16.msra.mxu0 %v1176
        %1532 = vmatprep.subr.bf16.mxu0 %v1179
        %1533 = vmatpush1.bf16.msra.mxu0 %v1178
        %1534 = vmatprep.subr.bf16.mxu0 %v1181
        %1535 = vmatpush1.bf16.msra.mxu0 %v1180
        %1536 = vmatprep.mubr.bf16.mxu0 %v707
        %1537 = vmatmul.mubr.bf16.gmra.mrb[0].mxu0 %v706
        %v1538 = vpop.f32.mrb[0].mxu0
        %v1539 = vadd.f32 %v1426, %v1538
        %v1540 = vpop.f32.mrb[0].mxu0
        %v1541 = vadd.f32 %v1428, %v1540
        %v1542 = vpop.f32.mrb[0].mxu0
        %v1543 = vadd.f32 %v1430, %v1542
        %v1544 = vpop.f32.mrb[0].mxu0
        %v1545 = vadd.f32 %v1432, %v1544
        %1546 = vmatprep.mubr.bf16.mxu0 %v713
        %1547 = vmatmul.mubr.bf16.gmra.mrb[0].mxu0 %v712
        %v1548 = vpop.f32.mrb[0].mxu0
        %v1549 = vadd.f32 %v1436, %v1548
        %v1550 = vpop.f32.mrb[0].mxu0
        %v1551 = vadd.f32 %v1438, %v1550
        %v1552 = vpop.f32.mrb[0].mxu0
        %v1553 = vadd.f32 %v1440, %v1552
        %v1554 = vpop.f32.mrb[0].mxu0
        %v1555 = vadd.f32 %v1442, %v1554
        %1556 = vmatprep.mubr.bf16.mxu0 %v719
        %1557 = vmatmul.mubr.bf16.gmra.mrb[0].mxu0 %v718
        %v1558 = vpop.f32.mrb[0].mxu0
        %v1559 = vadd.f32 %v1446, %v1558
        %v1560 = vpop.f32.mrb[0].mxu0
        %v1561 = vadd.f32 %v1448, %v1560
        %v1562 = vpop.f32.mrb[0].mxu0
        %v1563 = vadd.f32 %v1450, %v1562
        %v1564 = vpop.f32.mrb[0].mxu0
        %v1565 = vadd.f32 %v1452, %v1564
        %1566 = vmatprep.mubr.bf16.mxu0 %v725
        %1567 = vmatmul.mubr.bf16.gmra.mrb[0].mxu0 %v724
        %v1568 = vpop.f32.mrb[0].mxu0
        %v1569 = vadd.f32 %v1456, %v1568
        %v1570 = vpop.f32.mrb[0].mxu0
        %v1571 = vadd.f32 %v1458, %v1570
        %v1572 = vpop.f32.mrb[0].mxu0
        %v1573 = vadd.f32 %v1460, %v1572
        %v1574 = vpop.f32.mrb[0].mxu0
        %v1575 = vadd.f32 %v1462, %v1574
        %1576 = vmatprep.mubr.bf16.mxu0 %v731
        %1577 = vmatmul.mubr.bf16.gmra.mrb[0].mxu0 %v730
        %v1578 = vpop.f32.mrb[0].mxu0
        %v1579 = vadd.f32 %v1466, %v1578
        %v1580 = vpop.f32.mrb[0].mxu0
        %v1581 = vadd.f32 %v1468, %v1580
        %v1582 = vpop.f32.mrb[0].mxu0
        %v1583 = vadd.f32 %v1470, %v1582
        %v1584 = vpop.f32.mrb[0].mxu0
        %v1585 = vadd.f32 %v1472, %v1584
        %1586 = vmatprep.mubr.bf16.mxu0 %v737
        %1587 = vmatmul.mubr.bf16.gmra.mrb[0].mxu0 %v736
        %v1588 = vpop.f32.mrb[0].mxu0
        %v1589 = vadd.f32 %v1476, %v1588
        %v1590 = vpop.f32.mrb[0].mxu0
        %v1591 = vadd.f32 %v1478, %v1590
        %v1592 = vpop.f32.mrb[0].mxu0
        %v1593 = vadd.f32 %v1480, %v1592
        %v1594 = vpop.f32.mrb[0].mxu0
        %v1595 = vadd.f32 %v1482, %v1594
        %1596 = vmatprep.mubr.bf16.mxu0 %v743
        %1597 = vmatmul.mubr.bf16.gmra.mrb[0].mxu0 %v742
        %v1598 = vpop.f32.mrb[0].mxu0
        %v1599 = vadd.f32 %v1486, %v1598
        %v1600 = vpop.f32.mrb[0].mxu0
        %v1601 = vadd.f32 %v1488, %v1600
        %v1602 = vpop.f32.mrb[0].mxu0
        %v1603 = vadd.f32 %v1490, %v1602
        %v1604 = vpop.f32.mrb[0].mxu0
        %v1605 = vadd.f32 %v1492, %v1604
        %1606 = vmatprep.mubr.bf16.mxu0 %v749
        %1607 = vmatmul.mubr.bf16.gmra.mrb[0].mxu0 %v748
        %v1608 = vpop.f32.mrb[0].mxu0
        %v1609 = vadd.f32 %v1496, %v1608
        %v1610 = vpop.f32.mrb[0].mxu0
        %v1611 = vadd.f32 %v1498, %v1610
        %v1612 = vpop.f32.mrb[0].mxu0
        %v1613 = vadd.f32 %v1500, %v1612
        %v1614 = vpop.f32.mrb[0].mxu0
        %v1615 = vadd.f32 %v1502, %v1614
        %1616 = vdwg.mxu0
        %v1617 = vadd.f32 %v382, %v1539
        %v1618 = vadd.f32 %v383, %v1541
        %v1619 = vadd.f32 %v384, %v1543
        %v1620 = vadd.f32 %v385, %v1545
        %v1621 = vadd.f32 %v386, %v1549
        %v1622 = vadd.f32 %v387, %v1551
        %v1623 = vadd.f32 %v388, %v1553
        %v1624 = vadd.f32 %v389, %v1555
        %v1625 = vadd.f32 %v390, %v1559
        %v1626 = vadd.f32 %v391, %v1561
        %v1627 = vadd.f32 %v392, %v1563
        %v1628 = vadd.f32 %v393, %v1565
        %v1629 = vadd.f32 %v394, %v1569
        %v1630 = vadd.f32 %v395, %v1571
        %v1631 = vadd.f32 %v396, %v1573
        %v1632 = vadd.f32 %v397, %v1575
        %v1633 = vadd.f32 %v398, %v1579
        %v1634 = vadd.f32 %v399, %v1581
        %v1635 = vadd.f32 %v400, %v1583
        %v1636 = vadd.f32 %v401, %v1585
        %v1637 = vadd.f32 %v402, %v1589
        %v1638 = vadd.f32 %v403, %v1591
        %v1639 = vadd.f32 %v404, %v1593
        %v1640 = vadd.f32 %v405, %v1595
        %v1641 = vadd.f32 %v406, %v1599
        %v1642 = vadd.f32 %v407, %v1601
        %v1643 = vadd.f32 %v408, %v1603
        %v1644 = vadd.f32 %v409, %v1605
        %v1645 = vadd.f32 %v410, %v1609
        %v1646 = vadd.f32 %v411, %v1611
        %v1647 = vadd.f32 %v412, %v1613
        %v1648 = vadd.f32 %v413, %v1615
        %1649 = vst [vmem:[%s303] sm:$0xff] %v1617
        %1650 = vst [vmem:[%s303 + $0x8] sm:$0xff] %v1618
        %1651 = vst [vmem:[%s303 + $0x10] sm:$0xff] %v1619
        %1652 = vst [vmem:[%s303 + $0x18] sm:$0xff] %v1620
        %1653 = vst [vmem:[%s303 + $0x20] sm:$0xff] %v1621
        %1654 = vst [vmem:[%s303 + $0x28] sm:$0xff] %v1622
        %1655 = vst [vmem:[%s303 + $0x30] sm:$0xff] %v1623
        %1656 = vst [vmem:[%s303 + $0x38] sm:$0xff] %v1624
        %1657 = vst [vmem:[%s303 + $0x40] sm:$0xff] %v1625
        %1658 = vst [vmem:[%s303 + $0x48] sm:$0xff] %v1626
        %1659 = vst [vmem:[%s303 + $0x50] sm:$0xff] %v1627
        %1660 = vst [vmem:[%s303 + $0x58] sm:$0xff] %v1628
        %1661 = vst [vmem:[%s303 + $0x60] sm:$0xff] %v1629
        %1662 = vst [vmem:[%s303 + $0x68] sm:$0xff] %v1630
        %1663 = vst [vmem:[%s303 + $0x70] sm:$0xff] %v1631
        %1664 = vst [vmem:[%s303 + $0x78] sm:$0xff] %v1632
        %1665 = vst [vmem:[%s303 + $0x80] sm:$0xff] %v1633
        %1666 = vst [vmem:[%s303 + $0x88] sm:$0xff] %v1634
        %1667 = vst [vmem:[%s303 + $0x90] sm:$0xff] %v1635
        %1668 = vst [vmem:[%s303 + $0x98] sm:$0xff] %v1636
        %1669 = vst [vmem:[%s303 + $0xa0] sm:$0xff] %v1637
        %1670 = vst [vmem:[%s303 + $0xa8] sm:$0xff] %v1638
        %1671 = vst [vmem:[%s303 + $0xb0] sm:$0xff] %v1639
        %1672 = vst [vmem:[%s303 + $0xb8] sm:$0xff] %v1640
        %1673 = vst [vmem:[%s303 + $0xc0] sm:$0xff] %v1641
        %1674 = vst [vmem:[%s303 + $0xc8] sm:$0xff] %v1642
        %1675 = vst [vmem:[%s303 + $0xd0] sm:$0xff] %v1643
        %1676 = vst [vmem:[%s303 + $0xd8] sm:$0xff] %v1644
        %1677 = vst [vmem:[%s303 + $0xe0] sm:$0xff] %v1645
        %1678 = vst [vmem:[%s303 + $0xe8] sm:$0xff] %v1646
        %1679 = vst [vmem:[%s303 + $0xf0] sm:$0xff] %v1647
        %1680 = vst [vmem:[%s303 + $0xf8] sm:$0xff] %v1648
        %p1681 = scmp.eq.s32.totalorder %s25, 1
        %p1682 = scmp.eq.s32.totalorder %s26, 1
        %p1683 = pnand %p1681, %p1682
        %p1684 = pneg %p1683
        // Predicated region
        $region41: #{edge_model_forward.4} parent=35 // pred_check
          _
        $region42: #{edge_model_forward.4} parent=35 // pred_check_branch
          %1686 = sbr.rel (%p1683) target = $region44
        $region43: #{edge_model_forward.4} parent=35 // pred_region
          %v1687 = vld [vmem:[%s303] sm:$0xff]
          %v1688 = vld [vmem:[%s303 + $0x8] sm:$0xff]
          %v1689 = vld [vmem:[%s303 + $0x10] sm:$0xff]
          %v1690 = vld [vmem:[%s303 + $0x18] sm:$0xff]
          %v1691 = vld [vmem:[%s303 + $0x20] sm:$0xff]
          %v1692 = vld [vmem:[%s303 + $0x28] sm:$0xff]
          %v1693 = vld [vmem:[%s303 + $0x30] sm:$0xff]
          %v1694 = vld [vmem:[%s303 + $0x38] sm:$0xff]
          %v1695 = vld [vmem:[%s303 + $0x40] sm:$0xff]
          %v1696 = vld [vmem:[%s303 + $0x48] sm:$0xff]
          %v1697 = vld [vmem:[%s303 + $0x50] sm:$0xff]
          %v1698 = vld [vmem:[%s303 + $0x58] sm:$0xff]
          %v1699 = vld [vmem:[%s303 + $0x60] sm:$0xff]
          %v1700 = vld [vmem:[%s303 + $0x68] sm:$0xff]
          %v1701 = vld [vmem:[%s303 + $0x70] sm:$0xff]
          %v1702 = vld [vmem:[%s303 + $0x78] sm:$0xff]
          %v1703 = vld [vmem:[%s303 + $0x80] sm:$0xff]
          %v1704 = vld [vmem:[%s303 + $0x88] sm:$0xff]
          %v1705 = vld [vmem:[%s303 + $0x90] sm:$0xff]
          %v1706 = vld [vmem:[%s303 + $0x98] sm:$0xff]
          %v1707 = vld [vmem:[%s303 + $0xa0] sm:$0xff]
          %v1708 = vld [vmem:[%s303 + $0xa8] sm:$0xff]
          %v1709 = vld [vmem:[%s303 + $0xb0] sm:$0xff]
          %v1710 = vld [vmem:[%s303 + $0xb8] sm:$0xff]
          %v1711 = vld [vmem:[%s303 + $0xc0] sm:$0xff]
          %v1712 = vld [vmem:[%s303 + $0xc8] sm:$0xff]
          %v1713 = vld [vmem:[%s303 + $0xd0] sm:$0xff]
          %v1714 = vld [vmem:[%s303 + $0xd8] sm:$0xff]
          %v1715 = vld [vmem:[%s303 + $0xe0] sm:$0xff]
          %v1716 = vld [vmem:[%s303 + $0xe8] sm:$0xff]
          %v1717 = vld [vmem:[%s303 + $0xf0] sm:$0xff]
          %v1718 = vld [vmem:[%s303 + $0xf8] sm:$0xff]
          %v1719 = vld [vmem:[%s2] sm:$0x3]
          %v1721 = vlaneseq
          %v1722 = vshrl.u32 %v1721, 7
          %v1723 = vsub.s32 0, %v1722
          %v1724 = vrot.slane %v1719, %v1723
          %v1725 = vlaneseq
          %v1726 = vshrl.u32 %v1725, 7
          %v1727 = vsub.s32 1, %v1726
          %v1728 = vrot.slane %v1719, %v1727
          %v1731 = vmul.f32 %v1687, %v1724
          %v1732 = vmul.f32 %v1688, %v1728
          %v1733 = vmul.f32 %v1689, %v1724
          %v1734 = vmul.f32 %v1690, %v1728
          %v1735 = vmul.f32 %v1691, %v1724
          %v1736 = vmul.f32 %v1692, %v1728
          %v1737 = vmul.f32 %v1693, %v1724
          %v1738 = vmul.f32 %v1694, %v1728
          %v1739 = vmul.f32 %v1695, %v1724
          %v1740 = vmul.f32 %v1696, %v1728
          %v1741 = vmul.f32 %v1697, %v1724
          %v1742 = vmul.f32 %v1698, %v1728
          %v1743 = vmul.f32 %v1699, %v1724
          %v1744 = vmul.f32 %v1700, %v1728
          %v1745 = vmul.f32 %v1701, %v1724
          %v1746 = vmul.f32 %v1702, %v1728
          %v1747 = vmul.f32 %v1703, %v1724
          %v1748 = vmul.f32 %v1704, %v1728
          %v1749 = vmul.f32 %v1705, %v1724
          %v1750 = vmul.f32 %v1706, %v1728
          %v1751 = vmul.f32 %v1707, %v1724
          %v1752 = vmul.f32 %v1708, %v1728
          %v1753 = vmul.f32 %v1709, %v1724
          %v1754 = vmul.f32 %v1710, %v1728
          %v1755 = vmul.f32 %v1711, %v1724
          %v1756 = vmul.f32 %v1712, %v1728
          %v1757 = vmul.f32 %v1713, %v1724
          %v1758 = vmul.f32 %v1714, %v1728
          %v1759 = vmul.f32 %v1715, %v1724
          %v1760 = vmul.f32 %v1716, %v1728
          %v1761 = vmul.f32 %v1717, %v1724
          %v1762 = vmul.f32 %v1718, %v1728
          %v1763 = vld [vmem:[%s3] sm:$0x3]
          %v1765 = vlaneseq
          %v1766 = vshrl.u32 %v1765, 7
          %v1767 = vsub.s32 0, %v1766
          %v1768 = vrot.slane %v1763, %v1767
          %v1769 = vlaneseq
          %v1770 = vshrl.u32 %v1769, 7
          %v1771 = vsub.s32 1, %v1770
          %v1772 = vrot.slane %v1763, %v1771
          %v1775 = vadd.f32 %v1731, %v1768
          %v1776 = vadd.f32 %v1732, %v1772
          %v1777 = vadd.f32 %v1733, %v1768
          %v1778 = vadd.f32 %v1734, %v1772
          %v1779 = vadd.f32 %v1735, %v1768
          %v1780 = vadd.f32 %v1736, %v1772
          %v1781 = vadd.f32 %v1737, %v1768
          %v1782 = vadd.f32 %v1738, %v1772
          %v1783 = vadd.f32 %v1739, %v1768
          %v1784 = vadd.f32 %v1740, %v1772
          %v1785 = vadd.f32 %v1741, %v1768
          %v1786 = vadd.f32 %v1742, %v1772
          %v1787 = vadd.f32 %v1743, %v1768
          %v1788 = vadd.f32 %v1744, %v1772
          %v1789 = vadd.f32 %v1745, %v1768
          %v1790 = vadd.f32 %v1746, %v1772
          %v1791 = vadd.f32 %v1747, %v1768
          %v1792 = vadd.f32 %v1748, %v1772
          %v1793 = vadd.f32 %v1749, %v1768
          %v1794 = vadd.f32 %v1750, %v1772
          %v1795 = vadd.f32 %v1751, %v1768
          %v1796 = vadd.f32 %v1752, %v1772
          %v1797 = vadd.f32 %v1753, %v1768
          %v1798 = vadd.f32 %v1754, %v1772
          %v1799 = vadd.f32 %v1755, %v1768
          %v1800 = vadd.f32 %v1756, %v1772
          %v1801 = vadd.f32 %v1757, %v1768
          %v1802 = vadd.f32 %v1758, %v1772
          %v1803 = vadd.f32 %v1759, %v1768
          %v1804 = vadd.f32 %v1760, %v1772
          %v1805 = vadd.f32 %v1761, %v1768
          %v1806 = vadd.f32 %v1762, %v1772
          %v1807 = vmax.f32 %v1775, 0.0
          %v1808 = vmax.f32 %v1776, 0.0
          %v1809 = vmax.f32 %v1777, 0.0
          %v1810 = vmax.f32 %v1778, 0.0
          %v1811 = vmax.f32 %v1779, 0.0
          %v1812 = vmax.f32 %v1780, 0.0
          %v1813 = vmax.f32 %v1781, 0.0
          %v1814 = vmax.f32 %v1782, 0.0
          %v1815 = vmax.f32 %v1783, 0.0
          %v1816 = vmax.f32 %v1784, 0.0
          %v1817 = vmax.f32 %v1785, 0.0
          %v1818 = vmax.f32 %v1786, 0.0
          %v1819 = vmax.f32 %v1787, 0.0
          %v1820 = vmax.f32 %v1788, 0.0
          %v1821 = vmax.f32 %v1789, 0.0
          %v1822 = vmax.f32 %v1790, 0.0
          %v1823 = vmax.f32 %v1791, 0.0
          %v1824 = vmax.f32 %v1792, 0.0
          %v1825 = vmax.f32 %v1793, 0.0
          %v1826 = vmax.f32 %v1794, 0.0
          %v1827 = vmax.f32 %v1795, 0.0
          %v1828 = vmax.f32 %v1796, 0.0
          %v1829 = vmax.f32 %v1797, 0.0
          %v1830 = vmax.f32 %v1798, 0.0
          %v1831 = vmax.f32 %v1799, 0.0
          %v1832 = vmax.f32 %v1800, 0.0
          %v1833 = vmax.f32 %v1801, 0.0
          %v1834 = vmax.f32 %v1802, 0.0
          %v1835 = vmax.f32 %v1803, 0.0
          %v1836 = vmax.f32 %v1804, 0.0
          %v1837 = vmax.f32 %v1805, 0.0
          %v1838 = vmax.f32 %v1806, 0.0
          %1839 = vst [vmem:[%s303] sm:$0xff] %v1807
          %1840 = vst [vmem:[%s303 + $0x8] sm:$0xff] %v1808
          %1841 = vst [vmem:[%s303 + $0x10] sm:$0xff] %v1809
          %1842 = vst [vmem:[%s303 + $0x18] sm:$0xff] %v1810
          %1843 = vst [vmem:[%s303 + $0x20] sm:$0xff] %v1811
          %1844 = vst [vmem:[%s303 + $0x28] sm:$0xff] %v1812
          %1845 = vst [vmem:[%s303 + $0x30] sm:$0xff] %v1813
          %1846 = vst [vmem:[%s303 + $0x38] sm:$0xff] %v1814
          %1847 = vst [vmem:[%s303 + $0x40] sm:$0xff] %v1815
          %1848 = vst [vmem:[%s303 + $0x48] sm:$0xff] %v1816
          %1849 = vst [vmem:[%s303 + $0x50] sm:$0xff] %v1817
          %1850 = vst [vmem:[%s303 + $0x58] sm:$0xff] %v1818
          %1851 = vst [vmem:[%s303 + $0x60] sm:$0xff] %v1819
          %1852 = vst [vmem:[%s303 + $0x68] sm:$0xff] %v1820
          %1853 = vst [vmem:[%s303 + $0x70] sm:$0xff] %v1821
          %1854 = vst [vmem:[%s303 + $0x78] sm:$0xff] %v1822
          %1855 = vst [vmem:[%s303 + $0x80] sm:$0xff] %v1823
          %1856 = vst [vmem:[%s303 + $0x88] sm:$0xff] %v1824
          %1857 = vst [vmem:[%s303 + $0x90] sm:$0xff] %v1825
          %1858 = vst [vmem:[%s303 + $0x98] sm:$0xff] %v1826
          %1859 = vst [vmem:[%s303 + $0xa0] sm:$0xff] %v1827
          %1860 = vst [vmem:[%s303 + $0xa8] sm:$0xff] %v1828
          %1861 = vst [vmem:[%s303 + $0xb0] sm:$0xff] %v1829
          %1862 = vst [vmem:[%s303 + $0xb8] sm:$0xff] %v1830
          %1863 = vst [vmem:[%s303 + $0xc0] sm:$0xff] %v1831
          %1864 = vst [vmem:[%s303 + $0xc8] sm:$0xff] %v1832
          %1865 = vst [vmem:[%s303 + $0xd0] sm:$0xff] %v1833
          %1866 = vst [vmem:[%s303 + $0xd8] sm:$0xff] %v1834
          %1867 = vst [vmem:[%s303 + $0xe0] sm:$0xff] %v1835
          %1868 = vst [vmem:[%s303 + $0xe8] sm:$0xff] %v1836
          %1869 = vst [vmem:[%s303 + $0xf0] sm:$0xff] %v1837
          %1870 = vst [vmem:[%s303 + $0xf8] sm:$0xff] %v1838
        $region44: #{edge_model_forward.4} parent=35 // pred_fallthru
          _
        %s1871 = sand.u32 %s172, 1
        %s1872 = sand.u32 %s172, 1
        %s1873 = smul.addr %s1872, 256
        %s1874 = scalar_lea.vmem [#allocation2], %s1873
        // Predicated region
        $region45: #{edge_model_forward.4} parent=35 // pred_check
          %p1875 = pneg %p182
        $region46: #{edge_model_forward.4} parent=35 // pred_check_branch
          %1877 = sbr.rel (%p1875) target = $region48
        $region47: #{edge_model_forward.4} parent=35 // pred_region
          %s1878 = smul.u32 %s23, 2
          %s1879 = sadd.s32 %s1878, %s24
          %s1880 = smul.u32 16, %s22
          %s1881 = smul.u32 2, %s1879
          %s1882 = smul.addr %s1880, 8
          %s1883 = sadd.s32 %s1881, %s1882
          %s1884 = smul.addr %s1883, 8
          %s1885 = scalar_lea.vmem %s4, %s1884
          // Predicated region
          $region49: #{edge_model_forward.4} parent=47 // pred_check
            _
          $region50: #{edge_model_forward.4} parent=47 // pred_check_branch
            %1887 = sbr.rel (0) target = $region52
          $region51: #{edge_model_forward.4} parent=47 // pred_region
            // Predicated region
            $region53: #{edge_model_forward.4} parent=51 // pred_check
              _
            $region54: #{edge_model_forward.4} parent=51 // pred_check_branch
              %1889 = sbr.rel (0) target = $region56
            $region55: #{edge_model_forward.4} parent=51 // pred_region
              loop: start=0, step=1, limit=1
              $region57: #{edge_model_forward.4} parent=55 // loop_pre_header
                _
              $region58: #{edge_model_forward.4} parent=55 // loop_header
                %s1891 = sphi 0, %s1895
                %p1892 = scmp.ge.s32.totalorder %s1891, 1
                %s1896 = sphi %s1874, %s1874
                %s1897 = sphi %s1885, %s1885
              $region59: #{edge_model_forward.4} parent=55 // loop_header_branch
                %1894 = sbr.rel (%p1892) target = $region63
              $region60: #{edge_model_forward.4} parent=55 // loop_body
                %v1898 = vld [vmem:[%s1896] sm:$0xff]
                %1899 = vst [vmem:[%s1897] sm:$0xff] %v1898
                %v1900 = vld [vmem:[%s1896 + $0x8] sm:$0xff]
                %1901 = vst [vmem:[%s1897 + $0x8] sm:$0xff] %v1900
                %v1902 = vld [vmem:[%s1896 + $0x10] sm:$0xff]
                %1903 = vst [vmem:[%s1897 + $0x40] sm:$0xff] %v1902
                %v1904 = vld [vmem:[%s1896 + $0x18] sm:$0xff]
                %1905 = vst [vmem:[%s1897 + $0x48] sm:$0xff] %v1904
                %v1906 = vld [vmem:[%s1896 + $0x20] sm:$0xff]
                %1907 = vst [vmem:[%s1897 + $0x80] sm:$0xff] %v1906
                %v1908 = vld [vmem:[%s1896 + $0x28] sm:$0xff]
                %1909 = vst [vmem:[%s1897 + $0x88] sm:$0xff] %v1908
                %v1910 = vld [vmem:[%s1896 + $0x30] sm:$0xff]
                %1911 = vst [vmem:[%s1897 + $0xc0] sm:$0xff] %v1910
                %v1912 = vld [vmem:[%s1896 + $0x38] sm:$0xff]
                %1913 = vst [vmem:[%s1897 + $0xc8] sm:$0xff] %v1912
                %v1914 = vld [vmem:[%s1896 + $0x40] sm:$0xff]
                %1915 = vst [vmem:[%s1897 + $0x100] sm:$0xff] %v1914
                %v1916 = vld [vmem:[%s1896 + $0x48] sm:$0xff]
                %1917 = vst [vmem:[%s1897 + $0x108] sm:$0xff] %v1916
                %v1918 = vld [vmem:[%s1896 + $0x50] sm:$0xff]
                %1919 = vst [vmem:[%s1897 + $0x140] sm:$0xff] %v1918
                %v1920 = vld [vmem:[%s1896 + $0x58] sm:$0xff]
                %1921 = vst [vmem:[%s1897 + $0x148] sm:$0xff] %v1920
                %v1922 = vld [vmem:[%s1896 + $0x60] sm:$0xff]
                %1923 = vst [vmem:[%s1897 + $0x180] sm:$0xff] %v1922
                %v1924 = vld [vmem:[%s1896 + $0x68] sm:$0xff]
                %1925 = vst [vmem:[%s1897 + $0x188] sm:$0xff] %v1924
                %v1926 = vld [vmem:[%s1896 + $0x70] sm:$0xff]
                %1927 = vst [vmem:[%s1897 + $0x1c0] sm:$0xff] %v1926
                %v1928 = vld [vmem:[%s1896 + $0x78] sm:$0xff]
                %1929 = vst [vmem:[%s1897 + $0x1c8] sm:$0xff] %v1928
                %v1930 = vld [vmem:[%s1896 + $0x80] sm:$0xff]
                %1931 = vst [vmem:[%s1897 + $0x200] sm:$0xff] %v1930
                %v1932 = vld [vmem:[%s1896 + $0x88] sm:$0xff]
                %1933 = vst [vmem:[%s1897 + $0x208] sm:$0xff] %v1932
                %v1934 = vld [vmem:[%s1896 + $0x90] sm:$0xff]
                %1935 = vst [vmem:[%s1897 + $0x240] sm:$0xff] %v1934
                %v1936 = vld [vmem:[%s1896 + $0x98] sm:$0xff]
                %1937 = vst [vmem:[%s1897 + $0x248] sm:$0xff] %v1936
                %v1938 = vld [vmem:[%s1896 + $0xa0] sm:$0xff]
                %1939 = vst [vmem:[%s1897 + $0x280] sm:$0xff] %v1938
                %v1940 = vld [vmem:[%s1896 + $0xa8] sm:$0xff]
                %1941 = vst [vmem:[%s1897 + $0x288] sm:$0xff] %v1940
                %v1942 = vld [vmem:[%s1896 + $0xb0] sm:$0xff]
                %1943 = vst [vmem:[%s1897 + $0x2c0] sm:$0xff] %v1942
                %v1944 = vld [vmem:[%s1896 + $0xb8] sm:$0xff]
                %1945 = vst [vmem:[%s1897 + $0x2c8] sm:$0xff] %v1944
                %v1946 = vld [vmem:[%s1896 + $0xc0] sm:$0xff]
                %1947 = vst [vmem:[%s1897 + $0x300] sm:$0xff] %v1946
                %v1948 = vld [vmem:[%s1896 + $0xc8] sm:$0xff]
                %1949 = vst [vmem:[%s1897 + $0x308] sm:$0xff] %v1948
                %v1950 = vld [vmem:[%s1896 + $0xd0] sm:$0xff]
                %1951 = vst [vmem:[%s1897 + $0x340] sm:$0xff] %v1950
                %v1952 = vld [vmem:[%s1896 + $0xd8] sm:$0xff]
                %1953 = vst [vmem:[%s1897 + $0x348] sm:$0xff] %v1952
                %v1954 = vld [vmem:[%s1896 + $0xe0] sm:$0xff]
                %1955 = vst [vmem:[%s1897 + $0x380] sm:$0xff] %v1954
                %v1956 = vld [vmem:[%s1896 + $0xe8] sm:$0xff]
                %1957 = vst [vmem:[%s1897 + $0x388] sm:$0xff] %v1956
                %v1958 = vld [vmem:[%s1896 + $0xf0] sm:$0xff]
                %1959 = vst [vmem:[%s1897 + $0x3c0] sm:$0xff] %v1958
                %v1960 = vld [vmem:[%s1896 + $0xf8] sm:$0xff]
                %1961 = vst [vmem:[%s1897 + $0x3c8] sm:$0xff] %v1960
              $region61: #{edge_model_forward.4} parent=55 // loop_footer
                %s1895 = sadd.s32 1, %s1891
              $region62: #{edge_model_forward.4} parent=55 // loop_footer_branch
                %1890 = sbr.rel target = $region58
              $region63: #{edge_model_forward.4} parent=55 // loop_exit
                _
            $region56: #{edge_model_forward.4} parent=51 // pred_fallthru
              _
            // Predicated region
            $region64: #{edge_model_forward.4} parent=51 // pred_check
              _
            $region65: #{edge_model_forward.4} parent=51 // pred_check_branch
              %1963 = sbr.rel target = $region67
            $region66: #{edge_model_forward.4} parent=51 // pred_region
              _
            $region67: #{edge_model_forward.4} parent=51 // pred_fallthru
              _
          $region52: #{edge_model_forward.4} parent=47 // pred_fallthru
            _
          %1964 = vnop
        $region48: #{edge_model_forward.4} parent=35 // pred_fallthru
          _
      $region36: #{edge_model_forward.4} parent=5 // pred_fallthru
        _
      %p1965 = scmp.le.s32.totalorder 2, %s10
      // Predicated region
      $region68: #{edge_model_forward.4} parent=5 // pred_check
        %p1966 = pneg %p1965
      $region69: #{edge_model_forward.4} parent=5 // pred_check_branch
        %1968 = sbr.rel (%p1966) target = $region71
      $region70: #{edge_model_forward.4} parent=5 // pred_region
        %s1969 = ssub.s32 %s10, 2
        // Predicated region
        $region72: #{edge_model_forward.4} parent=70 // pred_check
          %p1970 = pneg %p188
        $region73: #{edge_model_forward.4} parent=70 // pred_check_branch
          %1972 = sbr.rel (%p1970) target = $region75
        $region74: #{edge_model_forward.4} parent=70 // pred_region
          %s1973 = sand.u32 %s173, 1
          %s1974 = sand.u32 %s173, 1
          %s1975 = smul.addr %s1974, 256
          %s1976 = scalar_lea.vmem [#allocation2], %s1975
        $region75: #{edge_model_forward.4} parent=70 // pred_fallthru
          _
      $region71: #{edge_model_forward.4} parent=5 // pred_fallthru
        _
    $region6: #{edge_model_forward.4} parent=1 // loop_footer
      %s14 = sadd.s32 1, %s10
    $region7: #{edge_model_forward.4} parent=1 // loop_footer_branch
      %9 = sbr.rel target = $region3
    $region8: #{edge_model_forward.4} parent=1 // loop_exit
      _

// kernel: tile.8
$region0: #{tile.8}
  #allocation0 [shape = 's32[1]{0}', space=sflag, size = 0x4, scoped, tag = 'scoped memory for tile.8']
  %s0 = inlined_call_operand.vmem [shape: f32[2], index: 0, kind: input, shape index: {}]
  %s1 = inlined_call_operand.vmem [shape: f32[4,2], index: 1, kind: output, shape index: {}]
  // Predicated region
  $region2: #{tile.8} parent=0 // pred_check
    _
  $region3: #{tile.8} parent=0 // pred_check_branch
    %3 = sbr.rel (0) target = $region5
  $region4: #{tile.8} parent=0 // pred_region
    _
  $region5: #{tile.8} parent=0 // pred_fallthru
    _
  %v4 = vld [vmem:[%s0] ss:$0 sm:$0xff]
  %5 = vst [vmem:[%s1] sm:$0xf] %v4

// kernel: tile.9
$region0: #{tile.9}
  %s0 = inlined_call_operand.vmem [shape: f32[4,2], index: 0, kind: input, shape index: {}]
  %s1 = inlined_call_operand.vmem [shape: f32[1,8], index: 1, kind: output, shape index: {}]
  $region1: #{tile.9} parent=0
    #allocation0 [shape = 'u8[4096]{0}', space=vmem, size = 0x1000, scoped, tag = 'scoped mem for output reshape']
    #allocation1 [shape = 'u8[4096]{0}', space=vmem, size = 0x1000, scoped, tag = 'scoped mem for input reshape']
    %s3 = sshllo.u32 0, 4
    %v4 = vld [vmem:[%s0] sm:%s3]
    %5 = vst [vmem:[#allocation1] sm:%s3] %v4
    %v6 = vld [vmem:[#allocation1] sm:$0x1]
    %vm7 = vcmask 15360
    %8 = vst.msk [vmem:[#allocation0] sm:$0x1] %vm7, %v6
    %s9 = scalar_lea.vmem [#allocation1], 3
    %v10 = vld [vmem:[%s9] sm:$0x1]
    %11 = vrot.lane.b32.xlu0 %v10, 6
    %v12 = vpop.permute.xlu0 %11
    %vm13 = vcmask 64560
    %14 = vst.msk [vmem:[#allocation0] sm:$0x1] %vm13, %v12
    %s15 = scalar_lea.vmem [#allocation1], 2
    %v16 = vld [vmem:[%s15] sm:$0x1]
    %17 = vrot.lane.b32.xlu0 %v16, 4
    %v18 = vpop.permute.xlu0 %17
    %vm19 = vcmask 48160
    %20 = vst.msk [vmem:[#allocation0] sm:$0x1] %vm19, %v18
    %s21 = scalar_lea.vmem [#allocation1], 1
    %v22 = vld [vmem:[%s21] sm:$0x1]
    %23 = vrot.lane.b32.xlu0 %v22, 2
    %v24 = vpop.permute.xlu0 %23
    %vm25 = vcmask 31760
    %26 = vst.msk [vmem:[#allocation0] sm:$0x1] %vm25, %v24
    %s28 = sshllo.u32 0, 1
    %v30 = vld [vmem:[#allocation0] sm:%s28]
    %s31 = sshllo.u32 0, 1
    %32 = vst [vmem:[%s1] sm:%s31] %v30

// kernel: edge_model_forward.5
$region0: #{edge_model_forward.5}
  #allocation0 [shape = 'u32[]', space=smem, size = 0x4, offset = 0x4, fixed_abs, tag = 'smem constant byte address 0x4 - core index']
  #allocation1 [shape = 'u32[144,128]{1,0:T(1,128)}', space=vmem, size = 0x12000, scoped, tag = 'internal scratch']
  %s0 = inlined_call_operand.vmem [shape: bf16[9,512,320], index: 0, kind: input, shape index: {}]
  %s1 = inlined_call_operand.vmem [shape: bf16[9,320,8], index: 1, kind: input, shape index: {}]
  %s2 = inlined_call_operand.vmem [shape: f32[1,8], index: 2, kind: input, shape index: {}]
  %s3 = inlined_call_operand.vmem [shape: f32[512,8], index: 3, kind: output, shape index: {}]
  %s4 = sld [smem:[#allocation0]]
  $region53: #{edge_model_forward.5} parent=0
    _
  %s6 = ssub.s32 1, %s4
  %s7 = scalar_select 0, %s6, %s4
  loop: start=0, step=1, limit=11
  $region2: #{edge_model_forward.5} parent=0 // loop_pre_header
    _
  $region3: #{edge_model_forward.5} parent=0 // loop_header
    %s9 = sphi 0, %s13
    %p10 = scmp.ge.s32.totalorder %s9, 11
    %s16 = sphi 0, %s28
    %s17 = sphi 0, %s24
    %s18 = sphi 0, %s16
    %s19 = sphi 0, %s17
    %s20 = sphi 0, %s18
    %s21 = sphi 0, %s19
    %s33 = sphi 0, %s35
    %s36 = sphi 0, %s33
    %s37 = sphi 0, %s36
    %s53 = sphi 0, %s37
    %s59 = sphi 0, %s61
    %s62 = sphi 0, %s59
    %s63 = sphi 0, %s62
    %s79 = sphi 0, %s63
    %s83 = sphi 0, %s83
    %s85 = sphi 0, %s83
    %s86 = sphi 0, %s85
    %s100 = sphi 0, %s86
    %s106 = sphi 0, %s108
    %s109 = sphi 0, %s106
    %s110 = sphi 0, %s109
    %s126 = sphi 0, %s110
  $region4: #{edge_model_forward.5} parent=0 // loop_header_branch
    %12 = sbr.rel (%p10) target = $region8
  $region5: #{edge_model_forward.5} parent=0 // loop_body
    %s14 = ssub.s32 %s9, 1
    %s15 = ssub.s32 %s9, 2
    %s22 = sadd.s32 1, %s17
    %p23 = scmp.ge.s32.totalorder %s22, 9
    %s24 = scalar_select %p23, 0, %s22
    %s25 = sadd.s32 1, %s16
    %s26 = scalar_select %p23, %s25, %s16
    %p27 = scmp.ge.s32.totalorder %s26, 1
    %s28 = scalar_select %p27, 0, %s26
    %s29 = ssub.s32 %s17, %s24
    %s30 = ssub.s32 %s16, %s28
    %s31 = sor.u32 %s29, %s30
    %p32 = scmp.eq.s32.totalorder %s31, 0
    %s34 = sadd.s32 %s33, 1
    %s35 = scalar_select %p32, %s33, %s34
    %p38 = pneg %p32
    %p39 = scmp.eq.s32.totalorder %s9, 8
    %p40 = por %p38, %p39
    %p41 = scmp.ne.s32.totalorder %s33, %s36
    %p42 = scmp.eq.s32.totalorder %s9, 0
    %p43 = por %p41, %p42
    %p44 = scmp.ne.s32.totalorder %s33, %s36
    %p45 = scmp.eq.s32.totalorder %s14, 8
    %p46 = por %p44, %p45
    %p47 = scmp.ne.s32.totalorder %s36, %s37
    %p48 = scmp.eq.s32.totalorder %s14, 0
    %p49 = por %p47, %p48
    %p50 = scmp.ne.s32.totalorder %s36, %s37
    %p51 = scmp.eq.s32.totalorder %s15, 8
    %p52 = por %p50, %p51
    %p54 = scmp.ne.s32.totalorder %s37, %s53
    %p55 = scmp.eq.s32.totalorder %s15, 0
    %p56 = por %p54, %p55
    %s57 = ssub.s32 %s17, %s24
    %p58 = scmp.eq.s32.totalorder %s57, 0
    %s60 = sadd.s32 %s59, 1
    %s61 = scalar_select %p58, %s59, %s60
    %p64 = pneg %p58
    %p65 = scmp.eq.s32.totalorder %s9, 8
    %p66 = por %p64, %p65
    %p67 = scmp.ne.s32.totalorder %s59, %s62
    %p68 = scmp.eq.s32.totalorder %s9, 0
    %p69 = por %p67, %p68
    %p70 = scmp.ne.s32.totalorder %s59, %s62
    %p71 = scmp.eq.s32.totalorder %s14, 8
    %p72 = por %p70, %p71
    %p73 = scmp.ne.s32.totalorder %s62, %s63
    %p74 = scmp.eq.s32.totalorder %s14, 0
    %p75 = por %p73, %p74
    %p76 = scmp.ne.s32.totalorder %s62, %s63
    %p77 = scmp.eq.s32.totalorder %s15, 8
    %p78 = por %p76, %p77
    %p80 = scmp.ne.s32.totalorder %s63, %s79
    %p81 = scmp.eq.s32.totalorder %s15, 0
    %p82 = por %p80, %p81
    %s84 = sadd.s32 %s83, 1
    %p87 = scmp.eq.s32.totalorder %s9, 8
    %p88 = scmp.ne.s32.totalorder %s83, %s85
    %p89 = scmp.eq.s32.totalorder %s9, 0
    %p90 = por %p88, %p89
    %p91 = scmp.ne.s32.totalorder %s83, %s85
    %p92 = scmp.eq.s32.totalorder %s14, 8
    %p93 = por %p91, %p92
    %p94 = scmp.ne.s32.totalorder %s85, %s86
    %p95 = scmp.eq.s32.totalorder %s14, 0
    %p96 = por %p94, %p95
    %p97 = scmp.ne.s32.totalorder %s85, %s86
    %p98 = scmp.eq.s32.totalorder %s15, 8
    %p99 = por %p97, %p98
    %p101 = scmp.ne.s32.totalorder %s86, %s100
    %p102 = scmp.eq.s32.totalorder %s15, 0
    %p103 = por %p101, %p102
    %s104 = ssub.s32 %s16, %s28
    %p105 = scmp.eq.s32.totalorder %s104, 0
    %s107 = sadd.s32 %s106, 1
    %s108 = scalar_select %p105, %s106, %s107
    %p111 = pneg %p105
    %p112 = scmp.eq.s32.totalorder %s9, 8
    %p113 = por %p111, %p112
    %p114 = scmp.ne.s32.totalorder %s106, %s109
    %p115 = scmp.eq.s32.totalorder %s9, 0
    %p116 = por %p114, %p115
    %p117 = scmp.ne.s32.totalorder %s106, %s109
    %p118 = scmp.eq.s32.totalorder %s14, 8
    %p119 = por %p117, %p118
    %p120 = scmp.ne.s32.totalorder %s109, %s110
    %p121 = scmp.eq.s32.totalorder %s14, 0
    %p122 = por %p120, %p121
    %p123 = scmp.ne.s32.totalorder %s109, %s110
    %p124 = scmp.eq.s32.totalorder %s15, 8
    %p125 = por %p123, %p124
    %p127 = scmp.ne.s32.totalorder %s110, %s126
    %p128 = scmp.eq.s32.totalorder %s15, 0
    %p129 = por %p127, %p128
    %p130 = scmp.le.s32.totalorder 1, %s9
    %p131 = scmp.lt.s32.totalorder %s9, 10
    %p132 = pnand %p130, %p131
    %p133 = pneg %p132
    // Predicated region
    $region9: #{edge_model_forward.5} parent=5 // pred_check
      _
    $region10: #{edge_model_forward.5} parent=5 // pred_check_branch
      %135 = sbr.rel (%p132) target = $region12
    $region11: #{edge_model_forward.5} parent=5 // pred_region
      %s136 = ssub.s32 %s9, 1
      // Predicated region
      $region13: #{edge_model_forward.5} parent=11 // pred_check
        %p137 = pneg %p96
      $region14: #{edge_model_forward.5} parent=11 // pred_check_branch
        %139 = sbr.rel (%p137) target = $region16
      $region15: #{edge_model_forward.5} parent=11 // pred_region
        _
      $region16: #{edge_model_forward.5} parent=11 // pred_fallthru
        _
    $region12: #{edge_model_forward.5} parent=5 // pred_fallthru
      _
    %p140 = scmp.lt.s32.totalorder %s9, 9
    // Predicated region
    $region17: #{edge_model_forward.5} parent=5 // pred_check
      %p141 = pneg %p140
    $region18: #{edge_model_forward.5} parent=5 // pred_check_branch
      %143 = sbr.rel (%p141) target = $region20
    $region19: #{edge_model_forward.5} parent=5 // pred_region
      // Predicated region
      $region21: #{edge_model_forward.5} parent=19 // pred_check
        %p144 = pneg %p43
      $region22: #{edge_model_forward.5} parent=19 // pred_check_branch
        %146 = sbr.rel (%p144) target = $region24
      $region23: #{edge_model_forward.5} parent=19 // pred_region
        %s147 = smul.u32 64, %s16
        %p148 = scmp.lt.s32.totalorder %s17, 8
        %s149 = scalar_select %p148, %s17, 8
        %p150 = scmp.lt.s32.totalorder %s147, 63
        %s151 = scalar_select %p150, %s147, 63
        %s152 = smul.addr %s151, 3
        %s153 = smul.addr %s149, 192
        %s154 = sadd.s32 %s152, %s153
        %s155 = smul.addr %s154, 4
        %s156 = scalar_lea.vmem %s0, %s155
        %s157 = smul.u32 64, %s16
      $region24: #{edge_model_forward.5} parent=19 // pred_fallthru
        _
      // Predicated region
      $region25: #{edge_model_forward.5} parent=19 // pred_check
        %p158 = pneg %p69
      $region26: #{edge_model_forward.5} parent=19 // pred_check_branch
        %160 = sbr.rel (%p158) target = $region28
      $region27: #{edge_model_forward.5} parent=19 // pred_region
        %p161 = scmp.lt.s32.totalorder %s17, 8
        %s162 = scalar_select %p161, %s17, 8
        %s163 = smul.addr %s162, 40
        %s164 = smul.addr %s163, 4
        %s165 = scalar_lea.vmem %s1, %s164
      $region28: #{edge_model_forward.5} parent=19 // pred_fallthru
        _
    $region20: #{edge_model_forward.5} parent=5 // pred_fallthru
      _
    %p166 = scmp.le.s32.totalorder 1, %s9
    %p167 = scmp.lt.s32.totalorder %s9, 10
    %p168 = pnand %p166, %p167
    %p169 = pneg %p168
    // Predicated region
    $region29: #{edge_model_forward.5} parent=5 // pred_check
      _
    $region30: #{edge_model_forward.5} parent=5 // pred_check_branch
      %171 = sbr.rel (%p168) target = $region32
    $region31: #{edge_model_forward.5} parent=5 // pred_region
      %s172 = ssub.s32 %s9, 1
      %s173 = smul.u32 64, %s18
      %p174 = scmp.lt.s32.totalorder %s19, 8
      %s175 = scalar_select %p174, %s19, 8
      %p176 = scmp.lt.s32.totalorder %s173, 63
      %s177 = scalar_select %p176, %s173, 63
      %s178 = smul.addr %s177, 3
      %s179 = smul.addr %s175, 192
      %s180 = sadd.s32 %s178, %s179
      %s181 = smul.addr %s180, 4
      %s182 = scalar_lea.vmem %s0, %s181
      %p183 = pneg %p49
      %p184 = pneg %p46
      %p185 = scmp.lt.s32.totalorder %s19, 8
      %s186 = scalar_select %p185, %s19, 8
      %s187 = smul.addr %s186, 40
      %s188 = smul.addr %s187, 4
      %s189 = scalar_lea.vmem %s1, %s188
      %p190 = pneg %p75
      %p191 = pneg %p72
      %p192 = pneg %p96
      %p193 = pneg %p93
      %p194 = pneg %p122
      %p195 = pneg %p119
      %s196 = smul.u32 64, %s18
      %p197 = scmp.lt.s32.totalorder %s196, 63
      %s198 = scalar_select %p197, %s196, 63
      %s199 = smul.addr %s198, 8
      %s200 = scalar_lea.vmem %s3, %s199
      %s201 = smul.u32 64, %s18
      %p202 = scmp.lt.s32.totalorder %s19, 8
      %s203 = scalar_select %p202, %s19, 8
      %p204 = scmp.lt.s32.totalorder %s201, 63
      %s205 = scalar_select %p204, %s201, 63
      %s206 = smul.addr %s205, 3
      %s207 = smul.addr %s203, 192
      %s208 = sadd.s32 %s206, %s207
      %s209 = smul.addr %s208, 4
      %s210 = scalar_lea.vmem %s0, %s209
      %s211 = smul.u32 64, %s18
      %p212 = scmp.lt.s32.totalorder %s19, 8
      %s213 = scalar_select %p212, %s19, 8
      %s214 = smul.addr %s213, 40
      %s215 = smul.addr %s214, 4
      %s216 = scalar_lea.vmem %s1, %s215
      %s217 = smul.u32 64, %s18
      %p218 = scmp.lt.s32.totalorder %s217, 63
      %s219 = scalar_select %p218, %s217, 63
      %s220 = smul.addr %s219, 8
      %s221 = scalar_lea.vmem %s3, %s220
      %s222 = smul.u32 64, %s18
      %p224 = scmp.eq.s32.totalorder %s19, 0
      // Predicated region
      $region33: #{edge_model_forward.5} parent=31 // pred_check
        %p225 = pneg %p224
      $region34: #{edge_model_forward.5} parent=31 // pred_check_branch
        %227 = sbr.rel (%p225) target = $region36
      $region35: #{edge_model_forward.5} parent=31 // pred_region
        %vm228 = vcmask 64512
        %229 = vst.msk [vmem:[%s221] sm:$0xff] %vm228, 0.0
        %230 = vst.msk [vmem:[%s221 + $0x8] sm:$0xff] %vm228, 0.0
        %231 = vst.msk [vmem:[%s221 + $0x10] sm:$0xff] %vm228, 0.0
        %232 = vst.msk [vmem:[%s221 + $0x18] sm:$0xff] %vm228, 0.0
        %233 = vst.msk [vmem:[%s221 + $0x20] sm:$0xff] %vm228, 0.0
        %234 = vst.msk [vmem:[%s221 + $0x28] sm:$0xff] %vm228, 0.0
        %235 = vst.msk [vmem:[%s221 + $0x30] sm:$0xff] %vm228, 0.0
        %236 = vst.msk [vmem:[%s221 + $0x38] sm:$0xff] %vm228, 0.0
        %237 = vst.msk [vmem:[%s221 + $0x40] sm:$0xff] %vm228, 0.0
        %238 = vst.msk [vmem:[%s221 + $0x48] sm:$0xff] %vm228, 0.0
        %239 = vst.msk [vmem:[%s221 + $0x50] sm:$0xff] %vm228, 0.0
        %240 = vst.msk [vmem:[%s221 + $0x58] sm:$0xff] %vm228, 0.0
        %241 = vst.msk [vmem:[%s221 + $0x60] sm:$0xff] %vm228, 0.0
        %242 = vst.msk [vmem:[%s221 + $0x68] sm:$0xff] %vm228, 0.0
        %243 = vst.msk [vmem:[%s221 + $0x70] sm:$0xff] %vm228, 0.0
        %244 = vst.msk [vmem:[%s221 + $0x78] sm:$0xff] %vm228, 0.0
        %245 = vst.msk [vmem:[%s221 + $0x80] sm:$0xff] %vm228, 0.0
        %246 = vst.msk [vmem:[%s221 + $0x88] sm:$0xff] %vm228, 0.0
        %247 = vst.msk [vmem:[%s221 + $0x90] sm:$0xff] %vm228, 0.0
        %248 = vst.msk [vmem:[%s221 + $0x98] sm:$0xff] %vm228, 0.0
        %249 = vst.msk [vmem:[%s221 + $0xa0] sm:$0xff] %vm228, 0.0
        %250 = vst.msk [vmem:[%s221 + $0xa8] sm:$0xff] %vm228, 0.0
        %251 = vst.msk [vmem:[%s221 + $0xb0] sm:$0xff] %vm228, 0.0
        %252 = vst.msk [vmem:[%s221 + $0xb8] sm:$0xff] %vm228, 0.0
        %253 = vst.msk [vmem:[%s221 + $0xc0] sm:$0xff] %vm228, 0.0
        %254 = vst.msk [vmem:[%s221 + $0xc8] sm:$0xff] %vm228, 0.0
        %255 = vst.msk [vmem:[%s221 + $0xd0] sm:$0xff] %vm228, 0.0
        %256 = vst.msk [vmem:[%s221 + $0xd8] sm:$0xff] %vm228, 0.0
        %257 = vst.msk [vmem:[%s221 + $0xe0] sm:$0xff] %vm228, 0.0
        %258 = vst.msk [vmem:[%s221 + $0xe8] sm:$0xff] %vm228, 0.0
        %259 = vst.msk [vmem:[%s221 + $0xf0] sm:$0xff] %vm228, 0.0
        %260 = vst.msk [vmem:[%s221 + $0xf8] sm:$0xff] %vm228, 0.0
        %261 = vst.msk [vmem:[%s221 + $0x100] sm:$0xff] %vm228, 0.0
        %262 = vst.msk [vmem:[%s221 + $0x108] sm:$0xff] %vm228, 0.0
        %263 = vst.msk [vmem:[%s221 + $0x110] sm:$0xff] %vm228, 0.0
        %264 = vst.msk [vmem:[%s221 + $0x118] sm:$0xff] %vm228, 0.0
        %265 = vst.msk [vmem:[%s221 + $0x120] sm:$0xff] %vm228, 0.0
        %266 = vst.msk [vmem:[%s221 + $0x128] sm:$0xff] %vm228, 0.0
        %267 = vst.msk [vmem:[%s221 + $0x130] sm:$0xff] %vm228, 0.0
        %268 = vst.msk [vmem:[%s221 + $0x138] sm:$0xff] %vm228, 0.0
        %269 = vst.msk [vmem:[%s221 + $0x140] sm:$0xff] %vm228, 0.0
        %270 = vst.msk [vmem:[%s221 + $0x148] sm:$0xff] %vm228, 0.0
        %271 = vst.msk [vmem:[%s221 + $0x150] sm:$0xff] %vm228, 0.0
        %272 = vst.msk [vmem:[%s221 + $0x158] sm:$0xff] %vm228, 0.0
        %273 = vst.msk [vmem:[%s221 + $0x160] sm:$0xff] %vm228, 0.0
        %274 = vst.msk [vmem:[%s221 + $0x168] sm:$0xff] %vm228, 0.0
        %275 = vst.msk [vmem:[%s221 + $0x170] sm:$0xff] %vm228, 0.0
        %276 = vst.msk [vmem:[%s221 + $0x178] sm:$0xff] %vm228, 0.0
        %277 = vst.msk [vmem:[%s221 + $0x180] sm:$0xff] %vm228, 0.0
        %278 = vst.msk [vmem:[%s221 + $0x188] sm:$0xff] %vm228, 0.0
        %279 = vst.msk [vmem:[%s221 + $0x190] sm:$0xff] %vm228, 0.0
        %280 = vst.msk [vmem:[%s221 + $0x198] sm:$0xff] %vm228, 0.0
        %281 = vst.msk [vmem:[%s221 + $0x1a0] sm:$0xff] %vm228, 0.0
        %282 = vst.msk [vmem:[%s221 + $0x1a8] sm:$0xff] %vm228, 0.0
        %283 = vst.msk [vmem:[%s221 + $0x1b0] sm:$0xff] %vm228, 0.0
        %284 = vst.msk [vmem:[%s221 + $0x1b8] sm:$0xff] %vm228, 0.0
        %285 = vst.msk [vmem:[%s221 + $0x1c0] sm:$0xff] %vm228, 0.0
        %286 = vst.msk [vmem:[%s221 + $0x1c8] sm:$0xff] %vm228, 0.0
        %287 = vst.msk [vmem:[%s221 + $0x1d0] sm:$0xff] %vm228, 0.0
        %288 = vst.msk [vmem:[%s221 + $0x1d8] sm:$0xff] %vm228, 0.0
        %289 = vst.msk [vmem:[%s221 + $0x1e0] sm:$0xff] %vm228, 0.0
        %290 = vst.msk [vmem:[%s221 + $0x1e8] sm:$0xff] %vm228, 0.0
        %291 = vst.msk [vmem:[%s221 + $0x1f0] sm:$0xff] %vm228, 0.0
        %292 = vst.msk [vmem:[%s221 + $0x1f8] sm:$0xff] %vm228, 0.0
      $region36: #{edge_model_forward.5} parent=31 // pred_fallthru
        _
      %v293 = vld [vmem:[%s221] sm:$0xff]
      %v294 = vld [vmem:[%s221 + $0x8] sm:$0xff]
      %v295 = vld [vmem:[%s221 + $0x10] sm:$0xff]
      %v296 = vld [vmem:[%s221 + $0x18] sm:$0xff]
      %v297 = vld [vmem:[%s221 + $0x20] sm:$0xff]
      %v298 = vld [vmem:[%s221 + $0x28] sm:$0xff]
      %v299 = vld [vmem:[%s221 + $0x30] sm:$0xff]
      %v300 = vld [vmem:[%s221 + $0x38] sm:$0xff]
      %v301 = vld [vmem:[%s221 + $0x40] sm:$0xff]
      %v302 = vld [vmem:[%s221 + $0x48] sm:$0xff]
      %v303 = vld [vmem:[%s221 + $0x50] sm:$0xff]
      %v304 = vld [vmem:[%s221 + $0x58] sm:$0xff]
      %v305 = vld [vmem:[%s221 + $0x60] sm:$0xff]
      %v306 = vld [vmem:[%s221 + $0x68] sm:$0xff]
      %v307 = vld [vmem:[%s221 + $0x70] sm:$0xff]
      %v308 = vld [vmem:[%s221 + $0x78] sm:$0xff]
      %v309 = vld [vmem:[%s221 + $0x80] sm:$0xff]
      %v310 = vld [vmem:[%s221 + $0x88] sm:$0xff]
      %v311 = vld [vmem:[%s221 + $0x90] sm:$0xff]
      %v312 = vld [vmem:[%s221 + $0x98] sm:$0xff]
      %v313 = vld [vmem:[%s221 + $0xa0] sm:$0xff]
      %v314 = vld [vmem:[%s221 + $0xa8] sm:$0xff]
      %v315 = vld [vmem:[%s221 + $0xb0] sm:$0xff]
      %v316 = vld [vmem:[%s221 + $0xb8] sm:$0xff]
      %v317 = vld [vmem:[%s221 + $0xc0] sm:$0xff]
      %v318 = vld [vmem:[%s221 + $0xc8] sm:$0xff]
      %v319 = vld [vmem:[%s221 + $0xd0] sm:$0xff]
      %v320 = vld [vmem:[%s221 + $0xd8] sm:$0xff]
      %v321 = vld [vmem:[%s221 + $0xe0] sm:$0xff]
      %v322 = vld [vmem:[%s221 + $0xe8] sm:$0xff]
      %v323 = vld [vmem:[%s221 + $0xf0] sm:$0xff]
      %v324 = vld [vmem:[%s221 + $0xf8] sm:$0xff]
      %v325 = vld [vmem:[%s221 + $0x100] sm:$0xff]
      %v326 = vld [vmem:[%s221 + $0x108] sm:$0xff]
      %v327 = vld [vmem:[%s221 + $0x110] sm:$0xff]
      %v328 = vld [vmem:[%s221 + $0x118] sm:$0xff]
      %v329 = vld [vmem:[%s221 + $0x120] sm:$0xff]
      %v330 = vld [vmem:[%s221 + $0x128] sm:$0xff]
      %v331 = vld [vmem:[%s221 + $0x130] sm:$0xff]
      %v332 = vld [vmem:[%s221 + $0x138] sm:$0xff]
      %v333 = vld [vmem:[%s221 + $0x140] sm:$0xff]
      %v334 = vld [vmem:[%s221 + $0x148] sm:$0xff]
      %v335 = vld [vmem:[%s221 + $0x150] sm:$0xff]
      %v336 = vld [vmem:[%s221 + $0x158] sm:$0xff]
      %v337 = vld [vmem:[%s221 + $0x160] sm:$0xff]
      %v338 = vld [vmem:[%s221 + $0x168] sm:$0xff]
      %v339 = vld [vmem:[%s221 + $0x170] sm:$0xff]
      %v340 = vld [vmem:[%s221 + $0x178] sm:$0xff]
      %v341 = vld [vmem:[%s221 + $0x180] sm:$0xff]
      %v342 = vld [vmem:[%s221 + $0x188] sm:$0xff]
      %v343 = vld [vmem:[%s221 + $0x190] sm:$0xff]
      %v344 = vld [vmem:[%s221 + $0x198] sm:$0xff]
      %v345 = vld [vmem:[%s221 + $0x1a0] sm:$0xff]
      %v346 = vld [vmem:[%s221 + $0x1a8] sm:$0xff]
      %v347 = vld [vmem:[%s221 + $0x1b0] sm:$0xff]
      %v348 = vld [vmem:[%s221 + $0x1b8] sm:$0xff]
      %v349 = vld [vmem:[%s221 + $0x1c0] sm:$0xff]
      %v350 = vld [vmem:[%s221 + $0x1c8] sm:$0xff]
      %v351 = vld [vmem:[%s221 + $0x1d0] sm:$0xff]
      %v352 = vld [vmem:[%s221 + $0x1d8] sm:$0xff]
      %v353 = vld [vmem:[%s221 + $0x1e0] sm:$0xff]
      %v354 = vld [vmem:[%s221 + $0x1e8] sm:$0xff]
      %v355 = vld [vmem:[%s221 + $0x1f0] sm:$0xff]
      %v356 = vld [vmem:[%s221 + $0x1f8] sm:$0xff]
      %v357 = vld [vmem:[%s210] sm:$0xff]
      %v358 = vld [vmem:[%s210 + $0x8] sm:$0xf]
      %v359 = vld [vmem:[%s210 + $0xc] sm:$0xff]
      %v360 = vld [vmem:[%s210 + $0x14] sm:$0xf]
      %v361 = vld [vmem:[%s210 + $0x18] sm:$0xff]
      %v362 = vld [vmem:[%s210 + $0x20] sm:$0xf]
      %v363 = vld [vmem:[%s210 + $0x24] sm:$0xff]
      %v364 = vld [vmem:[%s210 + $0x2c] sm:$0xf]
      %v365 = vld [vmem:[%s210 + $0x30] sm:$0xff]
      %v366 = vld [vmem:[%s210 + $0x38] sm:$0xf]
      %v367 = vld [vmem:[%s210 + $0x3c] sm:$0xff]
      %v368 = vld [vmem:[%s210 + $0x44] sm:$0xf]
      %v369 = vld [vmem:[%s210 + $0x48] sm:$0xff]
      %v370 = vld [vmem:[%s210 + $0x50] sm:$0xf]
      %v371 = vld [vmem:[%s210 + $0x54] sm:$0xff]
      %v372 = vld [vmem:[%s210 + $0x5c] sm:$0xf]
      %v373 = vld [vmem:[%s210 + $0x60] sm:$0xff]
      %v374 = vld [vmem:[%s210 + $0x68] sm:$0xf]
      %v375 = vld [vmem:[%s210 + $0x6c] sm:$0xff]
      %v376 = vld [vmem:[%s210 + $0x74] sm:$0xf]
      %v377 = vld [vmem:[%s210 + $0x78] sm:$0xff]
      %v378 = vld [vmem:[%s210 + $0x80] sm:$0xf]
      %v379 = vld [vmem:[%s210 + $0x84] sm:$0xff]
      %v380 = vld [vmem:[%s210 + $0x8c] sm:$0xf]
      %v381 = vld [vmem:[%s210 + $0x90] sm:$0xff]
      %v382 = vld [vmem:[%s210 + $0x98] sm:$0xf]
      %v383 = vld [vmem:[%s210 + $0x9c] sm:$0xff]
      %v384 = vld [vmem:[%s210 + $0xa4] sm:$0xf]
      %v385 = vld [vmem:[%s210 + $0xa8] sm:$0xff]
      %v386 = vld [vmem:[%s210 + $0xb0] sm:$0xf]
      %v387 = vld [vmem:[%s210 + $0xb4] sm:$0xff]
      %v388 = vld [vmem:[%s210 + $0xbc] sm:$0xf]
      %v389 = vld [vmem:[%s210 + $0xc0] sm:$0xff]
      %v390 = vld [vmem:[%s210 + $0xc8] sm:$0xf]
      %v391 = vld [vmem:[%s210 + $0xcc] sm:$0xff]
      %v392 = vld [vmem:[%s210 + $0xd4] sm:$0xf]
      %v393 = vld [vmem:[%s210 + $0xd8] sm:$0xff]
      %v394 = vld [vmem:[%s210 + $0xe0] sm:$0xf]
      %v395 = vld [vmem:[%s210 + $0xe4] sm:$0xff]
      %v396 = vld [vmem:[%s210 + $0xec] sm:$0xf]
      %v397 = vld [vmem:[%s210 + $0xf0] sm:$0xff]
      %v398 = vld [vmem:[%s210 + $0xf8] sm:$0xf]
      %v399 = vld [vmem:[%s210 + $0xfc] sm:$0xff]
      %v400 = vld [vmem:[%s210 + $0x104] sm:$0xf]
      %v401 = vld [vmem:[%s210 + $0x108] sm:$0xff]
      %v402 = vld [vmem:[%s210 + $0x110] sm:$0xf]
      %v403 = vld [vmem:[%s210 + $0x114] sm:$0xff]
      %v404 = vld [vmem:[%s210 + $0x11c] sm:$0xf]
      %v405 = vld [vmem:[%s210 + $0x120] sm:$0xff]
      %v406 = vld [vmem:[%s210 + $0x128] sm:$0xf]
      %v407 = vld [vmem:[%s210 + $0x12c] sm:$0xff]
      %v408 = vld [vmem:[%s210 + $0x134] sm:$0xf]
      %v409 = vld [vmem:[%s210 + $0x138] sm:$0xff]
      %v410 = vld [vmem:[%s210 + $0x140] sm:$0xf]
      %v411 = vld [vmem:[%s210 + $0x144] sm:$0xff]
      %v412 = vld [vmem:[%s210 + $0x14c] sm:$0xf]
      %v413 = vld [vmem:[%s210 + $0x150] sm:$0xff]
      %v414 = vld [vmem:[%s210 + $0x158] sm:$0xf]
      %v415 = vld [vmem:[%s210 + $0x15c] sm:$0xff]
      %v416 = vld [vmem:[%s210 + $0x164] sm:$0xf]
      %v417 = vld [vmem:[%s210 + $0x168] sm:$0xff]
      %v418 = vld [vmem:[%s210 + $0x170] sm:$0xf]
      %v419 = vld [vmem:[%s210 + $0x174] sm:$0xff]
      %v420 = vld [vmem:[%s210 + $0x17c] sm:$0xf]
      %v421 = vld [vmem:[%s210 + $0x180] sm:$0xff]
      %v422 = vld [vmem:[%s210 + $0x188] sm:$0xf]
      %v423 = vld [vmem:[%s210 + $0x18c] sm:$0xff]
      %v424 = vld [vmem:[%s210 + $0x194] sm:$0xf]
      %v425 = vld [vmem:[%s210 + $0x198] sm:$0xff]
      %v426 = vld [vmem:[%s210 + $0x1a0] sm:$0xf]
      %v427 = vld [vmem:[%s210 + $0x1a4] sm:$0xff]
      %v428 = vld [vmem:[%s210 + $0x1ac] sm:$0xf]
      %v429 = vld [vmem:[%s210 + $0x1b0] sm:$0xff]
      %v430 = vld [vmem:[%s210 + $0x1b8] sm:$0xf]
      %v431 = vld [vmem:[%s210 + $0x1bc] sm:$0xff]
      %v432 = vld [vmem:[%s210 + $0x1c4] sm:$0xf]
      %v433 = vld [vmem:[%s210 + $0x1c8] sm:$0xff]
      %v434 = vld [vmem:[%s210 + $0x1d0] sm:$0xf]
      %v435 = vld [vmem:[%s210 + $0x1d4] sm:$0xff]
      %v436 = vld [vmem:[%s210 + $0x1dc] sm:$0xf]
      %v437 = vld [vmem:[%s210 + $0x1e0] sm:$0xff]
      %v438 = vld [vmem:[%s210 + $0x1e8] sm:$0xf]
      %v439 = vld [vmem:[%s210 + $0x1ec] sm:$0xff]
      %v440 = vld [vmem:[%s210 + $0x1f4] sm:$0xf]
      %v441 = vld [vmem:[%s210 + $0x1f8] sm:$0xff]
      %v442 = vld [vmem:[%s210 + $0x200] sm:$0xf]
      %v443 = vld [vmem:[%s210 + $0x204] sm:$0xff]
      %v444 = vld [vmem:[%s210 + $0x20c] sm:$0xf]
      %v445 = vld [vmem:[%s210 + $0x210] sm:$0xff]
      %v446 = vld [vmem:[%s210 + $0x218] sm:$0xf]
      %v447 = vld [vmem:[%s210 + $0x21c] sm:$0xff]
      %v448 = vld [vmem:[%s210 + $0x224] sm:$0xf]
      %v449 = vld [vmem:[%s210 + $0x228] sm:$0xff]
      %v450 = vld [vmem:[%s210 + $0x230] sm:$0xf]
      %v451 = vld [vmem:[%s210 + $0x234] sm:$0xff]
      %v452 = vld [vmem:[%s210 + $0x23c] sm:$0xf]
      %v453 = vld [vmem:[%s210 + $0x240] sm:$0xff]
      %v454 = vld [vmem:[%s210 + $0x248] sm:$0xf]
      %v455 = vld [vmem:[%s210 + $0x24c] sm:$0xff]
      %v456 = vld [vmem:[%s210 + $0x254] sm:$0xf]
      %v457 = vld [vmem:[%s210 + $0x258] sm:$0xff]
      %v458 = vld [vmem:[%s210 + $0x260] sm:$0xf]
      %v459 = vld [vmem:[%s210 + $0x264] sm:$0xff]
      %v460 = vld [vmem:[%s210 + $0x26c] sm:$0xf]
      %v461 = vld [vmem:[%s210 + $0x270] sm:$0xff]
      %v462 = vld [vmem:[%s210 + $0x278] sm:$0xf]
      %v463 = vld [vmem:[%s210 + $0x27c] sm:$0xff]
      %v464 = vld [vmem:[%s210 + $0x284] sm:$0xf]
      %v465 = vld [vmem:[%s210 + $0x288] sm:$0xff]
      %v466 = vld [vmem:[%s210 + $0x290] sm:$0xf]
      %v467 = vld [vmem:[%s210 + $0x294] sm:$0xff]
      %v468 = vld [vmem:[%s210 + $0x29c] sm:$0xf]
      %v469 = vld [vmem:[%s210 + $0x2a0] sm:$0xff]
      %v470 = vld [vmem:[%s210 + $0x2a8] sm:$0xf]
      %v471 = vld [vmem:[%s210 + $0x2ac] sm:$0xff]
      %v472 = vld [vmem:[%s210 + $0x2b4] sm:$0xf]
      %v473 = vld [vmem:[%s210 + $0x2b8] sm:$0xff]
      %v474 = vld [vmem:[%s210 + $0x2c0] sm:$0xf]
      %v475 = vld [vmem:[%s210 + $0x2c4] sm:$0xff]
      %v476 = vld [vmem:[%s210 + $0x2cc] sm:$0xf]
      %v477 = vld [vmem:[%s210 + $0x2d0] sm:$0xff]
      %v478 = vld [vmem:[%s210 + $0x2d8] sm:$0xf]
      %v479 = vld [vmem:[%s210 + $0x2dc] sm:$0xff]
      %v480 = vld [vmem:[%s210 + $0x2e4] sm:$0xf]
      %v481 = vld [vmem:[%s210 + $0x2e8] sm:$0xff]
      %v482 = vld [vmem:[%s210 + $0x2f0] sm:$0xf]
      %v483 = vld [vmem:[%s210 + $0x2f4] sm:$0xff]
      %v484 = vld [vmem:[%s210 + $0x2fc] sm:$0xf]
      %v485 = vld [vmem:[%s216] sm:$0xf]
      %v486 = vld [vmem:[%s216 + $0x4] sm:$0xf]
      %v487 = vld [vmem:[%s216 + $0x8] sm:$0xf]
      %v488 = vld [vmem:[%s216 + $0xc] sm:$0xf]
      %v489 = vld [vmem:[%s216 + $0x10] sm:$0xf]
      %v490 = vld [vmem:[%s216 + $0x14] sm:$0xf]
      %v491 = vld [vmem:[%s216 + $0x18] sm:$0xf]
      %v492 = vld [vmem:[%s216 + $0x1c] sm:$0xf]
      %v493 = vld [vmem:[%s216 + $0x20] sm:$0xf]
      %v494 = vld [vmem:[%s216 + $0x24] sm:$0xf]
      %v495 = vld [vmem:[%s216 + $0x28] sm:$0xf]
      %v496 = vld [vmem:[%s216 + $0x2c] sm:$0xf]
      %v497 = vld [vmem:[%s216 + $0x30] sm:$0xf]
      %v498 = vld [vmem:[%s216 + $0x34] sm:$0xf]
      %v499 = vld [vmem:[%s216 + $0x38] sm:$0xf]
      %v500 = vld [vmem:[%s216 + $0x3c] sm:$0xf]
      %v501 = vld [vmem:[%s216 + $0x40] sm:$0xf]
      %v502 = vld [vmem:[%s216 + $0x44] sm:$0xf]
      %v503 = vld [vmem:[%s216 + $0x48] sm:$0xf]
      %v504 = vld [vmem:[%s216 + $0x4c] sm:$0xf]
      %v505 = vld [vmem:[%s216 + $0x50] sm:$0xf]
      %v506 = vld [vmem:[%s216 + $0x54] sm:$0xf]
      %v507 = vld [vmem:[%s216 + $0x58] sm:$0xf]
      %v508 = vld [vmem:[%s216 + $0x5c] sm:$0xf]
      %v509 = vld [vmem:[%s216 + $0x60] sm:$0xf]
      %v510 = vld [vmem:[%s216 + $0x64] sm:$0xf]
      %v511 = vld [vmem:[%s216 + $0x68] sm:$0xf]
      %v512 = vld [vmem:[%s216 + $0x6c] sm:$0xf]
      %v513 = vld [vmem:[%s216 + $0x70] sm:$0xf]
      %v514 = vld [vmem:[%s216 + $0x74] sm:$0xf]
      %v515 = vld [vmem:[%s216 + $0x78] sm:$0xf]
      %v516 = vld [vmem:[%s216 + $0x7c] sm:$0xf]
      %v517 = vld [vmem:[%s216 + $0x80] sm:$0xf]
      %v518 = vld [vmem:[%s216 + $0x84] sm:$0xf]
      %v519 = vld [vmem:[%s216 + $0x88] sm:$0xf]
      %v520 = vld [vmem:[%s216 + $0x8c] sm:$0xf]
      %v521 = vld [vmem:[%s216 + $0x90] sm:$0xf]
      %v522 = vld [vmem:[%s216 + $0x94] sm:$0xf]
      %v523 = vld [vmem:[%s216 + $0x98] sm:$0xf]
      %v524 = vld [vmem:[%s216 + $0x9c] sm:$0xf]
      %v653 = vunpack.c.l.b16 %v357
      %v654 = vunpack.c.h.b16 %v357
      %v655 = vunpack.c.l.b16 %v358
      %v656 = vunpack.c.l.b16 %v359
      %v657 = vunpack.c.h.b16 %v359
      %v658 = vunpack.c.l.b16 %v360
      %v659 = vunpack.c.l.b16 %v361
      %v660 = vunpack.c.h.b16 %v361
      %v661 = vunpack.c.l.b16 %v362
      %v662 = vunpack.c.l.b16 %v363
      %v663 = vunpack.c.h.b16 %v363
      %v664 = vunpack.c.l.b16 %v364
      %v665 = vunpack.c.l.b16 %v365
      %v666 = vunpack.c.h.b16 %v365
      %v667 = vunpack.c.l.b16 %v366
      %v668 = vunpack.c.l.b16 %v367
      %v669 = vunpack.c.h.b16 %v367
      %v670 = vunpack.c.l.b16 %v368
      %v671 = vunpack.c.l.b16 %v369
      %v672 = vunpack.c.h.b16 %v369
      %v673 = vunpack.c.l.b16 %v370
      %v674 = vunpack.c.l.b16 %v371
      %v675 = vunpack.c.h.b16 %v371
      %v676 = vunpack.c.l.b16 %v372
      %v677 = vunpack.c.l.b16 %v373
      %v678 = vunpack.c.h.b16 %v373
      %v679 = vunpack.c.l.b16 %v374
      %v680 = vunpack.c.l.b16 %v375
      %v681 = vunpack.c.h.b16 %v375
      %v682 = vunpack.c.l.b16 %v376
      %v683 = vunpack.c.l.b16 %v377
      %v684 = vunpack.c.h.b16 %v377
      %v685 = vunpack.c.l.b16 %v378
      %v686 = vunpack.c.l.b16 %v379
      %v687 = vunpack.c.h.b16 %v379
      %v688 = vunpack.c.l.b16 %v380
      %v689 = vunpack.c.l.b16 %v381
      %v690 = vunpack.c.h.b16 %v381
      %v691 = vunpack.c.l.b16 %v382
      %v692 = vunpack.c.l.b16 %v383
      %v693 = vunpack.c.h.b16 %v383
      %v694 = vunpack.c.l.b16 %v384
      %v695 = vunpack.c.l.b16 %v385
      %v696 = vunpack.c.h.b16 %v385
      %v697 = vunpack.c.l.b16 %v386
      %v698 = vunpack.c.l.b16 %v387
      %v699 = vunpack.c.h.b16 %v387
      %v700 = vunpack.c.l.b16 %v388
      %v701 = vunpack.c.l.b16 %v389
      %v702 = vunpack.c.h.b16 %v389
      %v703 = vunpack.c.l.b16 %v390
      %v704 = vunpack.c.l.b16 %v391
      %v705 = vunpack.c.h.b16 %v391
      %v706 = vunpack.c.l.b16 %v392
      %v707 = vunpack.c.l.b16 %v393
      %v708 = vunpack.c.h.b16 %v393
      %v709 = vunpack.c.l.b16 %v394
      %v710 = vunpack.c.l.b16 %v395
      %v711 = vunpack.c.h.b16 %v395
      %v712 = vunpack.c.l.b16 %v396
      %v713 = vunpack.c.l.b16 %v397
      %v714 = vunpack.c.h.b16 %v397
      %v715 = vunpack.c.l.b16 %v398
      %v716 = vunpack.c.l.b16 %v399
      %v717 = vunpack.c.h.b16 %v399
      %v718 = vunpack.c.l.b16 %v400
      %v719 = vunpack.c.l.b16 %v401
      %v720 = vunpack.c.h.b16 %v401
      %v721 = vunpack.c.l.b16 %v402
      %v722 = vunpack.c.l.b16 %v403
      %v723 = vunpack.c.h.b16 %v403
      %v724 = vunpack.c.l.b16 %v404
      %v725 = vunpack.c.l.b16 %v405
      %v726 = vunpack.c.h.b16 %v405
      %v727 = vunpack.c.l.b16 %v406
      %v728 = vunpack.c.l.b16 %v407
      %v729 = vunpack.c.h.b16 %v407
      %v730 = vunpack.c.l.b16 %v408
      %v731 = vunpack.c.l.b16 %v409
      %v732 = vunpack.c.h.b16 %v409
      %v733 = vunpack.c.l.b16 %v410
      %v734 = vunpack.c.l.b16 %v411
      %v735 = vunpack.c.h.b16 %v411
      %v736 = vunpack.c.l.b16 %v412
      %v737 = vunpack.c.l.b16 %v413
      %v738 = vunpack.c.h.b16 %v413
      %v739 = vunpack.c.l.b16 %v414
      %v740 = vunpack.c.l.b16 %v415
      %v741 = vunpack.c.h.b16 %v415
      %v742 = vunpack.c.l.b16 %v416
      %v743 = vunpack.c.l.b16 %v417
      %v744 = vunpack.c.h.b16 %v417
      %v745 = vunpack.c.l.b16 %v418
      %v746 = vunpack.c.l.b16 %v419
      %v747 = vunpack.c.h.b16 %v419
      %v748 = vunpack.c.l.b16 %v420
      %v749 = vunpack.c.l.b16 %v421
      %v750 = vunpack.c.h.b16 %v421
      %v751 = vunpack.c.l.b16 %v422
      %v752 = vunpack.c.l.b16 %v423
      %v753 = vunpack.c.h.b16 %v423
      %v754 = vunpack.c.l.b16 %v424
      %v755 = vunpack.c.l.b16 %v425
      %v756 = vunpack.c.h.b16 %v425
      %v757 = vunpack.c.l.b16 %v426
      %v758 = vunpack.c.l.b16 %v427
      %v759 = vunpack.c.h.b16 %v427
      %v760 = vunpack.c.l.b16 %v428
      %v761 = vunpack.c.l.b16 %v429
      %v762 = vunpack.c.h.b16 %v429
      %v763 = vunpack.c.l.b16 %v430
      %v764 = vunpack.c.l.b16 %v431
      %v765 = vunpack.c.h.b16 %v431
      %v766 = vunpack.c.l.b16 %v432
      %v767 = vunpack.c.l.b16 %v433
      %v768 = vunpack.c.h.b16 %v433
      %v769 = vunpack.c.l.b16 %v434
      %v770 = vunpack.c.l.b16 %v435
      %v771 = vunpack.c.h.b16 %v435
      %v772 = vunpack.c.l.b16 %v436
      %v773 = vunpack.c.l.b16 %v437
      %v774 = vunpack.c.h.b16 %v437
      %v775 = vunpack.c.l.b16 %v438
      %v776 = vunpack.c.l.b16 %v439
      %v777 = vunpack.c.h.b16 %v439
      %v778 = vunpack.c.l.b16 %v440
      %v779 = vunpack.c.l.b16 %v441
      %v780 = vunpack.c.h.b16 %v441
      %v781 = vunpack.c.l.b16 %v442
      %v782 = vunpack.c.l.b16 %v443
      %v783 = vunpack.c.h.b16 %v443
      %v784 = vunpack.c.l.b16 %v444
      %v785 = vunpack.c.l.b16 %v445
      %v786 = vunpack.c.h.b16 %v445
      %v787 = vunpack.c.l.b16 %v446
      %v788 = vunpack.c.l.b16 %v447
      %v789 = vunpack.c.h.b16 %v447
      %v790 = vunpack.c.l.b16 %v448
      %v791 = vunpack.c.l.b16 %v449
      %v792 = vunpack.c.h.b16 %v449
      %v793 = vunpack.c.l.b16 %v450
      %v794 = vunpack.c.l.b16 %v451
      %v795 = vunpack.c.h.b16 %v451
      %v796 = vunpack.c.l.b16 %v452
      %v797 = vunpack.c.l.b16 %v453
      %v798 = vunpack.c.h.b16 %v453
      %v799 = vunpack.c.l.b16 %v454
      %v800 = vunpack.c.l.b16 %v455
      %v801 = vunpack.c.h.b16 %v455
      %v802 = vunpack.c.l.b16 %v456
      %v803 = vunpack.c.l.b16 %v457
      %v804 = vunpack.c.h.b16 %v457
      %v805 = vunpack.c.l.b16 %v458
      %v806 = vunpack.c.l.b16 %v459
      %v807 = vunpack.c.h.b16 %v459
      %v808 = vunpack.c.l.b16 %v460
      %v809 = vunpack.c.l.b16 %v461
      %v810 = vunpack.c.h.b16 %v461
      %v811 = vunpack.c.l.b16 %v462
      %v812 = vunpack.c.l.b16 %v463
      %v813 = vunpack.c.h.b16 %v463
      %v814 = vunpack.c.l.b16 %v464
      %v815 = vunpack.c.l.b16 %v465
      %v816 = vunpack.c.h.b16 %v465
      %v817 = vunpack.c.l.b16 %v466
      %v818 = vunpack.c.l.b16 %v467
      %v819 = vunpack.c.h.b16 %v467
      %v820 = vunpack.c.l.b16 %v468
      %v821 = vunpack.c.l.b16 %v469
      %v822 = vunpack.c.h.b16 %v469
      %v823 = vunpack.c.l.b16 %v470
      %v824 = vunpack.c.l.b16 %v471
      %v825 = vunpack.c.h.b16 %v471
      %v826 = vunpack.c.l.b16 %v472
      %v827 = vunpack.c.l.b16 %v473
      %v828 = vunpack.c.h.b16 %v473
      %v829 = vunpack.c.l.b16 %v474
      %v830 = vunpack.c.l.b16 %v475
      %v831 = vunpack.c.h.b16 %v475
      %v832 = vunpack.c.l.b16 %v476
      %v833 = vunpack.c.l.b16 %v477
      %v834 = vunpack.c.h.b16 %v477
      %v835 = vunpack.c.l.b16 %v478
      %v836 = vunpack.c.l.b16 %v479
      %v837 = vunpack.c.h.b16 %v479
      %v838 = vunpack.c.l.b16 %v480
      %v839 = vunpack.c.l.b16 %v481
      %v840 = vunpack.c.h.b16 %v481
      %v841 = vunpack.c.l.b16 %v482
      %v842 = vunpack.c.l.b16 %v483
      %v843 = vunpack.c.h.b16 %v483
      %v844 = vunpack.c.l.b16 %v484
      %v845 = vpack.c.b16 %v656, %v653
      %v846 = vpack.c.b16 %v657, %v654
      %v847 = vpack.c.b16 %v658, %v655
      %v848 = vpack.c.b16 %v662, %v659
      %v849 = vpack.c.b16 %v663, %v660
      %v850 = vpack.c.b16 %v664, %v661
      %v851 = vpack.c.b16 %v668, %v665
      %v852 = vpack.c.b16 %v669, %v666
      %v853 = vpack.c.b16 %v670, %v667
      %v854 = vpack.c.b16 %v674, %v671
      %v855 = vpack.c.b16 %v675, %v672
      %v856 = vpack.c.b16 %v676, %v673
      %v857 = vpack.c.b16 %v680, %v677
      %v858 = vpack.c.b16 %v681, %v678
      %v859 = vpack.c.b16 %v682, %v679
      %v860 = vpack.c.b16 %v686, %v683
      %v861 = vpack.c.b16 %v687, %v684
      %v862 = vpack.c.b16 %v688, %v685
      %v863 = vpack.c.b16 %v692, %v689
      %v864 = vpack.c.b16 %v693, %v690
      %v865 = vpack.c.b16 %v694, %v691
      %v866 = vpack.c.b16 %v698, %v695
      %v867 = vpack.c.b16 %v699, %v696
      %v868 = vpack.c.b16 %v700, %v697
      %v869 = vpack.c.b16 %v704, %v701
      %v870 = vpack.c.b16 %v705, %v702
      %v871 = vpack.c.b16 %v706, %v703
      %v872 = vpack.c.b16 %v710, %v707
      %v873 = vpack.c.b16 %v711, %v708
      %v874 = vpack.c.b16 %v712, %v709
      %v875 = vpack.c.b16 %v716, %v713
      %v876 = vpack.c.b16 %v717, %v714
      %v877 = vpack.c.b16 %v718, %v715
      %v878 = vpack.c.b16 %v722, %v719
      %v879 = vpack.c.b16 %v723, %v720
      %v880 = vpack.c.b16 %v724, %v721
      %v881 = vpack.c.b16 %v728, %v725
      %v882 = vpack.c.b16 %v729, %v726
      %v883 = vpack.c.b16 %v730, %v727
      %v884 = vpack.c.b16 %v734, %v731
      %v885 = vpack.c.b16 %v735, %v732
      %v886 = vpack.c.b16 %v736, %v733
      %v887 = vpack.c.b16 %v740, %v737
      %v888 = vpack.c.b16 %v741, %v738
      %v889 = vpack.c.b16 %v742, %v739
      %v890 = vpack.c.b16 %v746, %v743
      %v891 = vpack.c.b16 %v747, %v744
      %v892 = vpack.c.b16 %v748, %v745
      %v893 = vpack.c.b16 %v752, %v749
      %v894 = vpack.c.b16 %v753, %v750
      %v895 = vpack.c.b16 %v754, %v751
      %v896 = vpack.c.b16 %v758, %v755
      %v897 = vpack.c.b16 %v759, %v756
      %v898 = vpack.c.b16 %v760, %v757
      %v899 = vpack.c.b16 %v764, %v761
      %v900 = vpack.c.b16 %v765, %v762
      %v901 = vpack.c.b16 %v766, %v763
      %v902 = vpack.c.b16 %v770, %v767
      %v903 = vpack.c.b16 %v771, %v768
      %v904 = vpack.c.b16 %v772, %v769
      %v905 = vpack.c.b16 %v776, %v773
      %v906 = vpack.c.b16 %v777, %v774
      %v907 = vpack.c.b16 %v778, %v775
      %v908 = vpack.c.b16 %v782, %v779
      %v909 = vpack.c.b16 %v783, %v780
      %v910 = vpack.c.b16 %v784, %v781
      %v911 = vpack.c.b16 %v788, %v785
      %v912 = vpack.c.b16 %v789, %v786
      %v913 = vpack.c.b16 %v790, %v787
      %v914 = vpack.c.b16 %v794, %v791
      %v915 = vpack.c.b16 %v795, %v792
      %v916 = vpack.c.b16 %v796, %v793
      %v917 = vpack.c.b16 %v800, %v797
      %v918 = vpack.c.b16 %v801, %v798
      %v919 = vpack.c.b16 %v802, %v799
      %v920 = vpack.c.b16 %v806, %v803
      %v921 = vpack.c.b16 %v807, %v804
      %v922 = vpack.c.b16 %v808, %v805
      %v923 = vpack.c.b16 %v812, %v809
      %v924 = vpack.c.b16 %v813, %v810
      %v925 = vpack.c.b16 %v814, %v811
      %v926 = vpack.c.b16 %v818, %v815
      %v927 = vpack.c.b16 %v819, %v816
      %v928 = vpack.c.b16 %v820, %v817
      %v929 = vpack.c.b16 %v824, %v821
      %v930 = vpack.c.b16 %v825, %v822
      %v931 = vpack.c.b16 %v826, %v823
      %v932 = vpack.c.b16 %v830, %v827
      %v933 = vpack.c.b16 %v831, %v828
      %v934 = vpack.c.b16 %v832, %v829
      %v935 = vpack.c.b16 %v836, %v833
      %v936 = vpack.c.b16 %v837, %v834
      %v937 = vpack.c.b16 %v838, %v835
      %v938 = vpack.c.b16 %v842, %v839
      %v939 = vpack.c.b16 %v843, %v840
      %v940 = vpack.c.b16 %v844, %v841
      %v1045 = vunpack.c.l.b16 %v485
      %v1046 = vunpack.c.l.b16 %v486
      %v1047 = vunpack.c.l.b16 %v487
      %v1048 = vunpack.c.l.b16 %v488
      %v1049 = vunpack.c.l.b16 %v489
      %v1050 = vunpack.c.l.b16 %v490
      %v1051 = vunpack.c.l.b16 %v491
      %v1052 = vunpack.c.l.b16 %v492
      %v1053 = vunpack.c.l.b16 %v493
      %v1054 = vunpack.c.l.b16 %v494
      %v1055 = vunpack.c.l.b16 %v495
      %v1056 = vunpack.c.l.b16 %v496
      %v1057 = vunpack.c.l.b16 %v497
      %v1058 = vunpack.c.l.b16 %v498
      %v1059 = vunpack.c.l.b16 %v499
      %v1060 = vunpack.c.l.b16 %v500
      %v1061 = vunpack.c.l.b16 %v501
      %v1062 = vunpack.c.l.b16 %v502
      %v1063 = vunpack.c.l.b16 %v503
      %v1064 = vunpack.c.l.b16 %v504
      %v1065 = vunpack.c.l.b16 %v505
      %v1066 = vunpack.c.l.b16 %v506
      %v1067 = vunpack.c.l.b16 %v507
      %v1068 = vunpack.c.l.b16 %v508
      %v1069 = vunpack.c.l.b16 %v509
      %v1070 = vunpack.c.l.b16 %v510
      %v1071 = vunpack.c.l.b16 %v511
      %v1072 = vunpack.c.l.b16 %v512
      %v1073 = vunpack.c.l.b16 %v513
      %v1074 = vunpack.c.l.b16 %v514
      %v1075 = vunpack.c.l.b16 %v515
      %v1076 = vunpack.c.l.b16 %v516
      %v1077 = vunpack.c.l.b16 %v517
      %v1078 = vunpack.c.l.b16 %v518
      %v1079 = vunpack.c.l.b16 %v519
      %v1080 = vunpack.c.l.b16 %v520
      %v1081 = vunpack.c.l.b16 %v521
      %v1082 = vunpack.c.l.b16 %v522
      %v1083 = vunpack.c.l.b16 %v523
      %v1084 = vunpack.c.l.b16 %v524
      %v1085 = vpack.c.b16 %v1046, %v1045
      %v1086 = vpack.c.b16 %v1048, %v1047
      %v1087 = vpack.c.b16 %v1050, %v1049
      %v1088 = vpack.c.b16 %v1052, %v1051
      %v1089 = vpack.c.b16 %v1054, %v1053
      %v1090 = vpack.c.b16 %v1056, %v1055
      %v1091 = vpack.c.b16 %v1058, %v1057
      %v1092 = vpack.c.b16 %v1060, %v1059
      %v1093 = vpack.c.b16 %v1062, %v1061
      %v1094 = vpack.c.b16 %v1064, %v1063
      %v1095 = vpack.c.b16 %v1066, %v1065
      %v1096 = vpack.c.b16 %v1068, %v1067
      %v1097 = vpack.c.b16 %v1070, %v1069
      %v1098 = vpack.c.b16 %v1072, %v1071
      %v1099 = vpack.c.b16 %v1074, %v1073
      %v1100 = vpack.c.b16 %v1076, %v1075
      %v1101 = vpack.c.b16 %v1078, %v1077
      %v1102 = vpack.c.b16 %v1080, %v1079
      %v1103 = vpack.c.b16 %v1082, %v1081
      %v1104 = vpack.c.b16 %v1084, %v1083
      %vm1125 = vcmask 523264
      %v1127 = vsel %vm1125, %v847, 0
      %v1130 = vsel %vm1125, %v850, 0
      %v1133 = vsel %vm1125, %v853, 0
      %v1136 = vsel %vm1125, %v856, 0
      %v1139 = vsel %vm1125, %v859, 0
      %v1142 = vsel %vm1125, %v862, 0
      %v1145 = vsel %vm1125, %v865, 0
      %v1148 = vsel %vm1125, %v868, 0
      %v1151 = vsel %vm1125, %v871, 0
      %v1154 = vsel %vm1125, %v874, 0
      %v1157 = vsel %vm1125, %v877, 0
      %v1160 = vsel %vm1125, %v880, 0
      %v1163 = vsel %vm1125, %v883, 0
      %v1166 = vsel %vm1125, %v886, 0
      %v1169 = vsel %vm1125, %v889, 0
      %v1172 = vsel %vm1125, %v892, 0
      %v1175 = vsel %vm1125, %v895, 0
      %v1178 = vsel %vm1125, %v898, 0
      %v1181 = vsel %vm1125, %v901, 0
      %v1184 = vsel %vm1125, %v904, 0
      %v1187 = vsel %vm1125, %v907, 0
      %v1190 = vsel %vm1125, %v910, 0
      %v1193 = vsel %vm1125, %v913, 0
      %v1196 = vsel %vm1125, %v916, 0
      %v1199 = vsel %vm1125, %v919, 0
      %v1202 = vsel %vm1125, %v922, 0
      %v1205 = vsel %vm1125, %v925, 0
      %v1208 = vsel %vm1125, %v928, 0
      %v1211 = vsel %vm1125, %v931, 0
      %v1214 = vsel %vm1125, %v934, 0
      %v1217 = vsel %vm1125, %v937, 0
      %v1220 = vsel %vm1125, %v940, 0
      %1222 = vmatprep.subr.bf16.mxu0 0
      %1223 = vmatpush1.bf16.msra.mxu0 %v1085
      %1224 = vmatprep.subr.bf16.mxu0 0
      %1225 = vmatpush1.bf16.msra.mxu0 %v1086
      %1226 = vmatprep.subr.bf16.mxu0 0
      %1227 = vmatpush1.bf16.msra.mxu0 %v1087
      %1228 = vmatprep.subr.bf16.mxu0 0
      %1229 = vmatpush1.bf16.msra.mxu0 %v1088
      %1230 = vmatprep.subr.bf16.mxu0 0
      %1231 = vmatpush1.bf16.msra.mxu0 %v1089
      %1232 = vmatprep.subr.bf16.mxu0 0
      %1233 = vmatpush1.bf16.msra.mxu0 %v1090
      %1234 = vmatprep.subr.bf16.mxu0 0
      %1235 = vmatpush1.bf16.msra.mxu0 %v1091
      %1236 = vmatprep.subr.bf16.mxu0 0
      %1237 = vmatpush1.bf16.msra.mxu0 %v1092
      %1238 = vmatprep.subr.bf16.mxu0 0
      %1239 = vmatpush1.bf16.msra.mxu0 %v1093
      %1240 = vmatprep.subr.bf16.mxu0 0
      %1241 = vmatpush1.bf16.msra.mxu0 %v1094
      %1242 = vmatprep.subr.bf16.mxu0 0
      %1243 = vmatpush1.bf16.msra.mxu0 %v1095
      %1244 = vmatprep.subr.bf16.mxu0 0
      %1245 = vmatpush1.bf16.msra.mxu0 %v1096
      %1246 = vmatprep.subr.bf16.mxu0 0
      %1247 = vmatpush1.bf16.msra.mxu0 %v1097
      %1248 = vmatprep.subr.bf16.mxu0 0
      %1249 = vmatpush1.bf16.msra.mxu0 %v1098
      %1250 = vmatprep.subr.bf16.mxu0 0
      %1251 = vmatpush1.bf16.msra.mxu0 %v1099
      %1252 = vmatprep.subr.bf16.mxu0 0
      %1253 = vmatpush1.bf16.msra.mxu0 %v1100
      %1254 = vmatprep.mubr.bf16.mxu0 %v846
      %1255 = vmatmul.mubr.bf16.gmra.mrb[0].mxu0 %v845
      %v1256 = vpop.f32.mrb[0].mxu0
      %v1257 = vadd.f32 0.0, %v1256
      %v1258 = vpop.f32.mrb[0].mxu0
      %v1259 = vpop.f32.mrb[0].mxu0
      %v1260 = vadd.f32 0.0, %v1259
      %v1261 = vpop.f32.mrb[0].mxu0
      %1262 = vmatprep.mubr.bf16.mxu0 %v849
      %1263 = vmatmul.mubr.bf16.gmra.mrb[0].mxu0 %v848
      %v1264 = vpop.f32.mrb[0].mxu0
      %v1265 = vadd.f32 0.0, %v1264
      %v1266 = vpop.f32.mrb[0].mxu0
      %v1267 = vpop.f32.mrb[0].mxu0
      %v1268 = vadd.f32 0.0, %v1267
      %v1269 = vpop.f32.mrb[0].mxu0
      %1270 = vmatprep.mubr.bf16.mxu0 %v852
      %1271 = vmatmul.mubr.bf16.gmra.mrb[0].mxu0 %v851
      %v1272 = vpop.f32.mrb[0].mxu0
      %v1273 = vadd.f32 0.0, %v1272
      %v1274 = vpop.f32.mrb[0].mxu0
      %v1275 = vpop.f32.mrb[0].mxu0
      %v1276 = vadd.f32 0.0, %v1275
      %v1277 = vpop.f32.mrb[0].mxu0
      %1278 = vmatprep.mubr.bf16.mxu0 %v855
      %1279 = vmatmul.mubr.bf16.gmra.mrb[0].mxu0 %v854
      %v1280 = vpop.f32.mrb[0].mxu0
      %v1281 = vadd.f32 0.0, %v1280
      %v1282 = vpop.f32.mrb[0].mxu0
      %v1283 = vpop.f32.mrb[0].mxu0
      %v1284 = vadd.f32 0.0, %v1283
      %v1285 = vpop.f32.mrb[0].mxu0
      %1286 = vmatprep.mubr.bf16.mxu0 %v858
      %1287 = vmatmul.mubr.bf16.gmra.mrb[0].mxu0 %v857
      %v1288 = vpop.f32.mrb[0].mxu0
      %v1289 = vadd.f32 0.0, %v1288
      %v1290 = vpop.f32.mrb[0].mxu0
      %v1291 = vpop.f32.mrb[0].mxu0
      %v1292 = vadd.f32 0.0, %v1291
      %v1293 = vpop.f32.mrb[0].mxu0
      %1294 = vmatprep.mubr.bf16.mxu0 %v861
      %1295 = vmatmul.mubr.bf16.gmra.mrb[0].mxu0 %v860
      %v1296 = vpop.f32.mrb[0].mxu0
      %v1297 = vadd.f32 0.0, %v1296
      %v1298 = vpop.f32.mrb[0].mxu0
      %v1299 = vpop.f32.mrb[0].mxu0
      %v1300 = vadd.f32 0.0, %v1299
      %v1301 = vpop.f32.mrb[0].mxu0
      %1302 = vmatprep.mubr.bf16.mxu0 %v864
      %1303 = vmatmul.mubr.bf16.gmra.mrb[0].mxu0 %v863
      %v1304 = vpop.f32.mrb[0].mxu0
      %v1305 = vadd.f32 0.0, %v1304
      %v1306 = vpop.f32.mrb[0].mxu0
      %v1307 = vpop.f32.mrb[0].mxu0
      %v1308 = vadd.f32 0.0, %v1307
      %v1309 = vpop.f32.mrb[0].mxu0
      %1310 = vmatprep.mubr.bf16.mxu0 %v867
      %1311 = vmatmul.mubr.bf16.gmra.mrb[0].mxu0 %v866
      %v1312 = vpop.f32.mrb[0].mxu0
      %v1313 = vadd.f32 0.0, %v1312
      %v1314 = vpop.f32.mrb[0].mxu0
      %v1315 = vpop.f32.mrb[0].mxu0
      %v1316 = vadd.f32 0.0, %v1315
      %v1317 = vpop.f32.mrb[0].mxu0
      %1318 = vmatprep.mubr.bf16.mxu0 %v870
      %1319 = vmatmul.mubr.bf16.gmra.mrb[0].mxu0 %v869
      %v1320 = vpop.f32.mrb[0].mxu0
      %v1321 = vadd.f32 0.0, %v1320
      %v1322 = vpop.f32.mrb[0].mxu0
      %v1323 = vpop.f32.mrb[0].mxu0
      %v1324 = vadd.f32 0.0, %v1323
      %v1325 = vpop.f32.mrb[0].mxu0
      %1326 = vmatprep.mubr.bf16.mxu0 %v873
      %1327 = vmatmul.mubr.bf16.gmra.mrb[0].mxu0 %v872
      %v1328 = vpop.f32.mrb[0].mxu0
      %v1329 = vadd.f32 0.0, %v1328
      %v1330 = vpop.f32.mrb[0].mxu0
      %v1331 = vpop.f32.mrb[0].mxu0
      %v1332 = vadd.f32 0.0, %v1331
      %v1333 = vpop.f32.mrb[0].mxu0
      %1334 = vmatprep.mubr.bf16.mxu0 %v876
      %1335 = vmatmul.mubr.bf16.gmra.mrb[0].mxu0 %v875
      %v1336 = vpop.f32.mrb[0].mxu0
      %v1337 = vadd.f32 0.0, %v1336
      %v1338 = vpop.f32.mrb[0].mxu0
      %v1339 = vpop.f32.mrb[0].mxu0
      %v1340 = vadd.f32 0.0, %v1339
      %v1341 = vpop.f32.mrb[0].mxu0
      %1342 = vmatprep.mubr.bf16.mxu0 %v879
      %1343 = vmatmul.mubr.bf16.gmra.mrb[0].mxu0 %v878
      %v1344 = vpop.f32.mrb[0].mxu0
      %v1345 = vadd.f32 0.0, %v1344
      %v1346 = vpop.f32.mrb[0].mxu0
      %v1347 = vpop.f32.mrb[0].mxu0
      %v1348 = vadd.f32 0.0, %v1347
      %v1349 = vpop.f32.mrb[0].mxu0
      %1350 = vmatprep.mubr.bf16.mxu0 %v882
      %1351 = vmatmul.mubr.bf16.gmra.mrb[0].mxu0 %v881
      %v1352 = vpop.f32.mrb[0].mxu0
      %v1353 = vadd.f32 0.0, %v1352
      %v1354 = vpop.f32.mrb[0].mxu0
      %v1355 = vpop.f32.mrb[0].mxu0
      %v1356 = vadd.f32 0.0, %v1355
      %v1357 = vpop.f32.mrb[0].mxu0
      %1358 = vmatprep.mubr.bf16.mxu0 %v885
      %1359 = vmatmul.mubr.bf16.gmra.mrb[0].mxu0 %v884
      %v1360 = vpop.f32.mrb[0].mxu0
      %v1361 = vadd.f32 0.0, %v1360
      %v1362 = vpop.f32.mrb[0].mxu0
      %v1363 = vpop.f32.mrb[0].mxu0
      %v1364 = vadd.f32 0.0, %v1363
      %v1365 = vpop.f32.mrb[0].mxu0
      %1366 = vmatprep.mubr.bf16.mxu0 %v888
      %1367 = vmatmul.mubr.bf16.gmra.mrb[0].mxu0 %v887
      %v1368 = vpop.f32.mrb[0].mxu0
      %v1369 = vadd.f32 0.0, %v1368
      %v1370 = vpop.f32.mrb[0].mxu0
      %v1371 = vpop.f32.mrb[0].mxu0
      %v1372 = vadd.f32 0.0, %v1371
      %v1373 = vpop.f32.mrb[0].mxu0
      %1374 = vmatprep.mubr.bf16.mxu0 %v891
      %1375 = vmatmul.mubr.bf16.gmra.mrb[0].mxu0 %v890
      %v1376 = vpop.f32.mrb[0].mxu0
      %v1377 = vadd.f32 0.0, %v1376
      %v1378 = vpop.f32.mrb[0].mxu0
      %v1379 = vpop.f32.mrb[0].mxu0
      %v1380 = vadd.f32 0.0, %v1379
      %v1381 = vpop.f32.mrb[0].mxu0
      %1382 = vmatprep.mubr.bf16.mxu0 %v894
      %1383 = vmatmul.mubr.bf16.gmra.mrb[0].mxu0 %v893
      %v1384 = vpop.f32.mrb[0].mxu0
      %v1385 = vadd.f32 0.0, %v1384
      %v1386 = vpop.f32.mrb[0].mxu0
      %v1387 = vpop.f32.mrb[0].mxu0
      %v1388 = vadd.f32 0.0, %v1387
      %v1389 = vpop.f32.mrb[0].mxu0
      %1390 = vmatprep.mubr.bf16.mxu0 %v897
      %1391 = vmatmul.mubr.bf16.gmra.mrb[0].mxu0 %v896
      %v1392 = vpop.f32.mrb[0].mxu0
      %v1393 = vadd.f32 0.0, %v1392
      %v1394 = vpop.f32.mrb[0].mxu0
      %v1395 = vpop.f32.mrb[0].mxu0
      %v1396 = vadd.f32 0.0, %v1395
      %v1397 = vpop.f32.mrb[0].mxu0
      %1398 = vmatprep.mubr.bf16.mxu0 %v900
      %1399 = vmatmul.mubr.bf16.gmra.mrb[0].mxu0 %v899
      %v1400 = vpop.f32.mrb[0].mxu0
      %v1401 = vadd.f32 0.0, %v1400
      %v1402 = vpop.f32.mrb[0].mxu0
      %v1403 = vpop.f32.mrb[0].mxu0
      %v1404 = vadd.f32 0.0, %v1403
      %v1405 = vpop.f32.mrb[0].mxu0
      %1406 = vmatprep.mubr.bf16.mxu0 %v903
      %1407 = vmatmul.mubr.bf16.gmra.mrb[0].mxu0 %v902
      %v1408 = vpop.f32.mrb[0].mxu0
      %v1409 = vadd.f32 0.0, %v1408
      %v1410 = vpop.f32.mrb[0].mxu0
      %v1411 = vpop.f32.mrb[0].mxu0
      %v1412 = vadd.f32 0.0, %v1411
      %v1413 = vpop.f32.mrb[0].mxu0
      %1414 = vmatprep.mubr.bf16.mxu0 %v906
      %1415 = vmatmul.mubr.bf16.gmra.mrb[0].mxu0 %v905
      %v1416 = vpop.f32.mrb[0].mxu0
      %v1417 = vadd.f32 0.0, %v1416
      %v1418 = vpop.f32.mrb[0].mxu0
      %v1419 = vpop.f32.mrb[0].mxu0
      %v1420 = vadd.f32 0.0, %v1419
      %v1421 = vpop.f32.mrb[0].mxu0
      %1422 = vmatprep.mubr.bf16.mxu0 %v909
      %1423 = vmatmul.mubr.bf16.gmra.mrb[0].mxu0 %v908
      %v1424 = vpop.f32.mrb[0].mxu0
      %v1425 = vadd.f32 0.0, %v1424
      %v1426 = vpop.f32.mrb[0].mxu0
      %v1427 = vpop.f32.mrb[0].mxu0
      %v1428 = vadd.f32 0.0, %v1427
      %v1429 = vpop.f32.mrb[0].mxu0
      %1430 = vmatprep.mubr.bf16.mxu0 %v912
      %1431 = vmatmul.mubr.bf16.gmra.mrb[0].mxu0 %v911
      %v1432 = vpop.f32.mrb[0].mxu0
      %v1433 = vadd.f32 0.0, %v1432
      %v1434 = vpop.f32.mrb[0].mxu0
      %v1435 = vpop.f32.mrb[0].mxu0
      %v1436 = vadd.f32 0.0, %v1435
      %v1437 = vpop.f32.mrb[0].mxu0
      %1438 = vmatprep.mubr.bf16.mxu0 %v915
      %1439 = vmatmul.mubr.bf16.gmra.mrb[0].mxu0 %v914
      %v1440 = vpop.f32.mrb[0].mxu0
      %v1441 = vadd.f32 0.0, %v1440
      %v1442 = vpop.f32.mrb[0].mxu0
      %v1443 = vpop.f32.mrb[0].mxu0
      %v1444 = vadd.f32 0.0, %v1443
      %v1445 = vpop.f32.mrb[0].mxu0
      %1446 = vmatprep.mubr.bf16.mxu0 %v918
      %1447 = vmatmul.mubr.bf16.gmra.mrb[0].mxu0 %v917
      %v1448 = vpop.f32.mrb[0].mxu0
      %v1449 = vadd.f32 0.0, %v1448
      %v1450 = vpop.f32.mrb[0].mxu0
      %v1451 = vpop.f32.mrb[0].mxu0
      %v1452 = vadd.f32 0.0, %v1451
      %v1453 = vpop.f32.mrb[0].mxu0
      %1454 = vmatprep.mubr.bf16.mxu0 %v921
      %1455 = vmatmul.mubr.bf16.gmra.mrb[0].mxu0 %v920
      %v1456 = vpop.f32.mrb[0].mxu0
      %v1457 = vadd.f32 0.0, %v1456
      %v1458 = vpop.f32.mrb[0].mxu0
      %v1459 = vpop.f32.mrb[0].mxu0
      %v1460 = vadd.f32 0.0, %v1459
      %v1461 = vpop.f32.mrb[0].mxu0
      %1462 = vmatprep.mubr.bf16.mxu0 %v924
      %1463 = vmatmul.mubr.bf16.gmra.mrb[0].mxu0 %v923
      %v1464 = vpop.f32.mrb[0].mxu0
      %v1465 = vadd.f32 0.0, %v1464
      %v1466 = vpop.f32.mrb[0].mxu0
      %v1467 = vpop.f32.mrb[0].mxu0
      %v1468 = vadd.f32 0.0, %v1467
      %v1469 = vpop.f32.mrb[0].mxu0
      %1470 = vmatprep.mubr.bf16.mxu0 %v927
      %1471 = vmatmul.mubr.bf16.gmra.mrb[0].mxu0 %v926
      %v1472 = vpop.f32.mrb[0].mxu0
      %v1473 = vadd.f32 0.0, %v1472
      %v1474 = vpop.f32.mrb[0].mxu0
      %v1475 = vpop.f32.mrb[0].mxu0
      %v1476 = vadd.f32 0.0, %v1475
      %v1477 = vpop.f32.mrb[0].mxu0
      %1478 = vmatprep.mubr.bf16.mxu0 %v930
      %1479 = vmatmul.mubr.bf16.gmra.mrb[0].mxu0 %v929
      %v1480 = vpop.f32.mrb[0].mxu0
      %v1481 = vadd.f32 0.0, %v1480
      %v1482 = vpop.f32.mrb[0].mxu0
      %v1483 = vpop.f32.mrb[0].mxu0
      %v1484 = vadd.f32 0.0, %v1483
      %v1485 = vpop.f32.mrb[0].mxu0
      %1486 = vmatprep.mubr.bf16.mxu0 %v933
      %1487 = vmatmul.mubr.bf16.gmra.mrb[0].mxu0 %v932
      %v1488 = vpop.f32.mrb[0].mxu0
      %v1489 = vadd.f32 0.0, %v1488
      %v1490 = vpop.f32.mrb[0].mxu0
      %v1491 = vpop.f32.mrb[0].mxu0
      %v1492 = vadd.f32 0.0, %v1491
      %v1493 = vpop.f32.mrb[0].mxu0
      %1494 = vmatprep.mubr.bf16.mxu0 %v936
      %1495 = vmatmul.mubr.bf16.gmra.mrb[0].mxu0 %v935
      %v1496 = vpop.f32.mrb[0].mxu0
      %v1497 = vadd.f32 0.0, %v1496
      %v1498 = vpop.f32.mrb[0].mxu0
      %v1499 = vpop.f32.mrb[0].mxu0
      %v1500 = vadd.f32 0.0, %v1499
      %v1501 = vpop.f32.mrb[0].mxu0
      %1502 = vmatprep.mubr.bf16.mxu0 %v939
      %1503 = vmatmul.mubr.bf16.gmra.mrb[0].mxu0 %v938
      %v1504 = vpop.f32.mrb[0].mxu0
      %v1505 = vadd.f32 0.0, %v1504
      %v1506 = vpop.f32.mrb[0].mxu0
      %v1507 = vpop.f32.mrb[0].mxu0
      %v1508 = vadd.f32 0.0, %v1507
      %v1509 = vpop.f32.mrb[0].mxu0
      %1510 = vdwg.mxu0
      %1511 = vmatprep.subr.bf16.mxu0 0
      %1512 = vmatpush1.bf16.msra.mxu0 %v1101
      %1513 = vmatprep.subr.bf16.mxu0 0
      %1514 = vmatpush1.bf16.msra.mxu0 %v1102
      %1515 = vmatprep.subr.bf16.mxu0 0
      %1516 = vmatpush1.bf16.msra.mxu0 %v1103
      %1517 = vmatprep.subr.bf16.mxu0 0
      %1518 = vmatpush1.bf16.msra.mxu0 %v1104
      %1519 = vmatprep.subr.bf16.mxu0 0
      %1520 = vmatpush1.bf16.msra.mxu0 0
      %1521 = vmatprep.subr.bf16.mxu0 0
      %1522 = vmatpush1.bf16.msra.mxu0 0
      %1523 = vmatprep.subr.bf16.mxu0 0
      %1524 = vmatpush1.bf16.msra.mxu0 0
      %1525 = vmatprep.subr.bf16.mxu0 0
      %1526 = vmatpush1.bf16.msra.mxu0 0
      %1527 = vmatprep.subr.bf16.mxu0 0
      %1528 = vmatpush1.bf16.msra.mxu0 0
      %1529 = vmatprep.subr.bf16.mxu0 0
      %1530 = vmatpush1.bf16.msra.mxu0 0
      %1531 = vmatprep.subr.bf16.mxu0 0
      %1532 = vmatpush1.bf16.msra.mxu0 0
      %1533 = vmatprep.subr.bf16.mxu0 0
      %1534 = vmatpush1.bf16.msra.mxu0 0
      %1535 = vmatprep.subr.bf16.mxu0 0
      %1536 = vmatpush1.bf16.msra.mxu0 0
      %1537 = vmatprep.subr.bf16.mxu0 0
      %1538 = vmatpush1.bf16.msra.mxu0 0
      %1539 = vmatprep.subr.bf16.mxu0 0
      %1540 = vmatpush1.bf16.msra.mxu0 0
      %1541 = vmatprep.subr.bf16.mxu0 0
      %1542 = vmatpush1.bf16.msra.mxu0 0
      %1543 = vmatprep.mubr.bf16.mxu0 0
      %1544 = vmatmul.mubr.bf16.gmra.mrb[0].mxu0 %v1127
      %v1545 = vpop.f32.mrb[0].mxu0
      %v1546 = vadd.f32 %v1257, %v1545
      %v1547 = vpop.f32.mrb[0].mxu0
      %v1548 = vpop.f32.mrb[0].mxu0
      %v1549 = vadd.f32 %v1260, %v1548
      %v1550 = vpop.f32.mrb[0].mxu0
      %1551 = vmatprep.mubr.bf16.mxu0 0
      %1552 = vmatmul.mubr.bf16.gmra.mrb[0].mxu0 %v1130
      %v1553 = vpop.f32.mrb[0].mxu0
      %v1554 = vadd.f32 %v1265, %v1553
      %v1555 = vpop.f32.mrb[0].mxu0
      %v1556 = vpop.f32.mrb[0].mxu0
      %v1557 = vadd.f32 %v1268, %v1556
      %v1558 = vpop.f32.mrb[0].mxu0
      %1559 = vmatprep.mubr.bf16.mxu0 0
      %1560 = vmatmul.mubr.bf16.gmra.mrb[0].mxu0 %v1133
      %v1561 = vpop.f32.mrb[0].mxu0
      %v1562 = vadd.f32 %v1273, %v1561
      %v1563 = vpop.f32.mrb[0].mxu0
      %v1564 = vpop.f32.mrb[0].mxu0
      %v1565 = vadd.f32 %v1276, %v1564
      %v1566 = vpop.f32.mrb[0].mxu0
      %1567 = vmatprep.mubr.bf16.mxu0 0
      %1568 = vmatmul.mubr.bf16.gmra.mrb[0].mxu0 %v1136
      %v1569 = vpop.f32.mrb[0].mxu0
      %v1570 = vadd.f32 %v1281, %v1569
      %v1571 = vpop.f32.mrb[0].mxu0
      %v1572 = vpop.f32.mrb[0].mxu0
      %v1573 = vadd.f32 %v1284, %v1572
      %v1574 = vpop.f32.mrb[0].mxu0
      %1575 = vmatprep.mubr.bf16.mxu0 0
      %1576 = vmatmul.mubr.bf16.gmra.mrb[0].mxu0 %v1139
      %v1577 = vpop.f32.mrb[0].mxu0
      %v1578 = vadd.f32 %v1289, %v1577
      %v1579 = vpop.f32.mrb[0].mxu0
      %v1580 = vpop.f32.mrb[0].mxu0
      %v1581 = vadd.f32 %v1292, %v1580
      %v1582 = vpop.f32.mrb[0].mxu0
      %1583 = vmatprep.mubr.bf16.mxu0 0
      %1584 = vmatmul.mubr.bf16.gmra.mrb[0].mxu0 %v1142
      %v1585 = vpop.f32.mrb[0].mxu0
      %v1586 = vadd.f32 %v1297, %v1585
      %v1587 = vpop.f32.mrb[0].mxu0
      %v1588 = vpop.f32.mrb[0].mxu0
      %v1589 = vadd.f32 %v1300, %v1588
      %v1590 = vpop.f32.mrb[0].mxu0
      %1591 = vmatprep.mubr.bf16.mxu0 0
      %1592 = vmatmul.mubr.bf16.gmra.mrb[0].mxu0 %v1145
      %v1593 = vpop.f32.mrb[0].mxu0
      %v1594 = vadd.f32 %v1305, %v1593
      %v1595 = vpop.f32.mrb[0].mxu0
      %v1596 = vpop.f32.mrb[0].mxu0
      %v1597 = vadd.f32 %v1308, %v1596
      %v1598 = vpop.f32.mrb[0].mxu0
      %1599 = vmatprep.mubr.bf16.mxu0 0
      %1600 = vmatmul.mubr.bf16.gmra.mrb[0].mxu0 %v1148
      %v1601 = vpop.f32.mrb[0].mxu0
      %v1602 = vadd.f32 %v1313, %v1601
      %v1603 = vpop.f32.mrb[0].mxu0
      %v1604 = vpop.f32.mrb[0].mxu0
      %v1605 = vadd.f32 %v1316, %v1604
      %v1606 = vpop.f32.mrb[0].mxu0
      %1607 = vmatprep.mubr.bf16.mxu0 0
      %1608 = vmatmul.mubr.bf16.gmra.mrb[0].mxu0 %v1151
      %v1609 = vpop.f32.mrb[0].mxu0
      %v1610 = vadd.f32 %v1321, %v1609
      %v1611 = vpop.f32.mrb[0].mxu0
      %v1612 = vpop.f32.mrb[0].mxu0
      %v1613 = vadd.f32 %v1324, %v1612
      %v1614 = vpop.f32.mrb[0].mxu0
      %1615 = vmatprep.mubr.bf16.mxu0 0
      %1616 = vmatmul.mubr.bf16.gmra.mrb[0].mxu0 %v1154
      %v1617 = vpop.f32.mrb[0].mxu0
      %v1618 = vadd.f32 %v1329, %v1617
      %v1619 = vpop.f32.mrb[0].mxu0
      %v1620 = vpop.f32.mrb[0].mxu0
      %v1621 = vadd.f32 %v1332, %v1620
      %v1622 = vpop.f32.mrb[0].mxu0
      %1623 = vmatprep.mubr.bf16.mxu0 0
      %1624 = vmatmul.mubr.bf16.gmra.mrb[0].mxu0 %v1157
      %v1625 = vpop.f32.mrb[0].mxu0
      %v1626 = vadd.f32 %v1337, %v1625
      %v1627 = vpop.f32.mrb[0].mxu0
      %v1628 = vpop.f32.mrb[0].mxu0
      %v1629 = vadd.f32 %v1340, %v1628
      %v1630 = vpop.f32.mrb[0].mxu0
      %1631 = vmatprep.mubr.bf16.mxu0 0
      %1632 = vmatmul.mubr.bf16.gmra.mrb[0].mxu0 %v1160
      %v1633 = vpop.f32.mrb[0].mxu0
      %v1634 = vadd.f32 %v1345, %v1633
      %v1635 = vpop.f32.mrb[0].mxu0
      %v1636 = vpop.f32.mrb[0].mxu0
      %v1637 = vadd.f32 %v1348, %v1636
      %v1638 = vpop.f32.mrb[0].mxu0
      %1639 = vmatprep.mubr.bf16.mxu0 0
      %1640 = vmatmul.mubr.bf16.gmra.mrb[0].mxu0 %v1163
      %v1641 = vpop.f32.mrb[0].mxu0
      %v1642 = vadd.f32 %v1353, %v1641
      %v1643 = vpop.f32.mrb[0].mxu0
      %v1644 = vpop.f32.mrb[0].mxu0
      %v1645 = vadd.f32 %v1356, %v1644
      %v1646 = vpop.f32.mrb[0].mxu0
      %1647 = vmatprep.mubr.bf16.mxu0 0
      %1648 = vmatmul.mubr.bf16.gmra.mrb[0].mxu0 %v1166
      %v1649 = vpop.f32.mrb[0].mxu0
      %v1650 = vadd.f32 %v1361, %v1649
      %v1651 = vpop.f32.mrb[0].mxu0
      %v1652 = vpop.f32.mrb[0].mxu0
      %v1653 = vadd.f32 %v1364, %v1652
      %v1654 = vpop.f32.mrb[0].mxu0
      %1655 = vmatprep.mubr.bf16.mxu0 0
      %1656 = vmatmul.mubr.bf16.gmra.mrb[0].mxu0 %v1169
      %v1657 = vpop.f32.mrb[0].mxu0
      %v1658 = vadd.f32 %v1369, %v1657
      %v1659 = vpop.f32.mrb[0].mxu0
      %v1660 = vpop.f32.mrb[0].mxu0
      %v1661 = vadd.f32 %v1372, %v1660
      %v1662 = vpop.f32.mrb[0].mxu0
      %1663 = vmatprep.mubr.bf16.mxu0 0
      %1664 = vmatmul.mubr.bf16.gmra.mrb[0].mxu0 %v1172
      %v1665 = vpop.f32.mrb[0].mxu0
      %v1666 = vadd.f32 %v1377, %v1665
      %v1667 = vpop.f32.mrb[0].mxu0
      %v1668 = vpop.f32.mrb[0].mxu0
      %v1669 = vadd.f32 %v1380, %v1668
      %v1670 = vpop.f32.mrb[0].mxu0
      %1671 = vmatprep.mubr.bf16.mxu0 0
      %1672 = vmatmul.mubr.bf16.gmra.mrb[0].mxu0 %v1175
      %v1673 = vpop.f32.mrb[0].mxu0
      %v1674 = vadd.f32 %v1385, %v1673
      %v1675 = vpop.f32.mrb[0].mxu0
      %v1676 = vpop.f32.mrb[0].mxu0
      %v1677 = vadd.f32 %v1388, %v1676
      %v1678 = vpop.f32.mrb[0].mxu0
      %1679 = vmatprep.mubr.bf16.mxu0 0
      %1680 = vmatmul.mubr.bf16.gmra.mrb[0].mxu0 %v1178
      %v1681 = vpop.f32.mrb[0].mxu0
      %v1682 = vadd.f32 %v1393, %v1681
      %v1683 = vpop.f32.mrb[0].mxu0
      %v1684 = vpop.f32.mrb[0].mxu0
      %v1685 = vadd.f32 %v1396, %v1684
      %v1686 = vpop.f32.mrb[0].mxu0
      %1687 = vmatprep.mubr.bf16.mxu0 0
      %1688 = vmatmul.mubr.bf16.gmra.mrb[0].mxu0 %v1181
      %v1689 = vpop.f32.mrb[0].mxu0
      %v1690 = vadd.f32 %v1401, %v1689
      %v1691 = vpop.f32.mrb[0].mxu0
      %v1692 = vpop.f32.mrb[0].mxu0
      %v1693 = vadd.f32 %v1404, %v1692
      %v1694 = vpop.f32.mrb[0].mxu0
      %1695 = vmatprep.mubr.bf16.mxu0 0
      %1696 = vmatmul.mubr.bf16.gmra.mrb[0].mxu0 %v1184
      %v1697 = vpop.f32.mrb[0].mxu0
      %v1698 = vadd.f32 %v1409, %v1697
      %v1699 = vpop.f32.mrb[0].mxu0
      %v1700 = vpop.f32.mrb[0].mxu0
      %v1701 = vadd.f32 %v1412, %v1700
      %v1702 = vpop.f32.mrb[0].mxu0
      %1703 = vmatprep.mubr.bf16.mxu0 0
      %1704 = vmatmul.mubr.bf16.gmra.mrb[0].mxu0 %v1187
      %v1705 = vpop.f32.mrb[0].mxu0
      %v1706 = vadd.f32 %v1417, %v1705
      %v1707 = vpop.f32.mrb[0].mxu0
      %v1708 = vpop.f32.mrb[0].mxu0
      %v1709 = vadd.f32 %v1420, %v1708
      %v1710 = vpop.f32.mrb[0].mxu0
      %1711 = vmatprep.mubr.bf16.mxu0 0
      %1712 = vmatmul.mubr.bf16.gmra.mrb[0].mxu0 %v1190
      %v1713 = vpop.f32.mrb[0].mxu0
      %v1714 = vadd.f32 %v1425, %v1713
      %v1715 = vpop.f32.mrb[0].mxu0
      %v1716 = vpop.f32.mrb[0].mxu0
      %v1717 = vadd.f32 %v1428, %v1716
      %v1718 = vpop.f32.mrb[0].mxu0
      %1719 = vmatprep.mubr.bf16.mxu0 0
      %1720 = vmatmul.mubr.bf16.gmra.mrb[0].mxu0 %v1193
      %v1721 = vpop.f32.mrb[0].mxu0
      %v1722 = vadd.f32 %v1433, %v1721
      %v1723 = vpop.f32.mrb[0].mxu0
      %v1724 = vpop.f32.mrb[0].mxu0
      %v1725 = vadd.f32 %v1436, %v1724
      %v1726 = vpop.f32.mrb[0].mxu0
      %1727 = vmatprep.mubr.bf16.mxu0 0
      %1728 = vmatmul.mubr.bf16.gmra.mrb[0].mxu0 %v1196
      %v1729 = vpop.f32.mrb[0].mxu0
      %v1730 = vadd.f32 %v1441, %v1729
      %v1731 = vpop.f32.mrb[0].mxu0
      %v1732 = vpop.f32.mrb[0].mxu0
      %v1733 = vadd.f32 %v1444, %v1732
      %v1734 = vpop.f32.mrb[0].mxu0
      %1735 = vmatprep.mubr.bf16.mxu0 0
      %1736 = vmatmul.mubr.bf16.gmra.mrb[0].mxu0 %v1199
      %v1737 = vpop.f32.mrb[0].mxu0
      %v1738 = vadd.f32 %v1449, %v1737
      %v1739 = vpop.f32.mrb[0].mxu0
      %v1740 = vpop.f32.mrb[0].mxu0
      %v1741 = vadd.f32 %v1452, %v1740
      %v1742 = vpop.f32.mrb[0].mxu0
      %1743 = vmatprep.mubr.bf16.mxu0 0
      %1744 = vmatmul.mubr.bf16.gmra.mrb[0].mxu0 %v1202
      %v1745 = vpop.f32.mrb[0].mxu0
      %v1746 = vadd.f32 %v1457, %v1745
      %v1747 = vpop.f32.mrb[0].mxu0
      %v1748 = vpop.f32.mrb[0].mxu0
      %v1749 = vadd.f32 %v1460, %v1748
      %v1750 = vpop.f32.mrb[0].mxu0
      %1751 = vmatprep.mubr.bf16.mxu0 0
      %1752 = vmatmul.mubr.bf16.gmra.mrb[0].mxu0 %v1205
      %v1753 = vpop.f32.mrb[0].mxu0
      %v1754 = vadd.f32 %v1465, %v1753
      %v1755 = vpop.f32.mrb[0].mxu0
      %v1756 = vpop.f32.mrb[0].mxu0
      %v1757 = vadd.f32 %v1468, %v1756
      %v1758 = vpop.f32.mrb[0].mxu0
      %1759 = vmatprep.mubr.bf16.mxu0 0
      %1760 = vmatmul.mubr.bf16.gmra.mrb[0].mxu0 %v1208
      %v1761 = vpop.f32.mrb[0].mxu0
      %v1762 = vadd.f32 %v1473, %v1761
      %v1763 = vpop.f32.mrb[0].mxu0
      %v1764 = vpop.f32.mrb[0].mxu0
      %v1765 = vadd.f32 %v1476, %v1764
      %v1766 = vpop.f32.mrb[0].mxu0
      %1767 = vmatprep.mubr.bf16.mxu0 0
      %1768 = vmatmul.mubr.bf16.gmra.mrb[0].mxu0 %v1211
      %v1769 = vpop.f32.mrb[0].mxu0
      %v1770 = vadd.f32 %v1481, %v1769
      %v1771 = vpop.f32.mrb[0].mxu0
      %v1772 = vpop.f32.mrb[0].mxu0
      %v1773 = vadd.f32 %v1484, %v1772
      %v1774 = vpop.f32.mrb[0].mxu0
      %1775 = vmatprep.mubr.bf16.mxu0 0
      %1776 = vmatmul.mubr.bf16.gmra.mrb[0].mxu0 %v1214
      %v1777 = vpop.f32.mrb[0].mxu0
      %v1778 = vadd.f32 %v1489, %v1777
      %v1779 = vpop.f32.mrb[0].mxu0
      %v1780 = vpop.f32.mrb[0].mxu0
      %v1781 = vadd.f32 %v1492, %v1780
      %v1782 = vpop.f32.mrb[0].mxu0
      %1783 = vmatprep.mubr.bf16.mxu0 0
      %1784 = vmatmul.mubr.bf16.gmra.mrb[0].mxu0 %v1217
      %v1785 = vpop.f32.mrb[0].mxu0
      %v1786 = vadd.f32 %v1497, %v1785
      %v1787 = vpop.f32.mrb[0].mxu0
      %v1788 = vpop.f32.mrb[0].mxu0
      %v1789 = vadd.f32 %v1500, %v1788
      %v1790 = vpop.f32.mrb[0].mxu0
      %1791 = vmatprep.mubr.bf16.mxu0 0
      %1792 = vmatmul.mubr.bf16.gmra.mrb[0].mxu0 %v1220
      %v1793 = vpop.f32.mrb[0].mxu0
      %v1794 = vadd.f32 %v1505, %v1793
      %v1795 = vpop.f32.mrb[0].mxu0
      %v1796 = vpop.f32.mrb[0].mxu0
      %v1797 = vadd.f32 %v1508, %v1796
      %v1798 = vpop.f32.mrb[0].mxu0
      %1799 = vdwg.mxu0
      %v1800 = vadd.f32 %v293, %v1546
      %v1801 = vadd.f32 %v294, %v1549
      %v1802 = vadd.f32 %v295, %v1554
      %v1803 = vadd.f32 %v296, %v1557
      %v1804 = vadd.f32 %v297, %v1562
      %v1805 = vadd.f32 %v298, %v1565
      %v1806 = vadd.f32 %v299, %v1570
      %v1807 = vadd.f32 %v300, %v1573
      %v1808 = vadd.f32 %v301, %v1578
      %v1809 = vadd.f32 %v302, %v1581
      %v1810 = vadd.f32 %v303, %v1586
      %v1811 = vadd.f32 %v304, %v1589
      %v1812 = vadd.f32 %v305, %v1594
      %v1813 = vadd.f32 %v306, %v1597
      %v1814 = vadd.f32 %v307, %v1602
      %v1815 = vadd.f32 %v308, %v1605
      %v1816 = vadd.f32 %v309, %v1610
      %v1817 = vadd.f32 %v310, %v1613
      %v1818 = vadd.f32 %v311, %v1618
      %v1819 = vadd.f32 %v312, %v1621
      %v1820 = vadd.f32 %v313, %v1626
      %v1821 = vadd.f32 %v314, %v1629
      %v1822 = vadd.f32 %v315, %v1634
      %v1823 = vadd.f32 %v316, %v1637
      %v1824 = vadd.f32 %v317, %v1642
      %v1825 = vadd.f32 %v318, %v1645
      %v1826 = vadd.f32 %v319, %v1650
      %v1827 = vadd.f32 %v320, %v1653
      %v1828 = vadd.f32 %v321, %v1658
      %v1829 = vadd.f32 %v322, %v1661
      %v1830 = vadd.f32 %v323, %v1666
      %v1831 = vadd.f32 %v324, %v1669
      %v1832 = vadd.f32 %v325, %v1674
      %v1833 = vadd.f32 %v326, %v1677
      %v1834 = vadd.f32 %v327, %v1682
      %v1835 = vadd.f32 %v328, %v1685
      %v1836 = vadd.f32 %v329, %v1690
      %v1837 = vadd.f32 %v330, %v1693
      %v1838 = vadd.f32 %v331, %v1698
      %v1839 = vadd.f32 %v332, %v1701
      %v1840 = vadd.f32 %v333, %v1706
      %v1841 = vadd.f32 %v334, %v1709
      %v1842 = vadd.f32 %v335, %v1714
      %v1843 = vadd.f32 %v336, %v1717
      %v1844 = vadd.f32 %v337, %v1722
      %v1845 = vadd.f32 %v338, %v1725
      %v1846 = vadd.f32 %v339, %v1730
      %v1847 = vadd.f32 %v340, %v1733
      %v1848 = vadd.f32 %v341, %v1738
      %v1849 = vadd.f32 %v342, %v1741
      %v1850 = vadd.f32 %v343, %v1746
      %v1851 = vadd.f32 %v344, %v1749
      %v1852 = vadd.f32 %v345, %v1754
      %v1853 = vadd.f32 %v346, %v1757
      %v1854 = vadd.f32 %v347, %v1762
      %v1855 = vadd.f32 %v348, %v1765
      %v1856 = vadd.f32 %v349, %v1770
      %v1857 = vadd.f32 %v350, %v1773
      %v1858 = vadd.f32 %v351, %v1778
      %v1859 = vadd.f32 %v352, %v1781
      %v1860 = vadd.f32 %v353, %v1786
      %v1861 = vadd.f32 %v354, %v1789
      %v1862 = vadd.f32 %v355, %v1794
      %v1863 = vadd.f32 %v356, %v1797
      %vm1864 = vcmask 64512
      %1865 = vst.msk [vmem:[%s221] sm:$0xff] %vm1864, %v1800
      %1866 = vst.msk [vmem:[%s221 + $0x8] sm:$0xff] %vm1864, %v1801
      %1867 = vst.msk [vmem:[%s221 + $0x10] sm:$0xff] %vm1864, %v1802
      %1868 = vst.msk [vmem:[%s221 + $0x18] sm:$0xff] %vm1864, %v1803
      %1869 = vst.msk [vmem:[%s221 + $0x20] sm:$0xff] %vm1864, %v1804
      %1870 = vst.msk [vmem:[%s221 + $0x28] sm:$0xff] %vm1864, %v1805
      %1871 = vst.msk [vmem:[%s221 + $0x30] sm:$0xff] %vm1864, %v1806
      %1872 = vst.msk [vmem:[%s221 + $0x38] sm:$0xff] %vm1864, %v1807
      %1873 = vst.msk [vmem:[%s221 + $0x40] sm:$0xff] %vm1864, %v1808
      %1874 = vst.msk [vmem:[%s221 + $0x48] sm:$0xff] %vm1864, %v1809
      %1875 = vst.msk [vmem:[%s221 + $0x50] sm:$0xff] %vm1864, %v1810
      %1876 = vst.msk [vmem:[%s221 + $0x58] sm:$0xff] %vm1864, %v1811
      %1877 = vst.msk [vmem:[%s221 + $0x60] sm:$0xff] %vm1864, %v1812
      %1878 = vst.msk [vmem:[%s221 + $0x68] sm:$0xff] %vm1864, %v1813
      %1879 = vst.msk [vmem:[%s221 + $0x70] sm:$0xff] %vm1864, %v1814
      %1880 = vst.msk [vmem:[%s221 + $0x78] sm:$0xff] %vm1864, %v1815
      %1881 = vst.msk [vmem:[%s221 + $0x80] sm:$0xff] %vm1864, %v1816
      %1882 = vst.msk [vmem:[%s221 + $0x88] sm:$0xff] %vm1864, %v1817
      %1883 = vst.msk [vmem:[%s221 + $0x90] sm:$0xff] %vm1864, %v1818
      %1884 = vst.msk [vmem:[%s221 + $0x98] sm:$0xff] %vm1864, %v1819
      %1885 = vst.msk [vmem:[%s221 + $0xa0] sm:$0xff] %vm1864, %v1820
      %1886 = vst.msk [vmem:[%s221 + $0xa8] sm:$0xff] %vm1864, %v1821
      %1887 = vst.msk [vmem:[%s221 + $0xb0] sm:$0xff] %vm1864, %v1822
      %1888 = vst.msk [vmem:[%s221 + $0xb8] sm:$0xff] %vm1864, %v1823
      %1889 = vst.msk [vmem:[%s221 + $0xc0] sm:$0xff] %vm1864, %v1824
      %1890 = vst.msk [vmem:[%s221 + $0xc8] sm:$0xff] %vm1864, %v1825
      %1891 = vst.msk [vmem:[%s221 + $0xd0] sm:$0xff] %vm1864, %v1826
      %1892 = vst.msk [vmem:[%s221 + $0xd8] sm:$0xff] %vm1864, %v1827
      %1893 = vst.msk [vmem:[%s221 + $0xe0] sm:$0xff] %vm1864, %v1828
      %1894 = vst.msk [vmem:[%s221 + $0xe8] sm:$0xff] %vm1864, %v1829
      %1895 = vst.msk [vmem:[%s221 + $0xf0] sm:$0xff] %vm1864, %v1830
      %1896 = vst.msk [vmem:[%s221 + $0xf8] sm:$0xff] %vm1864, %v1831
      %1897 = vst.msk [vmem:[%s221 + $0x100] sm:$0xff] %vm1864, %v1832
      %1898 = vst.msk [vmem:[%s221 + $0x108] sm:$0xff] %vm1864, %v1833
      %1899 = vst.msk [vmem:[%s221 + $0x110] sm:$0xff] %vm1864, %v1834
      %1900 = vst.msk [vmem:[%s221 + $0x118] sm:$0xff] %vm1864, %v1835
      %1901 = vst.msk [vmem:[%s221 + $0x120] sm:$0xff] %vm1864, %v1836
      %1902 = vst.msk [vmem:[%s221 + $0x128] sm:$0xff] %vm1864, %v1837
      %1903 = vst.msk [vmem:[%s221 + $0x130] sm:$0xff] %vm1864, %v1838
      %1904 = vst.msk [vmem:[%s221 + $0x138] sm:$0xff] %vm1864, %v1839
      %1905 = vst.msk [vmem:[%s221 + $0x140] sm:$0xff] %vm1864, %v1840
      %1906 = vst.msk [vmem:[%s221 + $0x148] sm:$0xff] %vm1864, %v1841
      %1907 = vst.msk [vmem:[%s221 + $0x150] sm:$0xff] %vm1864, %v1842
      %1908 = vst.msk [vmem:[%s221 + $0x158] sm:$0xff] %vm1864, %v1843
      %1909 = vst.msk [vmem:[%s221 + $0x160] sm:$0xff] %vm1864, %v1844
      %1910 = vst.msk [vmem:[%s221 + $0x168] sm:$0xff] %vm1864, %v1845
      %1911 = vst.msk [vmem:[%s221 + $0x170] sm:$0xff] %vm1864, %v1846
      %1912 = vst.msk [vmem:[%s221 + $0x178] sm:$0xff] %vm1864, %v1847
      %1913 = vst.msk [vmem:[%s221 + $0x180] sm:$0xff] %vm1864, %v1848
      %1914 = vst.msk [vmem:[%s221 + $0x188] sm:$0xff] %vm1864, %v1849
      %1915 = vst.msk [vmem:[%s221 + $0x190] sm:$0xff] %vm1864, %v1850
      %1916 = vst.msk [vmem:[%s221 + $0x198] sm:$0xff] %vm1864, %v1851
      %1917 = vst.msk [vmem:[%s221 + $0x1a0] sm:$0xff] %vm1864, %v1852
      %1918 = vst.msk [vmem:[%s221 + $0x1a8] sm:$0xff] %vm1864, %v1853
      %1919 = vst.msk [vmem:[%s221 + $0x1b0] sm:$0xff] %vm1864, %v1854
      %1920 = vst.msk [vmem:[%s221 + $0x1b8] sm:$0xff] %vm1864, %v1855
      %1921 = vst.msk [vmem:[%s221 + $0x1c0] sm:$0xff] %vm1864, %v1856
      %1922 = vst.msk [vmem:[%s221 + $0x1c8] sm:$0xff] %vm1864, %v1857
      %1923 = vst.msk [vmem:[%s221 + $0x1d0] sm:$0xff] %vm1864, %v1858
      %1924 = vst.msk [vmem:[%s221 + $0x1d8] sm:$0xff] %vm1864, %v1859
      %1925 = vst.msk [vmem:[%s221 + $0x1e0] sm:$0xff] %vm1864, %v1860
      %1926 = vst.msk [vmem:[%s221 + $0x1e8] sm:$0xff] %vm1864, %v1861
      %1927 = vst.msk [vmem:[%s221 + $0x1f0] sm:$0xff] %vm1864, %v1862
      %1928 = vst.msk [vmem:[%s221 + $0x1f8] sm:$0xff] %vm1864, %v1863
      %p1929 = scmp.eq.s32.totalorder %s19, 8
      // Predicated region
      $region37: #{edge_model_forward.5} parent=31 // pred_check
        %p1930 = pneg %p1929
      $region38: #{edge_model_forward.5} parent=31 // pred_check_branch
        %1932 = sbr.rel (%p1930) target = $region40
      $region39: #{edge_model_forward.5} parent=31 // pred_region
        %v1933 = vld [vmem:[%s221] sm:$0xff]
        %v1934 = vld [vmem:[%s221 + $0x8] sm:$0xff]
        %v1935 = vld [vmem:[%s221 + $0x10] sm:$0xff]
        %v1936 = vld [vmem:[%s221 + $0x18] sm:$0xff]
        %v1937 = vld [vmem:[%s221 + $0x20] sm:$0xff]
        %v1938 = vld [vmem:[%s221 + $0x28] sm:$0xff]
        %v1939 = vld [vmem:[%s221 + $0x30] sm:$0xff]
        %v1940 = vld [vmem:[%s221 + $0x38] sm:$0xff]
        %v1941 = vld [vmem:[%s221 + $0x40] sm:$0xff]
        %v1942 = vld [vmem:[%s221 + $0x48] sm:$0xff]
        %v1943 = vld [vmem:[%s221 + $0x50] sm:$0xff]
        %v1944 = vld [vmem:[%s221 + $0x58] sm:$0xff]
        %v1945 = vld [vmem:[%s221 + $0x60] sm:$0xff]
        %v1946 = vld [vmem:[%s221 + $0x68] sm:$0xff]
        %v1947 = vld [vmem:[%s221 + $0x70] sm:$0xff]
        %v1948 = vld [vmem:[%s221 + $0x78] sm:$0xff]
        %v1949 = vld [vmem:[%s221 + $0x80] sm:$0xff]
        %v1950 = vld [vmem:[%s221 + $0x88] sm:$0xff]
        %v1951 = vld [vmem:[%s221 + $0x90] sm:$0xff]
        %v1952 = vld [vmem:[%s221 + $0x98] sm:$0xff]
        %v1953 = vld [vmem:[%s221 + $0xa0] sm:$0xff]
        %v1954 = vld [vmem:[%s221 + $0xa8] sm:$0xff]
        %v1955 = vld [vmem:[%s221 + $0xb0] sm:$0xff]
        %v1956 = vld [vmem:[%s221 + $0xb8] sm:$0xff]
        %v1957 = vld [vmem:[%s221 + $0xc0] sm:$0xff]
        %v1958 = vld [vmem:[%s221 + $0xc8] sm:$0xff]
        %v1959 = vld [vmem:[%s221 + $0xd0] sm:$0xff]
        %v1960 = vld [vmem:[%s221 + $0xd8] sm:$0xff]
        %v1961 = vld [vmem:[%s221 + $0xe0] sm:$0xff]
        %v1962 = vld [vmem:[%s221 + $0xe8] sm:$0xff]
        %v1963 = vld [vmem:[%s221 + $0xf0] sm:$0xff]
        %v1964 = vld [vmem:[%s221 + $0xf8] sm:$0xff]
        %v1965 = vld [vmem:[%s221 + $0x100] sm:$0xff]
        %v1966 = vld [vmem:[%s221 + $0x108] sm:$0xff]
        %v1967 = vld [vmem:[%s221 + $0x110] sm:$0xff]
        %v1968 = vld [vmem:[%s221 + $0x118] sm:$0xff]
        %v1969 = vld [vmem:[%s221 + $0x120] sm:$0xff]
        %v1970 = vld [vmem:[%s221 + $0x128] sm:$0xff]
        %v1971 = vld [vmem:[%s221 + $0x130] sm:$0xff]
        %v1972 = vld [vmem:[%s221 + $0x138] sm:$0xff]
        %v1973 = vld [vmem:[%s221 + $0x140] sm:$0xff]
        %v1974 = vld [vmem:[%s221 + $0x148] sm:$0xff]
        %v1975 = vld [vmem:[%s221 + $0x150] sm:$0xff]
        %v1976 = vld [vmem:[%s221 + $0x158] sm:$0xff]
        %v1977 = vld [vmem:[%s221 + $0x160] sm:$0xff]
        %v1978 = vld [vmem:[%s221 + $0x168] sm:$0xff]
        %v1979 = vld [vmem:[%s221 + $0x170] sm:$0xff]
        %v1980 = vld [vmem:[%s221 + $0x178] sm:$0xff]
        %v1981 = vld [vmem:[%s221 + $0x180] sm:$0xff]
        %v1982 = vld [vmem:[%s221 + $0x188] sm:$0xff]
        %v1983 = vld [vmem:[%s221 + $0x190] sm:$0xff]
        %v1984 = vld [vmem:[%s221 + $0x198] sm:$0xff]
        %v1985 = vld [vmem:[%s221 + $0x1a0] sm:$0xff]
        %v1986 = vld [vmem:[%s221 + $0x1a8] sm:$0xff]
        %v1987 = vld [vmem:[%s221 + $0x1b0] sm:$0xff]
        %v1988 = vld [vmem:[%s221 + $0x1b8] sm:$0xff]
        %v1989 = vld [vmem:[%s221 + $0x1c0] sm:$0xff]
        %v1990 = vld [vmem:[%s221 + $0x1c8] sm:$0xff]
        %v1991 = vld [vmem:[%s221 + $0x1d0] sm:$0xff]
        %v1992 = vld [vmem:[%s221 + $0x1d8] sm:$0xff]
        %v1993 = vld [vmem:[%s221 + $0x1e0] sm:$0xff]
        %v1994 = vld [vmem:[%s221 + $0x1e8] sm:$0xff]
        %v1995 = vld [vmem:[%s221 + $0x1f0] sm:$0xff]
        %v1996 = vld [vmem:[%s221 + $0x1f8] sm:$0xff]
        %v1997 = vld [vmem:[%s2] sm:$0x1]
        %v1999 = vlaneseq
        %v2000 = vshrl.u32 %v1999, 7
        %v2001 = vsub.s32 0, %v2000
        %v2002 = vrot.slane %v1997, %v2001
        %v2004 = vadd.f32 %v1933, %v2002
        %v2005 = vadd.f32 %v1934, %v2002
        %v2006 = vadd.f32 %v1935, %v2002
        %v2007 = vadd.f32 %v1936, %v2002
        %v2008 = vadd.f32 %v1937, %v2002
        %v2009 = vadd.f32 %v1938, %v2002
        %v2010 = vadd.f32 %v1939, %v2002
        %v2011 = vadd.f32 %v1940, %v2002
        %v2012 = vadd.f32 %v1941, %v2002
        %v2013 = vadd.f32 %v1942, %v2002
        %v2014 = vadd.f32 %v1943, %v2002
        %v2015 = vadd.f32 %v1944, %v2002
        %v2016 = vadd.f32 %v1945, %v2002
        %v2017 = vadd.f32 %v1946, %v2002
        %v2018 = vadd.f32 %v1947, %v2002
        %v2019 = vadd.f32 %v1948, %v2002
        %v2020 = vadd.f32 %v1949, %v2002
        %v2021 = vadd.f32 %v1950, %v2002
        %v2022 = vadd.f32 %v1951, %v2002
        %v2023 = vadd.f32 %v1952, %v2002
        %v2024 = vadd.f32 %v1953, %v2002
        %v2025 = vadd.f32 %v1954, %v2002
        %v2026 = vadd.f32 %v1955, %v2002
        %v2027 = vadd.f32 %v1956, %v2002
        %v2028 = vadd.f32 %v1957, %v2002
        %v2029 = vadd.f32 %v1958, %v2002
        %v2030 = vadd.f32 %v1959, %v2002
        %v2031 = vadd.f32 %v1960, %v2002
        %v2032 = vadd.f32 %v1961, %v2002
        %v2033 = vadd.f32 %v1962, %v2002
        %v2034 = vadd.f32 %v1963, %v2002
        %v2035 = vadd.f32 %v1964, %v2002
        %v2036 = vadd.f32 %v1965, %v2002
        %v2037 = vadd.f32 %v1966, %v2002
        %v2038 = vadd.f32 %v1967, %v2002
        %v2039 = vadd.f32 %v1968, %v2002
        %v2040 = vadd.f32 %v1969, %v2002
        %v2041 = vadd.f32 %v1970, %v2002
        %v2042 = vadd.f32 %v1971, %v2002
        %v2043 = vadd.f32 %v1972, %v2002
        %v2044 = vadd.f32 %v1973, %v2002
        %v2045 = vadd.f32 %v1974, %v2002
        %v2046 = vadd.f32 %v1975, %v2002
        %v2047 = vadd.f32 %v1976, %v2002
        %v2048 = vadd.f32 %v1977, %v2002
        %v2049 = vadd.f32 %v1978, %v2002
        %v2050 = vadd.f32 %v1979, %v2002
        %v2051 = vadd.f32 %v1980, %v2002
        %v2052 = vadd.f32 %v1981, %v2002
        %v2053 = vadd.f32 %v1982, %v2002
        %v2054 = vadd.f32 %v1983, %v2002
        %v2055 = vadd.f32 %v1984, %v2002
        %v2056 = vadd.f32 %v1985, %v2002
        %v2057 = vadd.f32 %v1986, %v2002
        %v2058 = vadd.f32 %v1987, %v2002
        %v2059 = vadd.f32 %v1988, %v2002
        %v2060 = vadd.f32 %v1989, %v2002
        %v2061 = vadd.f32 %v1990, %v2002
        %v2062 = vadd.f32 %v1991, %v2002
        %v2063 = vadd.f32 %v1992, %v2002
        %v2064 = vadd.f32 %v1993, %v2002
        %v2065 = vadd.f32 %v1994, %v2002
        %v2066 = vadd.f32 %v1995, %v2002
        %v2067 = vadd.f32 %v1996, %v2002
        %2068 = vst.msk [vmem:[%s221] sm:$0xff] %vm1864, %v2004
        %2069 = vst.msk [vmem:[%s221 + $0x8] sm:$0xff] %vm1864, %v2005
        %2070 = vst.msk [vmem:[%s221 + $0x10] sm:$0xff] %vm1864, %v2006
        %2071 = vst.msk [vmem:[%s221 + $0x18] sm:$0xff] %vm1864, %v2007
        %2072 = vst.msk [vmem:[%s221 + $0x20] sm:$0xff] %vm1864, %v2008
        %2073 = vst.msk [vmem:[%s221 + $0x28] sm:$0xff] %vm1864, %v2009
        %2074 = vst.msk [vmem:[%s221 + $0x30] sm:$0xff] %vm1864, %v2010
        %2075 = vst.msk [vmem:[%s221 + $0x38] sm:$0xff] %vm1864, %v2011
        %2076 = vst.msk [vmem:[%s221 + $0x40] sm:$0xff] %vm1864, %v2012
        %2077 = vst.msk [vmem:[%s221 + $0x48] sm:$0xff] %vm1864, %v2013
        %2078 = vst.msk [vmem:[%s221 + $0x50] sm:$0xff] %vm1864, %v2014
        %2079 = vst.msk [vmem:[%s221 + $0x58] sm:$0xff] %vm1864, %v2015
        %2080 = vst.msk [vmem:[%s221 + $0x60] sm:$0xff] %vm1864, %v2016
        %2081 = vst.msk [vmem:[%s221 + $0x68] sm:$0xff] %vm1864, %v2017
        %2082 = vst.msk [vmem:[%s221 + $0x70] sm:$0xff] %vm1864, %v2018
        %2083 = vst.msk [vmem:[%s221 + $0x78] sm:$0xff] %vm1864, %v2019
        %2084 = vst.msk [vmem:[%s221 + $0x80] sm:$0xff] %vm1864, %v2020
        %2085 = vst.msk [vmem:[%s221 + $0x88] sm:$0xff] %vm1864, %v2021
        %2086 = vst.msk [vmem:[%s221 + $0x90] sm:$0xff] %vm1864, %v2022
        %2087 = vst.msk [vmem:[%s221 + $0x98] sm:$0xff] %vm1864, %v2023
        %2088 = vst.msk [vmem:[%s221 + $0xa0] sm:$0xff] %vm1864, %v2024
        %2089 = vst.msk [vmem:[%s221 + $0xa8] sm:$0xff] %vm1864, %v2025
        %2090 = vst.msk [vmem:[%s221 + $0xb0] sm:$0xff] %vm1864, %v2026
        %2091 = vst.msk [vmem:[%s221 + $0xb8] sm:$0xff] %vm1864, %v2027
        %2092 = vst.msk [vmem:[%s221 + $0xc0] sm:$0xff] %vm1864, %v2028
        %2093 = vst.msk [vmem:[%s221 + $0xc8] sm:$0xff] %vm1864, %v2029
        %2094 = vst.msk [vmem:[%s221 + $0xd0] sm:$0xff] %vm1864, %v2030
        %2095 = vst.msk [vmem:[%s221 + $0xd8] sm:$0xff] %vm1864, %v2031
        %2096 = vst.msk [vmem:[%s221 + $0xe0] sm:$0xff] %vm1864, %v2032
        %2097 = vst.msk [vmem:[%s221 + $0xe8] sm:$0xff] %vm1864, %v2033
        %2098 = vst.msk [vmem:[%s221 + $0xf0] sm:$0xff] %vm1864, %v2034
        %2099 = vst.msk [vmem:[%s221 + $0xf8] sm:$0xff] %vm1864, %v2035
        %2100 = vst.msk [vmem:[%s221 + $0x100] sm:$0xff] %vm1864, %v2036
        %2101 = vst.msk [vmem:[%s221 + $0x108] sm:$0xff] %vm1864, %v2037
        %2102 = vst.msk [vmem:[%s221 + $0x110] sm:$0xff] %vm1864, %v2038
        %2103 = vst.msk [vmem:[%s221 + $0x118] sm:$0xff] %vm1864, %v2039
        %2104 = vst.msk [vmem:[%s221 + $0x120] sm:$0xff] %vm1864, %v2040
        %2105 = vst.msk [vmem:[%s221 + $0x128] sm:$0xff] %vm1864, %v2041
        %2106 = vst.msk [vmem:[%s221 + $0x130] sm:$0xff] %vm1864, %v2042
        %2107 = vst.msk [vmem:[%s221 + $0x138] sm:$0xff] %vm1864, %v2043
        %2108 = vst.msk [vmem:[%s221 + $0x140] sm:$0xff] %vm1864, %v2044
        %2109 = vst.msk [vmem:[%s221 + $0x148] sm:$0xff] %vm1864, %v2045
        %2110 = vst.msk [vmem:[%s221 + $0x150] sm:$0xff] %vm1864, %v2046
        %2111 = vst.msk [vmem:[%s221 + $0x158] sm:$0xff] %vm1864, %v2047
        %2112 = vst.msk [vmem:[%s221 + $0x160] sm:$0xff] %vm1864, %v2048
        %2113 = vst.msk [vmem:[%s221 + $0x168] sm:$0xff] %vm1864, %v2049
        %2114 = vst.msk [vmem:[%s221 + $0x170] sm:$0xff] %vm1864, %v2050
        %2115 = vst.msk [vmem:[%s221 + $0x178] sm:$0xff] %vm1864, %v2051
        %2116 = vst.msk [vmem:[%s221 + $0x180] sm:$0xff] %vm1864, %v2052
        %2117 = vst.msk [vmem:[%s221 + $0x188] sm:$0xff] %vm1864, %v2053
        %2118 = vst.msk [vmem:[%s221 + $0x190] sm:$0xff] %vm1864, %v2054
        %2119 = vst.msk [vmem:[%s221 + $0x198] sm:$0xff] %vm1864, %v2055
        %2120 = vst.msk [vmem:[%s221 + $0x1a0] sm:$0xff] %vm1864, %v2056
        %2121 = vst.msk [vmem:[%s221 + $0x1a8] sm:$0xff] %vm1864, %v2057
        %2122 = vst.msk [vmem:[%s221 + $0x1b0] sm:$0xff] %vm1864, %v2058
        %2123 = vst.msk [vmem:[%s221 + $0x1b8] sm:$0xff] %vm1864, %v2059
        %2124 = vst.msk [vmem:[%s221 + $0x1c0] sm:$0xff] %vm1864, %v2060
        %2125 = vst.msk [vmem:[%s221 + $0x1c8] sm:$0xff] %vm1864, %v2061
        %2126 = vst.msk [vmem:[%s221 + $0x1d0] sm:$0xff] %vm1864, %v2062
        %2127 = vst.msk [vmem:[%s221 + $0x1d8] sm:$0xff] %vm1864, %v2063
        %2128 = vst.msk [vmem:[%s221 + $0x1e0] sm:$0xff] %vm1864, %v2064
        %2129 = vst.msk [vmem:[%s221 + $0x1e8] sm:$0xff] %vm1864, %v2065
        %2130 = vst.msk [vmem:[%s221 + $0x1f0] sm:$0xff] %vm1864, %v2066
        %2131 = vst.msk [vmem:[%s221 + $0x1f8] sm:$0xff] %vm1864, %v2067
      $region40: #{edge_model_forward.5} parent=31 // pred_fallthru
        _
      %s2132 = smul.u32 64, %s18
      %p2133 = scmp.lt.s32.totalorder %s2132, 63
      %s2134 = scalar_select %p2133, %s2132, 63
      %s2135 = smul.addr %s2134, 8
      %s2136 = scalar_lea.vmem %s3, %s2135
      // Predicated region
      $region41: #{edge_model_forward.5} parent=31 // pred_check
        %p2137 = pneg %p119
      $region42: #{edge_model_forward.5} parent=31 // pred_check_branch
        %2139 = sbr.rel (%p2137) target = $region44
      $region43: #{edge_model_forward.5} parent=31 // pred_region
        %s2140 = smul.u32 64, %s18
      $region44: #{edge_model_forward.5} parent=31 // pred_fallthru
        _
      // Predicated region
      $region45: #{edge_model_forward.5} parent=31 // pred_check
        %p2141 = pneg %p119
      $region46: #{edge_model_forward.5} parent=31 // pred_check_branch
        %2143 = sbr.rel (%p2141) target = $region48
      $region47: #{edge_model_forward.5} parent=31 // pred_region
        %s2144 = smul.u32 64, %s18
        %p2145 = scmp.lt.s32.totalorder %s2144, 63
        %s2146 = scalar_select %p2145, %s2144, 63
        %s2147 = smul.addr %s2146, 8
        %s2148 = scalar_lea.vmem %s3, %s2147
      $region48: #{edge_model_forward.5} parent=31 // pred_fallthru
        _
    $region32: #{edge_model_forward.5} parent=5 // pred_fallthru
      _
    %p2149 = scmp.le.s32.totalorder 2, %s9
    // Predicated region
    $region49: #{edge_model_forward.5} parent=5 // pred_check
      %p2150 = pneg %p2149
    $region50: #{edge_model_forward.5} parent=5 // pred_check_branch
      %2152 = sbr.rel (%p2150) target = $region52
    $region51: #{edge_model_forward.5} parent=5 // pred_region
      %s2153 = ssub.s32 %s9, 2
    $region52: #{edge_model_forward.5} parent=5 // pred_fallthru
      _
  $region6: #{edge_model_forward.5} parent=0 // loop_footer
    %s13 = sadd.s32 1, %s9
  $region7: #{edge_model_forward.5} parent=0 // loop_footer_branch
    %8 = sbr.rel target = $region3
  $region8: #{edge_model_forward.5} parent=0 // loop_exit
    _

</llo_original>
